<compile_context>
chip_gen: v5e
topology: v5e:2x2
jax: 0.10.0
libtpu: 0.0.40
codegen_flags: <defaults>
</compile_context>

<pallas_src>
import jax
import jax.numpy as jnp
from jax.experimental import pallas as pl
from jax.experimental.pallas import tpu as pltpu

D = 512        # gru_dim (fixed by the module)
H = 256        # per-group output channels (groups=2)
TL_MAX = 512   # max length tile (lane-dense; ~85% of HBM roofline per tile sweeps)


def gru_kernel(h_ref, s_ref, wh_ref, ws_ref, wq_ref, b_ref, out_ref):
    h = h_ref[0]                                   # (512, TL) input dtype
    s = s_ref[0]                                   # (512, TL)
    h16 = h.astype(jnp.bfloat16)                   # MXU operands
    s16 = s.astype(jnp.bfloat16)
    hf = h.astype(jnp.float32)                     # f32 gate math

    # Packed bias: [bz[:H], br[:H] | bz[H:], br[H:], bq[H:] | bq[:H]]
    b_h = b_ref[0:2 * H]                           # (512, 1)
    b_s = b_ref[2 * H:5 * H]                       # (768, 1)
    b_q = b_ref[5 * H:6 * H]                       # (256, 1)

    # h-path rows: [0:256]=z_h, [256:512]=r_h
    # s-path rows: [0:256]=z_s, [256:512]=r_s, [512:768]=q_s
    hp = jnp.dot(wh_ref[...], h16, preferred_element_type=jnp.float32) + b_h
    sp = jnp.dot(ws_ref[...], s16, preferred_element_type=jnp.float32) + b_s

    def sigmoid(x):
        # exp -> EUP, approx reciprocal -> EUP; no f32 divide chain on the VALU.
        return pl.reciprocal(1.0 + jnp.exp(-x), approx=True)

    z0 = sigmoid(hp[:H])
    r0 = sigmoid(hp[H:])
    z1 = sigmoid(sp[:H])
    r1 = sigmoid(sp[H:2 * H])

    h0 = hf[:H]
    h1 = hf[H:]
    # Full (512, TL) r*h -> single K=512 matmul for the q gate (fused q-path).
    rh = jnp.concatenate([r0 * h0, r1 * h1], axis=0).astype(jnp.bfloat16)
    q0 = jnp.tanh(jnp.dot(wq_ref[...], rh, preferred_element_type=jnp.float32) + b_q)
    q1 = jnp.tanh(sp[2 * H:])                      # bq[H:] already folded into sp

    out_ref[0, :H, :] = ((1.0 - z0) * h0 + z0 * q0).astype(out_ref.dtype)
    out_ref[0, H:, :] = ((1.0 - z1) * h1 + z1 * q1).astype(out_ref.dtype)


def pack_params(params):
    """One-time weight packing (slice/concat/cast) — kept out of the forward."""
    wz, bz, wr, br, wq, bq = params
    wz = wz[:, :, 0]                               # (512, 512)
    wr = wr[:, :, 0]
    wq = wq[:, :, 0]
    # groups=2: output rows [0:256] read h (or r*h), rows [256:512] read s.
    w_h = jnp.concatenate([wz[:H], wr[:H]], axis=0).astype(jnp.bfloat16)           # (512, 512)
    w_s = jnp.concatenate([wz[H:], wr[H:], wq[H:]], axis=0).astype(jnp.bfloat16)   # (768, 512)
    w_q = wq[:H].astype(jnp.bfloat16)                                              # (256, 512)
    bias = jnp.concatenate([bz[:H], br[:H],         # h-path (z0, r0)
                            bz[H:], br[H:], bq[H:],  # s-path (z1, r1, q1 pre-act)
                            bq[:H]])                 # q0
    bias = bias.reshape(6 * H, 1).astype(jnp.float32)
    return w_h, w_s, w_q, bias


def gru_forward(h, s, packed):
    """h, s: (B, 512, L) in f32 or bf16 (bf16 recommended on v6e/v7x).
    Output has the same dtype as h."""
    w_h, w_s, w_q, bias = packed
    B, d, L = h.shape
    assert d == D, d
    assert s.shape == h.shape
    out_dtype = h.dtype

    # Pad L to a multiple of 128 (lane width); pick the largest tile <= TL_MAX
    # dividing it, then shrink while the grid is too small to feed 2 TCs (v7x).
    L_pad = ((L + 127) // 128) * 128
    tl = TL_MAX
    while L_pad % tl != 0:
        tl //= 2
    while tl > 128 and B * (L_pad // tl) < 8:
        tl //= 2
    if L_pad != L:
        pad = ((0, 0), (0, 0), (0, L_pad - L))
        h = jnp.pad(h, pad)
        s = jnp.pad(s, pad)

    grid = (B, L_pad // tl)
    act_in_spec = pl.BlockSpec((1, D, tl), lambda b, l: (b, 0, l))
    out_spec = pl.BlockSpec((1, D, tl), lambda b, l: (b, 0, l))

    def const(shape):
        return pl.BlockSpec(shape, lambda b, l: (0, 0))

    n_weight = (2 * H + 3 * H + H) * D             # 786432 packed weight elems
    act_bytes = B * D * L_pad * jnp.dtype(h.dtype).itemsize
    out_bytes = B * D * L_pad * jnp.dtype(out_dtype).itemsize
    cost = pl.CostEstimate(
        flops=2 * n_weight * B * L_pad,
        transcendentals=6 * H * B * L_pad,
        bytes_accessed=n_weight * 2 + 6 * H * 4 + 2 * act_bytes + out_bytes,
    )

    out = pl.pallas_call(
        gru_kernel,
        out_shape=jax.ShapeDtypeStruct((B, D, L_pad), out_dtype),
        grid=grid,
        in_specs=[
            act_in_spec, act_in_spec,
            const((2 * H, D)),        # w_h
            const((3 * H, D)),        # w_s
            const((H, D)),            # w_q (fused q-path)
            const((6 * H, 1)),        # packed biases
        ],
        out_specs=out_spec,
        compiler_params=pltpu.CompilerParams(
            dimension_semantics=("parallel", "parallel"),
            vmem_limit_bytes=32 * 1024 * 1024),
        cost_estimate=cost,
    )(h, s, w_h, w_s, w_q, bias)

    if L_pad != L:
        out = out[:, :, :L]
    return out


def init_params(key):
    """PyTorch Conv1d(1024, 512, 1, groups=2) default init: U(-1/sqrt(fan_in), ...)."""
    ks = jax.random.split(key, 6)
    bound = 1.0 / float(D) ** 0.5                  # fan_in = in_ch/groups * k = 512

    def u(k, shape):
        return jax.random.uniform(k, shape, jnp.float32, -bound, bound)

    wz = u(ks[0], (D, D, 1)); bz = u(ks[1], (D,))
    wr = u(ks[2], (D, D, 1)); br = u(ks[3], (D,))
    wq = u(ks[4], (D, D, 1)); bq = u(ks[5], (D,))
    return wz, bz, wr, br, wq, bq


def reference_forward(h, s, params):
    """Pure-JAX mirror of the PyTorch forward (NCL, grouped 1x1 convs, f32)."""
    wz, bz, wr, br, wq, bq = params

    def gconv(x, w, b):
        # Conv1d(2D, D, 1, groups=2): x (B, 2D, L), w (D, D, 1), b (D,)
        x0, x1 = x[:, :D], x[:, D:]
        y0 = jnp.einsum('oi,bil->bol', w[:H, :, 0], x0) + b[:H][None, :, None]
        y1 = jnp.einsum('oi,bil->bol', w[H:, :, 0], x1) + b[H:][None, :, None]
        return jnp.concatenate([y0, y1], axis=1)

    hs = jnp.concatenate([h, s], axis=1)
    z = jax.nn.sigmoid(gconv(hs, wz, bz))
    r = jax.nn.sigmoid(gconv(hs, wr, br))
    q = jnp.tanh(gconv(jnp.concatenate([r * h, s], axis=1), wq, bq))
    return (1.0 - z) * h + z * q


if __name__ == "__main__":
    key = jax.random.PRNGKey(0)
    kp, kh, ksd = jax.random.split(key, 3)
    params = init_params(kp)
    packed = pack_params(params)                   # one-time packing, not per forward

    # gru_dim=512 is fixed by the module; L=200 exercises the pad-to-128 path.
    B, L = 2, 200
    h32 = jax.random.normal(kh, (B, D, L), jnp.float32)
    s32 = jax.random.normal(ksd, (B, D, L), jnp.float32)
    # bf16 activations at the HBM boundary (perf feedback for v6e/v7x).
    h = h32.astype(jnp.bfloat16)
    s = s32.astype(jnp.bfloat16)

    out = jax.block_until_ready(gru_forward(h, s, packed))
    assert out.shape == (B, D, L), out.shape
    assert out.dtype == jnp.bfloat16, out.dtype

    # Reference in f32 from the same bf16-rounded inputs (mirrors PyTorch math).
    ref = reference_forward(h.astype(jnp.float32), s.astype(jnp.float32), params)
    err = float(jnp.max(jnp.abs(out.astype(jnp.float32) - ref)))
    # bf16 weights + bf16 output rounding vs pure-f32 reference -> relaxed tol.
    if err > 1e-1:
        raise AssertionError(f"mismatch vs reference: max abs err = {err}")
    print("KERNEL_OK")
</pallas_src>

<mosaic_0001>
module attributes {stable_mosaic.version = 11 : i64} {
  func.func @gru_kernel(%arg0: i32, %arg1: i32, %arg2: memref<1x512x128xbf16, #tpu.memory_space<vmem>>, %arg3: memref<1x512x128xbf16, #tpu.memory_space<vmem>>, %arg4: memref<512x512xbf16, #tpu.memory_space<vmem>>, %arg5: memref<768x512xbf16, #tpu.memory_space<vmem>>, %arg6: memref<256x512xbf16, #tpu.memory_space<vmem>>, %arg7: memref<1536x1xf32, #tpu.memory_space<vmem>>, %arg8: memref<1x512x128xbf16, #tpu.memory_space<vmem>>) attributes {dimension_semantics = [#tpu.dimension_semantics<parallel>, #tpu.dimension_semantics<parallel>], iteration_bounds = array<i64: 2, 2>, scalar_prefetch = 0 : i64, scratch_operands = 0 : i64, tpu.core_type = #tpu.core_type<tc>, window_params = [{transform_indices = @transform_0, window_bounds = array<i64: 1, 512, 128>}, {transform_indices = @transform_1, window_bounds = array<i64: 1, 512, 128>}, {pipeline_mode = #tpu.pipeline_mode<synchronous>, transform_indices = @transform_2, window_bounds = array<i64: 512, 512>}, {pipeline_mode = #tpu.pipeline_mode<synchronous>, transform_indices = @transform_3, window_bounds = array<i64: 768, 512>}, {pipeline_mode = #tpu.pipeline_mode<synchronous>, transform_indices = @transform_4, window_bounds = array<i64: 256, 512>}, {pipeline_mode = #tpu.pipeline_mode<synchronous>, transform_indices = @transform_5, window_bounds = array<i64: 1536, 1>}, {transform_indices = @transform_6, window_bounds = array<i64: 1, 512, 128>}]} {
    %c0 = arith.constant 0 : index
    %c0_0 = arith.constant 0 : index
    %c0_1 = arith.constant 0 : index
    %0 = vector.load %arg2[%c0, %c0_0, %c0_1] : memref<1x512x128xbf16, #tpu.memory_space<vmem>>, vector<1x512x128xbf16>
    %1 = vector.shape_cast %0 : vector<1x512x128xbf16> to vector<512x128xbf16>
    %c0_2 = arith.constant 0 : index
    %c0_3 = arith.constant 0 : index
    %c0_4 = arith.constant 0 : index
    %2 = vector.load %arg3[%c0_2, %c0_3, %c0_4] : memref<1x512x128xbf16, #tpu.memory_space<vmem>>, vector<1x512x128xbf16>
    %3 = vector.shape_cast %2 : vector<1x512x128xbf16> to vector<512x128xbf16>
    %4 = arith.extf %1 : vector<512x128xbf16> to vector<512x128xf32>
    %c0_5 = arith.constant 0 : index
    %c0_6 = arith.constant 0 : index
    %5 = vector.load %arg7[%c0_5, %c0_6] : memref<1536x1xf32, #tpu.memory_space<vmem>>, vector<512x1xf32>
    %c512 = arith.constant 512 : index
    %c0_7 = arith.constant 0 : index
    %6 = vector.load %arg7[%c512, %c0_7] : memref<1536x1xf32, #tpu.memory_space<vmem>>, vector<768x1xf32>
    %c1280 = arith.constant 1280 : index
    %c0_8 = arith.constant 0 : index
    %7 = vector.load %arg7[%c1280, %c0_8] : memref<1536x1xf32, #tpu.memory_space<vmem>>, vector<256x1xf32>
    %c0_9 = arith.constant 0 : index
    %c0_10 = arith.constant 0 : index
    %8 = vector.load %arg4[%c0_9, %c0_10] : memref<512x512xbf16, #tpu.memory_space<vmem>>, vector<512x512xbf16>
    %cst = arith.constant dense<0.000000e+00> : vector<512x128xf32>
    %9 = tpu.matmul %8, %1, %cst {dimension_numbers = #tpu.dot_dimension_numbers<[1], [0], [0], [1], [0, 0, 1, 1], [], []>} : vector<512x512xbf16>, vector<512x128xbf16>, vector<512x128xf32> -> vector<512x128xf32>
    %10 = vector.broadcast %5 : vector<512x1xf32> to vector<512x128xf32>
    %11 = arith.addf %9, %10 : vector<512x128xf32>
    %c0_11 = arith.constant 0 : index
    %c0_12 = arith.constant 0 : index
    %12 = vector.load %arg5[%c0_11, %c0_12] : memref<768x512xbf16, #tpu.memory_space<vmem>>, vector<768x512xbf16>
    %cst_13 = arith.constant dense<0.000000e+00> : vector<768x128xf32>
    %13 = tpu.matmul %12, %3, %cst_13 {dimension_numbers = #tpu.dot_dimension_numbers<[1], [0], [0], [1], [0, 0, 1, 1], [], []>} : vector<768x512xbf16>, vector<512x128xbf16>, vector<768x128xf32> -> vector<768x128xf32>
    %14 = vector.broadcast %6 : vector<768x1xf32> to vector<768x128xf32>
    %15 = arith.addf %13, %14 : vector<768x128xf32>
    %16 = vector.extract_strided_slice %11 {offsets = [0, 0], sizes = [256, 128], strides = [1, 1]} : vector<512x128xf32> to vector<256x128xf32>
    %cst_14 = arith.constant 0.000000e+00 : f32
    %17 = vector.broadcast %cst_14 : f32 to vector<256x128xf32>
    %18 = arith.subf %17, %16 : vector<256x128xf32>
    %19 = math.exp %18 : vector<256x128xf32>
    %cst_15 = arith.constant 1.000000e+00 : f32
    %20 = vector.broadcast %cst_15 : f32 to vector<256x128xf32>
    %21 = arith.addf %20, %19 : vector<256x128xf32>
    %22 = tpu.reciprocal %21 {approx = true} : vector<256x128xf32> -> vector<256x128xf32>
    %23 = vector.extract_strided_slice %11 {offsets = [256, 0], sizes = [256, 128], strides = [1, 1]} : vector<512x128xf32> to vector<256x128xf32>
    %cst_16 = arith.constant 0.000000e+00 : f32
    %24 = vector.broadcast %cst_16 : f32 to vector<256x128xf32>
    %25 = arith.subf %24, %23 : vector<256x128xf32>
    %26 = math.exp %25 : vector<256x128xf32>
    %cst_17 = arith.constant 1.000000e+00 : f32
    %27 = vector.broadcast %cst_17 : f32 to vector<256x128xf32>
    %28 = arith.addf %27, %26 : vector<256x128xf32>
    %29 = tpu.reciprocal %28 {approx = true} : vector<256x128xf32> -> vector<256x128xf32>
    %30 = vector.extract_strided_slice %15 {offsets = [0, 0], sizes = [256, 128], strides = [1, 1]} : vector<768x128xf32> to vector<256x128xf32>
    %cst_18 = arith.constant 0.000000e+00 : f32
    %31 = vector.broadcast %cst_18 : f32 to vector<256x128xf32>
    %32 = arith.subf %31, %30 : vector<256x128xf32>
    %33 = math.exp %32 : vector<256x128xf32>
    %cst_19 = arith.constant 1.000000e+00 : f32
    %34 = vector.broadcast %cst_19 : f32 to vector<256x128xf32>
    %35 = arith.addf %34, %33 : vector<256x128xf32>
    %36 = tpu.reciprocal %35 {approx = true} : vector<256x128xf32> -> vector<256x128xf32>
    %37 = vector.extract_strided_slice %15 {offsets = [256, 0], sizes = [256, 128], strides = [1, 1]} : vector<768x128xf32> to vector<256x128xf32>
    %cst_20 = arith.constant 0.000000e+00 : f32
    %38 = vector.broadcast %cst_20 : f32 to vector<256x128xf32>
    %39 = arith.subf %38, %37 : vector<256x128xf32>
    %40 = math.exp %39 : vector<256x128xf32>
    %cst_21 = arith.constant 1.000000e+00 : f32
    %41 = vector.broadcast %cst_21 : f32 to vector<256x128xf32>
    %42 = arith.addf %41, %40 : vector<256x128xf32>
    %43 = tpu.reciprocal %42 {approx = true} : vector<256x128xf32> -> vector<256x128xf32>
    %44 = vector.extract_strided_slice %4 {offsets = [0, 0], sizes = [256, 128], strides = [1, 1]} : vector<512x128xf32> to vector<256x128xf32>
    %45 = vector.extract_strided_slice %4 {offsets = [256, 0], sizes = [256, 128], strides = [1, 1]} : vector<512x128xf32> to vector<256x128xf32>
    %46 = arith.mulf %29, %44 : vector<256x128xf32>
    %47 = arith.mulf %43, %45 : vector<256x128xf32>
    %48 = tpu.concatenate %46, %47 in 0 : vector<256x128xf32>, vector<256x128xf32> -> vector<512x128xf32>
    %49 = arith.truncf %48 : vector<512x128xf32> to vector<512x128xbf16>
    %c0_22 = arith.constant 0 : index
    %c0_23 = arith.constant 0 : index
    %50 = vector.load %arg6[%c0_22, %c0_23] : memref<256x512xbf16, #tpu.memory_space<vmem>>, vector<256x512xbf16>
    %cst_24 = arith.constant dense<0.000000e+00> : vector<256x128xf32>
    %51 = tpu.matmul %50, %49, %cst_24 {dimension_numbers = #tpu.dot_dimension_numbers<[1], [0], [0], [1], [0, 0, 1, 1], [], []>} : vector<256x512xbf16>, vector<512x128xbf16>, vector<256x128xf32> -> vector<256x128xf32>
    %52 = vector.broadcast %7 : vector<256x1xf32> to vector<256x128xf32>
    %53 = arith.addf %51, %52 : vector<256x128xf32>
    %54 = math.tanh %53 : vector<256x128xf32>
    %55 = vector.extract_strided_slice %15 {offsets = [512, 0], sizes = [256, 128], strides = [1, 1]} : vector<768x128xf32> to vector<256x128xf32>
    %56 = math.tanh %55 : vector<256x128xf32>
    %cst_25 = arith.constant 1.000000e+00 : f32
    %57 = vector.broadcast %cst_25 : f32 to vector<256x128xf32>
    %58 = arith.subf %57, %22 : vector<256x128xf32>
    %59 = arith.mulf %58, %44 : vector<256x128xf32>
    %60 = arith.mulf %22, %54 : vector<256x128xf32>
    %61 = arith.addf %59, %60 : vector<256x128xf32>
    %62 = arith.truncf %61 : vector<256x128xf32> to vector<256x128xbf16>
    %c0_26 = arith.constant 0 : index
    %c0_27 = arith.constant 0 : index
    %c0_28 = arith.constant 0 : index
    %63 = vector.load %arg8[%c0_26, %c0_27, %c0_28] : memref<1x512x128xbf16, #tpu.memory_space<vmem>>, vector<1x256x128xbf16>
    %64 = vector.shape_cast %63 : vector<1x256x128xbf16> to vector<256x128xbf16>
    %65 = vector.shape_cast %62 : vector<256x128xbf16> to vector<1x256x128xbf16>
    tpu.vector_store %arg8[%c0_26, %c0_27, %c0_28], %65 {strides = array<i32>} : memref<1x512x128xbf16, #tpu.memory_space<vmem>>, vector<1x256x128xbf16>,
    %cst_29 = arith.constant 1.000000e+00 : f32
    %66 = vector.broadcast %cst_29 : f32 to vector<256x128xf32>
    %67 = arith.subf %66, %36 : vector<256x128xf32>
    %68 = arith.mulf %67, %45 : vector<256x128xf32>
    %69 = arith.mulf %36, %56 : vector<256x128xf32>
    %70 = arith.addf %68, %69 : vector<256x128xf32>
    %71 = arith.truncf %70 : vector<256x128xf32> to vector<256x128xbf16>
    %c0_30 = arith.constant 0 : index
    %c256 = arith.constant 256 : index
    %c0_31 = arith.constant 0 : index
    %72 = vector.load %arg8[%c0_30, %c256, %c0_31] : memref<1x512x128xbf16, #tpu.memory_space<vmem>>, vector<1x256x128xbf16>
    %73 = vector.shape_cast %72 : vector<1x256x128xbf16> to vector<256x128xbf16>
    %74 = vector.shape_cast %71 : vector<256x128xbf16> to vector<1x256x128xbf16>
    tpu.vector_store %arg8[%c0_30, %c256, %c0_31], %74 {strides = array<i32>} : memref<1x512x128xbf16, #tpu.memory_space<vmem>>, vector<1x256x128xbf16>,
    return
  }
  func.func @transform_0(%arg0: i32, %arg1: i32) -> (i32, i32, i32) {
    %c0_i32 = arith.constant 0 : i32
    %c0_i32_0 = arith.constant 0 : i32
    return %arg0, %c0_i32, %arg1 : i32, i32, i32
  }
  func.func @transform_1(%arg0: i32, %arg1: i32) -> (i32, i32, i32) {
    %c0_i32 = arith.constant 0 : i32
    %c0_i32_0 = arith.constant 0 : i32
    return %arg0, %c0_i32, %arg1 : i32, i32, i32
  }
  func.func @transform_2(%arg0: i32, %arg1: i32) -> (i32, i32) {
    %c0_i32 = arith.constant 0 : i32
    %c0_i32_0 = arith.constant 0 : i32
    %c0_i32_1 = arith.constant 0 : i32
    return %c0_i32, %c0_i32_0 : i32, i32
  }
  func.func @transform_3(%arg0: i32, %arg1: i32) -> (i32, i32) {
    %c0_i32 = arith.constant 0 : i32
    %c0_i32_0 = arith.constant 0 : i32
    %c0_i32_1 = arith.constant 0 : i32
    return %c0_i32, %c0_i32_0 : i32, i32
  }
  func.func @transform_4(%arg0: i32, %arg1: i32) -> (i32, i32) {
    %c0_i32 = arith.constant 0 : i32
    %c0_i32_0 = arith.constant 0 : i32
    %c0_i32_1 = arith.constant 0 : i32
    return %c0_i32, %c0_i32_0 : i32, i32
  }
  func.func @transform_5(%arg0: i32, %arg1: i32) -> (i32, i32) {
    %c0_i32 = arith.constant 0 : i32
    %c0_i32_0 = arith.constant 0 : i32
    %c0_i32_1 = arith.constant 0 : i32
    return %c0_i32, %c0_i32_0 : i32, i32
  }
  func.func @transform_6(%arg0: i32, %arg1: i32) -> (i32, i32, i32) {
    %c0_i32 = arith.constant 0 : i32
    %c0_i32_0 = arith.constant 0 : i32
    return %arg0, %c0_i32, %arg1 : i32, i32, i32
  }
}

</mosaic_0001>

<llo_original>
// kernel: tpu_custom_call.1
$region0: #{tpu_custom_call.1}
  #allocation0 [shape = 'u32[]', space=smem, size = 0x4, offset = 0x4, fixed_abs, tag = 'smem constant byte address 0x4 - core index']
  #allocation1 [shape = 'u32[72,128]{1,0:T(1,128)}', space=vmem, size = 0x9000, scoped, tag = 'internal scratch']
  %s0 = inlined_call_operand.hbm [shape: bf16[2,512,256], index: 0, kind: input, shape index: {}]
  %s1 = inlined_call_operand.hbm [shape: bf16[2,512,256], index: 1, kind: input, shape index: {}]
  %s2 = inlined_call_operand.hbm [shape: bf16[512,512], index: 2, kind: input, shape index: {}]
  %s3 = inlined_call_operand.vmem [shape: bf16[768,512], index: 3, kind: input, shape index: {}]
  %s4 = inlined_call_operand.hbm [shape: bf16[256,512], index: 4, kind: input, shape index: {}]
  %s5 = inlined_call_operand.vmem [shape: f32[1536,1], index: 5, kind: input, shape index: {}]
  %s6 = inlined_call_operand.hbm [shape: bf16[2,512,256], index: 6, kind: output, shape index: {}]
  %s7 = sld [smem:[#allocation0]]
  $region73: #{tpu_custom_call.1} parent=0
    _
  %s9 = ssub.s32 1, %s7
  %s10 = scalar_select 0, %s9, %s7
  $region1: #{tpu_custom_call.1} parent=0
    #allocation2 [shape = 'u8[262144]{0}', space=vmem, size = 0x40000, scoped, tag = 'input window, operand 0']
    #allocation3 [shape = 's32[2]{0}', space=sflag, size = 0x8, scoped, tag = 'scoped memory for tpu_custom_call.1']
    #allocation4 [shape = 's32[2]{0}', space=sflag, size = 0x8, scoped, tag = 'scoped memory for tpu_custom_call.1']
    #allocation5 [shape = 'u8[262144]{0}', space=vmem, size = 0x40000, scoped, tag = 'input window, operand 1']
    #allocation6 [shape = 's32[2]{0}', space=sflag, size = 0x8, scoped, tag = 'scoped memory for tpu_custom_call.1']
    #allocation7 [shape = 'u8[524288]{0}', space=vmem, size = 0x80000, scoped, tag = 'input window, operand 2, single buffered']
    #allocation8 [shape = 'u8[262144]{0}', space=vmem, size = 0x40000, scoped, tag = 'input window, operand 4, single buffered']
    #allocation9 [shape = 's32[1]{0}', space=sflag, size = 0x4, scoped, tag = 'scoped memory for tpu_custom_call.1']
    #allocation10 [shape = 'u8[262144]{0}', space=vmem, size = 0x40000, scoped, tag = 'output window, operand 0']
    %11 = vsyncpa [#allocation3], 0
    %s12 = scalar_lea.sflag [#allocation3], 1
    %13 = vsyncpa %s12, 0
    %14 = vsyncpa [#allocation6], 0
    %s15 = scalar_lea.sflag [#allocation6], 1
    %16 = vsyncpa %s15, 0
    %17 = vsyncpa [#allocation9], 0
    %18 = vsyncpa [#allocation4], 0
    %s19 = scalar_lea.sflag [#allocation4], 1
    %20 = vsyncpa %s19, 0
    loop: start=0, step=1, limit=6
    $region2: #{tpu_custom_call.1} parent=1 // loop_pre_header
      _
    $region3: #{tpu_custom_call.1} parent=1 // loop_header
      %s22 = sphi 0, %s26
      %p23 = scmp.ge.s32.totalorder %s22, 6
      %s29 = sphi 0, %s41
      %s30 = sphi 0, %s37
      %s31 = sphi 0, %s29
      %s32 = sphi 0, %s30
      %s33 = sphi 0, %s31
      %s34 = sphi 0, %s32
      %s46 = sphi 0, %s48
      %s49 = sphi 0, %s46
      %s50 = sphi 0, %s49
      %s66 = sphi 0, %s50
      %s74 = sphi 0, %s76
      %s77 = sphi 0, %s74
      %s78 = sphi 0, %s77
      %s94 = sphi 0, %s78
      %s98 = sphi 0, %s98
      %s100 = sphi 0, %s98
      %s101 = sphi 0, %s100
      %s115 = sphi 0, %s101
      %s119 = sphi 0, %s119
      %s121 = sphi 0, %s119
      %s122 = sphi 0, %s121
      %s136 = sphi 0, %s122
      %s140 = sphi 0, %s140
      %s142 = sphi 0, %s140
      %s143 = sphi 0, %s142
      %s157 = sphi 0, %s143
      %s161 = sphi 0, %s161
      %s163 = sphi 0, %s161
      %s164 = sphi 0, %s163
      %s178 = sphi 0, %s164
      %s186 = sphi 0, %s188
      %s189 = sphi 0, %s186
      %s190 = sphi 0, %s189
      %s206 = sphi 0, %s190
    $region4: #{tpu_custom_call.1} parent=1 // loop_header_branch
      %25 = sbr.rel (%p23) target = $region8
    $region5: #{tpu_custom_call.1} parent=1 // loop_body
      %s27 = ssub.s32 %s22, 1
      %s28 = ssub.s32 %s22, 2
      %s35 = sadd.s32 1, %s30
      %p36 = scmp.ge.s32.totalorder %s35, 2
      %s37 = scalar_select %p36, 0, %s35
      %s38 = sadd.s32 1, %s29
      %s39 = scalar_select %p36, %s38, %s29
      %p40 = scmp.ge.s32.totalorder %s39, 2
      %s41 = scalar_select %p40, 0, %s39
      %s42 = ssub.s32 %s29, %s41
      %s43 = ssub.s32 %s30, %s37
      %s44 = sor.u32 %s42, %s43
      %p45 = scmp.eq.s32.totalorder %s44, 0
      %s47 = sadd.s32 %s46, 1
      %s48 = scalar_select %p45, %s46, %s47
      %p51 = pneg %p45
      %p52 = scmp.eq.s32.totalorder %s22, 3
      %p53 = por %p51, %p52
      %p54 = scmp.ne.s32.totalorder %s46, %s49
      %p55 = scmp.eq.s32.totalorder %s22, 0
      %p56 = por %p54, %p55
      %p57 = scmp.ne.s32.totalorder %s46, %s49
      %p58 = scmp.eq.s32.totalorder %s27, 3
      %p59 = por %p57, %p58
      %p60 = scmp.ne.s32.totalorder %s49, %s50
      %p61 = scmp.eq.s32.totalorder %s27, 0
      %p62 = por %p60, %p61
      %p63 = scmp.ne.s32.totalorder %s49, %s50
      %p64 = scmp.eq.s32.totalorder %s28, 3
      %p65 = por %p63, %p64
      %p67 = scmp.ne.s32.totalorder %s50, %s66
      %p68 = scmp.eq.s32.totalorder %s28, 0
      %p69 = por %p67, %p68
      %s70 = ssub.s32 %s29, %s41
      %s71 = ssub.s32 %s30, %s37
      %s72 = sor.u32 %s70, %s71
      %p73 = scmp.eq.s32.totalorder %s72, 0
      %s75 = sadd.s32 %s74, 1
      %s76 = scalar_select %p73, %s74, %s75
      %p79 = pneg %p73
      %p80 = scmp.eq.s32.totalorder %s22, 3
      %p81 = por %p79, %p80
      %p82 = scmp.ne.s32.totalorder %s74, %s77
      %p83 = scmp.eq.s32.totalorder %s22, 0
      %p84 = por %p82, %p83
      %p85 = scmp.ne.s32.totalorder %s74, %s77
      %p86 = scmp.eq.s32.totalorder %s27, 3
      %p87 = por %p85, %p86
      %p88 = scmp.ne.s32.totalorder %s77, %s78
      %p89 = scmp.eq.s32.totalorder %s27, 0
      %p90 = por %p88, %p89
      %p91 = scmp.ne.s32.totalorder %s77, %s78
      %p92 = scmp.eq.s32.totalorder %s28, 3
      %p93 = por %p91, %p92
      %p95 = scmp.ne.s32.totalorder %s78, %s94
      %p96 = scmp.eq.s32.totalorder %s28, 0
      %p97 = por %p95, %p96
      %s99 = sadd.s32 %s98, 1
      %p102 = scmp.eq.s32.totalorder %s22, 3
      %p103 = scmp.ne.s32.totalorder %s98, %s100
      %p104 = scmp.eq.s32.totalorder %s22, 0
      %p105 = por %p103, %p104
      %p106 = scmp.ne.s32.totalorder %s98, %s100
      %p107 = scmp.eq.s32.totalorder %s27, 3
      %p108 = por %p106, %p107
      %p109 = scmp.ne.s32.totalorder %s100, %s101
      %p110 = scmp.eq.s32.totalorder %s27, 0
      %p111 = por %p109, %p110
      %p112 = scmp.ne.s32.totalorder %s100, %s101
      %p113 = scmp.eq.s32.totalorder %s28, 3
      %p114 = por %p112, %p113
      %p116 = scmp.ne.s32.totalorder %s101, %s115
      %p117 = scmp.eq.s32.totalorder %s28, 0
      %p118 = por %p116, %p117
      %s120 = sadd.s32 %s119, 1
      %p123 = scmp.eq.s32.totalorder %s22, 3
      %p124 = scmp.ne.s32.totalorder %s119, %s121
      %p125 = scmp.eq.s32.totalorder %s22, 0
      %p126 = por %p124, %p125
      %p127 = scmp.ne.s32.totalorder %s119, %s121
      %p128 = scmp.eq.s32.totalorder %s27, 3
      %p129 = por %p127, %p128
      %p130 = scmp.ne.s32.totalorder %s121, %s122
      %p131 = scmp.eq.s32.totalorder %s27, 0
      %p132 = por %p130, %p131
      %p133 = scmp.ne.s32.totalorder %s121, %s122
      %p134 = scmp.eq.s32.totalorder %s28, 3
      %p135 = por %p133, %p134
      %p137 = scmp.ne.s32.totalorder %s122, %s136
      %p138 = scmp.eq.s32.totalorder %s28, 0
      %p139 = por %p137, %p138
      %s141 = sadd.s32 %s140, 1
      %p144 = scmp.eq.s32.totalorder %s22, 3
      %p145 = scmp.ne.s32.totalorder %s140, %s142
      %p146 = scmp.eq.s32.totalorder %s22, 0
      %p147 = por %p145, %p146
      %p148 = scmp.ne.s32.totalorder %s140, %s142
      %p149 = scmp.eq.s32.totalorder %s27, 3
      %p150 = por %p148, %p149
      %p151 = scmp.ne.s32.totalorder %s142, %s143
      %p152 = scmp.eq.s32.totalorder %s27, 0
      %p153 = por %p151, %p152
      %p154 = scmp.ne.s32.totalorder %s142, %s143
      %p155 = scmp.eq.s32.totalorder %s28, 3
      %p156 = por %p154, %p155
      %p158 = scmp.ne.s32.totalorder %s143, %s157
      %p159 = scmp.eq.s32.totalorder %s28, 0
      %p160 = por %p158, %p159
      %s162 = sadd.s32 %s161, 1
      %p165 = scmp.eq.s32.totalorder %s22, 3
      %p166 = scmp.ne.s32.totalorder %s161, %s163
      %p167 = scmp.eq.s32.totalorder %s22, 0
      %p168 = por %p166, %p167
      %p169 = scmp.ne.s32.totalorder %s161, %s163
      %p170 = scmp.eq.s32.totalorder %s27, 3
      %p171 = por %p169, %p170
      %p172 = scmp.ne.s32.totalorder %s163, %s164
      %p173 = scmp.eq.s32.totalorder %s27, 0
      %p174 = por %p172, %p173
      %p175 = scmp.ne.s32.totalorder %s163, %s164
      %p176 = scmp.eq.s32.totalorder %s28, 3
      %p177 = por %p175, %p176
      %p179 = scmp.ne.s32.totalorder %s164, %s178
      %p180 = scmp.eq.s32.totalorder %s28, 0
      %p181 = por %p179, %p180
      %s182 = ssub.s32 %s29, %s41
      %s183 = ssub.s32 %s30, %s37
      %s184 = sor.u32 %s182, %s183
      %p185 = scmp.eq.s32.totalorder %s184, 0
      %s187 = sadd.s32 %s186, 1
      %s188 = scalar_select %p185, %s186, %s187
      %p191 = pneg %p185
      %p192 = scmp.eq.s32.totalorder %s22, 3
      %p193 = por %p191, %p192
      %p194 = scmp.ne.s32.totalorder %s186, %s189
      %p195 = scmp.eq.s32.totalorder %s22, 0
      %p196 = por %p194, %p195
      %p197 = scmp.ne.s32.totalorder %s186, %s189
      %p198 = scmp.eq.s32.totalorder %s27, 3
      %p199 = por %p197, %p198
      %p200 = scmp.ne.s32.totalorder %s189, %s190
      %p201 = scmp.eq.s32.totalorder %s27, 0
      %p202 = por %p200, %p201
      %p203 = scmp.ne.s32.totalorder %s189, %s190
      %p204 = scmp.eq.s32.totalorder %s28, 3
      %p205 = por %p203, %p204
      %p207 = scmp.ne.s32.totalorder %s190, %s206
      %p208 = scmp.eq.s32.totalorder %s28, 0
      %p209 = por %p207, %p208
      %p210 = scmp.le.s32.totalorder 1, %s22
      %p211 = scmp.lt.s32.totalorder %s22, 5
      %p212 = pnand %p210, %p211
      %p213 = pneg %p212
      // Predicated region
      $region9: #{tpu_custom_call.1} parent=5 // pred_check
        _
      $region10: #{tpu_custom_call.1} parent=5 // pred_check_branch
        %215 = sbr.rel (%p212) target = $region12
      $region11: #{tpu_custom_call.1} parent=5 // pred_region
        %s216 = ssub.s32 %s22, 1
        // Predicated region
        $region13: #{tpu_custom_call.1} parent=11 // pred_check
          %p217 = pneg %p111
        $region14: #{tpu_custom_call.1} parent=11 // pred_check_branch
          %219 = sbr.rel (%p217) target = $region16
        $region15: #{tpu_custom_call.1} parent=11 // pred_region
          %221 = vsyncadd [#allocation6], 0
          %s222 = sshll.u32 %s2, 4
          %s223 = int_to_ptr.hbm [resolvable:$true] %s222
          %s224 = sshll.u32 [#allocation7], 4
          %s225 = int_to_ptr.vmem [resolvable:$true] %s224
          %230 = dma.hbm_to_vmem [thread:$0]  %s223, 16384, %s225, [#allocation6], 256, 256, 16
        $region16: #{tpu_custom_call.1} parent=11 // pred_fallthru
          _
        // Predicated region
        $region17: #{tpu_custom_call.1} parent=11 // pred_check
          %p231 = pneg %p132
        $region18: #{tpu_custom_call.1} parent=11 // pred_check_branch
          %233 = sbr.rel (%p231) target = $region20
        $region19: #{tpu_custom_call.1} parent=11 // pred_region
          _
        $region20: #{tpu_custom_call.1} parent=11 // pred_fallthru
          _
        // Predicated region
        $region21: #{tpu_custom_call.1} parent=11 // pred_check
          %p234 = pneg %p153
        $region22: #{tpu_custom_call.1} parent=11 // pred_check_branch
          %236 = sbr.rel (%p234) target = $region24
        $region23: #{tpu_custom_call.1} parent=11 // pred_region
          %238 = vsyncadd [#allocation9], 0
          %s239 = sshll.u32 %s4, 4
          %s240 = int_to_ptr.hbm [resolvable:$true] %s239
          %s241 = sshll.u32 [#allocation8], 4
          %s242 = int_to_ptr.vmem [resolvable:$true] %s241
          %247 = dma.hbm_to_vmem [thread:$0]  %s240, 8192, %s242, [#allocation9], 256, 256, 16
        $region24: #{tpu_custom_call.1} parent=11 // pred_fallthru
          _
        // Predicated region
        $region25: #{tpu_custom_call.1} parent=11 // pred_check
          %p248 = pneg %p174
        $region26: #{tpu_custom_call.1} parent=11 // pred_check_branch
          %250 = sbr.rel (%p248) target = $region28
        $region27: #{tpu_custom_call.1} parent=11 // pred_region
          _
        $region28: #{tpu_custom_call.1} parent=11 // pred_fallthru
          _
      $region12: #{tpu_custom_call.1} parent=5 // pred_fallthru
        _
      %p251 = scmp.lt.s32.totalorder %s22, 4
      // Predicated region
      $region29: #{tpu_custom_call.1} parent=5 // pred_check
        %p252 = pneg %p251
      $region30: #{tpu_custom_call.1} parent=5 // pred_check_branch
        %254 = sbr.rel (%p252) target = $region32
      $region31: #{tpu_custom_call.1} parent=5 // pred_region
        // Predicated region
        $region33: #{tpu_custom_call.1} parent=31 // pred_check
          %p255 = pneg %p56
        $region34: #{tpu_custom_call.1} parent=31 // pred_check_branch
          %257 = sbr.rel (%p255) target = $region36
        $region35: #{tpu_custom_call.1} parent=31 // pred_region
          %s258 = sand.u32 %s46, 1
          %s259 = scalar_lea.sflag [#allocation3], %s258
          %s260 = sand.u32 %s46, 1
          %s261 = smul.addr %s260, 256
          %s262 = scalar_lea.vmem [#allocation2], %s261
          %264 = vsyncadd %s259, 0
          %s265 = smul.addr %s29, 128
          %s266 = sadd.s32 %s30, %s265
          %s267 = smul.addr %s266, 4
          %s268 = scalar_lea.hbm %s0, %s267
          %s269 = sshll.u32 %s268, 4
          %s270 = int_to_ptr.hbm [resolvable:$true] %s269
          %s271 = sshll.u32 %s262, 4
          %s272 = int_to_ptr.vmem [resolvable:$true] %s271
          %277 = dma.hbm_to_vmem [thread:$0]  %s270, 4096, %s272, %s259, 128, 64, 4
        $region36: #{tpu_custom_call.1} parent=31 // pred_fallthru
          _
        // Predicated region
        $region37: #{tpu_custom_call.1} parent=31 // pred_check
          %p278 = pneg %p84
        $region38: #{tpu_custom_call.1} parent=31 // pred_check_branch
          %280 = sbr.rel (%p278) target = $region40
        $region39: #{tpu_custom_call.1} parent=31 // pred_region
          %s281 = sand.u32 %s22, 1
          %s282 = scalar_lea.sflag [#allocation6], %s281
          %s283 = sand.u32 %s74, 1
          %s284 = smul.addr %s283, 256
          %s285 = scalar_lea.vmem [#allocation5], %s284
          %287 = vsyncadd %s282, 0
          %s288 = smul.addr %s29, 128
          %s289 = sadd.s32 %s30, %s288
          %s290 = smul.addr %s289, 4
          %s291 = scalar_lea.hbm %s1, %s290
          %s292 = sshll.u32 %s291, 4
          %s293 = int_to_ptr.hbm [resolvable:$true] %s292
          %s294 = sshll.u32 %s285, 4
          %s295 = int_to_ptr.vmem [resolvable:$true] %s294
          %300 = dma.hbm_to_vmem [thread:$0]  %s293, 4096, %s295, %s282, 128, 64, 4
        $region40: #{tpu_custom_call.1} parent=31 // pred_fallthru
          _
      $region32: #{tpu_custom_call.1} parent=5 // pred_fallthru
        _
      %p301 = scmp.le.s32.totalorder 1, %s22
      %p302 = scmp.lt.s32.totalorder %s22, 5
      %p303 = pnand %p301, %p302
      %p304 = pneg %p303
      // Predicated region
      $region41: #{tpu_custom_call.1} parent=5 // pred_check
        _
      $region42: #{tpu_custom_call.1} parent=5 // pred_check_branch
        %306 = sbr.rel (%p303) target = $region44
      $region43: #{tpu_custom_call.1} parent=5 // pred_region
        %s307 = ssub.s32 %s22, 1
        %s308 = sand.u32 %s49, 1
        %s309 = scalar_lea.sflag [#allocation3], %s308
        %s310 = sand.u32 %s49, 1
        %s311 = smul.addr %s310, 256
        %s312 = scalar_lea.vmem [#allocation2], %s311
        // Predicated region
        $region45: #{tpu_custom_call.1} parent=43 // pred_check
          %p313 = pneg %p62
        $region46: #{tpu_custom_call.1} parent=43 // pred_check_branch
          %315 = sbr.rel (%p313) target = $region48
        $region47: #{tpu_custom_call.1} parent=43 // pred_region
          %317 = dma.done %s309, 4096
        $region48: #{tpu_custom_call.1} parent=43 // pred_fallthru
          _
        %s318 = sand.u32 %s27, 1
        %s319 = scalar_lea.sflag [#allocation6], %s318
        %s320 = sand.u32 %s77, 1
        %s321 = smul.addr %s320, 256
        %s322 = scalar_lea.vmem [#allocation5], %s321
        // Predicated region
        $region49: #{tpu_custom_call.1} parent=43 // pred_check
          %p323 = pneg %p90
        $region50: #{tpu_custom_call.1} parent=43 // pred_check_branch
          %325 = sbr.rel (%p323) target = $region52
        $region51: #{tpu_custom_call.1} parent=43 // pred_region
          %327 = dma.done %s319, 4096
        $region52: #{tpu_custom_call.1} parent=43 // pred_fallthru
          _
        // Predicated region
        $region53: #{tpu_custom_call.1} parent=43 // pred_check
          %p328 = pneg %p111
        $region54: #{tpu_custom_call.1} parent=43 // pred_check_branch
          %330 = sbr.rel (%p328) target = $region56
        $region55: #{tpu_custom_call.1} parent=43 // pred_region
          %332 = dma.done [#allocation6], 16384
        $region56: #{tpu_custom_call.1} parent=43 // pred_fallthru
          _
        // Predicated region
        $region57: #{tpu_custom_call.1} parent=43 // pred_check
          %p333 = pneg %p153
        $region58: #{tpu_custom_call.1} parent=43 // pred_check_branch
          %335 = sbr.rel (%p333) target = $region60
        $region59: #{tpu_custom_call.1} parent=43 // pred_region
          %337 = dma.done [#allocation9], 8192
        $region60: #{tpu_custom_call.1} parent=43 // pred_fallthru
          _
        %s338 = sand.u32 %s49, 1
        %s339 = scalar_lea.sflag [#allocation3], %s338
        %s340 = sand.u32 %s49, 1
        %s341 = smul.addr %s340, 256
        %s342 = scalar_lea.vmem [#allocation2], %s341
        %p343 = pneg %p62
        %p344 = pneg %p59
        %s345 = sand.u32 %s27, 1
        %s346 = scalar_lea.sflag [#allocation6], %s345
        %s347 = sand.u32 %s77, 1
        %s348 = smul.addr %s347, 256
        %s349 = scalar_lea.vmem [#allocation5], %s348
        %p350 = pneg %p90
        %p351 = pneg %p87
        %p352 = pneg %p111
        %p353 = pneg %p108
        %p354 = pneg %p132
        %p355 = pneg %p129
        %p356 = pneg %p153
        %p357 = pneg %p150
        %p358 = pneg %p174
        %p359 = pneg %p171
        %p360 = pneg %p202
        %p361 = pneg %p199
        %s362 = sand.u32 %s189, 1
        %s363 = scalar_lea.sflag [#allocation4], %s362
        %s364 = sand.u32 %s189, 1
        %s365 = smul.addr %s364, 256
        %s366 = scalar_lea.vmem [#allocation10], %s365
        %v367 = vld [vmem:[%s312] sm:$0xf]
        %v368 = vld [vmem:[%s312 + $0x4] sm:$0xf]
        %v369 = vld [vmem:[%s312 + $0x8] sm:$0xf]
        %v370 = vld [vmem:[%s312 + $0xc] sm:$0xf]
        %v371 = vld [vmem:[%s312 + $0x10] sm:$0xf]
        %v372 = vld [vmem:[%s312 + $0x14] sm:$0xf]
        %v373 = vld [vmem:[%s312 + $0x18] sm:$0xf]
        %v374 = vld [vmem:[%s312 + $0x1c] sm:$0xf]
        %v375 = vld [vmem:[%s312 + $0x20] sm:$0xf]
        %v376 = vld [vmem:[%s312 + $0x24] sm:$0xf]
        %v377 = vld [vmem:[%s312 + $0x28] sm:$0xf]
        %v378 = vld [vmem:[%s312 + $0x2c] sm:$0xf]
        %v379 = vld [vmem:[%s312 + $0x30] sm:$0xf]
        %v380 = vld [vmem:[%s312 + $0x34] sm:$0xf]
        %v381 = vld [vmem:[%s312 + $0x38] sm:$0xf]
        %v382 = vld [vmem:[%s312 + $0x3c] sm:$0xf]
        %v383 = vld [vmem:[%s312 + $0x40] sm:$0xf]
        %v384 = vld [vmem:[%s312 + $0x44] sm:$0xf]
        %v385 = vld [vmem:[%s312 + $0x48] sm:$0xf]
        %v386 = vld [vmem:[%s312 + $0x4c] sm:$0xf]
        %v387 = vld [vmem:[%s312 + $0x50] sm:$0xf]
        %v388 = vld [vmem:[%s312 + $0x54] sm:$0xf]
        %v389 = vld [vmem:[%s312 + $0x58] sm:$0xf]
        %v390 = vld [vmem:[%s312 + $0x5c] sm:$0xf]
        %v391 = vld [vmem:[%s312 + $0x60] sm:$0xf]
        %v392 = vld [vmem:[%s312 + $0x64] sm:$0xf]
        %v393 = vld [vmem:[%s312 + $0x68] sm:$0xf]
        %v394 = vld [vmem:[%s312 + $0x6c] sm:$0xf]
        %v395 = vld [vmem:[%s312 + $0x70] sm:$0xf]
        %v396 = vld [vmem:[%s312 + $0x74] sm:$0xf]
        %v397 = vld [vmem:[%s312 + $0x78] sm:$0xf]
        %v398 = vld [vmem:[%s312 + $0x7c] sm:$0xf]
        %v399 = vld [vmem:[%s312 + $0x80] sm:$0xf]
        %v400 = vld [vmem:[%s312 + $0x84] sm:$0xf]
        %v401 = vld [vmem:[%s312 + $0x88] sm:$0xf]
        %v402 = vld [vmem:[%s312 + $0x8c] sm:$0xf]
        %v403 = vld [vmem:[%s312 + $0x90] sm:$0xf]
        %v404 = vld [vmem:[%s312 + $0x94] sm:$0xf]
        %v405 = vld [vmem:[%s312 + $0x98] sm:$0xf]
        %v406 = vld [vmem:[%s312 + $0x9c] sm:$0xf]
        %v407 = vld [vmem:[%s312 + $0xa0] sm:$0xf]
        %v408 = vld [vmem:[%s312 + $0xa4] sm:$0xf]
        %v409 = vld [vmem:[%s312 + $0xa8] sm:$0xf]
        %v410 = vld [vmem:[%s312 + $0xac] sm:$0xf]
        %v411 = vld [vmem:[%s312 + $0xb0] sm:$0xf]
        %v412 = vld [vmem:[%s312 + $0xb4] sm:$0xf]
        %v413 = vld [vmem:[%s312 + $0xb8] sm:$0xf]
        %v414 = vld [vmem:[%s312 + $0xbc] sm:$0xf]
        %v415 = vld [vmem:[%s312 + $0xc0] sm:$0xf]
        %v416 = vld [vmem:[%s312 + $0xc4] sm:$0xf]
        %v417 = vld [vmem:[%s312 + $0xc8] sm:$0xf]
        %v418 = vld [vmem:[%s312 + $0xcc] sm:$0xf]
        %v419 = vld [vmem:[%s312 + $0xd0] sm:$0xf]
        %v420 = vld [vmem:[%s312 + $0xd4] sm:$0xf]
        %v421 = vld [vmem:[%s312 + $0xd8] sm:$0xf]
        %v422 = vld [vmem:[%s312 + $0xdc] sm:$0xf]
        %v423 = vld [vmem:[%s312 + $0xe0] sm:$0xf]
        %v424 = vld [vmem:[%s312 + $0xe4] sm:$0xf]
        %v425 = vld [vmem:[%s312 + $0xe8] sm:$0xf]
        %v426 = vld [vmem:[%s312 + $0xec] sm:$0xf]
        %v427 = vld [vmem:[%s312 + $0xf0] sm:$0xf]
        %v428 = vld [vmem:[%s312 + $0xf4] sm:$0xf]
        %v429 = vld [vmem:[%s312 + $0xf8] sm:$0xf]
        %v430 = vld [vmem:[%s312 + $0xfc] sm:$0xf]
        %v431 = vld [vmem:[%s322] sm:$0xf]
        %v432 = vld [vmem:[%s322 + $0x4] sm:$0xf]
        %v433 = vld [vmem:[%s322 + $0x8] sm:$0xf]
        %v434 = vld [vmem:[%s322 + $0xc] sm:$0xf]
        %v435 = vld [vmem:[%s322 + $0x10] sm:$0xf]
        %v436 = vld [vmem:[%s322 + $0x14] sm:$0xf]
        %v437 = vld [vmem:[%s322 + $0x18] sm:$0xf]
        %v438 = vld [vmem:[%s322 + $0x1c] sm:$0xf]
        %v439 = vld [vmem:[%s322 + $0x20] sm:$0xf]
        %v440 = vld [vmem:[%s322 + $0x24] sm:$0xf]
        %v441 = vld [vmem:[%s322 + $0x28] sm:$0xf]
        %v442 = vld [vmem:[%s322 + $0x2c] sm:$0xf]
        %v443 = vld [vmem:[%s322 + $0x30] sm:$0xf]
        %v444 = vld [vmem:[%s322 + $0x34] sm:$0xf]
        %v445 = vld [vmem:[%s322 + $0x38] sm:$0xf]
        %v446 = vld [vmem:[%s322 + $0x3c] sm:$0xf]
        %v447 = vld [vmem:[%s322 + $0x40] sm:$0xf]
        %v448 = vld [vmem:[%s322 + $0x44] sm:$0xf]
        %v449 = vld [vmem:[%s322 + $0x48] sm:$0xf]
        %v450 = vld [vmem:[%s322 + $0x4c] sm:$0xf]
        %v451 = vld [vmem:[%s322 + $0x50] sm:$0xf]
        %v452 = vld [vmem:[%s322 + $0x54] sm:$0xf]
        %v453 = vld [vmem:[%s322 + $0x58] sm:$0xf]
        %v454 = vld [vmem:[%s322 + $0x5c] sm:$0xf]
        %v455 = vld [vmem:[%s322 + $0x60] sm:$0xf]
        %v456 = vld [vmem:[%s322 + $0x64] sm:$0xf]
        %v457 = vld [vmem:[%s322 + $0x68] sm:$0xf]
        %v458 = vld [vmem:[%s322 + $0x6c] sm:$0xf]
        %v459 = vld [vmem:[%s322 + $0x70] sm:$0xf]
        %v460 = vld [vmem:[%s322 + $0x74] sm:$0xf]
        %v461 = vld [vmem:[%s322 + $0x78] sm:$0xf]
        %v462 = vld [vmem:[%s322 + $0x7c] sm:$0xf]
        %v463 = vld [vmem:[%s322 + $0x80] sm:$0xf]
        %v464 = vld [vmem:[%s322 + $0x84] sm:$0xf]
        %v465 = vld [vmem:[%s322 + $0x88] sm:$0xf]
        %v466 = vld [vmem:[%s322 + $0x8c] sm:$0xf]
        %v467 = vld [vmem:[%s322 + $0x90] sm:$0xf]
        %v468 = vld [vmem:[%s322 + $0x94] sm:$0xf]
        %v469 = vld [vmem:[%s322 + $0x98] sm:$0xf]
        %v470 = vld [vmem:[%s322 + $0x9c] sm:$0xf]
        %v471 = vld [vmem:[%s322 + $0xa0] sm:$0xf]
        %v472 = vld [vmem:[%s322 + $0xa4] sm:$0xf]
        %v473 = vld [vmem:[%s322 + $0xa8] sm:$0xf]
        %v474 = vld [vmem:[%s322 + $0xac] sm:$0xf]
        %v475 = vld [vmem:[%s322 + $0xb0] sm:$0xf]
        %v476 = vld [vmem:[%s322 + $0xb4] sm:$0xf]
        %v477 = vld [vmem:[%s322 + $0xb8] sm:$0xf]
        %v478 = vld [vmem:[%s322 + $0xbc] sm:$0xf]
        %v479 = vld [vmem:[%s322 + $0xc0] sm:$0xf]
        %v480 = vld [vmem:[%s322 + $0xc4] sm:$0xf]
        %v481 = vld [vmem:[%s322 + $0xc8] sm:$0xf]
        %v482 = vld [vmem:[%s322 + $0xcc] sm:$0xf]
        %v483 = vld [vmem:[%s322 + $0xd0] sm:$0xf]
        %v484 = vld [vmem:[%s322 + $0xd4] sm:$0xf]
        %v485 = vld [vmem:[%s322 + $0xd8] sm:$0xf]
        %v486 = vld [vmem:[%s322 + $0xdc] sm:$0xf]
        %v487 = vld [vmem:[%s322 + $0xe0] sm:$0xf]
        %v488 = vld [vmem:[%s322 + $0xe4] sm:$0xf]
        %v489 = vld [vmem:[%s322 + $0xe8] sm:$0xf]
        %v490 = vld [vmem:[%s322 + $0xec] sm:$0xf]
        %v491 = vld [vmem:[%s322 + $0xf0] sm:$0xf]
        %v492 = vld [vmem:[%s322 + $0xf4] sm:$0xf]
        %v493 = vld [vmem:[%s322 + $0xf8] sm:$0xf]
        %v494 = vld [vmem:[%s322 + $0xfc] sm:$0xf]
        %v495 = vunpack.c.l.bf16 %v367
        %v496 = vunpack.c.l.bf16 %v368
        %v497 = vunpack.c.l.bf16 %v369
        %v498 = vunpack.c.l.bf16 %v370
        %v499 = vunpack.c.l.bf16 %v371
        %v500 = vunpack.c.l.bf16 %v372
        %v501 = vunpack.c.l.bf16 %v373
        %v502 = vunpack.c.l.bf16 %v374
        %v503 = vunpack.c.l.bf16 %v375
        %v504 = vunpack.c.l.bf16 %v376
        %v505 = vunpack.c.l.bf16 %v377
        %v506 = vunpack.c.l.bf16 %v378
        %v507 = vunpack.c.l.bf16 %v379
        %v508 = vunpack.c.l.bf16 %v380
        %v509 = vunpack.c.l.bf16 %v381
        %v510 = vunpack.c.l.bf16 %v382
        %v511 = vunpack.c.l.bf16 %v383
        %v512 = vunpack.c.l.bf16 %v384
        %v513 = vunpack.c.l.bf16 %v385
        %v514 = vunpack.c.l.bf16 %v386
        %v515 = vunpack.c.l.bf16 %v387
        %v516 = vunpack.c.l.bf16 %v388
        %v517 = vunpack.c.l.bf16 %v389
        %v518 = vunpack.c.l.bf16 %v390
        %v519 = vunpack.c.l.bf16 %v391
        %v520 = vunpack.c.l.bf16 %v392
        %v521 = vunpack.c.l.bf16 %v393
        %v522 = vunpack.c.l.bf16 %v394
        %v523 = vunpack.c.l.bf16 %v395
        %v524 = vunpack.c.l.bf16 %v396
        %v525 = vunpack.c.l.bf16 %v397
        %v526 = vunpack.c.l.bf16 %v398
        %v527 = vunpack.c.l.bf16 %v399
        %v528 = vunpack.c.l.bf16 %v400
        %v529 = vunpack.c.l.bf16 %v401
        %v530 = vunpack.c.l.bf16 %v402
        %v531 = vunpack.c.l.bf16 %v403
        %v532 = vunpack.c.l.bf16 %v404
        %v533 = vunpack.c.l.bf16 %v405
        %v534 = vunpack.c.l.bf16 %v406
        %v535 = vunpack.c.l.bf16 %v407
        %v536 = vunpack.c.l.bf16 %v408
        %v537 = vunpack.c.l.bf16 %v409
        %v538 = vunpack.c.l.bf16 %v410
        %v539 = vunpack.c.l.bf16 %v411
        %v540 = vunpack.c.l.bf16 %v412
        %v541 = vunpack.c.l.bf16 %v413
        %v542 = vunpack.c.l.bf16 %v414
        %v543 = vunpack.c.l.bf16 %v415
        %v544 = vunpack.c.l.bf16 %v416
        %v545 = vunpack.c.l.bf16 %v417
        %v546 = vunpack.c.l.bf16 %v418
        %v547 = vunpack.c.l.bf16 %v419
        %v548 = vunpack.c.l.bf16 %v420
        %v549 = vunpack.c.l.bf16 %v421
        %v550 = vunpack.c.l.bf16 %v422
        %v551 = vunpack.c.l.bf16 %v423
        %v552 = vunpack.c.l.bf16 %v424
        %v553 = vunpack.c.l.bf16 %v425
        %v554 = vunpack.c.l.bf16 %v426
        %v555 = vunpack.c.l.bf16 %v427
        %v556 = vunpack.c.l.bf16 %v428
        %v557 = vunpack.c.l.bf16 %v429
        %v558 = vunpack.c.l.bf16 %v430
        %v559 = vld [vmem:[%s5] sm:$0xff]
        %v560 = vld [vmem:[%s5 + $0x8] sm:$0xff]
        %v561 = vld [vmem:[%s5 + $0x10] sm:$0xff]
        %v562 = vld [vmem:[%s5 + $0x18] sm:$0xff]
        %v563 = vld [vmem:[%s5 + $0x20] sm:$0xff]
        %v564 = vld [vmem:[%s5 + $0x28] sm:$0xff]
        %v565 = vld [vmem:[%s5 + $0x30] sm:$0xff]
        %v566 = vld [vmem:[%s5 + $0x38] sm:$0xff]
        %v567 = vld [vmem:[%s5 + $0x40] sm:$0xff]
        %v568 = vld [vmem:[%s5 + $0x48] sm:$0xff]
        %v569 = vld [vmem:[%s5 + $0x50] sm:$0xff]
        %v570 = vld [vmem:[%s5 + $0x58] sm:$0xff]
        %v571 = vld [vmem:[%s5 + $0x60] sm:$0xff]
        %v572 = vld [vmem:[%s5 + $0x68] sm:$0xff]
        %v573 = vld [vmem:[%s5 + $0x70] sm:$0xff]
        %v574 = vld [vmem:[%s5 + $0x78] sm:$0xff]
        %v575 = vld [vmem:[%s5 + $0x80] sm:$0xff]
        %v576 = vld [vmem:[%s5 + $0x88] sm:$0xff]
        %v577 = vld [vmem:[%s5 + $0x90] sm:$0xff]
        %v578 = vld [vmem:[%s5 + $0x98] sm:$0xff]
        %v579 = vld [vmem:[%s5 + $0xa0] sm:$0xff]
        %v580 = vld [vmem:[%s5 + $0xa8] sm:$0xff]
        %v581 = vld [vmem:[%s5 + $0xb0] sm:$0xff]
        %v582 = vld [vmem:[%s5 + $0xb8] sm:$0xff]
        %v583 = vld [vmem:[%s5 + $0xc0] sm:$0xff]
        %v584 = vld [vmem:[%s5 + $0xc8] sm:$0xff]
        %v585 = vld [vmem:[%s5 + $0xd0] sm:$0xff]
        %v586 = vld [vmem:[%s5 + $0xd8] sm:$0xff]
        %v587 = vld [vmem:[%s5 + $0xe0] sm:$0xff]
        %v588 = vld [vmem:[%s5 + $0xe8] sm:$0xff]
        %v589 = vld [vmem:[%s5 + $0xf0] sm:$0xff]
        %v590 = vld [vmem:[%s5 + $0xf8] sm:$0xff]
        %v591 = vld [vmem:[%s5 + $0x100] sm:$0xff]
        %v592 = vld [vmem:[%s5 + $0x108] sm:$0xff]
        %v593 = vld [vmem:[%s5 + $0x110] sm:$0xff]
        %v594 = vld [vmem:[%s5 + $0x118] sm:$0xff]
        %v595 = vld [vmem:[%s5 + $0x120] sm:$0xff]
        %v596 = vld [vmem:[%s5 + $0x128] sm:$0xff]
        %v597 = vld [vmem:[%s5 + $0x130] sm:$0xff]
        %v598 = vld [vmem:[%s5 + $0x138] sm:$0xff]
        %v599 = vld [vmem:[%s5 + $0x140] sm:$0xff]
        %v600 = vld [vmem:[%s5 + $0x148] sm:$0xff]
        %v601 = vld [vmem:[%s5 + $0x150] sm:$0xff]
        %v602 = vld [vmem:[%s5 + $0x158] sm:$0xff]
        %v603 = vld [vmem:[%s5 + $0x160] sm:$0xff]
        %v604 = vld [vmem:[%s5 + $0x168] sm:$0xff]
        %v605 = vld [vmem:[%s5 + $0x170] sm:$0xff]
        %v606 = vld [vmem:[%s5 + $0x178] sm:$0xff]
        %v607 = vld [vmem:[%s5 + $0x180] sm:$0xff]
        %v608 = vld [vmem:[%s5 + $0x188] sm:$0xff]
        %v609 = vld [vmem:[%s5 + $0x190] sm:$0xff]
        %v610 = vld [vmem:[%s5 + $0x198] sm:$0xff]
        %v611 = vld [vmem:[%s5 + $0x1a0] sm:$0xff]
        %v612 = vld [vmem:[%s5 + $0x1a8] sm:$0xff]
        %v613 = vld [vmem:[%s5 + $0x1b0] sm:$0xff]
        %v614 = vld [vmem:[%s5 + $0x1b8] sm:$0xff]
        %v615 = vld [vmem:[%s5 + $0x1c0] sm:$0xff]
        %v616 = vld [vmem:[%s5 + $0x1c8] sm:$0xff]
        %v617 = vld [vmem:[%s5 + $0x1d0] sm:$0xff]
        %v618 = vld [vmem:[%s5 + $0x1d8] sm:$0xff]
        %v619 = vld [vmem:[%s5 + $0x1e0] sm:$0xff]
        %v620 = vld [vmem:[%s5 + $0x1e8] sm:$0xff]
        %v621 = vld [vmem:[%s5 + $0x1f0] sm:$0xff]
        %v622 = vld [vmem:[%s5 + $0x1f8] sm:$0xff]
        %v623 = vld [vmem:[%s5 + $0x200] sm:$0xff]
        %v624 = vld [vmem:[%s5 + $0x208] sm:$0xff]
        %v625 = vld [vmem:[%s5 + $0x210] sm:$0xff]
        %v626 = vld [vmem:[%s5 + $0x218] sm:$0xff]
        %v627 = vld [vmem:[%s5 + $0x220] sm:$0xff]
        %v628 = vld [vmem:[%s5 + $0x228] sm:$0xff]
        %v629 = vld [vmem:[%s5 + $0x230] sm:$0xff]
        %v630 = vld [vmem:[%s5 + $0x238] sm:$0xff]
        %v631 = vld [vmem:[%s5 + $0x240] sm:$0xff]
        %v632 = vld [vmem:[%s5 + $0x248] sm:$0xff]
        %v633 = vld [vmem:[%s5 + $0x250] sm:$0xff]
        %v634 = vld [vmem:[%s5 + $0x258] sm:$0xff]
        %v635 = vld [vmem:[%s5 + $0x260] sm:$0xff]
        %v636 = vld [vmem:[%s5 + $0x268] sm:$0xff]
        %v637 = vld [vmem:[%s5 + $0x270] sm:$0xff]
        %v638 = vld [vmem:[%s5 + $0x278] sm:$0xff]
        %v639 = vld [vmem:[%s5 + $0x280] sm:$0xff]
        %v640 = vld [vmem:[%s5 + $0x288] sm:$0xff]
        %v641 = vld [vmem:[%s5 + $0x290] sm:$0xff]
        %v642 = vld [vmem:[%s5 + $0x298] sm:$0xff]
        %v643 = vld [vmem:[%s5 + $0x2a0] sm:$0xff]
        %v644 = vld [vmem:[%s5 + $0x2a8] sm:$0xff]
        %v645 = vld [vmem:[%s5 + $0x2b0] sm:$0xff]
        %v646 = vld [vmem:[%s5 + $0x2b8] sm:$0xff]
        %v647 = vld [vmem:[%s5 + $0x2c0] sm:$0xff]
        %v648 = vld [vmem:[%s5 + $0x2c8] sm:$0xff]
        %v649 = vld [vmem:[%s5 + $0x2d0] sm:$0xff]
        %v650 = vld [vmem:[%s5 + $0x2d8] sm:$0xff]
        %v651 = vld [vmem:[%s5 + $0x2e0] sm:$0xff]
        %v652 = vld [vmem:[%s5 + $0x2e8] sm:$0xff]
        %v653 = vld [vmem:[%s5 + $0x2f0] sm:$0xff]
        %v654 = vld [vmem:[%s5 + $0x2f8] sm:$0xff]
        %v655 = vld [vmem:[%s5 + $0x300] sm:$0xff]
        %v656 = vld [vmem:[%s5 + $0x308] sm:$0xff]
        %v657 = vld [vmem:[%s5 + $0x310] sm:$0xff]
        %v658 = vld [vmem:[%s5 + $0x318] sm:$0xff]
        %v659 = vld [vmem:[%s5 + $0x320] sm:$0xff]
        %v660 = vld [vmem:[%s5 + $0x328] sm:$0xff]
        %v661 = vld [vmem:[%s5 + $0x330] sm:$0xff]
        %v662 = vld [vmem:[%s5 + $0x338] sm:$0xff]
        %v663 = vld [vmem:[%s5 + $0x340] sm:$0xff]
        %v664 = vld [vmem:[%s5 + $0x348] sm:$0xff]
        %v665 = vld [vmem:[%s5 + $0x350] sm:$0xff]
        %v666 = vld [vmem:[%s5 + $0x358] sm:$0xff]
        %v667 = vld [vmem:[%s5 + $0x360] sm:$0xff]
        %v668 = vld [vmem:[%s5 + $0x368] sm:$0xff]
        %v669 = vld [vmem:[%s5 + $0x370] sm:$0xff]
        %v670 = vld [vmem:[%s5 + $0x378] sm:$0xff]
        %v671 = vld [vmem:[%s5 + $0x380] sm:$0xff]
        %v672 = vld [vmem:[%s5 + $0x388] sm:$0xff]
        %v673 = vld [vmem:[%s5 + $0x390] sm:$0xff]
        %v674 = vld [vmem:[%s5 + $0x398] sm:$0xff]
        %v675 = vld [vmem:[%s5 + $0x3a0] sm:$0xff]
        %v676 = vld [vmem:[%s5 + $0x3a8] sm:$0xff]
        %v677 = vld [vmem:[%s5 + $0x3b0] sm:$0xff]
        %v678 = vld [vmem:[%s5 + $0x3b8] sm:$0xff]
        %v679 = vld [vmem:[%s5 + $0x3c0] sm:$0xff]
        %v680 = vld [vmem:[%s5 + $0x3c8] sm:$0xff]
        %v681 = vld [vmem:[%s5 + $0x3d0] sm:$0xff]
        %v682 = vld [vmem:[%s5 + $0x3d8] sm:$0xff]
        %v683 = vld [vmem:[%s5 + $0x3e0] sm:$0xff]
        %v684 = vld [vmem:[%s5 + $0x3e8] sm:$0xff]
        %v685 = vld [vmem:[%s5 + $0x3f0] sm:$0xff]
        %v686 = vld [vmem:[%s5 + $0x3f8] sm:$0xff]
        %v687 = vld [vmem:[%s5 + $0x400] sm:$0xff]
        %v688 = vld [vmem:[%s5 + $0x408] sm:$0xff]
        %v689 = vld [vmem:[%s5 + $0x410] sm:$0xff]
        %v690 = vld [vmem:[%s5 + $0x418] sm:$0xff]
        %v691 = vld [vmem:[%s5 + $0x420] sm:$0xff]
        %v692 = vld [vmem:[%s5 + $0x428] sm:$0xff]
        %v693 = vld [vmem:[%s5 + $0x430] sm:$0xff]
        %v694 = vld [vmem:[%s5 + $0x438] sm:$0xff]
        %v695 = vld [vmem:[%s5 + $0x440] sm:$0xff]
        %v696 = vld [vmem:[%s5 + $0x448] sm:$0xff]
        %v697 = vld [vmem:[%s5 + $0x450] sm:$0xff]
        %v698 = vld [vmem:[%s5 + $0x458] sm:$0xff]
        %v699 = vld [vmem:[%s5 + $0x460] sm:$0xff]
        %v700 = vld [vmem:[%s5 + $0x468] sm:$0xff]
        %v701 = vld [vmem:[%s5 + $0x470] sm:$0xff]
        %v702 = vld [vmem:[%s5 + $0x478] sm:$0xff]
        %v703 = vld [vmem:[%s5 + $0x480] sm:$0xff]
        %v704 = vld [vmem:[%s5 + $0x488] sm:$0xff]
        %v705 = vld [vmem:[%s5 + $0x490] sm:$0xff]
        %v706 = vld [vmem:[%s5 + $0x498] sm:$0xff]
        %v707 = vld [vmem:[%s5 + $0x4a0] sm:$0xff]
        %v708 = vld [vmem:[%s5 + $0x4a8] sm:$0xff]
        %v709 = vld [vmem:[%s5 + $0x4b0] sm:$0xff]
        %v710 = vld [vmem:[%s5 + $0x4b8] sm:$0xff]
        %v711 = vld [vmem:[%s5 + $0x4c0] sm:$0xff]
        %v712 = vld [vmem:[%s5 + $0x4c8] sm:$0xff]
        %v713 = vld [vmem:[%s5 + $0x4d0] sm:$0xff]
        %v714 = vld [vmem:[%s5 + $0x4d8] sm:$0xff]
        %v715 = vld [vmem:[%s5 + $0x4e0] sm:$0xff]
        %v716 = vld [vmem:[%s5 + $0x4e8] sm:$0xff]
        %v717 = vld [vmem:[%s5 + $0x4f0] sm:$0xff]
        %v718 = vld [vmem:[%s5 + $0x4f8] sm:$0xff]
        %v719 = vld [vmem:[%s5 + $0x500] sm:$0xff]
        %v720 = vld [vmem:[%s5 + $0x508] sm:$0xff]
        %v721 = vld [vmem:[%s5 + $0x510] sm:$0xff]
        %v722 = vld [vmem:[%s5 + $0x518] sm:$0xff]
        %v723 = vld [vmem:[%s5 + $0x520] sm:$0xff]
        %v724 = vld [vmem:[%s5 + $0x528] sm:$0xff]
        %v725 = vld [vmem:[%s5 + $0x530] sm:$0xff]
        %v726 = vld [vmem:[%s5 + $0x538] sm:$0xff]
        %v727 = vld [vmem:[%s5 + $0x540] sm:$0xff]
        %v728 = vld [vmem:[%s5 + $0x548] sm:$0xff]
        %v729 = vld [vmem:[%s5 + $0x550] sm:$0xff]
        %v730 = vld [vmem:[%s5 + $0x558] sm:$0xff]
        %v731 = vld [vmem:[%s5 + $0x560] sm:$0xff]
        %v732 = vld [vmem:[%s5 + $0x568] sm:$0xff]
        %v733 = vld [vmem:[%s5 + $0x570] sm:$0xff]
        %v734 = vld [vmem:[%s5 + $0x578] sm:$0xff]
        %v735 = vld [vmem:[%s5 + $0x580] sm:$0xff]
        %v736 = vld [vmem:[%s5 + $0x588] sm:$0xff]
        %v737 = vld [vmem:[%s5 + $0x590] sm:$0xff]
        %v738 = vld [vmem:[%s5 + $0x598] sm:$0xff]
        %v739 = vld [vmem:[%s5 + $0x5a0] sm:$0xff]
        %v740 = vld [vmem:[%s5 + $0x5a8] sm:$0xff]
        %v741 = vld [vmem:[%s5 + $0x5b0] sm:$0xff]
        %v742 = vld [vmem:[%s5 + $0x5b8] sm:$0xff]
        %v743 = vld [vmem:[%s5 + $0x5c0] sm:$0xff]
        %v744 = vld [vmem:[%s5 + $0x5c8] sm:$0xff]
        %v745 = vld [vmem:[%s5 + $0x5d0] sm:$0xff]
        %v746 = vld [vmem:[%s5 + $0x5d8] sm:$0xff]
        %v747 = vld [vmem:[%s5 + $0x5e0] sm:$0xff]
        %v748 = vld [vmem:[%s5 + $0x5e8] sm:$0xff]
        %v749 = vld [vmem:[%s5 + $0x5f0] sm:$0xff]
        %v750 = vld [vmem:[%s5 + $0x5f8] sm:$0xff]
        %v751 = vld [vmem:[#allocation7] sm:$0xff]
        %v752 = vld [vmem:[#allocation7 + $0x8] sm:$0xff]
        %v753 = vld [vmem:[#allocation7 + $0x10] sm:$0xff]
        %v754 = vld [vmem:[#allocation7 + $0x18] sm:$0xff]
        %v755 = vld [vmem:[#allocation7 + $0x20] sm:$0xff]
        %v756 = vld [vmem:[#allocation7 + $0x28] sm:$0xff]
        %v757 = vld [vmem:[#allocation7 + $0x30] sm:$0xff]
        %v758 = vld [vmem:[#allocation7 + $0x38] sm:$0xff]
        %v759 = vld [vmem:[#allocation7 + $0x40] sm:$0xff]
        %v760 = vld [vmem:[#allocation7 + $0x48] sm:$0xff]
        %v761 = vld [vmem:[#allocation7 + $0x50] sm:$0xff]
        %v762 = vld [vmem:[#allocation7 + $0x58] sm:$0xff]
        %v763 = vld [vmem:[#allocation7 + $0x60] sm:$0xff]
        %v764 = vld [vmem:[#allocation7 + $0x68] sm:$0xff]
        %v765 = vld [vmem:[#allocation7 + $0x70] sm:$0xff]
        %v766 = vld [vmem:[#allocation7 + $0x78] sm:$0xff]
        %v767 = vld [vmem:[#allocation7 + $0x80] sm:$0xff]
        %v768 = vld [vmem:[#allocation7 + $0x88] sm:$0xff]
        %v769 = vld [vmem:[#allocation7 + $0x90] sm:$0xff]
        %v770 = vld [vmem:[#allocation7 + $0x98] sm:$0xff]
        %v771 = vld [vmem:[#allocation7 + $0xa0] sm:$0xff]
        %v772 = vld [vmem:[#allocation7 + $0xa8] sm:$0xff]
        %v773 = vld [vmem:[#allocation7 + $0xb0] sm:$0xff]
        %v774 = vld [vmem:[#allocation7 + $0xb8] sm:$0xff]
        %v775 = vld [vmem:[#allocation7 + $0xc0] sm:$0xff]
        %v776 = vld [vmem:[#allocation7 + $0xc8] sm:$0xff]
        %v777 = vld [vmem:[#allocation7 + $0xd0] sm:$0xff]
        %v778 = vld [vmem:[#allocation7 + $0xd8] sm:$0xff]
        %v779 = vld [vmem:[#allocation7 + $0xe0] sm:$0xff]
        %v780 = vld [vmem:[#allocation7 + $0xe8] sm:$0xff]
        %v781 = vld [vmem:[#allocation7 + $0xf0] sm:$0xff]
        %v782 = vld [vmem:[#allocation7 + $0xf8] sm:$0xff]
        %v783 = vld [vmem:[#allocation7 + $0x100] sm:$0xff]
        %v784 = vld [vmem:[#allocation7 + $0x108] sm:$0xff]
        %v785 = vld [vmem:[#allocation7 + $0x110] sm:$0xff]
        %v786 = vld [vmem:[#allocation7 + $0x118] sm:$0xff]
        %v787 = vld [vmem:[#allocation7 + $0x120] sm:$0xff]
        %v788 = vld [vmem:[#allocation7 + $0x128] sm:$0xff]
        %v789 = vld [vmem:[#allocation7 + $0x130] sm:$0xff]
        %v790 = vld [vmem:[#allocation7 + $0x138] sm:$0xff]
        %v791 = vld [vmem:[#allocation7 + $0x140] sm:$0xff]
        %v792 = vld [vmem:[#allocation7 + $0x148] sm:$0xff]
        %v793 = vld [vmem:[#allocation7 + $0x150] sm:$0xff]
        %v794 = vld [vmem:[#allocation7 + $0x158] sm:$0xff]
        %v795 = vld [vmem:[#allocation7 + $0x160] sm:$0xff]
        %v796 = vld [vmem:[#allocation7 + $0x168] sm:$0xff]
        %v797 = vld [vmem:[#allocation7 + $0x170] sm:$0xff]
        %v798 = vld [vmem:[#allocation7 + $0x178] sm:$0xff]
        %v799 = vld [vmem:[#allocation7 + $0x180] sm:$0xff]
        %v800 = vld [vmem:[#allocation7 + $0x188] sm:$0xff]
        %v801 = vld [vmem:[#allocation7 + $0x190] sm:$0xff]
        %v802 = vld [vmem:[#allocation7 + $0x198] sm:$0xff]
        %v803 = vld [vmem:[#allocation7 + $0x1a0] sm:$0xff]
        %v804 = vld [vmem:[#allocation7 + $0x1a8] sm:$0xff]
        %v805 = vld [vmem:[#allocation7 + $0x1b0] sm:$0xff]
        %v806 = vld [vmem:[#allocation7 + $0x1b8] sm:$0xff]
        %v807 = vld [vmem:[#allocation7 + $0x1c0] sm:$0xff]
        %v808 = vld [vmem:[#allocation7 + $0x1c8] sm:$0xff]
        %v809 = vld [vmem:[#allocation7 + $0x1d0] sm:$0xff]
        %v810 = vld [vmem:[#allocation7 + $0x1d8] sm:$0xff]
        %v811 = vld [vmem:[#allocation7 + $0x1e0] sm:$0xff]
        %v812 = vld [vmem:[#allocation7 + $0x1e8] sm:$0xff]
        %v813 = vld [vmem:[#allocation7 + $0x1f0] sm:$0xff]
        %v814 = vld [vmem:[#allocation7 + $0x1f8] sm:$0xff]
        %v815 = vld [vmem:[#allocation7 + $0x200] sm:$0xff]
        %v816 = vld [vmem:[#allocation7 + $0x208] sm:$0xff]
        %v817 = vld [vmem:[#allocation7 + $0x210] sm:$0xff]
        %v818 = vld [vmem:[#allocation7 + $0x218] sm:$0xff]
        %v819 = vld [vmem:[#allocation7 + $0x220] sm:$0xff]
        %v820 = vld [vmem:[#allocation7 + $0x228] sm:$0xff]
        %v821 = vld [vmem:[#allocation7 + $0x230] sm:$0xff]
        %v822 = vld [vmem:[#allocation7 + $0x238] sm:$0xff]
        %v823 = vld [vmem:[#allocation7 + $0x240] sm:$0xff]
        %v824 = vld [vmem:[#allocation7 + $0x248] sm:$0xff]
        %v825 = vld [vmem:[#allocation7 + $0x250] sm:$0xff]
        %v826 = vld [vmem:[#allocation7 + $0x258] sm:$0xff]
        %v827 = vld [vmem:[#allocation7 + $0x260] sm:$0xff]
        %v828 = vld [vmem:[#allocation7 + $0x268] sm:$0xff]
        %v829 = vld [vmem:[#allocation7 + $0x270] sm:$0xff]
        %v830 = vld [vmem:[#allocation7 + $0x278] sm:$0xff]
        %v831 = vld [vmem:[#allocation7 + $0x280] sm:$0xff]
        %v832 = vld [vmem:[#allocation7 + $0x288] sm:$0xff]
        %v833 = vld [vmem:[#allocation7 + $0x290] sm:$0xff]
        %v834 = vld [vmem:[#allocation7 + $0x298] sm:$0xff]
        %v835 = vld [vmem:[#allocation7 + $0x2a0] sm:$0xff]
        %v836 = vld [vmem:[#allocation7 + $0x2a8] sm:$0xff]
        %v837 = vld [vmem:[#allocation7 + $0x2b0] sm:$0xff]
        %v838 = vld [vmem:[#allocation7 + $0x2b8] sm:$0xff]
        %v839 = vld [vmem:[#allocation7 + $0x2c0] sm:$0xff]
        %v840 = vld [vmem:[#allocation7 + $0x2c8] sm:$0xff]
        %v841 = vld [vmem:[#allocation7 + $0x2d0] sm:$0xff]
        %v842 = vld [vmem:[#allocation7 + $0x2d8] sm:$0xff]
        %v843 = vld [vmem:[#allocation7 + $0x2e0] sm:$0xff]
        %v844 = vld [vmem:[#allocation7 + $0x2e8] sm:$0xff]
        %v845 = vld [vmem:[#allocation7 + $0x2f0] sm:$0xff]
        %v846 = vld [vmem:[#allocation7 + $0x2f8] sm:$0xff]
        %v847 = vld [vmem:[#allocation7 + $0x300] sm:$0xff]
        %v848 = vld [vmem:[#allocation7 + $0x308] sm:$0xff]
        %v849 = vld [vmem:[#allocation7 + $0x310] sm:$0xff]
        %v850 = vld [vmem:[#allocation7 + $0x318] sm:$0xff]
        %v851 = vld [vmem:[#allocation7 + $0x320] sm:$0xff]
        %v852 = vld [vmem:[#allocation7 + $0x328] sm:$0xff]
        %v853 = vld [vmem:[#allocation7 + $0x330] sm:$0xff]
        %v854 = vld [vmem:[#allocation7 + $0x338] sm:$0xff]
        %v855 = vld [vmem:[#allocation7 + $0x340] sm:$0xff]
        %v856 = vld [vmem:[#allocation7 + $0x348] sm:$0xff]
        %v857 = vld [vmem:[#allocation7 + $0x350] sm:$0xff]
        %v858 = vld [vmem:[#allocation7 + $0x358] sm:$0xff]
        %v859 = vld [vmem:[#allocation7 + $0x360] sm:$0xff]
        %v860 = vld [vmem:[#allocation7 + $0x368] sm:$0xff]
        %v861 = vld [vmem:[#allocation7 + $0x370] sm:$0xff]
        %v862 = vld [vmem:[#allocation7 + $0x378] sm:$0xff]
        %v863 = vld [vmem:[#allocation7 + $0x380] sm:$0xff]
        %v864 = vld [vmem:[#allocation7 + $0x388] sm:$0xff]
        %v865 = vld [vmem:[#allocation7 + $0x390] sm:$0xff]
        %v866 = vld [vmem:[#allocation7 + $0x398] sm:$0xff]
        %v867 = vld [vmem:[#allocation7 + $0x3a0] sm:$0xff]
        %v868 = vld [vmem:[#allocation7 + $0x3a8] sm:$0xff]
        %v869 = vld [vmem:[#allocation7 + $0x3b0] sm:$0xff]
        %v870 = vld [vmem:[#allocation7 + $0x3b8] sm:$0xff]
        %v871 = vld [vmem:[#allocation7 + $0x3c0] sm:$0xff]
        %v872 = vld [vmem:[#allocation7 + $0x3c8] sm:$0xff]
        %v873 = vld [vmem:[#allocation7 + $0x3d0] sm:$0xff]
        %v874 = vld [vmem:[#allocation7 + $0x3d8] sm:$0xff]
        %v875 = vld [vmem:[#allocation7 + $0x3e0] sm:$0xff]
        %v876 = vld [vmem:[#allocation7 + $0x3e8] sm:$0xff]
        %v877 = vld [vmem:[#allocation7 + $0x3f0] sm:$0xff]
        %v878 = vld [vmem:[#allocation7 + $0x3f8] sm:$0xff]
        %880 = vset.pattern.permute.xlu0 0
        %881 = vperm.xlu0 %880, %v559
        %v882 = vpop.permute.xlu0 %881
        %885 = vset.pattern.permute.xlu0 0
        %886 = vperm.xlu0 %885, %v560
        %v887 = vpop.permute.xlu0 %886
        %890 = vset.pattern.permute.xlu0 0
        %891 = vperm.xlu0 %890, %v561
        %v892 = vpop.permute.xlu0 %891
        %895 = vset.pattern.permute.xlu0 0
        %896 = vperm.xlu0 %895, %v562
        %v897 = vpop.permute.xlu0 %896
        %900 = vset.pattern.permute.xlu0 0
        %901 = vperm.xlu0 %900, %v563
        %v902 = vpop.permute.xlu0 %901
        %905 = vset.pattern.permute.xlu0 0
        %906 = vperm.xlu0 %905, %v564
        %v907 = vpop.permute.xlu0 %906
        %910 = vset.pattern.permute.xlu0 0
        %911 = vperm.xlu0 %910, %v565
        %v912 = vpop.permute.xlu0 %911
        %915 = vset.pattern.permute.xlu0 0
        %916 = vperm.xlu0 %915, %v566
        %v917 = vpop.permute.xlu0 %916
        %920 = vset.pattern.permute.xlu0 0
        %921 = vperm.xlu0 %920, %v567
        %v922 = vpop.permute.xlu0 %921
        %925 = vset.pattern.permute.xlu0 0
        %926 = vperm.xlu0 %925, %v568
        %v927 = vpop.permute.xlu0 %926
        %930 = vset.pattern.permute.xlu0 0
        %931 = vperm.xlu0 %930, %v569
        %v932 = vpop.permute.xlu0 %931
        %935 = vset.pattern.permute.xlu0 0
        %936 = vperm.xlu0 %935, %v570
        %v937 = vpop.permute.xlu0 %936
        %940 = vset.pattern.permute.xlu0 0
        %941 = vperm.xlu0 %940, %v571
        %v942 = vpop.permute.xlu0 %941
        %945 = vset.pattern.permute.xlu0 0
        %946 = vperm.xlu0 %945, %v572
        %v947 = vpop.permute.xlu0 %946
        %950 = vset.pattern.permute.xlu0 0
        %951 = vperm.xlu0 %950, %v573
        %v952 = vpop.permute.xlu0 %951
        %955 = vset.pattern.permute.xlu0 0
        %956 = vperm.xlu0 %955, %v574
        %v957 = vpop.permute.xlu0 %956
        %960 = vset.pattern.permute.xlu0 0
        %961 = vperm.xlu0 %960, %v575
        %v962 = vpop.permute.xlu0 %961
        %965 = vset.pattern.permute.xlu0 0
        %966 = vperm.xlu0 %965, %v576
        %v967 = vpop.permute.xlu0 %966
        %970 = vset.pattern.permute.xlu0 0
        %971 = vperm.xlu0 %970, %v577
        %v972 = vpop.permute.xlu0 %971
        %975 = vset.pattern.permute.xlu0 0
        %976 = vperm.xlu0 %975, %v578
        %v977 = vpop.permute.xlu0 %976
        %980 = vset.pattern.permute.xlu0 0
        %981 = vperm.xlu0 %980, %v579
        %v982 = vpop.permute.xlu0 %981
        %985 = vset.pattern.permute.xlu0 0
        %986 = vperm.xlu0 %985, %v580
        %v987 = vpop.permute.xlu0 %986
        %990 = vset.pattern.permute.xlu0 0
        %991 = vperm.xlu0 %990, %v581
        %v992 = vpop.permute.xlu0 %991
        %995 = vset.pattern.permute.xlu0 0
        %996 = vperm.xlu0 %995, %v582
        %v997 = vpop.permute.xlu0 %996
        %1000 = vset.pattern.permute.xlu0 0
        %1001 = vperm.xlu0 %1000, %v583
        %v1002 = vpop.permute.xlu0 %1001
        %1005 = vset.pattern.permute.xlu0 0
        %1006 = vperm.xlu0 %1005, %v584
        %v1007 = vpop.permute.xlu0 %1006
        %1010 = vset.pattern.permute.xlu0 0
        %1011 = vperm.xlu0 %1010, %v585
        %v1012 = vpop.permute.xlu0 %1011
        %1015 = vset.pattern.permute.xlu0 0
        %1016 = vperm.xlu0 %1015, %v586
        %v1017 = vpop.permute.xlu0 %1016
        %1020 = vset.pattern.permute.xlu0 0
        %1021 = vperm.xlu0 %1020, %v587
        %v1022 = vpop.permute.xlu0 %1021
        %1025 = vset.pattern.permute.xlu0 0
        %1026 = vperm.xlu0 %1025, %v588
        %v1027 = vpop.permute.xlu0 %1026
        %1030 = vset.pattern.permute.xlu0 0
        %1031 = vperm.xlu0 %1030, %v589
        %v1032 = vpop.permute.xlu0 %1031
        %1035 = vset.pattern.permute.xlu0 0
        %1036 = vperm.xlu0 %1035, %v590
        %v1037 = vpop.permute.xlu0 %1036
        %1040 = vset.pattern.permute.xlu0 0
        %1041 = vperm.xlu0 %1040, %v591
        %v1042 = vpop.permute.xlu0 %1041
        %1045 = vset.pattern.permute.xlu0 0
        %1046 = vperm.xlu0 %1045, %v592
        %v1047 = vpop.permute.xlu0 %1046
        %1050 = vset.pattern.permute.xlu0 0
        %1051 = vperm.xlu0 %1050, %v593
        %v1052 = vpop.permute.xlu0 %1051
        %1055 = vset.pattern.permute.xlu0 0
        %1056 = vperm.xlu0 %1055, %v594
        %v1057 = vpop.permute.xlu0 %1056
        %1060 = vset.pattern.permute.xlu0 0
        %1061 = vperm.xlu0 %1060, %v595
        %v1062 = vpop.permute.xlu0 %1061
        %1065 = vset.pattern.permute.xlu0 0
        %1066 = vperm.xlu0 %1065, %v596
        %v1067 = vpop.permute.xlu0 %1066
        %1070 = vset.pattern.permute.xlu0 0
        %1071 = vperm.xlu0 %1070, %v597
        %v1072 = vpop.permute.xlu0 %1071
        %1075 = vset.pattern.permute.xlu0 0
        %1076 = vperm.xlu0 %1075, %v598
        %v1077 = vpop.permute.xlu0 %1076
        %1080 = vset.pattern.permute.xlu0 0
        %1081 = vperm.xlu0 %1080, %v599
        %v1082 = vpop.permute.xlu0 %1081
        %1085 = vset.pattern.permute.xlu0 0
        %1086 = vperm.xlu0 %1085, %v600
        %v1087 = vpop.permute.xlu0 %1086
        %1090 = vset.pattern.permute.xlu0 0
        %1091 = vperm.xlu0 %1090, %v601
        %v1092 = vpop.permute.xlu0 %1091
        %1095 = vset.pattern.permute.xlu0 0
        %1096 = vperm.xlu0 %1095, %v602
        %v1097 = vpop.permute.xlu0 %1096
        %1100 = vset.pattern.permute.xlu0 0
        %1101 = vperm.xlu0 %1100, %v603
        %v1102 = vpop.permute.xlu0 %1101
        %1105 = vset.pattern.permute.xlu0 0
        %1106 = vperm.xlu0 %1105, %v604
        %v1107 = vpop.permute.xlu0 %1106
        %1110 = vset.pattern.permute.xlu0 0
        %1111 = vperm.xlu0 %1110, %v605
        %v1112 = vpop.permute.xlu0 %1111
        %1115 = vset.pattern.permute.xlu0 0
        %1116 = vperm.xlu0 %1115, %v606
        %v1117 = vpop.permute.xlu0 %1116
        %1120 = vset.pattern.permute.xlu0 0
        %1121 = vperm.xlu0 %1120, %v607
        %v1122 = vpop.permute.xlu0 %1121
        %1125 = vset.pattern.permute.xlu0 0
        %1126 = vperm.xlu0 %1125, %v608
        %v1127 = vpop.permute.xlu0 %1126
        %1130 = vset.pattern.permute.xlu0 0
        %1131 = vperm.xlu0 %1130, %v609
        %v1132 = vpop.permute.xlu0 %1131
        %1135 = vset.pattern.permute.xlu0 0
        %1136 = vperm.xlu0 %1135, %v610
        %v1137 = vpop.permute.xlu0 %1136
        %1140 = vset.pattern.permute.xlu0 0
        %1141 = vperm.xlu0 %1140, %v611
        %v1142 = vpop.permute.xlu0 %1141
        %1145 = vset.pattern.permute.xlu0 0
        %1146 = vperm.xlu0 %1145, %v612
        %v1147 = vpop.permute.xlu0 %1146
        %1150 = vset.pattern.permute.xlu0 0
        %1151 = vperm.xlu0 %1150, %v613
        %v1152 = vpop.permute.xlu0 %1151
        %1155 = vset.pattern.permute.xlu0 0
        %1156 = vperm.xlu0 %1155, %v614
        %v1157 = vpop.permute.xlu0 %1156
        %1160 = vset.pattern.permute.xlu0 0
        %1161 = vperm.xlu0 %1160, %v615
        %v1162 = vpop.permute.xlu0 %1161
        %1165 = vset.pattern.permute.xlu0 0
        %1166 = vperm.xlu0 %1165, %v616
        %v1167 = vpop.permute.xlu0 %1166
        %1170 = vset.pattern.permute.xlu0 0
        %1171 = vperm.xlu0 %1170, %v617
        %v1172 = vpop.permute.xlu0 %1171
        %1175 = vset.pattern.permute.xlu0 0
        %1176 = vperm.xlu0 %1175, %v618
        %v1177 = vpop.permute.xlu0 %1176
        %1180 = vset.pattern.permute.xlu0 0
        %1181 = vperm.xlu0 %1180, %v619
        %v1182 = vpop.permute.xlu0 %1181
        %1185 = vset.pattern.permute.xlu0 0
        %1186 = vperm.xlu0 %1185, %v620
        %v1187 = vpop.permute.xlu0 %1186
        %1190 = vset.pattern.permute.xlu0 0
        %1191 = vperm.xlu0 %1190, %v621
        %v1192 = vpop.permute.xlu0 %1191
        %1195 = vset.pattern.permute.xlu0 0
        %1196 = vperm.xlu0 %1195, %v622
        %v1197 = vpop.permute.xlu0 %1196
        %v1327 = vunpack.c.l.b16 %v751
        %v1328 = vunpack.c.h.b16 %v751
        %v1329 = vunpack.c.l.b16 %v752
        %v1330 = vunpack.c.h.b16 %v752
        %v1331 = vunpack.c.l.b16 %v753
        %v1332 = vunpack.c.h.b16 %v753
        %v1333 = vunpack.c.l.b16 %v754
        %v1334 = vunpack.c.h.b16 %v754
        %v1335 = vunpack.c.l.b16 %v755
        %v1336 = vunpack.c.h.b16 %v755
        %v1337 = vunpack.c.l.b16 %v756
        %v1338 = vunpack.c.h.b16 %v756
        %v1339 = vunpack.c.l.b16 %v757
        %v1340 = vunpack.c.h.b16 %v757
        %v1341 = vunpack.c.l.b16 %v758
        %v1342 = vunpack.c.h.b16 %v758
        %v1343 = vunpack.c.l.b16 %v759
        %v1344 = vunpack.c.h.b16 %v759
        %v1345 = vunpack.c.l.b16 %v760
        %v1346 = vunpack.c.h.b16 %v760
        %v1347 = vunpack.c.l.b16 %v761
        %v1348 = vunpack.c.h.b16 %v761
        %v1349 = vunpack.c.l.b16 %v762
        %v1350 = vunpack.c.h.b16 %v762
        %v1351 = vunpack.c.l.b16 %v763
        %v1352 = vunpack.c.h.b16 %v763
        %v1353 = vunpack.c.l.b16 %v764
        %v1354 = vunpack.c.h.b16 %v764
        %v1355 = vunpack.c.l.b16 %v765
        %v1356 = vunpack.c.h.b16 %v765
        %v1357 = vunpack.c.l.b16 %v766
        %v1358 = vunpack.c.h.b16 %v766
        %v1359 = vunpack.c.l.b16 %v767
        %v1360 = vunpack.c.h.b16 %v767
        %v1361 = vunpack.c.l.b16 %v768
        %v1362 = vunpack.c.h.b16 %v768
        %v1363 = vunpack.c.l.b16 %v769
        %v1364 = vunpack.c.h.b16 %v769
        %v1365 = vunpack.c.l.b16 %v770
        %v1366 = vunpack.c.h.b16 %v770
        %v1367 = vunpack.c.l.b16 %v771
        %v1368 = vunpack.c.h.b16 %v771
        %v1369 = vunpack.c.l.b16 %v772
        %v1370 = vunpack.c.h.b16 %v772
        %v1371 = vunpack.c.l.b16 %v773
        %v1372 = vunpack.c.h.b16 %v773
        %v1373 = vunpack.c.l.b16 %v774
        %v1374 = vunpack.c.h.b16 %v774
        %v1375 = vunpack.c.l.b16 %v775
        %v1376 = vunpack.c.h.b16 %v775
        %v1377 = vunpack.c.l.b16 %v776
        %v1378 = vunpack.c.h.b16 %v776
        %v1379 = vunpack.c.l.b16 %v777
        %v1380 = vunpack.c.h.b16 %v777
        %v1381 = vunpack.c.l.b16 %v778
        %v1382 = vunpack.c.h.b16 %v778
        %v1383 = vunpack.c.l.b16 %v779
        %v1384 = vunpack.c.h.b16 %v779
        %v1385 = vunpack.c.l.b16 %v780
        %v1386 = vunpack.c.h.b16 %v780
        %v1387 = vunpack.c.l.b16 %v781
        %v1388 = vunpack.c.h.b16 %v781
        %v1389 = vunpack.c.l.b16 %v782
        %v1390 = vunpack.c.h.b16 %v782
        %v1391 = vunpack.c.l.b16 %v783
        %v1392 = vunpack.c.h.b16 %v783
        %v1393 = vunpack.c.l.b16 %v784
        %v1394 = vunpack.c.h.b16 %v784
        %v1395 = vunpack.c.l.b16 %v785
        %v1396 = vunpack.c.h.b16 %v785
        %v1397 = vunpack.c.l.b16 %v786
        %v1398 = vunpack.c.h.b16 %v786
        %v1399 = vunpack.c.l.b16 %v787
        %v1400 = vunpack.c.h.b16 %v787
        %v1401 = vunpack.c.l.b16 %v788
        %v1402 = vunpack.c.h.b16 %v788
        %v1403 = vunpack.c.l.b16 %v789
        %v1404 = vunpack.c.h.b16 %v789
        %v1405 = vunpack.c.l.b16 %v790
        %v1406 = vunpack.c.h.b16 %v790
        %v1407 = vunpack.c.l.b16 %v791
        %v1408 = vunpack.c.h.b16 %v791
        %v1409 = vunpack.c.l.b16 %v792
        %v1410 = vunpack.c.h.b16 %v792
        %v1411 = vunpack.c.l.b16 %v793
        %v1412 = vunpack.c.h.b16 %v793
        %v1413 = vunpack.c.l.b16 %v794
        %v1414 = vunpack.c.h.b16 %v794
        %v1415 = vunpack.c.l.b16 %v795
        %v1416 = vunpack.c.h.b16 %v795
        %v1417 = vunpack.c.l.b16 %v796
        %v1418 = vunpack.c.h.b16 %v796
        %v1419 = vunpack.c.l.b16 %v797
        %v1420 = vunpack.c.h.b16 %v797
        %v1421 = vunpack.c.l.b16 %v798
        %v1422 = vunpack.c.h.b16 %v798
        %v1423 = vunpack.c.l.b16 %v799
        %v1424 = vunpack.c.h.b16 %v799
        %v1425 = vunpack.c.l.b16 %v800
        %v1426 = vunpack.c.h.b16 %v800
        %v1427 = vunpack.c.l.b16 %v801
        %v1428 = vunpack.c.h.b16 %v801
        %v1429 = vunpack.c.l.b16 %v802
        %v1430 = vunpack.c.h.b16 %v802
        %v1431 = vunpack.c.l.b16 %v803
        %v1432 = vunpack.c.h.b16 %v803
        %v1433 = vunpack.c.l.b16 %v804
        %v1434 = vunpack.c.h.b16 %v804
        %v1435 = vunpack.c.l.b16 %v805
        %v1436 = vunpack.c.h.b16 %v805
        %v1437 = vunpack.c.l.b16 %v806
        %v1438 = vunpack.c.h.b16 %v806
        %v1439 = vunpack.c.l.b16 %v807
        %v1440 = vunpack.c.h.b16 %v807
        %v1441 = vunpack.c.l.b16 %v808
        %v1442 = vunpack.c.h.b16 %v808
        %v1443 = vunpack.c.l.b16 %v809
        %v1444 = vunpack.c.h.b16 %v809
        %v1445 = vunpack.c.l.b16 %v810
        %v1446 = vunpack.c.h.b16 %v810
        %v1447 = vunpack.c.l.b16 %v811
        %v1448 = vunpack.c.h.b16 %v811
        %v1449 = vunpack.c.l.b16 %v812
        %v1450 = vunpack.c.h.b16 %v812
        %v1451 = vunpack.c.l.b16 %v813
        %v1452 = vunpack.c.h.b16 %v813
        %v1453 = vunpack.c.l.b16 %v814
        %v1454 = vunpack.c.h.b16 %v814
        %v1455 = vunpack.c.l.b16 %v815
        %v1456 = vunpack.c.h.b16 %v815
        %v1457 = vunpack.c.l.b16 %v816
        %v1458 = vunpack.c.h.b16 %v816
        %v1459 = vunpack.c.l.b16 %v817
        %v1460 = vunpack.c.h.b16 %v817
        %v1461 = vunpack.c.l.b16 %v818
        %v1462 = vunpack.c.h.b16 %v818
        %v1463 = vunpack.c.l.b16 %v819
        %v1464 = vunpack.c.h.b16 %v819
        %v1465 = vunpack.c.l.b16 %v820
        %v1466 = vunpack.c.h.b16 %v820
        %v1467 = vunpack.c.l.b16 %v821
        %v1468 = vunpack.c.h.b16 %v821
        %v1469 = vunpack.c.l.b16 %v822
        %v1470 = vunpack.c.h.b16 %v822
        %v1471 = vunpack.c.l.b16 %v823
        %v1472 = vunpack.c.h.b16 %v823
        %v1473 = vunpack.c.l.b16 %v824
        %v1474 = vunpack.c.h.b16 %v824
        %v1475 = vunpack.c.l.b16 %v825
        %v1476 = vunpack.c.h.b16 %v825
        %v1477 = vunpack.c.l.b16 %v826
        %v1478 = vunpack.c.h.b16 %v826
        %v1479 = vunpack.c.l.b16 %v827
        %v1480 = vunpack.c.h.b16 %v827
        %v1481 = vunpack.c.l.b16 %v828
        %v1482 = vunpack.c.h.b16 %v828
        %v1483 = vunpack.c.l.b16 %v829
        %v1484 = vunpack.c.h.b16 %v829
        %v1485 = vunpack.c.l.b16 %v830
        %v1486 = vunpack.c.h.b16 %v830
        %v1487 = vunpack.c.l.b16 %v831
        %v1488 = vunpack.c.h.b16 %v831
        %v1489 = vunpack.c.l.b16 %v832
        %v1490 = vunpack.c.h.b16 %v832
        %v1491 = vunpack.c.l.b16 %v833
        %v1492 = vunpack.c.h.b16 %v833
        %v1493 = vunpack.c.l.b16 %v834
        %v1494 = vunpack.c.h.b16 %v834
        %v1495 = vunpack.c.l.b16 %v835
        %v1496 = vunpack.c.h.b16 %v835
        %v1497 = vunpack.c.l.b16 %v836
        %v1498 = vunpack.c.h.b16 %v836
        %v1499 = vunpack.c.l.b16 %v837
        %v1500 = vunpack.c.h.b16 %v837
        %v1501 = vunpack.c.l.b16 %v838
        %v1502 = vunpack.c.h.b16 %v838
        %v1503 = vunpack.c.l.b16 %v839
        %v1504 = vunpack.c.h.b16 %v839
        %v1505 = vunpack.c.l.b16 %v840
        %v1506 = vunpack.c.h.b16 %v840
        %v1507 = vunpack.c.l.b16 %v841
        %v1508 = vunpack.c.h.b16 %v841
        %v1509 = vunpack.c.l.b16 %v842
        %v1510 = vunpack.c.h.b16 %v842
        %v1511 = vunpack.c.l.b16 %v843
        %v1512 = vunpack.c.h.b16 %v843
        %v1513 = vunpack.c.l.b16 %v844
        %v1514 = vunpack.c.h.b16 %v844
        %v1515 = vunpack.c.l.b16 %v845
        %v1516 = vunpack.c.h.b16 %v845
        %v1517 = vunpack.c.l.b16 %v846
        %v1518 = vunpack.c.h.b16 %v846
        %v1519 = vunpack.c.l.b16 %v847
        %v1520 = vunpack.c.h.b16 %v847
        %v1521 = vunpack.c.l.b16 %v848
        %v1522 = vunpack.c.h.b16 %v848
        %v1523 = vunpack.c.l.b16 %v849
        %v1524 = vunpack.c.h.b16 %v849
        %v1525 = vunpack.c.l.b16 %v850
        %v1526 = vunpack.c.h.b16 %v850
        %v1527 = vunpack.c.l.b16 %v851
        %v1528 = vunpack.c.h.b16 %v851
        %v1529 = vunpack.c.l.b16 %v852
        %v1530 = vunpack.c.h.b16 %v852
        %v1531 = vunpack.c.l.b16 %v853
        %v1532 = vunpack.c.h.b16 %v853
        %v1533 = vunpack.c.l.b16 %v854
        %v1534 = vunpack.c.h.b16 %v854
        %v1535 = vunpack.c.l.b16 %v855
        %v1536 = vunpack.c.h.b16 %v855
        %v1537 = vunpack.c.l.b16 %v856
        %v1538 = vunpack.c.h.b16 %v856
        %v1539 = vunpack.c.l.b16 %v857
        %v1540 = vunpack.c.h.b16 %v857
        %v1541 = vunpack.c.l.b16 %v858
        %v1542 = vunpack.c.h.b16 %v858
        %v1543 = vunpack.c.l.b16 %v859
        %v1544 = vunpack.c.h.b16 %v859
        %v1545 = vunpack.c.l.b16 %v860
        %v1546 = vunpack.c.h.b16 %v860
        %v1547 = vunpack.c.l.b16 %v861
        %v1548 = vunpack.c.h.b16 %v861
        %v1549 = vunpack.c.l.b16 %v862
        %v1550 = vunpack.c.h.b16 %v862
        %v1551 = vunpack.c.l.b16 %v863
        %v1552 = vunpack.c.h.b16 %v863
        %v1553 = vunpack.c.l.b16 %v864
        %v1554 = vunpack.c.h.b16 %v864
        %v1555 = vunpack.c.l.b16 %v865
        %v1556 = vunpack.c.h.b16 %v865
        %v1557 = vunpack.c.l.b16 %v866
        %v1558 = vunpack.c.h.b16 %v866
        %v1559 = vunpack.c.l.b16 %v867
        %v1560 = vunpack.c.h.b16 %v867
        %v1561 = vunpack.c.l.b16 %v868
        %v1562 = vunpack.c.h.b16 %v868
        %v1563 = vunpack.c.l.b16 %v869
        %v1564 = vunpack.c.h.b16 %v869
        %v1565 = vunpack.c.l.b16 %v870
        %v1566 = vunpack.c.h.b16 %v870
        %v1567 = vunpack.c.l.b16 %v871
        %v1568 = vunpack.c.h.b16 %v871
        %v1569 = vunpack.c.l.b16 %v872
        %v1570 = vunpack.c.h.b16 %v872
        %v1571 = vunpack.c.l.b16 %v873
        %v1572 = vunpack.c.h.b16 %v873
        %v1573 = vunpack.c.l.b16 %v874
        %v1574 = vunpack.c.h.b16 %v874
        %v1575 = vunpack.c.l.b16 %v875
        %v1576 = vunpack.c.h.b16 %v875
        %v1577 = vunpack.c.l.b16 %v876
        %v1578 = vunpack.c.h.b16 %v876
        %v1579 = vunpack.c.l.b16 %v877
        %v1580 = vunpack.c.h.b16 %v877
        %v1581 = vunpack.c.l.b16 %v878
        %v1582 = vunpack.c.h.b16 %v878
        %v1583 = vpack.c.b16 %v1331, %v1327
        %v1584 = vpack.c.b16 %v1332, %v1328
        %v1585 = vpack.c.b16 %v1333, %v1329
        %v1586 = vpack.c.b16 %v1334, %v1330
        %v1587 = vpack.c.b16 %v1339, %v1335
        %v1588 = vpack.c.b16 %v1340, %v1336
        %v1589 = vpack.c.b16 %v1341, %v1337
        %v1590 = vpack.c.b16 %v1342, %v1338
        %v1591 = vpack.c.b16 %v1347, %v1343
        %v1592 = vpack.c.b16 %v1348, %v1344
        %v1593 = vpack.c.b16 %v1349, %v1345
        %v1594 = vpack.c.b16 %v1350, %v1346
        %v1595 = vpack.c.b16 %v1355, %v1351
        %v1596 = vpack.c.b16 %v1356, %v1352
        %v1597 = vpack.c.b16 %v1357, %v1353
        %v1598 = vpack.c.b16 %v1358, %v1354
        %v1599 = vpack.c.b16 %v1363, %v1359
        %v1600 = vpack.c.b16 %v1364, %v1360
        %v1601 = vpack.c.b16 %v1365, %v1361
        %v1602 = vpack.c.b16 %v1366, %v1362
        %v1603 = vpack.c.b16 %v1371, %v1367
        %v1604 = vpack.c.b16 %v1372, %v1368
        %v1605 = vpack.c.b16 %v1373, %v1369
        %v1606 = vpack.c.b16 %v1374, %v1370
        %v1607 = vpack.c.b16 %v1379, %v1375
        %v1608 = vpack.c.b16 %v1380, %v1376
        %v1609 = vpack.c.b16 %v1381, %v1377
        %v1610 = vpack.c.b16 %v1382, %v1378
        %v1611 = vpack.c.b16 %v1387, %v1383
        %v1612 = vpack.c.b16 %v1388, %v1384
        %v1613 = vpack.c.b16 %v1389, %v1385
        %v1614 = vpack.c.b16 %v1390, %v1386
        %v1615 = vpack.c.b16 %v1395, %v1391
        %v1616 = vpack.c.b16 %v1396, %v1392
        %v1617 = vpack.c.b16 %v1397, %v1393
        %v1618 = vpack.c.b16 %v1398, %v1394
        %v1619 = vpack.c.b16 %v1403, %v1399
        %v1620 = vpack.c.b16 %v1404, %v1400
        %v1621 = vpack.c.b16 %v1405, %v1401
        %v1622 = vpack.c.b16 %v1406, %v1402
        %v1623 = vpack.c.b16 %v1411, %v1407
        %v1624 = vpack.c.b16 %v1412, %v1408
        %v1625 = vpack.c.b16 %v1413, %v1409
        %v1626 = vpack.c.b16 %v1414, %v1410
        %v1627 = vpack.c.b16 %v1419, %v1415
        %v1628 = vpack.c.b16 %v1420, %v1416
        %v1629 = vpack.c.b16 %v1421, %v1417
        %v1630 = vpack.c.b16 %v1422, %v1418
        %v1631 = vpack.c.b16 %v1427, %v1423
        %v1632 = vpack.c.b16 %v1428, %v1424
        %v1633 = vpack.c.b16 %v1429, %v1425
        %v1634 = vpack.c.b16 %v1430, %v1426
        %v1635 = vpack.c.b16 %v1435, %v1431
        %v1636 = vpack.c.b16 %v1436, %v1432
        %v1637 = vpack.c.b16 %v1437, %v1433
        %v1638 = vpack.c.b16 %v1438, %v1434
        %v1639 = vpack.c.b16 %v1443, %v1439
        %v1640 = vpack.c.b16 %v1444, %v1440
        %v1641 = vpack.c.b16 %v1445, %v1441
        %v1642 = vpack.c.b16 %v1446, %v1442
        %v1643 = vpack.c.b16 %v1451, %v1447
        %v1644 = vpack.c.b16 %v1452, %v1448
        %v1645 = vpack.c.b16 %v1453, %v1449
        %v1646 = vpack.c.b16 %v1454, %v1450
        %v1647 = vpack.c.b16 %v1459, %v1455
        %v1648 = vpack.c.b16 %v1460, %v1456
        %v1649 = vpack.c.b16 %v1461, %v1457
        %v1650 = vpack.c.b16 %v1462, %v1458
        %v1651 = vpack.c.b16 %v1467, %v1463
        %v1652 = vpack.c.b16 %v1468, %v1464
        %v1653 = vpack.c.b16 %v1469, %v1465
        %v1654 = vpack.c.b16 %v1470, %v1466
        %v1655 = vpack.c.b16 %v1475, %v1471
        %v1656 = vpack.c.b16 %v1476, %v1472
        %v1657 = vpack.c.b16 %v1477, %v1473
        %v1658 = vpack.c.b16 %v1478, %v1474
        %v1659 = vpack.c.b16 %v1483, %v1479
        %v1660 = vpack.c.b16 %v1484, %v1480
        %v1661 = vpack.c.b16 %v1485, %v1481
        %v1662 = vpack.c.b16 %v1486, %v1482
        %v1663 = vpack.c.b16 %v1491, %v1487
        %v1664 = vpack.c.b16 %v1492, %v1488
        %v1665 = vpack.c.b16 %v1493, %v1489
        %v1666 = vpack.c.b16 %v1494, %v1490
        %v1667 = vpack.c.b16 %v1499, %v1495
        %v1668 = vpack.c.b16 %v1500, %v1496
        %v1669 = vpack.c.b16 %v1501, %v1497
        %v1670 = vpack.c.b16 %v1502, %v1498
        %v1671 = vpack.c.b16 %v1507, %v1503
        %v1672 = vpack.c.b16 %v1508, %v1504
        %v1673 = vpack.c.b16 %v1509, %v1505
        %v1674 = vpack.c.b16 %v1510, %v1506
        %v1675 = vpack.c.b16 %v1515, %v1511
        %v1676 = vpack.c.b16 %v1516, %v1512
        %v1677 = vpack.c.b16 %v1517, %v1513
        %v1678 = vpack.c.b16 %v1518, %v1514
        %v1679 = vpack.c.b16 %v1523, %v1519
        %v1680 = vpack.c.b16 %v1524, %v1520
        %v1681 = vpack.c.b16 %v1525, %v1521
        %v1682 = vpack.c.b16 %v1526, %v1522
        %v1683 = vpack.c.b16 %v1531, %v1527
        %v1684 = vpack.c.b16 %v1532, %v1528
        %v1685 = vpack.c.b16 %v1533, %v1529
        %v1686 = vpack.c.b16 %v1534, %v1530
        %v1687 = vpack.c.b16 %v1539, %v1535
        %v1688 = vpack.c.b16 %v1540, %v1536
        %v1689 = vpack.c.b16 %v1541, %v1537
        %v1690 = vpack.c.b16 %v1542, %v1538
        %v1691 = vpack.c.b16 %v1547, %v1543
        %v1692 = vpack.c.b16 %v1548, %v1544
        %v1693 = vpack.c.b16 %v1549, %v1545
        %v1694 = vpack.c.b16 %v1550, %v1546
        %v1695 = vpack.c.b16 %v1555, %v1551
        %v1696 = vpack.c.b16 %v1556, %v1552
        %v1697 = vpack.c.b16 %v1557, %v1553
        %v1698 = vpack.c.b16 %v1558, %v1554
        %v1699 = vpack.c.b16 %v1563, %v1559
        %v1700 = vpack.c.b16 %v1564, %v1560
        %v1701 = vpack.c.b16 %v1565, %v1561
        %v1702 = vpack.c.b16 %v1566, %v1562
        %v1703 = vpack.c.b16 %v1571, %v1567
        %v1704 = vpack.c.b16 %v1572, %v1568
        %v1705 = vpack.c.b16 %v1573, %v1569
        %v1706 = vpack.c.b16 %v1574, %v1570
        %v1707 = vpack.c.b16 %v1579, %v1575
        %v1708 = vpack.c.b16 %v1580, %v1576
        %v1709 = vpack.c.b16 %v1581, %v1577
        %v1710 = vpack.c.b16 %v1582, %v1578
        %v1903 = vunpack.c.l.b16 %v367
        %v1904 = vunpack.c.l.b16 %v368
        %v1905 = vunpack.c.l.b16 %v369
        %v1906 = vunpack.c.l.b16 %v370
        %v1907 = vunpack.c.l.b16 %v371
        %v1908 = vunpack.c.l.b16 %v372
        %v1909 = vunpack.c.l.b16 %v373
        %v1910 = vunpack.c.l.b16 %v374
        %v1911 = vunpack.c.l.b16 %v375
        %v1912 = vunpack.c.l.b16 %v376
        %v1913 = vunpack.c.l.b16 %v377
        %v1914 = vunpack.c.l.b16 %v378
        %v1915 = vunpack.c.l.b16 %v379
        %v1916 = vunpack.c.l.b16 %v380
        %v1917 = vunpack.c.l.b16 %v381
        %v1918 = vunpack.c.l.b16 %v382
        %v1919 = vunpack.c.l.b16 %v383
        %v1920 = vunpack.c.l.b16 %v384
        %v1921 = vunpack.c.l.b16 %v385
        %v1922 = vunpack.c.l.b16 %v386
        %v1923 = vunpack.c.l.b16 %v387
        %v1924 = vunpack.c.l.b16 %v388
        %v1925 = vunpack.c.l.b16 %v389
        %v1926 = vunpack.c.l.b16 %v390
        %v1927 = vunpack.c.l.b16 %v391
        %v1928 = vunpack.c.l.b16 %v392
        %v1929 = vunpack.c.l.b16 %v393
        %v1930 = vunpack.c.l.b16 %v394
        %v1931 = vunpack.c.l.b16 %v395
        %v1932 = vunpack.c.l.b16 %v396
        %v1933 = vunpack.c.l.b16 %v397
        %v1934 = vunpack.c.l.b16 %v398
        %v1935 = vunpack.c.l.b16 %v399
        %v1936 = vunpack.c.l.b16 %v400
        %v1937 = vunpack.c.l.b16 %v401
        %v1938 = vunpack.c.l.b16 %v402
        %v1939 = vunpack.c.l.b16 %v403
        %v1940 = vunpack.c.l.b16 %v404
        %v1941 = vunpack.c.l.b16 %v405
        %v1942 = vunpack.c.l.b16 %v406
        %v1943 = vunpack.c.l.b16 %v407
        %v1944 = vunpack.c.l.b16 %v408
        %v1945 = vunpack.c.l.b16 %v409
        %v1946 = vunpack.c.l.b16 %v410
        %v1947 = vunpack.c.l.b16 %v411
        %v1948 = vunpack.c.l.b16 %v412
        %v1949 = vunpack.c.l.b16 %v413
        %v1950 = vunpack.c.l.b16 %v414
        %v1951 = vunpack.c.l.b16 %v415
        %v1952 = vunpack.c.l.b16 %v416
        %v1953 = vunpack.c.l.b16 %v417
        %v1954 = vunpack.c.l.b16 %v418
        %v1955 = vunpack.c.l.b16 %v419
        %v1956 = vunpack.c.l.b16 %v420
        %v1957 = vunpack.c.l.b16 %v421
        %v1958 = vunpack.c.l.b16 %v422
        %v1959 = vunpack.c.l.b16 %v423
        %v1960 = vunpack.c.l.b16 %v424
        %v1961 = vunpack.c.l.b16 %v425
        %v1962 = vunpack.c.l.b16 %v426
        %v1963 = vunpack.c.l.b16 %v427
        %v1964 = vunpack.c.l.b16 %v428
        %v1965 = vunpack.c.l.b16 %v429
        %v1966 = vunpack.c.l.b16 %v430
        %v1967 = vpack.c.b16 %v1904, %v1903
        %v1968 = vpack.c.b16 %v1906, %v1905
        %v1969 = vpack.c.b16 %v1908, %v1907
        %v1970 = vpack.c.b16 %v1910, %v1909
        %v1971 = vpack.c.b16 %v1912, %v1911
        %v1972 = vpack.c.b16 %v1914, %v1913
        %v1973 = vpack.c.b16 %v1916, %v1915
        %v1974 = vpack.c.b16 %v1918, %v1917
        %v1975 = vpack.c.b16 %v1920, %v1919
        %v1976 = vpack.c.b16 %v1922, %v1921
        %v1977 = vpack.c.b16 %v1924, %v1923
        %v1978 = vpack.c.b16 %v1926, %v1925
        %v1979 = vpack.c.b16 %v1928, %v1927
        %v1980 = vpack.c.b16 %v1930, %v1929
        %v1981 = vpack.c.b16 %v1932, %v1931
        %v1982 = vpack.c.b16 %v1934, %v1933
        %v1983 = vpack.c.b16 %v1936, %v1935
        %v1984 = vpack.c.b16 %v1938, %v1937
        %v1985 = vpack.c.b16 %v1940, %v1939
        %v1986 = vpack.c.b16 %v1942, %v1941
        %v1987 = vpack.c.b16 %v1944, %v1943
        %v1988 = vpack.c.b16 %v1946, %v1945
        %v1989 = vpack.c.b16 %v1948, %v1947
        %v1990 = vpack.c.b16 %v1950, %v1949
        %v1991 = vpack.c.b16 %v1952, %v1951
        %v1992 = vpack.c.b16 %v1954, %v1953
        %v1993 = vpack.c.b16 %v1956, %v1955
        %v1994 = vpack.c.b16 %v1958, %v1957
        %v1995 = vpack.c.b16 %v1960, %v1959
        %v1996 = vpack.c.b16 %v1962, %v1961
        %v1997 = vpack.c.b16 %v1964, %v1963
        %v1998 = vpack.c.b16 %v1966, %v1965
        %2031 = vmatpush.bf16.msra.mxu0 %v1974
        %2032 = vmatpush.bf16.msra.mxu0 %v1973
        %2033 = vmatpush.bf16.msra.mxu0 %v1972
        %2034 = vmatpush.bf16.msra.mxu0 %v1971
        %2035 = vmatpush.bf16.msra.mxu0 %v1970
        %2036 = vmatpush.bf16.msra.mxu0 %v1969
        %2037 = vmatpush.bf16.msra.mxu0 %v1968
        %2038 = vmatpush.bf16.msra.mxu0 %v1967
        %2039 = vmatmul.bf16.gmra.mxu0 %v1583
        %v2040 = vpop.f32.mrf.mxu0
        %v2041 = vadd.f32 %v882, %v2040
        %v2042 = vpop.f32.mrf.mxu0
        %v2043 = vadd.f32 %v887, %v2042
        %2044 = vmatmul.bf16.gmra.mxu0 %v1587
        %v2045 = vpop.f32.mrf.mxu0
        %v2046 = vadd.f32 %v892, %v2045
        %v2047 = vpop.f32.mrf.mxu0
        %v2048 = vadd.f32 %v897, %v2047
        %2049 = vmatmul.bf16.gmra.mxu0 %v1591
        %v2050 = vpop.f32.mrf.mxu0
        %v2051 = vadd.f32 %v902, %v2050
        %v2052 = vpop.f32.mrf.mxu0
        %v2053 = vadd.f32 %v907, %v2052
        %2054 = vmatmul.bf16.gmra.mxu0 %v1595
        %v2055 = vpop.f32.mrf.mxu0
        %v2056 = vadd.f32 %v912, %v2055
        %v2057 = vpop.f32.mrf.mxu0
        %v2058 = vadd.f32 %v917, %v2057
        %2059 = vmatmul.bf16.gmra.mxu0 %v1599
        %v2060 = vpop.f32.mrf.mxu0
        %v2061 = vadd.f32 %v922, %v2060
        %v2062 = vpop.f32.mrf.mxu0
        %v2063 = vadd.f32 %v927, %v2062
        %2064 = vmatmul.bf16.gmra.mxu0 %v1603
        %v2065 = vpop.f32.mrf.mxu0
        %v2066 = vadd.f32 %v932, %v2065
        %v2067 = vpop.f32.mrf.mxu0
        %v2068 = vadd.f32 %v937, %v2067
        %2069 = vmatmul.bf16.gmra.mxu0 %v1607
        %v2070 = vpop.f32.mrf.mxu0
        %v2071 = vadd.f32 %v942, %v2070
        %v2072 = vpop.f32.mrf.mxu0
        %v2073 = vadd.f32 %v947, %v2072
        %2074 = vmatmul.bf16.gmra.mxu0 %v1611
        %v2075 = vpop.f32.mrf.mxu0
        %v2076 = vadd.f32 %v952, %v2075
        %v2077 = vpop.f32.mrf.mxu0
        %v2078 = vadd.f32 %v957, %v2077
        %2079 = vmatmul.bf16.gmra.mxu0 %v1615
        %v2080 = vpop.f32.mrf.mxu0
        %v2081 = vadd.f32 %v962, %v2080
        %v2082 = vpop.f32.mrf.mxu0
        %v2083 = vadd.f32 %v967, %v2082
        %2084 = vmatmul.bf16.gmra.mxu0 %v1619
        %v2085 = vpop.f32.mrf.mxu0
        %v2086 = vadd.f32 %v972, %v2085
        %v2087 = vpop.f32.mrf.mxu0
        %v2088 = vadd.f32 %v977, %v2087
        %2089 = vmatmul.bf16.gmra.mxu0 %v1623
        %v2090 = vpop.f32.mrf.mxu0
        %v2091 = vadd.f32 %v982, %v2090
        %v2092 = vpop.f32.mrf.mxu0
        %v2093 = vadd.f32 %v987, %v2092
        %2094 = vmatmul.bf16.gmra.mxu0 %v1627
        %v2095 = vpop.f32.mrf.mxu0
        %v2096 = vadd.f32 %v992, %v2095
        %v2097 = vpop.f32.mrf.mxu0
        %v2098 = vadd.f32 %v997, %v2097
        %2099 = vmatmul.bf16.gmra.mxu0 %v1631
        %v2100 = vpop.f32.mrf.mxu0
        %v2101 = vadd.f32 %v1002, %v2100
        %v2102 = vpop.f32.mrf.mxu0
        %v2103 = vadd.f32 %v1007, %v2102
        %2104 = vmatmul.bf16.gmra.mxu0 %v1635
        %v2105 = vpop.f32.mrf.mxu0
        %v2106 = vadd.f32 %v1012, %v2105
        %v2107 = vpop.f32.mrf.mxu0
        %v2108 = vadd.f32 %v1017, %v2107
        %2109 = vmatmul.bf16.gmra.mxu0 %v1639
        %v2110 = vpop.f32.mrf.mxu0
        %v2111 = vadd.f32 %v1022, %v2110
        %v2112 = vpop.f32.mrf.mxu0
        %v2113 = vadd.f32 %v1027, %v2112
        %2114 = vmatmul.bf16.gmra.mxu0 %v1643
        %v2115 = vpop.f32.mrf.mxu0
        %v2116 = vadd.f32 %v1032, %v2115
        %v2117 = vpop.f32.mrf.mxu0
        %v2118 = vadd.f32 %v1037, %v2117
        %2119 = vmatmul.bf16.gmra.mxu0 %v1647
        %v2120 = vpop.f32.mrf.mxu0
        %v2121 = vadd.f32 %v1042, %v2120
        %v2122 = vpop.f32.mrf.mxu0
        %v2123 = vadd.f32 %v1047, %v2122
        %2124 = vmatmul.bf16.gmra.mxu0 %v1651
        %v2125 = vpop.f32.mrf.mxu0
        %v2126 = vadd.f32 %v1052, %v2125
        %v2127 = vpop.f32.mrf.mxu0
        %v2128 = vadd.f32 %v1057, %v2127
        %2129 = vmatmul.bf16.gmra.mxu0 %v1655
        %v2130 = vpop.f32.mrf.mxu0
        %v2131 = vadd.f32 %v1062, %v2130
        %v2132 = vpop.f32.mrf.mxu0
        %v2133 = vadd.f32 %v1067, %v2132
        %2134 = vmatmul.bf16.gmra.mxu0 %v1659
        %v2135 = vpop.f32.mrf.mxu0
        %v2136 = vadd.f32 %v1072, %v2135
        %v2137 = vpop.f32.mrf.mxu0
        %v2138 = vadd.f32 %v1077, %v2137
        %2139 = vmatmul.bf16.gmra.mxu0 %v1663
        %v2140 = vpop.f32.mrf.mxu0
        %v2141 = vadd.f32 %v1082, %v2140
        %v2142 = vpop.f32.mrf.mxu0
        %v2143 = vadd.f32 %v1087, %v2142
        %2144 = vmatmul.bf16.gmra.mxu0 %v1667
        %v2145 = vpop.f32.mrf.mxu0
        %v2146 = vadd.f32 %v1092, %v2145
        %v2147 = vpop.f32.mrf.mxu0
        %v2148 = vadd.f32 %v1097, %v2147
        %2149 = vmatmul.bf16.gmra.mxu0 %v1671
        %v2150 = vpop.f32.mrf.mxu0
        %v2151 = vadd.f32 %v1102, %v2150
        %v2152 = vpop.f32.mrf.mxu0
        %v2153 = vadd.f32 %v1107, %v2152
        %2154 = vmatmul.bf16.gmra.mxu0 %v1675
        %v2155 = vpop.f32.mrf.mxu0
        %v2156 = vadd.f32 %v1112, %v2155
        %v2157 = vpop.f32.mrf.mxu0
        %v2158 = vadd.f32 %v1117, %v2157
        %2159 = vmatmul.bf16.gmra.mxu0 %v1679
        %v2160 = vpop.f32.mrf.mxu0
        %v2161 = vadd.f32 %v1122, %v2160
        %v2162 = vpop.f32.mrf.mxu0
        %v2163 = vadd.f32 %v1127, %v2162
        %2164 = vmatmul.bf16.gmra.mxu0 %v1683
        %v2165 = vpop.f32.mrf.mxu0
        %v2166 = vadd.f32 %v1132, %v2165
        %v2167 = vpop.f32.mrf.mxu0
        %v2168 = vadd.f32 %v1137, %v2167
        %2169 = vmatmul.bf16.gmra.mxu0 %v1687
        %v2170 = vpop.f32.mrf.mxu0
        %v2171 = vadd.f32 %v1142, %v2170
        %v2172 = vpop.f32.mrf.mxu0
        %v2173 = vadd.f32 %v1147, %v2172
        %2174 = vmatmul.bf16.gmra.mxu0 %v1691
        %v2175 = vpop.f32.mrf.mxu0
        %v2176 = vadd.f32 %v1152, %v2175
        %v2177 = vpop.f32.mrf.mxu0
        %v2178 = vadd.f32 %v1157, %v2177
        %2179 = vmatmul.bf16.gmra.mxu0 %v1695
        %v2180 = vpop.f32.mrf.mxu0
        %v2181 = vadd.f32 %v1162, %v2180
        %v2182 = vpop.f32.mrf.mxu0
        %v2183 = vadd.f32 %v1167, %v2182
        %2184 = vmatmul.bf16.gmra.mxu0 %v1699
        %v2185 = vpop.f32.mrf.mxu0
        %v2186 = vadd.f32 %v1172, %v2185
        %v2187 = vpop.f32.mrf.mxu0
        %v2188 = vadd.f32 %v1177, %v2187
        %2189 = vmatmul.bf16.gmra.mxu0 %v1703
        %v2190 = vpop.f32.mrf.mxu0
        %v2191 = vadd.f32 %v1182, %v2190
        %v2192 = vpop.f32.mrf.mxu0
        %v2193 = vadd.f32 %v1187, %v2192
        %2194 = vmatmul.bf16.gmra.mxu0 %v1707
        %v2195 = vpop.f32.mrf.mxu0
        %v2196 = vadd.f32 %v1192, %v2195
        %v2197 = vpop.f32.mrf.mxu0
        %v2198 = vadd.f32 %v1197, %v2197
        %2199 = vdwg.mxu0
        %2200 = vmatpush.bf16.msra.mxu0 %v1982
        %2201 = vmatpush.bf16.msra.mxu0 %v1981
        %2202 = vmatpush.bf16.msra.mxu0 %v1980
        %2203 = vmatpush.bf16.msra.mxu0 %v1979
        %2204 = vmatpush.bf16.msra.mxu0 %v1978
        %2205 = vmatpush.bf16.msra.mxu0 %v1977
        %2206 = vmatpush.bf16.msra.mxu0 %v1976
        %2207 = vmatpush.bf16.msra.mxu0 %v1975
        %2208 = vmatmul.bf16.gmra.mxu0 %v1584
        %v2209 = vpop.f32.mrf.mxu0
        %v2210 = vadd.f32 %v2041, %v2209
        %v2211 = vpop.f32.mrf.mxu0
        %v2212 = vadd.f32 %v2043, %v2211
        %2213 = vmatmul.bf16.gmra.mxu0 %v1588
        %v2214 = vpop.f32.mrf.mxu0
        %v2215 = vadd.f32 %v2046, %v2214
        %v2216 = vpop.f32.mrf.mxu0
        %v2217 = vadd.f32 %v2048, %v2216
        %2218 = vmatmul.bf16.gmra.mxu0 %v1592
        %v2219 = vpop.f32.mrf.mxu0
        %v2220 = vadd.f32 %v2051, %v2219
        %v2221 = vpop.f32.mrf.mxu0
        %v2222 = vadd.f32 %v2053, %v2221
        %2223 = vmatmul.bf16.gmra.mxu0 %v1596
        %v2224 = vpop.f32.mrf.mxu0
        %v2225 = vadd.f32 %v2056, %v2224
        %v2226 = vpop.f32.mrf.mxu0
        %v2227 = vadd.f32 %v2058, %v2226
        %2228 = vmatmul.bf16.gmra.mxu0 %v1600
        %v2229 = vpop.f32.mrf.mxu0
        %v2230 = vadd.f32 %v2061, %v2229
        %v2231 = vpop.f32.mrf.mxu0
        %v2232 = vadd.f32 %v2063, %v2231
        %2233 = vmatmul.bf16.gmra.mxu0 %v1604
        %v2234 = vpop.f32.mrf.mxu0
        %v2235 = vadd.f32 %v2066, %v2234
        %v2236 = vpop.f32.mrf.mxu0
        %v2237 = vadd.f32 %v2068, %v2236
        %2238 = vmatmul.bf16.gmra.mxu0 %v1608
        %v2239 = vpop.f32.mrf.mxu0
        %v2240 = vadd.f32 %v2071, %v2239
        %v2241 = vpop.f32.mrf.mxu0
        %v2242 = vadd.f32 %v2073, %v2241
        %2243 = vmatmul.bf16.gmra.mxu0 %v1612
        %v2244 = vpop.f32.mrf.mxu0
        %v2245 = vadd.f32 %v2076, %v2244
        %v2246 = vpop.f32.mrf.mxu0
        %v2247 = vadd.f32 %v2078, %v2246
        %2248 = vmatmul.bf16.gmra.mxu0 %v1616
        %v2249 = vpop.f32.mrf.mxu0
        %v2250 = vadd.f32 %v2081, %v2249
        %v2251 = vpop.f32.mrf.mxu0
        %v2252 = vadd.f32 %v2083, %v2251
        %2253 = vmatmul.bf16.gmra.mxu0 %v1620
        %v2254 = vpop.f32.mrf.mxu0
        %v2255 = vadd.f32 %v2086, %v2254
        %v2256 = vpop.f32.mrf.mxu0
        %v2257 = vadd.f32 %v2088, %v2256
        %2258 = vmatmul.bf16.gmra.mxu0 %v1624
        %v2259 = vpop.f32.mrf.mxu0
        %v2260 = vadd.f32 %v2091, %v2259
        %v2261 = vpop.f32.mrf.mxu0
        %v2262 = vadd.f32 %v2093, %v2261
        %2263 = vmatmul.bf16.gmra.mxu0 %v1628
        %v2264 = vpop.f32.mrf.mxu0
        %v2265 = vadd.f32 %v2096, %v2264
        %v2266 = vpop.f32.mrf.mxu0
        %v2267 = vadd.f32 %v2098, %v2266
        %2268 = vmatmul.bf16.gmra.mxu0 %v1632
        %v2269 = vpop.f32.mrf.mxu0
        %v2270 = vadd.f32 %v2101, %v2269
        %v2271 = vpop.f32.mrf.mxu0
        %v2272 = vadd.f32 %v2103, %v2271
        %2273 = vmatmul.bf16.gmra.mxu0 %v1636
        %v2274 = vpop.f32.mrf.mxu0
        %v2275 = vadd.f32 %v2106, %v2274
        %v2276 = vpop.f32.mrf.mxu0
        %v2277 = vadd.f32 %v2108, %v2276
        %2278 = vmatmul.bf16.gmra.mxu0 %v1640
        %v2279 = vpop.f32.mrf.mxu0
        %v2280 = vadd.f32 %v2111, %v2279
        %v2281 = vpop.f32.mrf.mxu0
        %v2282 = vadd.f32 %v2113, %v2281
        %2283 = vmatmul.bf16.gmra.mxu0 %v1644
        %v2284 = vpop.f32.mrf.mxu0
        %v2285 = vadd.f32 %v2116, %v2284
        %v2286 = vpop.f32.mrf.mxu0
        %v2287 = vadd.f32 %v2118, %v2286
        %2288 = vmatmul.bf16.gmra.mxu0 %v1648
        %v2289 = vpop.f32.mrf.mxu0
        %v2290 = vadd.f32 %v2121, %v2289
        %v2291 = vpop.f32.mrf.mxu0
        %v2292 = vadd.f32 %v2123, %v2291
        %2293 = vmatmul.bf16.gmra.mxu0 %v1652
        %v2294 = vpop.f32.mrf.mxu0
        %v2295 = vadd.f32 %v2126, %v2294
        %v2296 = vpop.f32.mrf.mxu0
        %v2297 = vadd.f32 %v2128, %v2296
        %2298 = vmatmul.bf16.gmra.mxu0 %v1656
        %v2299 = vpop.f32.mrf.mxu0
        %v2300 = vadd.f32 %v2131, %v2299
        %v2301 = vpop.f32.mrf.mxu0
        %v2302 = vadd.f32 %v2133, %v2301
        %2303 = vmatmul.bf16.gmra.mxu0 %v1660
        %v2304 = vpop.f32.mrf.mxu0
        %v2305 = vadd.f32 %v2136, %v2304
        %v2306 = vpop.f32.mrf.mxu0
        %v2307 = vadd.f32 %v2138, %v2306
        %2308 = vmatmul.bf16.gmra.mxu0 %v1664
        %v2309 = vpop.f32.mrf.mxu0
        %v2310 = vadd.f32 %v2141, %v2309
        %v2311 = vpop.f32.mrf.mxu0
        %v2312 = vadd.f32 %v2143, %v2311
        %2313 = vmatmul.bf16.gmra.mxu0 %v1668
        %v2314 = vpop.f32.mrf.mxu0
        %v2315 = vadd.f32 %v2146, %v2314
        %v2316 = vpop.f32.mrf.mxu0
        %v2317 = vadd.f32 %v2148, %v2316
        %2318 = vmatmul.bf16.gmra.mxu0 %v1672
        %v2319 = vpop.f32.mrf.mxu0
        %v2320 = vadd.f32 %v2151, %v2319
        %v2321 = vpop.f32.mrf.mxu0
        %v2322 = vadd.f32 %v2153, %v2321
        %2323 = vmatmul.bf16.gmra.mxu0 %v1676
        %v2324 = vpop.f32.mrf.mxu0
        %v2325 = vadd.f32 %v2156, %v2324
        %v2326 = vpop.f32.mrf.mxu0
        %v2327 = vadd.f32 %v2158, %v2326
        %2328 = vmatmul.bf16.gmra.mxu0 %v1680
        %v2329 = vpop.f32.mrf.mxu0
        %v2330 = vadd.f32 %v2161, %v2329
        %v2331 = vpop.f32.mrf.mxu0
        %v2332 = vadd.f32 %v2163, %v2331
        %2333 = vmatmul.bf16.gmra.mxu0 %v1684
        %v2334 = vpop.f32.mrf.mxu0
        %v2335 = vadd.f32 %v2166, %v2334
        %v2336 = vpop.f32.mrf.mxu0
        %v2337 = vadd.f32 %v2168, %v2336
        %2338 = vmatmul.bf16.gmra.mxu0 %v1688
        %v2339 = vpop.f32.mrf.mxu0
        %v2340 = vadd.f32 %v2171, %v2339
        %v2341 = vpop.f32.mrf.mxu0
        %v2342 = vadd.f32 %v2173, %v2341
        %2343 = vmatmul.bf16.gmra.mxu0 %v1692
        %v2344 = vpop.f32.mrf.mxu0
        %v2345 = vadd.f32 %v2176, %v2344
        %v2346 = vpop.f32.mrf.mxu0
        %v2347 = vadd.f32 %v2178, %v2346
        %2348 = vmatmul.bf16.gmra.mxu0 %v1696
        %v2349 = vpop.f32.mrf.mxu0
        %v2350 = vadd.f32 %v2181, %v2349
        %v2351 = vpop.f32.mrf.mxu0
        %v2352 = vadd.f32 %v2183, %v2351
        %2353 = vmatmul.bf16.gmra.mxu0 %v1700
        %v2354 = vpop.f32.mrf.mxu0
        %v2355 = vadd.f32 %v2186, %v2354
        %v2356 = vpop.f32.mrf.mxu0
        %v2357 = vadd.f32 %v2188, %v2356
        %2358 = vmatmul.bf16.gmra.mxu0 %v1704
        %v2359 = vpop.f32.mrf.mxu0
        %v2360 = vadd.f32 %v2191, %v2359
        %v2361 = vpop.f32.mrf.mxu0
        %v2362 = vadd.f32 %v2193, %v2361
        %2363 = vmatmul.bf16.gmra.mxu0 %v1708
        %v2364 = vpop.f32.mrf.mxu0
        %v2365 = vadd.f32 %v2196, %v2364
        %v2366 = vpop.f32.mrf.mxu0
        %v2367 = vadd.f32 %v2198, %v2366
        %2368 = vdwg.mxu0
        %2369 = vmatpush.bf16.msra.mxu0 %v1990
        %2370 = vmatpush.bf16.msra.mxu0 %v1989
        %2371 = vmatpush.bf16.msra.mxu0 %v1988
        %2372 = vmatpush.bf16.msra.mxu0 %v1987
        %2373 = vmatpush.bf16.msra.mxu0 %v1986
        %2374 = vmatpush.bf16.msra.mxu0 %v1985
        %2375 = vmatpush.bf16.msra.mxu0 %v1984
        %2376 = vmatpush.bf16.msra.mxu0 %v1983
        %2377 = vmatmul.bf16.gmra.mxu0 %v1585
        %v2378 = vpop.f32.mrf.mxu0
        %v2379 = vadd.f32 %v2210, %v2378
        %v2380 = vpop.f32.mrf.mxu0
        %v2381 = vadd.f32 %v2212, %v2380
        %2382 = vmatmul.bf16.gmra.mxu0 %v1589
        %v2383 = vpop.f32.mrf.mxu0
        %v2384 = vadd.f32 %v2215, %v2383
        %v2385 = vpop.f32.mrf.mxu0
        %v2386 = vadd.f32 %v2217, %v2385
        %2387 = vmatmul.bf16.gmra.mxu0 %v1593
        %v2388 = vpop.f32.mrf.mxu0
        %v2389 = vadd.f32 %v2220, %v2388
        %v2390 = vpop.f32.mrf.mxu0
        %v2391 = vadd.f32 %v2222, %v2390
        %2392 = vmatmul.bf16.gmra.mxu0 %v1597
        %v2393 = vpop.f32.mrf.mxu0
        %v2394 = vadd.f32 %v2225, %v2393
        %v2395 = vpop.f32.mrf.mxu0
        %v2396 = vadd.f32 %v2227, %v2395
        %2397 = vmatmul.bf16.gmra.mxu0 %v1601
        %v2398 = vpop.f32.mrf.mxu0
        %v2399 = vadd.f32 %v2230, %v2398
        %v2400 = vpop.f32.mrf.mxu0
        %v2401 = vadd.f32 %v2232, %v2400
        %2402 = vmatmul.bf16.gmra.mxu0 %v1605
        %v2403 = vpop.f32.mrf.mxu0
        %v2404 = vadd.f32 %v2235, %v2403
        %v2405 = vpop.f32.mrf.mxu0
        %v2406 = vadd.f32 %v2237, %v2405
        %2407 = vmatmul.bf16.gmra.mxu0 %v1609
        %v2408 = vpop.f32.mrf.mxu0
        %v2409 = vadd.f32 %v2240, %v2408
        %v2410 = vpop.f32.mrf.mxu0
        %v2411 = vadd.f32 %v2242, %v2410
        %2412 = vmatmul.bf16.gmra.mxu0 %v1613
        %v2413 = vpop.f32.mrf.mxu0
        %v2414 = vadd.f32 %v2245, %v2413
        %v2415 = vpop.f32.mrf.mxu0
        %v2416 = vadd.f32 %v2247, %v2415
        %2417 = vmatmul.bf16.gmra.mxu0 %v1617
        %v2418 = vpop.f32.mrf.mxu0
        %v2419 = vadd.f32 %v2250, %v2418
        %v2420 = vpop.f32.mrf.mxu0
        %v2421 = vadd.f32 %v2252, %v2420
        %2422 = vmatmul.bf16.gmra.mxu0 %v1621
        %v2423 = vpop.f32.mrf.mxu0
        %v2424 = vadd.f32 %v2255, %v2423
        %v2425 = vpop.f32.mrf.mxu0
        %v2426 = vadd.f32 %v2257, %v2425
        %2427 = vmatmul.bf16.gmra.mxu0 %v1625
        %v2428 = vpop.f32.mrf.mxu0
        %v2429 = vadd.f32 %v2260, %v2428
        %v2430 = vpop.f32.mrf.mxu0
        %v2431 = vadd.f32 %v2262, %v2430
        %2432 = vmatmul.bf16.gmra.mxu0 %v1629
        %v2433 = vpop.f32.mrf.mxu0
        %v2434 = vadd.f32 %v2265, %v2433
        %v2435 = vpop.f32.mrf.mxu0
        %v2436 = vadd.f32 %v2267, %v2435
        %2437 = vmatmul.bf16.gmra.mxu0 %v1633
        %v2438 = vpop.f32.mrf.mxu0
        %v2439 = vadd.f32 %v2270, %v2438
        %v2440 = vpop.f32.mrf.mxu0
        %v2441 = vadd.f32 %v2272, %v2440
        %2442 = vmatmul.bf16.gmra.mxu0 %v1637
        %v2443 = vpop.f32.mrf.mxu0
        %v2444 = vadd.f32 %v2275, %v2443
        %v2445 = vpop.f32.mrf.mxu0
        %v2446 = vadd.f32 %v2277, %v2445
        %2447 = vmatmul.bf16.gmra.mxu0 %v1641
        %v2448 = vpop.f32.mrf.mxu0
        %v2449 = vadd.f32 %v2280, %v2448
        %v2450 = vpop.f32.mrf.mxu0
        %v2451 = vadd.f32 %v2282, %v2450
        %2452 = vmatmul.bf16.gmra.mxu0 %v1645
        %v2453 = vpop.f32.mrf.mxu0
        %v2454 = vadd.f32 %v2285, %v2453
        %v2455 = vpop.f32.mrf.mxu0
        %v2456 = vadd.f32 %v2287, %v2455
        %2457 = vmatmul.bf16.gmra.mxu0 %v1649
        %v2458 = vpop.f32.mrf.mxu0
        %v2459 = vadd.f32 %v2290, %v2458
        %v2460 = vpop.f32.mrf.mxu0
        %v2461 = vadd.f32 %v2292, %v2460
        %2462 = vmatmul.bf16.gmra.mxu0 %v1653
        %v2463 = vpop.f32.mrf.mxu0
        %v2464 = vadd.f32 %v2295, %v2463
        %v2465 = vpop.f32.mrf.mxu0
        %v2466 = vadd.f32 %v2297, %v2465
        %2467 = vmatmul.bf16.gmra.mxu0 %v1657
        %v2468 = vpop.f32.mrf.mxu0
        %v2469 = vadd.f32 %v2300, %v2468
        %v2470 = vpop.f32.mrf.mxu0
        %v2471 = vadd.f32 %v2302, %v2470
        %2472 = vmatmul.bf16.gmra.mxu0 %v1661
        %v2473 = vpop.f32.mrf.mxu0
        %v2474 = vadd.f32 %v2305, %v2473
        %v2475 = vpop.f32.mrf.mxu0
        %v2476 = vadd.f32 %v2307, %v2475
        %2477 = vmatmul.bf16.gmra.mxu0 %v1665
        %v2478 = vpop.f32.mrf.mxu0
        %v2479 = vadd.f32 %v2310, %v2478
        %v2480 = vpop.f32.mrf.mxu0
        %v2481 = vadd.f32 %v2312, %v2480
        %2482 = vmatmul.bf16.gmra.mxu0 %v1669
        %v2483 = vpop.f32.mrf.mxu0
        %v2484 = vadd.f32 %v2315, %v2483
        %v2485 = vpop.f32.mrf.mxu0
        %v2486 = vadd.f32 %v2317, %v2485
        %2487 = vmatmul.bf16.gmra.mxu0 %v1673
        %v2488 = vpop.f32.mrf.mxu0
        %v2489 = vadd.f32 %v2320, %v2488
        %v2490 = vpop.f32.mrf.mxu0
        %v2491 = vadd.f32 %v2322, %v2490
        %2492 = vmatmul.bf16.gmra.mxu0 %v1677
        %v2493 = vpop.f32.mrf.mxu0
        %v2494 = vadd.f32 %v2325, %v2493
        %v2495 = vpop.f32.mrf.mxu0
        %v2496 = vadd.f32 %v2327, %v2495
        %2497 = vmatmul.bf16.gmra.mxu0 %v1681
        %v2498 = vpop.f32.mrf.mxu0
        %v2499 = vadd.f32 %v2330, %v2498
        %v2500 = vpop.f32.mrf.mxu0
        %v2501 = vadd.f32 %v2332, %v2500
        %2502 = vmatmul.bf16.gmra.mxu0 %v1685
        %v2503 = vpop.f32.mrf.mxu0
        %v2504 = vadd.f32 %v2335, %v2503
        %v2505 = vpop.f32.mrf.mxu0
        %v2506 = vadd.f32 %v2337, %v2505
        %2507 = vmatmul.bf16.gmra.mxu0 %v1689
        %v2508 = vpop.f32.mrf.mxu0
        %v2509 = vadd.f32 %v2340, %v2508
        %v2510 = vpop.f32.mrf.mxu0
        %v2511 = vadd.f32 %v2342, %v2510
        %2512 = vmatmul.bf16.gmra.mxu0 %v1693
        %v2513 = vpop.f32.mrf.mxu0
        %v2514 = vadd.f32 %v2345, %v2513
        %v2515 = vpop.f32.mrf.mxu0
        %v2516 = vadd.f32 %v2347, %v2515
        %2517 = vmatmul.bf16.gmra.mxu0 %v1697
        %v2518 = vpop.f32.mrf.mxu0
        %v2519 = vadd.f32 %v2350, %v2518
        %v2520 = vpop.f32.mrf.mxu0
        %v2521 = vadd.f32 %v2352, %v2520
        %2522 = vmatmul.bf16.gmra.mxu0 %v1701
        %v2523 = vpop.f32.mrf.mxu0
        %v2524 = vadd.f32 %v2355, %v2523
        %v2525 = vpop.f32.mrf.mxu0
        %v2526 = vadd.f32 %v2357, %v2525
        %2527 = vmatmul.bf16.gmra.mxu0 %v1705
        %v2528 = vpop.f32.mrf.mxu0
        %v2529 = vadd.f32 %v2360, %v2528
        %v2530 = vpop.f32.mrf.mxu0
        %v2531 = vadd.f32 %v2362, %v2530
        %2532 = vmatmul.bf16.gmra.mxu0 %v1709
        %v2533 = vpop.f32.mrf.mxu0
        %v2534 = vadd.f32 %v2365, %v2533
        %v2535 = vpop.f32.mrf.mxu0
        %v2536 = vadd.f32 %v2367, %v2535
        %2537 = vdwg.mxu0
        %2538 = vmatpush.bf16.msra.mxu0 %v1998
        %2539 = vmatpush.bf16.msra.mxu0 %v1997
        %2540 = vmatpush.bf16.msra.mxu0 %v1996
        %2541 = vmatpush.bf16.msra.mxu0 %v1995
        %2542 = vmatpush.bf16.msra.mxu0 %v1994
        %2543 = vmatpush.bf16.msra.mxu0 %v1993
        %2544 = vmatpush.bf16.msra.mxu0 %v1992
        %2545 = vmatpush.bf16.msra.mxu0 %v1991
        %2546 = vmatmul.bf16.gmra.mxu0 %v1586
        %v2547 = vpop.f32.mrf.mxu0
        %v2548 = vadd.f32 %v2379, %v2547
        %v2549 = vpop.f32.mrf.mxu0
        %v2550 = vadd.f32 %v2381, %v2549
        %2551 = vmatmul.bf16.gmra.mxu0 %v1590
        %v2552 = vpop.f32.mrf.mxu0
        %v2553 = vadd.f32 %v2384, %v2552
        %v2554 = vpop.f32.mrf.mxu0
        %v2555 = vadd.f32 %v2386, %v2554
        %2556 = vmatmul.bf16.gmra.mxu0 %v1594
        %v2557 = vpop.f32.mrf.mxu0
        %v2558 = vadd.f32 %v2389, %v2557
        %v2559 = vpop.f32.mrf.mxu0
        %v2560 = vadd.f32 %v2391, %v2559
        %2561 = vmatmul.bf16.gmra.mxu0 %v1598
        %v2562 = vpop.f32.mrf.mxu0
        %v2563 = vadd.f32 %v2394, %v2562
        %v2564 = vpop.f32.mrf.mxu0
        %v2565 = vadd.f32 %v2396, %v2564
        %2566 = vmatmul.bf16.gmra.mxu0 %v1602
        %v2567 = vpop.f32.mrf.mxu0
        %v2568 = vadd.f32 %v2399, %v2567
        %v2569 = vpop.f32.mrf.mxu0
        %v2570 = vadd.f32 %v2401, %v2569
        %2571 = vmatmul.bf16.gmra.mxu0 %v1606
        %v2572 = vpop.f32.mrf.mxu0
        %v2573 = vadd.f32 %v2404, %v2572
        %v2574 = vpop.f32.mrf.mxu0
        %v2575 = vadd.f32 %v2406, %v2574
        %2576 = vmatmul.bf16.gmra.mxu0 %v1610
        %v2577 = vpop.f32.mrf.mxu0
        %v2578 = vadd.f32 %v2409, %v2577
        %v2579 = vpop.f32.mrf.mxu0
        %v2580 = vadd.f32 %v2411, %v2579
        %2581 = vmatmul.bf16.gmra.mxu0 %v1614
        %v2582 = vpop.f32.mrf.mxu0
        %v2583 = vadd.f32 %v2414, %v2582
        %v2584 = vpop.f32.mrf.mxu0
        %v2585 = vadd.f32 %v2416, %v2584
        %2586 = vmatmul.bf16.gmra.mxu0 %v1618
        %v2587 = vpop.f32.mrf.mxu0
        %v2588 = vadd.f32 %v2419, %v2587
        %v2589 = vpop.f32.mrf.mxu0
        %v2590 = vadd.f32 %v2421, %v2589
        %2591 = vmatmul.bf16.gmra.mxu0 %v1622
        %v2592 = vpop.f32.mrf.mxu0
        %v2593 = vadd.f32 %v2424, %v2592
        %v2594 = vpop.f32.mrf.mxu0
        %v2595 = vadd.f32 %v2426, %v2594
        %2596 = vmatmul.bf16.gmra.mxu0 %v1626
        %v2597 = vpop.f32.mrf.mxu0
        %v2598 = vadd.f32 %v2429, %v2597
        %v2599 = vpop.f32.mrf.mxu0
        %v2600 = vadd.f32 %v2431, %v2599
        %2601 = vmatmul.bf16.gmra.mxu0 %v1630
        %v2602 = vpop.f32.mrf.mxu0
        %v2603 = vadd.f32 %v2434, %v2602
        %v2604 = vpop.f32.mrf.mxu0
        %v2605 = vadd.f32 %v2436, %v2604
        %2606 = vmatmul.bf16.gmra.mxu0 %v1634
        %v2607 = vpop.f32.mrf.mxu0
        %v2608 = vadd.f32 %v2439, %v2607
        %v2609 = vpop.f32.mrf.mxu0
        %v2610 = vadd.f32 %v2441, %v2609
        %2611 = vmatmul.bf16.gmra.mxu0 %v1638
        %v2612 = vpop.f32.mrf.mxu0
        %v2613 = vadd.f32 %v2444, %v2612
        %v2614 = vpop.f32.mrf.mxu0
        %v2615 = vadd.f32 %v2446, %v2614
        %2616 = vmatmul.bf16.gmra.mxu0 %v1642
        %v2617 = vpop.f32.mrf.mxu0
        %v2618 = vadd.f32 %v2449, %v2617
        %v2619 = vpop.f32.mrf.mxu0
        %v2620 = vadd.f32 %v2451, %v2619
        %2621 = vmatmul.bf16.gmra.mxu0 %v1646
        %v2622 = vpop.f32.mrf.mxu0
        %v2623 = vadd.f32 %v2454, %v2622
        %v2624 = vpop.f32.mrf.mxu0
        %v2625 = vadd.f32 %v2456, %v2624
        %2626 = vmatmul.bf16.gmra.mxu0 %v1650
        %v2627 = vpop.f32.mrf.mxu0
        %v2628 = vadd.f32 %v2459, %v2627
        %v2629 = vpop.f32.mrf.mxu0
        %v2630 = vadd.f32 %v2461, %v2629
        %2631 = vmatmul.bf16.gmra.mxu0 %v1654
        %v2632 = vpop.f32.mrf.mxu0
        %v2633 = vadd.f32 %v2464, %v2632
        %v2634 = vpop.f32.mrf.mxu0
        %v2635 = vadd.f32 %v2466, %v2634
        %2636 = vmatmul.bf16.gmra.mxu0 %v1658
        %v2637 = vpop.f32.mrf.mxu0
        %v2638 = vadd.f32 %v2469, %v2637
        %v2639 = vpop.f32.mrf.mxu0
        %v2640 = vadd.f32 %v2471, %v2639
        %2641 = vmatmul.bf16.gmra.mxu0 %v1662
        %v2642 = vpop.f32.mrf.mxu0
        %v2643 = vadd.f32 %v2474, %v2642
        %v2644 = vpop.f32.mrf.mxu0
        %v2645 = vadd.f32 %v2476, %v2644
        %2646 = vmatmul.bf16.gmra.mxu0 %v1666
        %v2647 = vpop.f32.mrf.mxu0
        %v2648 = vadd.f32 %v2479, %v2647
        %v2649 = vpop.f32.mrf.mxu0
        %v2650 = vadd.f32 %v2481, %v2649
        %2651 = vmatmul.bf16.gmra.mxu0 %v1670
        %v2652 = vpop.f32.mrf.mxu0
        %v2653 = vadd.f32 %v2484, %v2652
        %v2654 = vpop.f32.mrf.mxu0
        %v2655 = vadd.f32 %v2486, %v2654
        %2656 = vmatmul.bf16.gmra.mxu0 %v1674
        %v2657 = vpop.f32.mrf.mxu0
        %v2658 = vadd.f32 %v2489, %v2657
        %v2659 = vpop.f32.mrf.mxu0
        %v2660 = vadd.f32 %v2491, %v2659
        %2661 = vmatmul.bf16.gmra.mxu0 %v1678
        %v2662 = vpop.f32.mrf.mxu0
        %v2663 = vadd.f32 %v2494, %v2662
        %v2664 = vpop.f32.mrf.mxu0
        %v2665 = vadd.f32 %v2496, %v2664
        %2666 = vmatmul.bf16.gmra.mxu0 %v1682
        %v2667 = vpop.f32.mrf.mxu0
        %v2668 = vadd.f32 %v2499, %v2667
        %v2669 = vpop.f32.mrf.mxu0
        %v2670 = vadd.f32 %v2501, %v2669
        %2671 = vmatmul.bf16.gmra.mxu0 %v1686
        %v2672 = vpop.f32.mrf.mxu0
        %v2673 = vadd.f32 %v2504, %v2672
        %v2674 = vpop.f32.mrf.mxu0
        %v2675 = vadd.f32 %v2506, %v2674
        %2676 = vmatmul.bf16.gmra.mxu0 %v1690
        %v2677 = vpop.f32.mrf.mxu0
        %v2678 = vadd.f32 %v2509, %v2677
        %v2679 = vpop.f32.mrf.mxu0
        %v2680 = vadd.f32 %v2511, %v2679
        %2681 = vmatmul.bf16.gmra.mxu0 %v1694
        %v2682 = vpop.f32.mrf.mxu0
        %v2683 = vadd.f32 %v2514, %v2682
        %v2684 = vpop.f32.mrf.mxu0
        %v2685 = vadd.f32 %v2516, %v2684
        %2686 = vmatmul.bf16.gmra.mxu0 %v1698
        %v2687 = vpop.f32.mrf.mxu0
        %v2688 = vadd.f32 %v2519, %v2687
        %v2689 = vpop.f32.mrf.mxu0
        %v2690 = vadd.f32 %v2521, %v2689
        %2691 = vmatmul.bf16.gmra.mxu0 %v1702
        %v2692 = vpop.f32.mrf.mxu0
        %v2693 = vadd.f32 %v2524, %v2692
        %v2694 = vpop.f32.mrf.mxu0
        %v2695 = vadd.f32 %v2526, %v2694
        %2696 = vmatmul.bf16.gmra.mxu0 %v1706
        %v2697 = vpop.f32.mrf.mxu0
        %v2698 = vadd.f32 %v2529, %v2697
        %v2699 = vpop.f32.mrf.mxu0
        %v2700 = vadd.f32 %v2531, %v2699
        %2701 = vmatmul.bf16.gmra.mxu0 %v1710
        %v2702 = vpop.f32.mrf.mxu0
        %v2703 = vadd.f32 %v2534, %v2702
        %v2704 = vpop.f32.mrf.mxu0
        %v2705 = vadd.f32 %v2536, %v2704
        %2706 = vdwg.mxu0
        %v2707 = vld [vmem:[%s3] sm:$0xff]
        %v2708 = vld [vmem:[%s3 + $0x8] sm:$0xff]
        %v2709 = vld [vmem:[%s3 + $0x10] sm:$0xff]
        %v2710 = vld [vmem:[%s3 + $0x18] sm:$0xff]
        %v2711 = vld [vmem:[%s3 + $0x20] sm:$0xff]
        %v2712 = vld [vmem:[%s3 + $0x28] sm:$0xff]
        %v2713 = vld [vmem:[%s3 + $0x30] sm:$0xff]
        %v2714 = vld [vmem:[%s3 + $0x38] sm:$0xff]
        %v2715 = vld [vmem:[%s3 + $0x40] sm:$0xff]
        %v2716 = vld [vmem:[%s3 + $0x48] sm:$0xff]
        %v2717 = vld [vmem:[%s3 + $0x50] sm:$0xff]
        %v2718 = vld [vmem:[%s3 + $0x58] sm:$0xff]
        %v2719 = vld [vmem:[%s3 + $0x60] sm:$0xff]
        %v2720 = vld [vmem:[%s3 + $0x68] sm:$0xff]
        %v2721 = vld [vmem:[%s3 + $0x70] sm:$0xff]
        %v2722 = vld [vmem:[%s3 + $0x78] sm:$0xff]
        %v2723 = vld [vmem:[%s3 + $0x80] sm:$0xff]
        %v2724 = vld [vmem:[%s3 + $0x88] sm:$0xff]
        %v2725 = vld [vmem:[%s3 + $0x90] sm:$0xff]
        %v2726 = vld [vmem:[%s3 + $0x98] sm:$0xff]
        %v2727 = vld [vmem:[%s3 + $0xa0] sm:$0xff]
        %v2728 = vld [vmem:[%s3 + $0xa8] sm:$0xff]
        %v2729 = vld [vmem:[%s3 + $0xb0] sm:$0xff]
        %v2730 = vld [vmem:[%s3 + $0xb8] sm:$0xff]
        %v2731 = vld [vmem:[%s3 + $0xc0] sm:$0xff]
        %v2732 = vld [vmem:[%s3 + $0xc8] sm:$0xff]
        %v2733 = vld [vmem:[%s3 + $0xd0] sm:$0xff]
        %v2734 = vld [vmem:[%s3 + $0xd8] sm:$0xff]
        %v2735 = vld [vmem:[%s3 + $0xe0] sm:$0xff]
        %v2736 = vld [vmem:[%s3 + $0xe8] sm:$0xff]
        %v2737 = vld [vmem:[%s3 + $0xf0] sm:$0xff]
        %v2738 = vld [vmem:[%s3 + $0xf8] sm:$0xff]
        %v2739 = vld [vmem:[%s3 + $0x100] sm:$0xff]
        %v2740 = vld [vmem:[%s3 + $0x108] sm:$0xff]
        %v2741 = vld [vmem:[%s3 + $0x110] sm:$0xff]
        %v2742 = vld [vmem:[%s3 + $0x118] sm:$0xff]
        %v2743 = vld [vmem:[%s3 + $0x120] sm:$0xff]
        %v2744 = vld [vmem:[%s3 + $0x128] sm:$0xff]
        %v2745 = vld [vmem:[%s3 + $0x130] sm:$0xff]
        %v2746 = vld [vmem:[%s3 + $0x138] sm:$0xff]
        %v2747 = vld [vmem:[%s3 + $0x140] sm:$0xff]
        %v2748 = vld [vmem:[%s3 + $0x148] sm:$0xff]
        %v2749 = vld [vmem:[%s3 + $0x150] sm:$0xff]
        %v2750 = vld [vmem:[%s3 + $0x158] sm:$0xff]
        %v2751 = vld [vmem:[%s3 + $0x160] sm:$0xff]
        %v2752 = vld [vmem:[%s3 + $0x168] sm:$0xff]
        %v2753 = vld [vmem:[%s3 + $0x170] sm:$0xff]
        %v2754 = vld [vmem:[%s3 + $0x178] sm:$0xff]
        %v2755 = vld [vmem:[%s3 + $0x180] sm:$0xff]
        %v2756 = vld [vmem:[%s3 + $0x188] sm:$0xff]
        %v2757 = vld [vmem:[%s3 + $0x190] sm:$0xff]
        %v2758 = vld [vmem:[%s3 + $0x198] sm:$0xff]
        %v2759 = vld [vmem:[%s3 + $0x1a0] sm:$0xff]
        %v2760 = vld [vmem:[%s3 + $0x1a8] sm:$0xff]
        %v2761 = vld [vmem:[%s3 + $0x1b0] sm:$0xff]
        %v2762 = vld [vmem:[%s3 + $0x1b8] sm:$0xff]
        %v2763 = vld [vmem:[%s3 + $0x1c0] sm:$0xff]
        %v2764 = vld [vmem:[%s3 + $0x1c8] sm:$0xff]
        %v2765 = vld [vmem:[%s3 + $0x1d0] sm:$0xff]
        %v2766 = vld [vmem:[%s3 + $0x1d8] sm:$0xff]
        %v2767 = vld [vmem:[%s3 + $0x1e0] sm:$0xff]
        %v2768 = vld [vmem:[%s3 + $0x1e8] sm:$0xff]
        %v2769 = vld [vmem:[%s3 + $0x1f0] sm:$0xff]
        %v2770 = vld [vmem:[%s3 + $0x1f8] sm:$0xff]
        %v2771 = vld [vmem:[%s3 + $0x200] sm:$0xff]
        %v2772 = vld [vmem:[%s3 + $0x208] sm:$0xff]
        %v2773 = vld [vmem:[%s3 + $0x210] sm:$0xff]
        %v2774 = vld [vmem:[%s3 + $0x218] sm:$0xff]
        %v2775 = vld [vmem:[%s3 + $0x220] sm:$0xff]
        %v2776 = vld [vmem:[%s3 + $0x228] sm:$0xff]
        %v2777 = vld [vmem:[%s3 + $0x230] sm:$0xff]
        %v2778 = vld [vmem:[%s3 + $0x238] sm:$0xff]
        %v2779 = vld [vmem:[%s3 + $0x240] sm:$0xff]
        %v2780 = vld [vmem:[%s3 + $0x248] sm:$0xff]
        %v2781 = vld [vmem:[%s3 + $0x250] sm:$0xff]
        %v2782 = vld [vmem:[%s3 + $0x258] sm:$0xff]
        %v2783 = vld [vmem:[%s3 + $0x260] sm:$0xff]
        %v2784 = vld [vmem:[%s3 + $0x268] sm:$0xff]
        %v2785 = vld [vmem:[%s3 + $0x270] sm:$0xff]
        %v2786 = vld [vmem:[%s3 + $0x278] sm:$0xff]
        %v2787 = vld [vmem:[%s3 + $0x280] sm:$0xff]
        %v2788 = vld [vmem:[%s3 + $0x288] sm:$0xff]
        %v2789 = vld [vmem:[%s3 + $0x290] sm:$0xff]
        %v2790 = vld [vmem:[%s3 + $0x298] sm:$0xff]
        %v2791 = vld [vmem:[%s3 + $0x2a0] sm:$0xff]
        %v2792 = vld [vmem:[%s3 + $0x2a8] sm:$0xff]
        %v2793 = vld [vmem:[%s3 + $0x2b0] sm:$0xff]
        %v2794 = vld [vmem:[%s3 + $0x2b8] sm:$0xff]
        %v2795 = vld [vmem:[%s3 + $0x2c0] sm:$0xff]
        %v2796 = vld [vmem:[%s3 + $0x2c8] sm:$0xff]
        %v2797 = vld [vmem:[%s3 + $0x2d0] sm:$0xff]
        %v2798 = vld [vmem:[%s3 + $0x2d8] sm:$0xff]
        %v2799 = vld [vmem:[%s3 + $0x2e0] sm:$0xff]
        %v2800 = vld [vmem:[%s3 + $0x2e8] sm:$0xff]
        %v2801 = vld [vmem:[%s3 + $0x2f0] sm:$0xff]
        %v2802 = vld [vmem:[%s3 + $0x2f8] sm:$0xff]
        %v2803 = vld [vmem:[%s3 + $0x300] sm:$0xff]
        %v2804 = vld [vmem:[%s3 + $0x308] sm:$0xff]
        %v2805 = vld [vmem:[%s3 + $0x310] sm:$0xff]
        %v2806 = vld [vmem:[%s3 + $0x318] sm:$0xff]
        %v2807 = vld [vmem:[%s3 + $0x320] sm:$0xff]
        %v2808 = vld [vmem:[%s3 + $0x328] sm:$0xff]
        %v2809 = vld [vmem:[%s3 + $0x330] sm:$0xff]
        %v2810 = vld [vmem:[%s3 + $0x338] sm:$0xff]
        %v2811 = vld [vmem:[%s3 + $0x340] sm:$0xff]
        %v2812 = vld [vmem:[%s3 + $0x348] sm:$0xff]
        %v2813 = vld [vmem:[%s3 + $0x350] sm:$0xff]
        %v2814 = vld [vmem:[%s3 + $0x358] sm:$0xff]
        %v2815 = vld [vmem:[%s3 + $0x360] sm:$0xff]
        %v2816 = vld [vmem:[%s3 + $0x368] sm:$0xff]
        %v2817 = vld [vmem:[%s3 + $0x370] sm:$0xff]
        %v2818 = vld [vmem:[%s3 + $0x378] sm:$0xff]
        %v2819 = vld [vmem:[%s3 + $0x380] sm:$0xff]
        %v2820 = vld [vmem:[%s3 + $0x388] sm:$0xff]
        %v2821 = vld [vmem:[%s3 + $0x390] sm:$0xff]
        %v2822 = vld [vmem:[%s3 + $0x398] sm:$0xff]
        %v2823 = vld [vmem:[%s3 + $0x3a0] sm:$0xff]
        %v2824 = vld [vmem:[%s3 + $0x3a8] sm:$0xff]
        %v2825 = vld [vmem:[%s3 + $0x3b0] sm:$0xff]
        %v2826 = vld [vmem:[%s3 + $0x3b8] sm:$0xff]
        %v2827 = vld [vmem:[%s3 + $0x3c0] sm:$0xff]
        %v2828 = vld [vmem:[%s3 + $0x3c8] sm:$0xff]
        %v2829 = vld [vmem:[%s3 + $0x3d0] sm:$0xff]
        %v2830 = vld [vmem:[%s3 + $0x3d8] sm:$0xff]
        %v2831 = vld [vmem:[%s3 + $0x3e0] sm:$0xff]
        %v2832 = vld [vmem:[%s3 + $0x3e8] sm:$0xff]
        %v2833 = vld [vmem:[%s3 + $0x3f0] sm:$0xff]
        %v2834 = vld [vmem:[%s3 + $0x3f8] sm:$0xff]
        %v2835 = vld [vmem:[%s3 + $0x400] sm:$0xff]
        %v2836 = vld [vmem:[%s3 + $0x408] sm:$0xff]
        %v2837 = vld [vmem:[%s3 + $0x410] sm:$0xff]
        %v2838 = vld [vmem:[%s3 + $0x418] sm:$0xff]
        %v2839 = vld [vmem:[%s3 + $0x420] sm:$0xff]
        %v2840 = vld [vmem:[%s3 + $0x428] sm:$0xff]
        %v2841 = vld [vmem:[%s3 + $0x430] sm:$0xff]
        %v2842 = vld [vmem:[%s3 + $0x438] sm:$0xff]
        %v2843 = vld [vmem:[%s3 + $0x440] sm:$0xff]
        %v2844 = vld [vmem:[%s3 + $0x448] sm:$0xff]
        %v2845 = vld [vmem:[%s3 + $0x450] sm:$0xff]
        %v2846 = vld [vmem:[%s3 + $0x458] sm:$0xff]
        %v2847 = vld [vmem:[%s3 + $0x460] sm:$0xff]
        %v2848 = vld [vmem:[%s3 + $0x468] sm:$0xff]
        %v2849 = vld [vmem:[%s3 + $0x470] sm:$0xff]
        %v2850 = vld [vmem:[%s3 + $0x478] sm:$0xff]
        %v2851 = vld [vmem:[%s3 + $0x480] sm:$0xff]
        %v2852 = vld [vmem:[%s3 + $0x488] sm:$0xff]
        %v2853 = vld [vmem:[%s3 + $0x490] sm:$0xff]
        %v2854 = vld [vmem:[%s3 + $0x498] sm:$0xff]
        %v2855 = vld [vmem:[%s3 + $0x4a0] sm:$0xff]
        %v2856 = vld [vmem:[%s3 + $0x4a8] sm:$0xff]
        %v2857 = vld [vmem:[%s3 + $0x4b0] sm:$0xff]
        %v2858 = vld [vmem:[%s3 + $0x4b8] sm:$0xff]
        %v2859 = vld [vmem:[%s3 + $0x4c0] sm:$0xff]
        %v2860 = vld [vmem:[%s3 + $0x4c8] sm:$0xff]
        %v2861 = vld [vmem:[%s3 + $0x4d0] sm:$0xff]
        %v2862 = vld [vmem:[%s3 + $0x4d8] sm:$0xff]
        %v2863 = vld [vmem:[%s3 + $0x4e0] sm:$0xff]
        %v2864 = vld [vmem:[%s3 + $0x4e8] sm:$0xff]
        %v2865 = vld [vmem:[%s3 + $0x4f0] sm:$0xff]
        %v2866 = vld [vmem:[%s3 + $0x4f8] sm:$0xff]
        %v2867 = vld [vmem:[%s3 + $0x500] sm:$0xff]
        %v2868 = vld [vmem:[%s3 + $0x508] sm:$0xff]
        %v2869 = vld [vmem:[%s3 + $0x510] sm:$0xff]
        %v2870 = vld [vmem:[%s3 + $0x518] sm:$0xff]
        %v2871 = vld [vmem:[%s3 + $0x520] sm:$0xff]
        %v2872 = vld [vmem:[%s3 + $0x528] sm:$0xff]
        %v2873 = vld [vmem:[%s3 + $0x530] sm:$0xff]
        %v2874 = vld [vmem:[%s3 + $0x538] sm:$0xff]
        %v2875 = vld [vmem:[%s3 + $0x540] sm:$0xff]
        %v2876 = vld [vmem:[%s3 + $0x548] sm:$0xff]
        %v2877 = vld [vmem:[%s3 + $0x550] sm:$0xff]
        %v2878 = vld [vmem:[%s3 + $0x558] sm:$0xff]
        %v2879 = vld [vmem:[%s3 + $0x560] sm:$0xff]
        %v2880 = vld [vmem:[%s3 + $0x568] sm:$0xff]
        %v2881 = vld [vmem:[%s3 + $0x570] sm:$0xff]
        %v2882 = vld [vmem:[%s3 + $0x578] sm:$0xff]
        %v2883 = vld [vmem:[%s3 + $0x580] sm:$0xff]
        %v2884 = vld [vmem:[%s3 + $0x588] sm:$0xff]
        %v2885 = vld [vmem:[%s3 + $0x590] sm:$0xff]
        %v2886 = vld [vmem:[%s3 + $0x598] sm:$0xff]
        %v2887 = vld [vmem:[%s3 + $0x5a0] sm:$0xff]
        %v2888 = vld [vmem:[%s3 + $0x5a8] sm:$0xff]
        %v2889 = vld [vmem:[%s3 + $0x5b0] sm:$0xff]
        %v2890 = vld [vmem:[%s3 + $0x5b8] sm:$0xff]
        %v2891 = vld [vmem:[%s3 + $0x5c0] sm:$0xff]
        %v2892 = vld [vmem:[%s3 + $0x5c8] sm:$0xff]
        %v2893 = vld [vmem:[%s3 + $0x5d0] sm:$0xff]
        %v2894 = vld [vmem:[%s3 + $0x5d8] sm:$0xff]
        %v2895 = vld [vmem:[%s3 + $0x5e0] sm:$0xff]
        %v2896 = vld [vmem:[%s3 + $0x5e8] sm:$0xff]
        %v2897 = vld [vmem:[%s3 + $0x5f0] sm:$0xff]
        %v2898 = vld [vmem:[%s3 + $0x5f8] sm:$0xff]
        %2900 = vset.pattern.permute.xlu0 0
        %2901 = vperm.xlu0 %2900, %v623
        %v2902 = vpop.permute.xlu0 %2901
        %2905 = vset.pattern.permute.xlu0 0
        %2906 = vperm.xlu0 %2905, %v624
        %v2907 = vpop.permute.xlu0 %2906
        %2910 = vset.pattern.permute.xlu0 0
        %2911 = vperm.xlu0 %2910, %v625
        %v2912 = vpop.permute.xlu0 %2911
        %2915 = vset.pattern.permute.xlu0 0
        %2916 = vperm.xlu0 %2915, %v626
        %v2917 = vpop.permute.xlu0 %2916
        %2920 = vset.pattern.permute.xlu0 0
        %2921 = vperm.xlu0 %2920, %v627
        %v2922 = vpop.permute.xlu0 %2921
        %2925 = vset.pattern.permute.xlu0 0
        %2926 = vperm.xlu0 %2925, %v628
        %v2927 = vpop.permute.xlu0 %2926
        %2930 = vset.pattern.permute.xlu0 0
        %2931 = vperm.xlu0 %2930, %v629
        %v2932 = vpop.permute.xlu0 %2931
        %2935 = vset.pattern.permute.xlu0 0
        %2936 = vperm.xlu0 %2935, %v630
        %v2937 = vpop.permute.xlu0 %2936
        %2940 = vset.pattern.permute.xlu0 0
        %2941 = vperm.xlu0 %2940, %v631
        %v2942 = vpop.permute.xlu0 %2941
        %2945 = vset.pattern.permute.xlu0 0
        %2946 = vperm.xlu0 %2945, %v632
        %v2947 = vpop.permute.xlu0 %2946
        %2950 = vset.pattern.permute.xlu0 0
        %2951 = vperm.xlu0 %2950, %v633
        %v2952 = vpop.permute.xlu0 %2951
        %2955 = vset.pattern.permute.xlu0 0
        %2956 = vperm.xlu0 %2955, %v634
        %v2957 = vpop.permute.xlu0 %2956
        %2960 = vset.pattern.permute.xlu0 0
        %2961 = vperm.xlu0 %2960, %v635
        %v2962 = vpop.permute.xlu0 %2961
        %2965 = vset.pattern.permute.xlu0 0
        %2966 = vperm.xlu0 %2965, %v636
        %v2967 = vpop.permute.xlu0 %2966
        %2970 = vset.pattern.permute.xlu0 0
        %2971 = vperm.xlu0 %2970, %v637
        %v2972 = vpop.permute.xlu0 %2971
        %2975 = vset.pattern.permute.xlu0 0
        %2976 = vperm.xlu0 %2975, %v638
        %v2977 = vpop.permute.xlu0 %2976
        %2980 = vset.pattern.permute.xlu0 0
        %2981 = vperm.xlu0 %2980, %v639
        %v2982 = vpop.permute.xlu0 %2981
        %2985 = vset.pattern.permute.xlu0 0
        %2986 = vperm.xlu0 %2985, %v640
        %v2987 = vpop.permute.xlu0 %2986
        %2990 = vset.pattern.permute.xlu0 0
        %2991 = vperm.xlu0 %2990, %v641
        %v2992 = vpop.permute.xlu0 %2991
        %2995 = vset.pattern.permute.xlu0 0
        %2996 = vperm.xlu0 %2995, %v642
        %v2997 = vpop.permute.xlu0 %2996
        %3000 = vset.pattern.permute.xlu0 0
        %3001 = vperm.xlu0 %3000, %v643
        %v3002 = vpop.permute.xlu0 %3001
        %3005 = vset.pattern.permute.xlu0 0
        %3006 = vperm.xlu0 %3005, %v644
        %v3007 = vpop.permute.xlu0 %3006
        %3010 = vset.pattern.permute.xlu0 0
        %3011 = vperm.xlu0 %3010, %v645
        %v3012 = vpop.permute.xlu0 %3011
        %3015 = vset.pattern.permute.xlu0 0
        %3016 = vperm.xlu0 %3015, %v646
        %v3017 = vpop.permute.xlu0 %3016
        %3020 = vset.pattern.permute.xlu0 0
        %3021 = vperm.xlu0 %3020, %v647
        %v3022 = vpop.permute.xlu0 %3021
        %3025 = vset.pattern.permute.xlu0 0
        %3026 = vperm.xlu0 %3025, %v648
        %v3027 = vpop.permute.xlu0 %3026
        %3030 = vset.pattern.permute.xlu0 0
        %3031 = vperm.xlu0 %3030, %v649
        %v3032 = vpop.permute.xlu0 %3031
        %3035 = vset.pattern.permute.xlu0 0
        %3036 = vperm.xlu0 %3035, %v650
        %v3037 = vpop.permute.xlu0 %3036
        %3040 = vset.pattern.permute.xlu0 0
        %3041 = vperm.xlu0 %3040, %v651
        %v3042 = vpop.permute.xlu0 %3041
        %3045 = vset.pattern.permute.xlu0 0
        %3046 = vperm.xlu0 %3045, %v652
        %v3047 = vpop.permute.xlu0 %3046
        %3050 = vset.pattern.permute.xlu0 0
        %3051 = vperm.xlu0 %3050, %v653
        %v3052 = vpop.permute.xlu0 %3051
        %3055 = vset.pattern.permute.xlu0 0
        %3056 = vperm.xlu0 %3055, %v654
        %v3057 = vpop.permute.xlu0 %3056
        %3060 = vset.pattern.permute.xlu0 0
        %3061 = vperm.xlu0 %3060, %v655
        %v3062 = vpop.permute.xlu0 %3061
        %3065 = vset.pattern.permute.xlu0 0
        %3066 = vperm.xlu0 %3065, %v656
        %v3067 = vpop.permute.xlu0 %3066
        %3070 = vset.pattern.permute.xlu0 0
        %3071 = vperm.xlu0 %3070, %v657
        %v3072 = vpop.permute.xlu0 %3071
        %3075 = vset.pattern.permute.xlu0 0
        %3076 = vperm.xlu0 %3075, %v658
        %v3077 = vpop.permute.xlu0 %3076
        %3080 = vset.pattern.permute.xlu0 0
        %3081 = vperm.xlu0 %3080, %v659
        %v3082 = vpop.permute.xlu0 %3081
        %3085 = vset.pattern.permute.xlu0 0
        %3086 = vperm.xlu0 %3085, %v660
        %v3087 = vpop.permute.xlu0 %3086
        %3090 = vset.pattern.permute.xlu0 0
        %3091 = vperm.xlu0 %3090, %v661
        %v3092 = vpop.permute.xlu0 %3091
        %3095 = vset.pattern.permute.xlu0 0
        %3096 = vperm.xlu0 %3095, %v662
        %v3097 = vpop.permute.xlu0 %3096
        %3100 = vset.pattern.permute.xlu0 0
        %3101 = vperm.xlu0 %3100, %v663
        %v3102 = vpop.permute.xlu0 %3101
        %3105 = vset.pattern.permute.xlu0 0
        %3106 = vperm.xlu0 %3105, %v664
        %v3107 = vpop.permute.xlu0 %3106
        %3110 = vset.pattern.permute.xlu0 0
        %3111 = vperm.xlu0 %3110, %v665
        %v3112 = vpop.permute.xlu0 %3111
        %3115 = vset.pattern.permute.xlu0 0
        %3116 = vperm.xlu0 %3115, %v666
        %v3117 = vpop.permute.xlu0 %3116
        %3120 = vset.pattern.permute.xlu0 0
        %3121 = vperm.xlu0 %3120, %v667
        %v3122 = vpop.permute.xlu0 %3121
        %3125 = vset.pattern.permute.xlu0 0
        %3126 = vperm.xlu0 %3125, %v668
        %v3127 = vpop.permute.xlu0 %3126
        %3130 = vset.pattern.permute.xlu0 0
        %3131 = vperm.xlu0 %3130, %v669
        %v3132 = vpop.permute.xlu0 %3131
        %3135 = vset.pattern.permute.xlu0 0
        %3136 = vperm.xlu0 %3135, %v670
        %v3137 = vpop.permute.xlu0 %3136
        %3140 = vset.pattern.permute.xlu0 0
        %3141 = vperm.xlu0 %3140, %v671
        %v3142 = vpop.permute.xlu0 %3141
        %3145 = vset.pattern.permute.xlu0 0
        %3146 = vperm.xlu0 %3145, %v672
        %v3147 = vpop.permute.xlu0 %3146
        %3150 = vset.pattern.permute.xlu0 0
        %3151 = vperm.xlu0 %3150, %v673
        %v3152 = vpop.permute.xlu0 %3151
        %3155 = vset.pattern.permute.xlu0 0
        %3156 = vperm.xlu0 %3155, %v674
        %v3157 = vpop.permute.xlu0 %3156
        %3160 = vset.pattern.permute.xlu0 0
        %3161 = vperm.xlu0 %3160, %v675
        %v3162 = vpop.permute.xlu0 %3161
        %3165 = vset.pattern.permute.xlu0 0
        %3166 = vperm.xlu0 %3165, %v676
        %v3167 = vpop.permute.xlu0 %3166
        %3170 = vset.pattern.permute.xlu0 0
        %3171 = vperm.xlu0 %3170, %v677
        %v3172 = vpop.permute.xlu0 %3171
        %3175 = vset.pattern.permute.xlu0 0
        %3176 = vperm.xlu0 %3175, %v678
        %v3177 = vpop.permute.xlu0 %3176
        %3180 = vset.pattern.permute.xlu0 0
        %3181 = vperm.xlu0 %3180, %v679
        %v3182 = vpop.permute.xlu0 %3181
        %3185 = vset.pattern.permute.xlu0 0
        %3186 = vperm.xlu0 %3185, %v680
        %v3187 = vpop.permute.xlu0 %3186
        %3190 = vset.pattern.permute.xlu0 0
        %3191 = vperm.xlu0 %3190, %v681
        %v3192 = vpop.permute.xlu0 %3191
        %3195 = vset.pattern.permute.xlu0 0
        %3196 = vperm.xlu0 %3195, %v682
        %v3197 = vpop.permute.xlu0 %3196
        %3200 = vset.pattern.permute.xlu0 0
        %3201 = vperm.xlu0 %3200, %v683
        %v3202 = vpop.permute.xlu0 %3201
        %3205 = vset.pattern.permute.xlu0 0
        %3206 = vperm.xlu0 %3205, %v684
        %v3207 = vpop.permute.xlu0 %3206
        %3210 = vset.pattern.permute.xlu0 0
        %3211 = vperm.xlu0 %3210, %v685
        %v3212 = vpop.permute.xlu0 %3211
        %3215 = vset.pattern.permute.xlu0 0
        %3216 = vperm.xlu0 %3215, %v686
        %v3217 = vpop.permute.xlu0 %3216
        %3220 = vset.pattern.permute.xlu0 0
        %3221 = vperm.xlu0 %3220, %v687
        %v3222 = vpop.permute.xlu0 %3221
        %3225 = vset.pattern.permute.xlu0 0
        %3226 = vperm.xlu0 %3225, %v688
        %v3227 = vpop.permute.xlu0 %3226
        %3230 = vset.pattern.permute.xlu0 0
        %3231 = vperm.xlu0 %3230, %v689
        %v3232 = vpop.permute.xlu0 %3231
        %3235 = vset.pattern.permute.xlu0 0
        %3236 = vperm.xlu0 %3235, %v690
        %v3237 = vpop.permute.xlu0 %3236
        %3240 = vset.pattern.permute.xlu0 0
        %3241 = vperm.xlu0 %3240, %v691
        %v3242 = vpop.permute.xlu0 %3241
        %3245 = vset.pattern.permute.xlu0 0
        %3246 = vperm.xlu0 %3245, %v692
        %v3247 = vpop.permute.xlu0 %3246
        %3250 = vset.pattern.permute.xlu0 0
        %3251 = vperm.xlu0 %3250, %v693
        %v3252 = vpop.permute.xlu0 %3251
        %3255 = vset.pattern.permute.xlu0 0
        %3256 = vperm.xlu0 %3255, %v694
        %v3257 = vpop.permute.xlu0 %3256
        %3260 = vset.pattern.permute.xlu0 0
        %3261 = vperm.xlu0 %3260, %v695
        %v3262 = vpop.permute.xlu0 %3261
        %3265 = vset.pattern.permute.xlu0 0
        %3266 = vperm.xlu0 %3265, %v696
        %v3267 = vpop.permute.xlu0 %3266
        %3270 = vset.pattern.permute.xlu0 0
        %3271 = vperm.xlu0 %3270, %v697
        %v3272 = vpop.permute.xlu0 %3271
        %3275 = vset.pattern.permute.xlu0 0
        %3276 = vperm.xlu0 %3275, %v698
        %v3277 = vpop.permute.xlu0 %3276
        %3280 = vset.pattern.permute.xlu0 0
        %3281 = vperm.xlu0 %3280, %v699
        %v3282 = vpop.permute.xlu0 %3281
        %3285 = vset.pattern.permute.xlu0 0
        %3286 = vperm.xlu0 %3285, %v700
        %v3287 = vpop.permute.xlu0 %3286
        %3290 = vset.pattern.permute.xlu0 0
        %3291 = vperm.xlu0 %3290, %v701
        %v3292 = vpop.permute.xlu0 %3291
        %3295 = vset.pattern.permute.xlu0 0
        %3296 = vperm.xlu0 %3295, %v702
        %v3297 = vpop.permute.xlu0 %3296
        %3300 = vset.pattern.permute.xlu0 0
        %3301 = vperm.xlu0 %3300, %v703
        %v3302 = vpop.permute.xlu0 %3301
        %3305 = vset.pattern.permute.xlu0 0
        %3306 = vperm.xlu0 %3305, %v704
        %v3307 = vpop.permute.xlu0 %3306
        %3310 = vset.pattern.permute.xlu0 0
        %3311 = vperm.xlu0 %3310, %v705
        %v3312 = vpop.permute.xlu0 %3311
        %3315 = vset.pattern.permute.xlu0 0
        %3316 = vperm.xlu0 %3315, %v706
        %v3317 = vpop.permute.xlu0 %3316
        %3320 = vset.pattern.permute.xlu0 0
        %3321 = vperm.xlu0 %3320, %v707
        %v3322 = vpop.permute.xlu0 %3321
        %3325 = vset.pattern.permute.xlu0 0
        %3326 = vperm.xlu0 %3325, %v708
        %v3327 = vpop.permute.xlu0 %3326
        %3330 = vset.pattern.permute.xlu0 0
        %3331 = vperm.xlu0 %3330, %v709
        %v3332 = vpop.permute.xlu0 %3331
        %3335 = vset.pattern.permute.xlu0 0
        %3336 = vperm.xlu0 %3335, %v710
        %v3337 = vpop.permute.xlu0 %3336
        %3340 = vset.pattern.permute.xlu0 0
        %3341 = vperm.xlu0 %3340, %v711
        %v3342 = vpop.permute.xlu0 %3341
        %3345 = vset.pattern.permute.xlu0 0
        %3346 = vperm.xlu0 %3345, %v712
        %v3347 = vpop.permute.xlu0 %3346
        %3350 = vset.pattern.permute.xlu0 0
        %3351 = vperm.xlu0 %3350, %v713
        %v3352 = vpop.permute.xlu0 %3351
        %3355 = vset.pattern.permute.xlu0 0
        %3356 = vperm.xlu0 %3355, %v714
        %v3357 = vpop.permute.xlu0 %3356
        %3360 = vset.pattern.permute.xlu0 0
        %3361 = vperm.xlu0 %3360, %v715
        %v3362 = vpop.permute.xlu0 %3361
        %3365 = vset.pattern.permute.xlu0 0
        %3366 = vperm.xlu0 %3365, %v716
        %v3367 = vpop.permute.xlu0 %3366
        %3370 = vset.pattern.permute.xlu0 0
        %3371 = vperm.xlu0 %3370, %v717
        %v3372 = vpop.permute.xlu0 %3371
        %3375 = vset.pattern.permute.xlu0 0
        %3376 = vperm.xlu0 %3375, %v718
        %v3377 = vpop.permute.xlu0 %3376
        %v3571 = vunpack.c.l.b16 %v2707
        %v3572 = vunpack.c.h.b16 %v2707
        %v3573 = vunpack.c.l.b16 %v2708
        %v3574 = vunpack.c.h.b16 %v2708
        %v3575 = vunpack.c.l.b16 %v2709
        %v3576 = vunpack.c.h.b16 %v2709
        %v3577 = vunpack.c.l.b16 %v2710
        %v3578 = vunpack.c.h.b16 %v2710
        %v3579 = vunpack.c.l.b16 %v2711
        %v3580 = vunpack.c.h.b16 %v2711
        %v3581 = vunpack.c.l.b16 %v2712
        %v3582 = vunpack.c.h.b16 %v2712
        %v3583 = vunpack.c.l.b16 %v2713
        %v3584 = vunpack.c.h.b16 %v2713
        %v3585 = vunpack.c.l.b16 %v2714
        %v3586 = vunpack.c.h.b16 %v2714
        %v3587 = vunpack.c.l.b16 %v2715
        %v3588 = vunpack.c.h.b16 %v2715
        %v3589 = vunpack.c.l.b16 %v2716
        %v3590 = vunpack.c.h.b16 %v2716
        %v3591 = vunpack.c.l.b16 %v2717
        %v3592 = vunpack.c.h.b16 %v2717
        %v3593 = vunpack.c.l.b16 %v2718
        %v3594 = vunpack.c.h.b16 %v2718
        %v3595 = vunpack.c.l.b16 %v2719
        %v3596 = vunpack.c.h.b16 %v2719
        %v3597 = vunpack.c.l.b16 %v2720
        %v3598 = vunpack.c.h.b16 %v2720
        %v3599 = vunpack.c.l.b16 %v2721
        %v3600 = vunpack.c.h.b16 %v2721
        %v3601 = vunpack.c.l.b16 %v2722
        %v3602 = vunpack.c.h.b16 %v2722
        %v3603 = vunpack.c.l.b16 %v2723
        %v3604 = vunpack.c.h.b16 %v2723
        %v3605 = vunpack.c.l.b16 %v2724
        %v3606 = vunpack.c.h.b16 %v2724
        %v3607 = vunpack.c.l.b16 %v2725
        %v3608 = vunpack.c.h.b16 %v2725
        %v3609 = vunpack.c.l.b16 %v2726
        %v3610 = vunpack.c.h.b16 %v2726
        %v3611 = vunpack.c.l.b16 %v2727
        %v3612 = vunpack.c.h.b16 %v2727
        %v3613 = vunpack.c.l.b16 %v2728
        %v3614 = vunpack.c.h.b16 %v2728
        %v3615 = vunpack.c.l.b16 %v2729
        %v3616 = vunpack.c.h.b16 %v2729
        %v3617 = vunpack.c.l.b16 %v2730
        %v3618 = vunpack.c.h.b16 %v2730
        %v3619 = vunpack.c.l.b16 %v2731
        %v3620 = vunpack.c.h.b16 %v2731
        %v3621 = vunpack.c.l.b16 %v2732
        %v3622 = vunpack.c.h.b16 %v2732
        %v3623 = vunpack.c.l.b16 %v2733
        %v3624 = vunpack.c.h.b16 %v2733
        %v3625 = vunpack.c.l.b16 %v2734
        %v3626 = vunpack.c.h.b16 %v2734
        %v3627 = vunpack.c.l.b16 %v2735
        %v3628 = vunpack.c.h.b16 %v2735
        %v3629 = vunpack.c.l.b16 %v2736
        %v3630 = vunpack.c.h.b16 %v2736
        %v3631 = vunpack.c.l.b16 %v2737
        %v3632 = vunpack.c.h.b16 %v2737
        %v3633 = vunpack.c.l.b16 %v2738
        %v3634 = vunpack.c.h.b16 %v2738
        %v3635 = vunpack.c.l.b16 %v2739
        %v3636 = vunpack.c.h.b16 %v2739
        %v3637 = vunpack.c.l.b16 %v2740
        %v3638 = vunpack.c.h.b16 %v2740
        %v3639 = vunpack.c.l.b16 %v2741
        %v3640 = vunpack.c.h.b16 %v2741
        %v3641 = vunpack.c.l.b16 %v2742
        %v3642 = vunpack.c.h.b16 %v2742
        %v3643 = vunpack.c.l.b16 %v2743
        %v3644 = vunpack.c.h.b16 %v2743
        %v3645 = vunpack.c.l.b16 %v2744
        %v3646 = vunpack.c.h.b16 %v2744
        %v3647 = vunpack.c.l.b16 %v2745
        %v3648 = vunpack.c.h.b16 %v2745
        %v3649 = vunpack.c.l.b16 %v2746
        %v3650 = vunpack.c.h.b16 %v2746
        %v3651 = vunpack.c.l.b16 %v2747
        %v3652 = vunpack.c.h.b16 %v2747
        %v3653 = vunpack.c.l.b16 %v2748
        %v3654 = vunpack.c.h.b16 %v2748
        %v3655 = vunpack.c.l.b16 %v2749
        %v3656 = vunpack.c.h.b16 %v2749
        %v3657 = vunpack.c.l.b16 %v2750
        %v3658 = vunpack.c.h.b16 %v2750
        %v3659 = vunpack.c.l.b16 %v2751
        %v3660 = vunpack.c.h.b16 %v2751
        %v3661 = vunpack.c.l.b16 %v2752
        %v3662 = vunpack.c.h.b16 %v2752
        %v3663 = vunpack.c.l.b16 %v2753
        %v3664 = vunpack.c.h.b16 %v2753
        %v3665 = vunpack.c.l.b16 %v2754
        %v3666 = vunpack.c.h.b16 %v2754
        %v3667 = vunpack.c.l.b16 %v2755
        %v3668 = vunpack.c.h.b16 %v2755
        %v3669 = vunpack.c.l.b16 %v2756
        %v3670 = vunpack.c.h.b16 %v2756
        %v3671 = vunpack.c.l.b16 %v2757
        %v3672 = vunpack.c.h.b16 %v2757
        %v3673 = vunpack.c.l.b16 %v2758
        %v3674 = vunpack.c.h.b16 %v2758
        %v3675 = vunpack.c.l.b16 %v2759
        %v3676 = vunpack.c.h.b16 %v2759
        %v3677 = vunpack.c.l.b16 %v2760
        %v3678 = vunpack.c.h.b16 %v2760
        %v3679 = vunpack.c.l.b16 %v2761
        %v3680 = vunpack.c.h.b16 %v2761
        %v3681 = vunpack.c.l.b16 %v2762
        %v3682 = vunpack.c.h.b16 %v2762
        %v3683 = vunpack.c.l.b16 %v2763
        %v3684 = vunpack.c.h.b16 %v2763
        %v3685 = vunpack.c.l.b16 %v2764
        %v3686 = vunpack.c.h.b16 %v2764
        %v3687 = vunpack.c.l.b16 %v2765
        %v3688 = vunpack.c.h.b16 %v2765
        %v3689 = vunpack.c.l.b16 %v2766
        %v3690 = vunpack.c.h.b16 %v2766
        %v3691 = vunpack.c.l.b16 %v2767
        %v3692 = vunpack.c.h.b16 %v2767
        %v3693 = vunpack.c.l.b16 %v2768
        %v3694 = vunpack.c.h.b16 %v2768
        %v3695 = vunpack.c.l.b16 %v2769
        %v3696 = vunpack.c.h.b16 %v2769
        %v3697 = vunpack.c.l.b16 %v2770
        %v3698 = vunpack.c.h.b16 %v2770
        %v3699 = vunpack.c.l.b16 %v2771
        %v3700 = vunpack.c.h.b16 %v2771
        %v3701 = vunpack.c.l.b16 %v2772
        %v3702 = vunpack.c.h.b16 %v2772
        %v3703 = vunpack.c.l.b16 %v2773
        %v3704 = vunpack.c.h.b16 %v2773
        %v3705 = vunpack.c.l.b16 %v2774
        %v3706 = vunpack.c.h.b16 %v2774
        %v3707 = vunpack.c.l.b16 %v2775
        %v3708 = vunpack.c.h.b16 %v2775
        %v3709 = vunpack.c.l.b16 %v2776
        %v3710 = vunpack.c.h.b16 %v2776
        %v3711 = vunpack.c.l.b16 %v2777
        %v3712 = vunpack.c.h.b16 %v2777
        %v3713 = vunpack.c.l.b16 %v2778
        %v3714 = vunpack.c.h.b16 %v2778
        %v3715 = vunpack.c.l.b16 %v2779
        %v3716 = vunpack.c.h.b16 %v2779
        %v3717 = vunpack.c.l.b16 %v2780
        %v3718 = vunpack.c.h.b16 %v2780
        %v3719 = vunpack.c.l.b16 %v2781
        %v3720 = vunpack.c.h.b16 %v2781
        %v3721 = vunpack.c.l.b16 %v2782
        %v3722 = vunpack.c.h.b16 %v2782
        %v3723 = vunpack.c.l.b16 %v2783
        %v3724 = vunpack.c.h.b16 %v2783
        %v3725 = vunpack.c.l.b16 %v2784
        %v3726 = vunpack.c.h.b16 %v2784
        %v3727 = vunpack.c.l.b16 %v2785
        %v3728 = vunpack.c.h.b16 %v2785
        %v3729 = vunpack.c.l.b16 %v2786
        %v3730 = vunpack.c.h.b16 %v2786
        %v3731 = vunpack.c.l.b16 %v2787
        %v3732 = vunpack.c.h.b16 %v2787
        %v3733 = vunpack.c.l.b16 %v2788
        %v3734 = vunpack.c.h.b16 %v2788
        %v3735 = vunpack.c.l.b16 %v2789
        %v3736 = vunpack.c.h.b16 %v2789
        %v3737 = vunpack.c.l.b16 %v2790
        %v3738 = vunpack.c.h.b16 %v2790
        %v3739 = vunpack.c.l.b16 %v2791
        %v3740 = vunpack.c.h.b16 %v2791
        %v3741 = vunpack.c.l.b16 %v2792
        %v3742 = vunpack.c.h.b16 %v2792
        %v3743 = vunpack.c.l.b16 %v2793
        %v3744 = vunpack.c.h.b16 %v2793
        %v3745 = vunpack.c.l.b16 %v2794
        %v3746 = vunpack.c.h.b16 %v2794
        %v3747 = vunpack.c.l.b16 %v2795
        %v3748 = vunpack.c.h.b16 %v2795
        %v3749 = vunpack.c.l.b16 %v2796
        %v3750 = vunpack.c.h.b16 %v2796
        %v3751 = vunpack.c.l.b16 %v2797
        %v3752 = vunpack.c.h.b16 %v2797
        %v3753 = vunpack.c.l.b16 %v2798
        %v3754 = vunpack.c.h.b16 %v2798
        %v3755 = vunpack.c.l.b16 %v2799
        %v3756 = vunpack.c.h.b16 %v2799
        %v3757 = vunpack.c.l.b16 %v2800
        %v3758 = vunpack.c.h.b16 %v2800
        %v3759 = vunpack.c.l.b16 %v2801
        %v3760 = vunpack.c.h.b16 %v2801
        %v3761 = vunpack.c.l.b16 %v2802
        %v3762 = vunpack.c.h.b16 %v2802
        %v3763 = vunpack.c.l.b16 %v2803
        %v3764 = vunpack.c.h.b16 %v2803
        %v3765 = vunpack.c.l.b16 %v2804
        %v3766 = vunpack.c.h.b16 %v2804
        %v3767 = vunpack.c.l.b16 %v2805
        %v3768 = vunpack.c.h.b16 %v2805
        %v3769 = vunpack.c.l.b16 %v2806
        %v3770 = vunpack.c.h.b16 %v2806
        %v3771 = vunpack.c.l.b16 %v2807
        %v3772 = vunpack.c.h.b16 %v2807
        %v3773 = vunpack.c.l.b16 %v2808
        %v3774 = vunpack.c.h.b16 %v2808
        %v3775 = vunpack.c.l.b16 %v2809
        %v3776 = vunpack.c.h.b16 %v2809
        %v3777 = vunpack.c.l.b16 %v2810
        %v3778 = vunpack.c.h.b16 %v2810
        %v3779 = vunpack.c.l.b16 %v2811
        %v3780 = vunpack.c.h.b16 %v2811
        %v3781 = vunpack.c.l.b16 %v2812
        %v3782 = vunpack.c.h.b16 %v2812
        %v3783 = vunpack.c.l.b16 %v2813
        %v3784 = vunpack.c.h.b16 %v2813
        %v3785 = vunpack.c.l.b16 %v2814
        %v3786 = vunpack.c.h.b16 %v2814
        %v3787 = vunpack.c.l.b16 %v2815
        %v3788 = vunpack.c.h.b16 %v2815
        %v3789 = vunpack.c.l.b16 %v2816
        %v3790 = vunpack.c.h.b16 %v2816
        %v3791 = vunpack.c.l.b16 %v2817
        %v3792 = vunpack.c.h.b16 %v2817
        %v3793 = vunpack.c.l.b16 %v2818
        %v3794 = vunpack.c.h.b16 %v2818
        %v3795 = vunpack.c.l.b16 %v2819
        %v3796 = vunpack.c.h.b16 %v2819
        %v3797 = vunpack.c.l.b16 %v2820
        %v3798 = vunpack.c.h.b16 %v2820
        %v3799 = vunpack.c.l.b16 %v2821
        %v3800 = vunpack.c.h.b16 %v2821
        %v3801 = vunpack.c.l.b16 %v2822
        %v3802 = vunpack.c.h.b16 %v2822
        %v3803 = vunpack.c.l.b16 %v2823
        %v3804 = vunpack.c.h.b16 %v2823
        %v3805 = vunpack.c.l.b16 %v2824
        %v3806 = vunpack.c.h.b16 %v2824
        %v3807 = vunpack.c.l.b16 %v2825
        %v3808 = vunpack.c.h.b16 %v2825
        %v3809 = vunpack.c.l.b16 %v2826
        %v3810 = vunpack.c.h.b16 %v2826
        %v3811 = vunpack.c.l.b16 %v2827
        %v3812 = vunpack.c.h.b16 %v2827
        %v3813 = vunpack.c.l.b16 %v2828
        %v3814 = vunpack.c.h.b16 %v2828
        %v3815 = vunpack.c.l.b16 %v2829
        %v3816 = vunpack.c.h.b16 %v2829
        %v3817 = vunpack.c.l.b16 %v2830
        %v3818 = vunpack.c.h.b16 %v2830
        %v3819 = vunpack.c.l.b16 %v2831
        %v3820 = vunpack.c.h.b16 %v2831
        %v3821 = vunpack.c.l.b16 %v2832
        %v3822 = vunpack.c.h.b16 %v2832
        %v3823 = vunpack.c.l.b16 %v2833
        %v3824 = vunpack.c.h.b16 %v2833
        %v3825 = vunpack.c.l.b16 %v2834
        %v3826 = vunpack.c.h.b16 %v2834
        %v3827 = vunpack.c.l.b16 %v2835
        %v3828 = vunpack.c.h.b16 %v2835
        %v3829 = vunpack.c.l.b16 %v2836
        %v3830 = vunpack.c.h.b16 %v2836
        %v3831 = vunpack.c.l.b16 %v2837
        %v3832 = vunpack.c.h.b16 %v2837
        %v3833 = vunpack.c.l.b16 %v2838
        %v3834 = vunpack.c.h.b16 %v2838
        %v3835 = vunpack.c.l.b16 %v2839
        %v3836 = vunpack.c.h.b16 %v2839
        %v3837 = vunpack.c.l.b16 %v2840
        %v3838 = vunpack.c.h.b16 %v2840
        %v3839 = vunpack.c.l.b16 %v2841
        %v3840 = vunpack.c.h.b16 %v2841
        %v3841 = vunpack.c.l.b16 %v2842
        %v3842 = vunpack.c.h.b16 %v2842
        %v3843 = vunpack.c.l.b16 %v2843
        %v3844 = vunpack.c.h.b16 %v2843
        %v3845 = vunpack.c.l.b16 %v2844
        %v3846 = vunpack.c.h.b16 %v2844
        %v3847 = vunpack.c.l.b16 %v2845
        %v3848 = vunpack.c.h.b16 %v2845
        %v3849 = vunpack.c.l.b16 %v2846
        %v3850 = vunpack.c.h.b16 %v2846
        %v3851 = vunpack.c.l.b16 %v2847
        %v3852 = vunpack.c.h.b16 %v2847
        %v3853 = vunpack.c.l.b16 %v2848
        %v3854 = vunpack.c.h.b16 %v2848
        %v3855 = vunpack.c.l.b16 %v2849
        %v3856 = vunpack.c.h.b16 %v2849
        %v3857 = vunpack.c.l.b16 %v2850
        %v3858 = vunpack.c.h.b16 %v2850
        %v3859 = vunpack.c.l.b16 %v2851
        %v3860 = vunpack.c.h.b16 %v2851
        %v3861 = vunpack.c.l.b16 %v2852
        %v3862 = vunpack.c.h.b16 %v2852
        %v3863 = vunpack.c.l.b16 %v2853
        %v3864 = vunpack.c.h.b16 %v2853
        %v3865 = vunpack.c.l.b16 %v2854
        %v3866 = vunpack.c.h.b16 %v2854
        %v3867 = vunpack.c.l.b16 %v2855
        %v3868 = vunpack.c.h.b16 %v2855
        %v3869 = vunpack.c.l.b16 %v2856
        %v3870 = vunpack.c.h.b16 %v2856
        %v3871 = vunpack.c.l.b16 %v2857
        %v3872 = vunpack.c.h.b16 %v2857
        %v3873 = vunpack.c.l.b16 %v2858
        %v3874 = vunpack.c.h.b16 %v2858
        %v3875 = vunpack.c.l.b16 %v2859
        %v3876 = vunpack.c.h.b16 %v2859
        %v3877 = vunpack.c.l.b16 %v2860
        %v3878 = vunpack.c.h.b16 %v2860
        %v3879 = vunpack.c.l.b16 %v2861
        %v3880 = vunpack.c.h.b16 %v2861
        %v3881 = vunpack.c.l.b16 %v2862
        %v3882 = vunpack.c.h.b16 %v2862
        %v3883 = vunpack.c.l.b16 %v2863
        %v3884 = vunpack.c.h.b16 %v2863
        %v3885 = vunpack.c.l.b16 %v2864
        %v3886 = vunpack.c.h.b16 %v2864
        %v3887 = vunpack.c.l.b16 %v2865
        %v3888 = vunpack.c.h.b16 %v2865
        %v3889 = vunpack.c.l.b16 %v2866
        %v3890 = vunpack.c.h.b16 %v2866
        %v3891 = vunpack.c.l.b16 %v2867
        %v3892 = vunpack.c.h.b16 %v2867
        %v3893 = vunpack.c.l.b16 %v2868
        %v3894 = vunpack.c.h.b16 %v2868
        %v3895 = vunpack.c.l.b16 %v2869
        %v3896 = vunpack.c.h.b16 %v2869
        %v3897 = vunpack.c.l.b16 %v2870
        %v3898 = vunpack.c.h.b16 %v2870
        %v3899 = vunpack.c.l.b16 %v2871
        %v3900 = vunpack.c.h.b16 %v2871
        %v3901 = vunpack.c.l.b16 %v2872
        %v3902 = vunpack.c.h.b16 %v2872
        %v3903 = vunpack.c.l.b16 %v2873
        %v3904 = vunpack.c.h.b16 %v2873
        %v3905 = vunpack.c.l.b16 %v2874
        %v3906 = vunpack.c.h.b16 %v2874
        %v3907 = vunpack.c.l.b16 %v2875
        %v3908 = vunpack.c.h.b16 %v2875
        %v3909 = vunpack.c.l.b16 %v2876
        %v3910 = vunpack.c.h.b16 %v2876
        %v3911 = vunpack.c.l.b16 %v2877
        %v3912 = vunpack.c.h.b16 %v2877
        %v3913 = vunpack.c.l.b16 %v2878
        %v3914 = vunpack.c.h.b16 %v2878
        %v3915 = vunpack.c.l.b16 %v2879
        %v3916 = vunpack.c.h.b16 %v2879
        %v3917 = vunpack.c.l.b16 %v2880
        %v3918 = vunpack.c.h.b16 %v2880
        %v3919 = vunpack.c.l.b16 %v2881
        %v3920 = vunpack.c.h.b16 %v2881
        %v3921 = vunpack.c.l.b16 %v2882
        %v3922 = vunpack.c.h.b16 %v2882
        %v3923 = vunpack.c.l.b16 %v2883
        %v3924 = vunpack.c.h.b16 %v2883
        %v3925 = vunpack.c.l.b16 %v2884
        %v3926 = vunpack.c.h.b16 %v2884
        %v3927 = vunpack.c.l.b16 %v2885
        %v3928 = vunpack.c.h.b16 %v2885
        %v3929 = vunpack.c.l.b16 %v2886
        %v3930 = vunpack.c.h.b16 %v2886
        %v3931 = vunpack.c.l.b16 %v2887
        %v3932 = vunpack.c.h.b16 %v2887
        %v3933 = vunpack.c.l.b16 %v2888
        %v3934 = vunpack.c.h.b16 %v2888
        %v3935 = vunpack.c.l.b16 %v2889
        %v3936 = vunpack.c.h.b16 %v2889
        %v3937 = vunpack.c.l.b16 %v2890
        %v3938 = vunpack.c.h.b16 %v2890
        %v3939 = vunpack.c.l.b16 %v2891
        %v3940 = vunpack.c.h.b16 %v2891
        %v3941 = vunpack.c.l.b16 %v2892
        %v3942 = vunpack.c.h.b16 %v2892
        %v3943 = vunpack.c.l.b16 %v2893
        %v3944 = vunpack.c.h.b16 %v2893
        %v3945 = vunpack.c.l.b16 %v2894
        %v3946 = vunpack.c.h.b16 %v2894
        %v3947 = vunpack.c.l.b16 %v2895
        %v3948 = vunpack.c.h.b16 %v2895
        %v3949 = vunpack.c.l.b16 %v2896
        %v3950 = vunpack.c.h.b16 %v2896
        %v3951 = vunpack.c.l.b16 %v2897
        %v3952 = vunpack.c.h.b16 %v2897
        %v3953 = vunpack.c.l.b16 %v2898
        %v3954 = vunpack.c.h.b16 %v2898
        %v3955 = vpack.c.b16 %v3575, %v3571
        %v3956 = vpack.c.b16 %v3576, %v3572
        %v3957 = vpack.c.b16 %v3577, %v3573
        %v3958 = vpack.c.b16 %v3578, %v3574
        %v3959 = vpack.c.b16 %v3583, %v3579
        %v3960 = vpack.c.b16 %v3584, %v3580
        %v3961 = vpack.c.b16 %v3585, %v3581
        %v3962 = vpack.c.b16 %v3586, %v3582
        %v3963 = vpack.c.b16 %v3591, %v3587
        %v3964 = vpack.c.b16 %v3592, %v3588
        %v3965 = vpack.c.b16 %v3593, %v3589
        %v3966 = vpack.c.b16 %v3594, %v3590
        %v3967 = vpack.c.b16 %v3599, %v3595
        %v3968 = vpack.c.b16 %v3600, %v3596
        %v3969 = vpack.c.b16 %v3601, %v3597
        %v3970 = vpack.c.b16 %v3602, %v3598
        %v3971 = vpack.c.b16 %v3607, %v3603
        %v3972 = vpack.c.b16 %v3608, %v3604
        %v3973 = vpack.c.b16 %v3609, %v3605
        %v3974 = vpack.c.b16 %v3610, %v3606
        %v3975 = vpack.c.b16 %v3615, %v3611
        %v3976 = vpack.c.b16 %v3616, %v3612
        %v3977 = vpack.c.b16 %v3617, %v3613
        %v3978 = vpack.c.b16 %v3618, %v3614
        %v3979 = vpack.c.b16 %v3623, %v3619
        %v3980 = vpack.c.b16 %v3624, %v3620
        %v3981 = vpack.c.b16 %v3625, %v3621
        %v3982 = vpack.c.b16 %v3626, %v3622
        %v3983 = vpack.c.b16 %v3631, %v3627
        %v3984 = vpack.c.b16 %v3632, %v3628
        %v3985 = vpack.c.b16 %v3633, %v3629
        %v3986 = vpack.c.b16 %v3634, %v3630
        %v3987 = vpack.c.b16 %v3639, %v3635
        %v3988 = vpack.c.b16 %v3640, %v3636
        %v3989 = vpack.c.b16 %v3641, %v3637
        %v3990 = vpack.c.b16 %v3642, %v3638
        %v3991 = vpack.c.b16 %v3647, %v3643
        %v3992 = vpack.c.b16 %v3648, %v3644
        %v3993 = vpack.c.b16 %v3649, %v3645
        %v3994 = vpack.c.b16 %v3650, %v3646
        %v3995 = vpack.c.b16 %v3655, %v3651
        %v3996 = vpack.c.b16 %v3656, %v3652
        %v3997 = vpack.c.b16 %v3657, %v3653
        %v3998 = vpack.c.b16 %v3658, %v3654
        %v3999 = vpack.c.b16 %v3663, %v3659
        %v4000 = vpack.c.b16 %v3664, %v3660
        %v4001 = vpack.c.b16 %v3665, %v3661
        %v4002 = vpack.c.b16 %v3666, %v3662
        %v4003 = vpack.c.b16 %v3671, %v3667
        %v4004 = vpack.c.b16 %v3672, %v3668
        %v4005 = vpack.c.b16 %v3673, %v3669
        %v4006 = vpack.c.b16 %v3674, %v3670
        %v4007 = vpack.c.b16 %v3679, %v3675
        %v4008 = vpack.c.b16 %v3680, %v3676
        %v4009 = vpack.c.b16 %v3681, %v3677
        %v4010 = vpack.c.b16 %v3682, %v3678
        %v4011 = vpack.c.b16 %v3687, %v3683
        %v4012 = vpack.c.b16 %v3688, %v3684
        %v4013 = vpack.c.b16 %v3689, %v3685
        %v4014 = vpack.c.b16 %v3690, %v3686
        %v4015 = vpack.c.b16 %v3695, %v3691
        %v4016 = vpack.c.b16 %v3696, %v3692
        %v4017 = vpack.c.b16 %v3697, %v3693
        %v4018 = vpack.c.b16 %v3698, %v3694
        %v4019 = vpack.c.b16 %v3703, %v3699
        %v4020 = vpack.c.b16 %v3704, %v3700
        %v4021 = vpack.c.b16 %v3705, %v3701
        %v4022 = vpack.c.b16 %v3706, %v3702
        %v4023 = vpack.c.b16 %v3711, %v3707
        %v4024 = vpack.c.b16 %v3712, %v3708
        %v4025 = vpack.c.b16 %v3713, %v3709
        %v4026 = vpack.c.b16 %v3714, %v3710
        %v4027 = vpack.c.b16 %v3719, %v3715
        %v4028 = vpack.c.b16 %v3720, %v3716
        %v4029 = vpack.c.b16 %v3721, %v3717
        %v4030 = vpack.c.b16 %v3722, %v3718
        %v4031 = vpack.c.b16 %v3727, %v3723
        %v4032 = vpack.c.b16 %v3728, %v3724
        %v4033 = vpack.c.b16 %v3729, %v3725
        %v4034 = vpack.c.b16 %v3730, %v3726
        %v4035 = vpack.c.b16 %v3735, %v3731
        %v4036 = vpack.c.b16 %v3736, %v3732
        %v4037 = vpack.c.b16 %v3737, %v3733
        %v4038 = vpack.c.b16 %v3738, %v3734
        %v4039 = vpack.c.b16 %v3743, %v3739
        %v4040 = vpack.c.b16 %v3744, %v3740
        %v4041 = vpack.c.b16 %v3745, %v3741
        %v4042 = vpack.c.b16 %v3746, %v3742
        %v4043 = vpack.c.b16 %v3751, %v3747
        %v4044 = vpack.c.b16 %v3752, %v3748
        %v4045 = vpack.c.b16 %v3753, %v3749
        %v4046 = vpack.c.b16 %v3754, %v3750
        %v4047 = vpack.c.b16 %v3759, %v3755
        %v4048 = vpack.c.b16 %v3760, %v3756
        %v4049 = vpack.c.b16 %v3761, %v3757
        %v4050 = vpack.c.b16 %v3762, %v3758
        %v4051 = vpack.c.b16 %v3767, %v3763
        %v4052 = vpack.c.b16 %v3768, %v3764
        %v4053 = vpack.c.b16 %v3769, %v3765
        %v4054 = vpack.c.b16 %v3770, %v3766
        %v4055 = vpack.c.b16 %v3775, %v3771
        %v4056 = vpack.c.b16 %v3776, %v3772
        %v4057 = vpack.c.b16 %v3777, %v3773
        %v4058 = vpack.c.b16 %v3778, %v3774
        %v4059 = vpack.c.b16 %v3783, %v3779
        %v4060 = vpack.c.b16 %v3784, %v3780
        %v4061 = vpack.c.b16 %v3785, %v3781
        %v4062 = vpack.c.b16 %v3786, %v3782
        %v4063 = vpack.c.b16 %v3791, %v3787
        %v4064 = vpack.c.b16 %v3792, %v3788
        %v4065 = vpack.c.b16 %v3793, %v3789
        %v4066 = vpack.c.b16 %v3794, %v3790
        %v4067 = vpack.c.b16 %v3799, %v3795
        %v4068 = vpack.c.b16 %v3800, %v3796
        %v4069 = vpack.c.b16 %v3801, %v3797
        %v4070 = vpack.c.b16 %v3802, %v3798
        %v4071 = vpack.c.b16 %v3807, %v3803
        %v4072 = vpack.c.b16 %v3808, %v3804
        %v4073 = vpack.c.b16 %v3809, %v3805
        %v4074 = vpack.c.b16 %v3810, %v3806
        %v4075 = vpack.c.b16 %v3815, %v3811
        %v4076 = vpack.c.b16 %v3816, %v3812
        %v4077 = vpack.c.b16 %v3817, %v3813
        %v4078 = vpack.c.b16 %v3818, %v3814
        %v4079 = vpack.c.b16 %v3823, %v3819
        %v4080 = vpack.c.b16 %v3824, %v3820
        %v4081 = vpack.c.b16 %v3825, %v3821
        %v4082 = vpack.c.b16 %v3826, %v3822
        %v4083 = vpack.c.b16 %v3831, %v3827
        %v4084 = vpack.c.b16 %v3832, %v3828
        %v4085 = vpack.c.b16 %v3833, %v3829
        %v4086 = vpack.c.b16 %v3834, %v3830
        %v4087 = vpack.c.b16 %v3839, %v3835
        %v4088 = vpack.c.b16 %v3840, %v3836
        %v4089 = vpack.c.b16 %v3841, %v3837
        %v4090 = vpack.c.b16 %v3842, %v3838
        %v4091 = vpack.c.b16 %v3847, %v3843
        %v4092 = vpack.c.b16 %v3848, %v3844
        %v4093 = vpack.c.b16 %v3849, %v3845
        %v4094 = vpack.c.b16 %v3850, %v3846
        %v4095 = vpack.c.b16 %v3855, %v3851
        %v4096 = vpack.c.b16 %v3856, %v3852
        %v4097 = vpack.c.b16 %v3857, %v3853
        %v4098 = vpack.c.b16 %v3858, %v3854
        %v4099 = vpack.c.b16 %v3863, %v3859
        %v4100 = vpack.c.b16 %v3864, %v3860
        %v4101 = vpack.c.b16 %v3865, %v3861
        %v4102 = vpack.c.b16 %v3866, %v3862
        %v4103 = vpack.c.b16 %v3871, %v3867
        %v4104 = vpack.c.b16 %v3872, %v3868
        %v4105 = vpack.c.b16 %v3873, %v3869
        %v4106 = vpack.c.b16 %v3874, %v3870
        %v4107 = vpack.c.b16 %v3879, %v3875
        %v4108 = vpack.c.b16 %v3880, %v3876
        %v4109 = vpack.c.b16 %v3881, %v3877
        %v4110 = vpack.c.b16 %v3882, %v3878
        %v4111 = vpack.c.b16 %v3887, %v3883
        %v4112 = vpack.c.b16 %v3888, %v3884
        %v4113 = vpack.c.b16 %v3889, %v3885
        %v4114 = vpack.c.b16 %v3890, %v3886
        %v4115 = vpack.c.b16 %v3895, %v3891
        %v4116 = vpack.c.b16 %v3896, %v3892
        %v4117 = vpack.c.b16 %v3897, %v3893
        %v4118 = vpack.c.b16 %v3898, %v3894
        %v4119 = vpack.c.b16 %v3903, %v3899
        %v4120 = vpack.c.b16 %v3904, %v3900
        %v4121 = vpack.c.b16 %v3905, %v3901
        %v4122 = vpack.c.b16 %v3906, %v3902
        %v4123 = vpack.c.b16 %v3911, %v3907
        %v4124 = vpack.c.b16 %v3912, %v3908
        %v4125 = vpack.c.b16 %v3913, %v3909
        %v4126 = vpack.c.b16 %v3914, %v3910
        %v4127 = vpack.c.b16 %v3919, %v3915
        %v4128 = vpack.c.b16 %v3920, %v3916
        %v4129 = vpack.c.b16 %v3921, %v3917
        %v4130 = vpack.c.b16 %v3922, %v3918
        %v4131 = vpack.c.b16 %v3927, %v3923
        %v4132 = vpack.c.b16 %v3928, %v3924
        %v4133 = vpack.c.b16 %v3929, %v3925
        %v4134 = vpack.c.b16 %v3930, %v3926
        %v4135 = vpack.c.b16 %v3935, %v3931
        %v4136 = vpack.c.b16 %v3936, %v3932
        %v4137 = vpack.c.b16 %v3937, %v3933
        %v4138 = vpack.c.b16 %v3938, %v3934
        %v4139 = vpack.c.b16 %v3943, %v3939
        %v4140 = vpack.c.b16 %v3944, %v3940
        %v4141 = vpack.c.b16 %v3945, %v3941
        %v4142 = vpack.c.b16 %v3946, %v3942
        %v4143 = vpack.c.b16 %v3951, %v3947
        %v4144 = vpack.c.b16 %v3952, %v3948
        %v4145 = vpack.c.b16 %v3953, %v3949
        %v4146 = vpack.c.b16 %v3954, %v3950
        %v4403 = vunpack.c.l.b16 %v431
        %v4404 = vunpack.c.l.b16 %v432
        %v4405 = vunpack.c.l.b16 %v433
        %v4406 = vunpack.c.l.b16 %v434
        %v4407 = vunpack.c.l.b16 %v435
        %v4408 = vunpack.c.l.b16 %v436
        %v4409 = vunpack.c.l.b16 %v437
        %v4410 = vunpack.c.l.b16 %v438
        %v4411 = vunpack.c.l.b16 %v439
        %v4412 = vunpack.c.l.b16 %v440
        %v4413 = vunpack.c.l.b16 %v441
        %v4414 = vunpack.c.l.b16 %v442
        %v4415 = vunpack.c.l.b16 %v443
        %v4416 = vunpack.c.l.b16 %v444
        %v4417 = vunpack.c.l.b16 %v445
        %v4418 = vunpack.c.l.b16 %v446
        %v4419 = vunpack.c.l.b16 %v447
        %v4420 = vunpack.c.l.b16 %v448
        %v4421 = vunpack.c.l.b16 %v449
        %v4422 = vunpack.c.l.b16 %v450
        %v4423 = vunpack.c.l.b16 %v451
        %v4424 = vunpack.c.l.b16 %v452
        %v4425 = vunpack.c.l.b16 %v453
        %v4426 = vunpack.c.l.b16 %v454
        %v4427 = vunpack.c.l.b16 %v455
        %v4428 = vunpack.c.l.b16 %v456
        %v4429 = vunpack.c.l.b16 %v457
        %v4430 = vunpack.c.l.b16 %v458
        %v4431 = vunpack.c.l.b16 %v459
        %v4432 = vunpack.c.l.b16 %v460
        %v4433 = vunpack.c.l.b16 %v461
        %v4434 = vunpack.c.l.b16 %v462
        %v4435 = vunpack.c.l.b16 %v463
        %v4436 = vunpack.c.l.b16 %v464
        %v4437 = vunpack.c.l.b16 %v465
        %v4438 = vunpack.c.l.b16 %v466
        %v4439 = vunpack.c.l.b16 %v467
        %v4440 = vunpack.c.l.b16 %v468
        %v4441 = vunpack.c.l.b16 %v469
        %v4442 = vunpack.c.l.b16 %v470
        %v4443 = vunpack.c.l.b16 %v471
        %v4444 = vunpack.c.l.b16 %v472
        %v4445 = vunpack.c.l.b16 %v473
        %v4446 = vunpack.c.l.b16 %v474
        %v4447 = vunpack.c.l.b16 %v475
        %v4448 = vunpack.c.l.b16 %v476
        %v4449 = vunpack.c.l.b16 %v477
        %v4450 = vunpack.c.l.b16 %v478
        %v4451 = vunpack.c.l.b16 %v479
        %v4452 = vunpack.c.l.b16 %v480
        %v4453 = vunpack.c.l.b16 %v481
        %v4454 = vunpack.c.l.b16 %v482
        %v4455 = vunpack.c.l.b16 %v483
        %v4456 = vunpack.c.l.b16 %v484
        %v4457 = vunpack.c.l.b16 %v485
        %v4458 = vunpack.c.l.b16 %v486
        %v4459 = vunpack.c.l.b16 %v487
        %v4460 = vunpack.c.l.b16 %v488
        %v4461 = vunpack.c.l.b16 %v489
        %v4462 = vunpack.c.l.b16 %v490
        %v4463 = vunpack.c.l.b16 %v491
        %v4464 = vunpack.c.l.b16 %v492
        %v4465 = vunpack.c.l.b16 %v493
        %v4466 = vunpack.c.l.b16 %v494
        %v4467 = vpack.c.b16 %v4404, %v4403
        %v4468 = vpack.c.b16 %v4406, %v4405
        %v4469 = vpack.c.b16 %v4408, %v4407
        %v4470 = vpack.c.b16 %v4410, %v4409
        %v4471 = vpack.c.b16 %v4412, %v4411
        %v4472 = vpack.c.b16 %v4414, %v4413
        %v4473 = vpack.c.b16 %v4416, %v4415
        %v4474 = vpack.c.b16 %v4418, %v4417
        %v4475 = vpack.c.b16 %v4420, %v4419
        %v4476 = vpack.c.b16 %v4422, %v4421
        %v4477 = vpack.c.b16 %v4424, %v4423
        %v4478 = vpack.c.b16 %v4426, %v4425
        %v4479 = vpack.c.b16 %v4428, %v4427
        %v4480 = vpack.c.b16 %v4430, %v4429
        %v4481 = vpack.c.b16 %v4432, %v4431
        %v4482 = vpack.c.b16 %v4434, %v4433
        %v4483 = vpack.c.b16 %v4436, %v4435
        %v4484 = vpack.c.b16 %v4438, %v4437
        %v4485 = vpack.c.b16 %v4440, %v4439
        %v4486 = vpack.c.b16 %v4442, %v4441
        %v4487 = vpack.c.b16 %v4444, %v4443
        %v4488 = vpack.c.b16 %v4446, %v4445
        %v4489 = vpack.c.b16 %v4448, %v4447
        %v4490 = vpack.c.b16 %v4450, %v4449
        %v4491 = vpack.c.b16 %v4452, %v4451
        %v4492 = vpack.c.b16 %v4454, %v4453
        %v4493 = vpack.c.b16 %v4456, %v4455
        %v4494 = vpack.c.b16 %v4458, %v4457
        %v4495 = vpack.c.b16 %v4460, %v4459
        %v4496 = vpack.c.b16 %v4462, %v4461
        %v4497 = vpack.c.b16 %v4464, %v4463
        %v4498 = vpack.c.b16 %v4466, %v4465
        %4531 = vmatpush.bf16.msra.mxu0 %v4474
        %4532 = vmatpush.bf16.msra.mxu0 %v4473
        %4533 = vmatpush.bf16.msra.mxu0 %v4472
        %4534 = vmatpush.bf16.msra.mxu0 %v4471
        %4535 = vmatpush.bf16.msra.mxu0 %v4470
        %4536 = vmatpush.bf16.msra.mxu0 %v4469
        %4537 = vmatpush.bf16.msra.mxu0 %v4468
        %4538 = vmatpush.bf16.msra.mxu0 %v4467
        %4539 = vmatmul.bf16.gmra.mxu0 %v3955
        %v4540 = vpop.f32.mrf.mxu0
        %v4541 = vadd.f32 %v2902, %v4540
        %v4542 = vpop.f32.mrf.mxu0
        %v4543 = vadd.f32 %v2907, %v4542
        %4544 = vmatmul.bf16.gmra.mxu0 %v3959
        %v4545 = vpop.f32.mrf.mxu0
        %v4546 = vadd.f32 %v2912, %v4545
        %v4547 = vpop.f32.mrf.mxu0
        %v4548 = vadd.f32 %v2917, %v4547
        %4549 = vmatmul.bf16.gmra.mxu0 %v3963
        %v4550 = vpop.f32.mrf.mxu0
        %v4551 = vadd.f32 %v2922, %v4550
        %v4552 = vpop.f32.mrf.mxu0
        %v4553 = vadd.f32 %v2927, %v4552
        %4554 = vmatmul.bf16.gmra.mxu0 %v3967
        %v4555 = vpop.f32.mrf.mxu0
        %v4556 = vadd.f32 %v2932, %v4555
        %v4557 = vpop.f32.mrf.mxu0
        %v4558 = vadd.f32 %v2937, %v4557
        %4559 = vmatmul.bf16.gmra.mxu0 %v3971
        %v4560 = vpop.f32.mrf.mxu0
        %v4561 = vadd.f32 %v2942, %v4560
        %v4562 = vpop.f32.mrf.mxu0
        %v4563 = vadd.f32 %v2947, %v4562
        %4564 = vmatmul.bf16.gmra.mxu0 %v3975
        %v4565 = vpop.f32.mrf.mxu0
        %v4566 = vadd.f32 %v2952, %v4565
        %v4567 = vpop.f32.mrf.mxu0
        %v4568 = vadd.f32 %v2957, %v4567
        %4569 = vmatmul.bf16.gmra.mxu0 %v3979
        %v4570 = vpop.f32.mrf.mxu0
        %v4571 = vadd.f32 %v2962, %v4570
        %v4572 = vpop.f32.mrf.mxu0
        %v4573 = vadd.f32 %v2967, %v4572
        %4574 = vmatmul.bf16.gmra.mxu0 %v3983
        %v4575 = vpop.f32.mrf.mxu0
        %v4576 = vadd.f32 %v2972, %v4575
        %v4577 = vpop.f32.mrf.mxu0
        %v4578 = vadd.f32 %v2977, %v4577
        %4579 = vmatmul.bf16.gmra.mxu0 %v3987
        %v4580 = vpop.f32.mrf.mxu0
        %v4581 = vadd.f32 %v2982, %v4580
        %v4582 = vpop.f32.mrf.mxu0
        %v4583 = vadd.f32 %v2987, %v4582
        %4584 = vmatmul.bf16.gmra.mxu0 %v3991
        %v4585 = vpop.f32.mrf.mxu0
        %v4586 = vadd.f32 %v2992, %v4585
        %v4587 = vpop.f32.mrf.mxu0
        %v4588 = vadd.f32 %v2997, %v4587
        %4589 = vmatmul.bf16.gmra.mxu0 %v3995
        %v4590 = vpop.f32.mrf.mxu0
        %v4591 = vadd.f32 %v3002, %v4590
        %v4592 = vpop.f32.mrf.mxu0
        %v4593 = vadd.f32 %v3007, %v4592
        %4594 = vmatmul.bf16.gmra.mxu0 %v3999
        %v4595 = vpop.f32.mrf.mxu0
        %v4596 = vadd.f32 %v3012, %v4595
        %v4597 = vpop.f32.mrf.mxu0
        %v4598 = vadd.f32 %v3017, %v4597
        %4599 = vmatmul.bf16.gmra.mxu0 %v4003
        %v4600 = vpop.f32.mrf.mxu0
        %v4601 = vadd.f32 %v3022, %v4600
        %v4602 = vpop.f32.mrf.mxu0
        %v4603 = vadd.f32 %v3027, %v4602
        %4604 = vmatmul.bf16.gmra.mxu0 %v4007
        %v4605 = vpop.f32.mrf.mxu0
        %v4606 = vadd.f32 %v3032, %v4605
        %v4607 = vpop.f32.mrf.mxu0
        %v4608 = vadd.f32 %v3037, %v4607
        %4609 = vmatmul.bf16.gmra.mxu0 %v4011
        %v4610 = vpop.f32.mrf.mxu0
        %v4611 = vadd.f32 %v3042, %v4610
        %v4612 = vpop.f32.mrf.mxu0
        %v4613 = vadd.f32 %v3047, %v4612
        %4614 = vmatmul.bf16.gmra.mxu0 %v4015
        %v4615 = vpop.f32.mrf.mxu0
        %v4616 = vadd.f32 %v3052, %v4615
        %v4617 = vpop.f32.mrf.mxu0
        %v4618 = vadd.f32 %v3057, %v4617
        %4619 = vmatmul.bf16.gmra.mxu0 %v4019
        %v4620 = vpop.f32.mrf.mxu0
        %v4621 = vadd.f32 %v3062, %v4620
        %v4622 = vpop.f32.mrf.mxu0
        %v4623 = vadd.f32 %v3067, %v4622
        %4624 = vmatmul.bf16.gmra.mxu0 %v4023
        %v4625 = vpop.f32.mrf.mxu0
        %v4626 = vadd.f32 %v3072, %v4625
        %v4627 = vpop.f32.mrf.mxu0
        %v4628 = vadd.f32 %v3077, %v4627
        %4629 = vmatmul.bf16.gmra.mxu0 %v4027
        %v4630 = vpop.f32.mrf.mxu0
        %v4631 = vadd.f32 %v3082, %v4630
        %v4632 = vpop.f32.mrf.mxu0
        %v4633 = vadd.f32 %v3087, %v4632
        %4634 = vmatmul.bf16.gmra.mxu0 %v4031
        %v4635 = vpop.f32.mrf.mxu0
        %v4636 = vadd.f32 %v3092, %v4635
        %v4637 = vpop.f32.mrf.mxu0
        %v4638 = vadd.f32 %v3097, %v4637
        %4639 = vmatmul.bf16.gmra.mxu0 %v4035
        %v4640 = vpop.f32.mrf.mxu0
        %v4641 = vadd.f32 %v3102, %v4640
        %v4642 = vpop.f32.mrf.mxu0
        %v4643 = vadd.f32 %v3107, %v4642
        %4644 = vmatmul.bf16.gmra.mxu0 %v4039
        %v4645 = vpop.f32.mrf.mxu0
        %v4646 = vadd.f32 %v3112, %v4645
        %v4647 = vpop.f32.mrf.mxu0
        %v4648 = vadd.f32 %v3117, %v4647
        %4649 = vmatmul.bf16.gmra.mxu0 %v4043
        %v4650 = vpop.f32.mrf.mxu0
        %v4651 = vadd.f32 %v3122, %v4650
        %v4652 = vpop.f32.mrf.mxu0
        %v4653 = vadd.f32 %v3127, %v4652
        %4654 = vmatmul.bf16.gmra.mxu0 %v4047
        %v4655 = vpop.f32.mrf.mxu0
        %v4656 = vadd.f32 %v3132, %v4655
        %v4657 = vpop.f32.mrf.mxu0
        %v4658 = vadd.f32 %v3137, %v4657
        %4659 = vmatmul.bf16.gmra.mxu0 %v4051
        %v4660 = vpop.f32.mrf.mxu0
        %v4661 = vadd.f32 %v3142, %v4660
        %v4662 = vpop.f32.mrf.mxu0
        %v4663 = vadd.f32 %v3147, %v4662
        %4664 = vmatmul.bf16.gmra.mxu0 %v4055
        %v4665 = vpop.f32.mrf.mxu0
        %v4666 = vadd.f32 %v3152, %v4665
        %v4667 = vpop.f32.mrf.mxu0
        %v4668 = vadd.f32 %v3157, %v4667
        %4669 = vmatmul.bf16.gmra.mxu0 %v4059
        %v4670 = vpop.f32.mrf.mxu0
        %v4671 = vadd.f32 %v3162, %v4670
        %v4672 = vpop.f32.mrf.mxu0
        %v4673 = vadd.f32 %v3167, %v4672
        %4674 = vmatmul.bf16.gmra.mxu0 %v4063
        %v4675 = vpop.f32.mrf.mxu0
        %v4676 = vadd.f32 %v3172, %v4675
        %v4677 = vpop.f32.mrf.mxu0
        %v4678 = vadd.f32 %v3177, %v4677
        %4679 = vmatmul.bf16.gmra.mxu0 %v4067
        %v4680 = vpop.f32.mrf.mxu0
        %v4681 = vadd.f32 %v3182, %v4680
        %v4682 = vpop.f32.mrf.mxu0
        %v4683 = vadd.f32 %v3187, %v4682
        %4684 = vmatmul.bf16.gmra.mxu0 %v4071
        %v4685 = vpop.f32.mrf.mxu0
        %v4686 = vadd.f32 %v3192, %v4685
        %v4687 = vpop.f32.mrf.mxu0
        %v4688 = vadd.f32 %v3197, %v4687
        %4689 = vmatmul.bf16.gmra.mxu0 %v4075
        %v4690 = vpop.f32.mrf.mxu0
        %v4691 = vadd.f32 %v3202, %v4690
        %v4692 = vpop.f32.mrf.mxu0
        %v4693 = vadd.f32 %v3207, %v4692
        %4694 = vmatmul.bf16.gmra.mxu0 %v4079
        %v4695 = vpop.f32.mrf.mxu0
        %v4696 = vadd.f32 %v3212, %v4695
        %v4697 = vpop.f32.mrf.mxu0
        %v4698 = vadd.f32 %v3217, %v4697
        %4699 = vmatmul.bf16.gmra.mxu0 %v4083
        %v4700 = vpop.f32.mrf.mxu0
        %v4701 = vadd.f32 %v3222, %v4700
        %v4702 = vpop.f32.mrf.mxu0
        %v4703 = vadd.f32 %v3227, %v4702
        %4704 = vmatmul.bf16.gmra.mxu0 %v4087
        %v4705 = vpop.f32.mrf.mxu0
        %v4706 = vadd.f32 %v3232, %v4705
        %v4707 = vpop.f32.mrf.mxu0
        %v4708 = vadd.f32 %v3237, %v4707
        %4709 = vmatmul.bf16.gmra.mxu0 %v4091
        %v4710 = vpop.f32.mrf.mxu0
        %v4711 = vadd.f32 %v3242, %v4710
        %v4712 = vpop.f32.mrf.mxu0
        %v4713 = vadd.f32 %v3247, %v4712
        %4714 = vmatmul.bf16.gmra.mxu0 %v4095
        %v4715 = vpop.f32.mrf.mxu0
        %v4716 = vadd.f32 %v3252, %v4715
        %v4717 = vpop.f32.mrf.mxu0
        %v4718 = vadd.f32 %v3257, %v4717
        %4719 = vmatmul.bf16.gmra.mxu0 %v4099
        %v4720 = vpop.f32.mrf.mxu0
        %v4721 = vadd.f32 %v3262, %v4720
        %v4722 = vpop.f32.mrf.mxu0
        %v4723 = vadd.f32 %v3267, %v4722
        %4724 = vmatmul.bf16.gmra.mxu0 %v4103
        %v4725 = vpop.f32.mrf.mxu0
        %v4726 = vadd.f32 %v3272, %v4725
        %v4727 = vpop.f32.mrf.mxu0
        %v4728 = vadd.f32 %v3277, %v4727
        %4729 = vmatmul.bf16.gmra.mxu0 %v4107
        %v4730 = vpop.f32.mrf.mxu0
        %v4731 = vadd.f32 %v3282, %v4730
        %v4732 = vpop.f32.mrf.mxu0
        %v4733 = vadd.f32 %v3287, %v4732
        %4734 = vmatmul.bf16.gmra.mxu0 %v4111
        %v4735 = vpop.f32.mrf.mxu0
        %v4736 = vadd.f32 %v3292, %v4735
        %v4737 = vpop.f32.mrf.mxu0
        %v4738 = vadd.f32 %v3297, %v4737
        %4739 = vmatmul.bf16.gmra.mxu0 %v4115
        %v4740 = vpop.f32.mrf.mxu0
        %v4741 = vadd.f32 %v3302, %v4740
        %v4742 = vpop.f32.mrf.mxu0
        %v4743 = vadd.f32 %v3307, %v4742
        %4744 = vmatmul.bf16.gmra.mxu0 %v4119
        %v4745 = vpop.f32.mrf.mxu0
        %v4746 = vadd.f32 %v3312, %v4745
        %v4747 = vpop.f32.mrf.mxu0
        %v4748 = vadd.f32 %v3317, %v4747
        %4749 = vmatmul.bf16.gmra.mxu0 %v4123
        %v4750 = vpop.f32.mrf.mxu0
        %v4751 = vadd.f32 %v3322, %v4750
        %v4752 = vpop.f32.mrf.mxu0
        %v4753 = vadd.f32 %v3327, %v4752
        %4754 = vmatmul.bf16.gmra.mxu0 %v4127
        %v4755 = vpop.f32.mrf.mxu0
        %v4756 = vadd.f32 %v3332, %v4755
        %v4757 = vpop.f32.mrf.mxu0
        %v4758 = vadd.f32 %v3337, %v4757
        %4759 = vmatmul.bf16.gmra.mxu0 %v4131
        %v4760 = vpop.f32.mrf.mxu0
        %v4761 = vadd.f32 %v3342, %v4760
        %v4762 = vpop.f32.mrf.mxu0
        %v4763 = vadd.f32 %v3347, %v4762
        %4764 = vmatmul.bf16.gmra.mxu0 %v4135
        %v4765 = vpop.f32.mrf.mxu0
        %v4766 = vadd.f32 %v3352, %v4765
        %v4767 = vpop.f32.mrf.mxu0
        %v4768 = vadd.f32 %v3357, %v4767
        %4769 = vmatmul.bf16.gmra.mxu0 %v4139
        %v4770 = vpop.f32.mrf.mxu0
        %v4771 = vadd.f32 %v3362, %v4770
        %v4772 = vpop.f32.mrf.mxu0
        %v4773 = vadd.f32 %v3367, %v4772
        %4774 = vmatmul.bf16.gmra.mxu0 %v4143
        %v4775 = vpop.f32.mrf.mxu0
        %v4776 = vadd.f32 %v3372, %v4775
        %v4777 = vpop.f32.mrf.mxu0
        %v4778 = vadd.f32 %v3377, %v4777
        %4779 = vdwg.mxu0
        %4780 = vmatpush.bf16.msra.mxu0 %v4482
        %4781 = vmatpush.bf16.msra.mxu0 %v4481
        %4782 = vmatpush.bf16.msra.mxu0 %v4480
        %4783 = vmatpush.bf16.msra.mxu0 %v4479
        %4784 = vmatpush.bf16.msra.mxu0 %v4478
        %4785 = vmatpush.bf16.msra.mxu0 %v4477
        %4786 = vmatpush.bf16.msra.mxu0 %v4476
        %4787 = vmatpush.bf16.msra.mxu0 %v4475
        %4788 = vmatmul.bf16.gmra.mxu0 %v3956
        %v4789 = vpop.f32.mrf.mxu0
        %v4790 = vadd.f32 %v4541, %v4789
        %v4791 = vpop.f32.mrf.mxu0
        %v4792 = vadd.f32 %v4543, %v4791
        %4793 = vmatmul.bf16.gmra.mxu0 %v3960
        %v4794 = vpop.f32.mrf.mxu0
        %v4795 = vadd.f32 %v4546, %v4794
        %v4796 = vpop.f32.mrf.mxu0
        %v4797 = vadd.f32 %v4548, %v4796
        %4798 = vmatmul.bf16.gmra.mxu0 %v3964
        %v4799 = vpop.f32.mrf.mxu0
        %v4800 = vadd.f32 %v4551, %v4799
        %v4801 = vpop.f32.mrf.mxu0
        %v4802 = vadd.f32 %v4553, %v4801
        %4803 = vmatmul.bf16.gmra.mxu0 %v3968
        %v4804 = vpop.f32.mrf.mxu0
        %v4805 = vadd.f32 %v4556, %v4804
        %v4806 = vpop.f32.mrf.mxu0
        %v4807 = vadd.f32 %v4558, %v4806
        %4808 = vmatmul.bf16.gmra.mxu0 %v3972
        %v4809 = vpop.f32.mrf.mxu0
        %v4810 = vadd.f32 %v4561, %v4809
        %v4811 = vpop.f32.mrf.mxu0
        %v4812 = vadd.f32 %v4563, %v4811
        %4813 = vmatmul.bf16.gmra.mxu0 %v3976
        %v4814 = vpop.f32.mrf.mxu0
        %v4815 = vadd.f32 %v4566, %v4814
        %v4816 = vpop.f32.mrf.mxu0
        %v4817 = vadd.f32 %v4568, %v4816
        %4818 = vmatmul.bf16.gmra.mxu0 %v3980
        %v4819 = vpop.f32.mrf.mxu0
        %v4820 = vadd.f32 %v4571, %v4819
        %v4821 = vpop.f32.mrf.mxu0
        %v4822 = vadd.f32 %v4573, %v4821
        %4823 = vmatmul.bf16.gmra.mxu0 %v3984
        %v4824 = vpop.f32.mrf.mxu0
        %v4825 = vadd.f32 %v4576, %v4824
        %v4826 = vpop.f32.mrf.mxu0
        %v4827 = vadd.f32 %v4578, %v4826
        %4828 = vmatmul.bf16.gmra.mxu0 %v3988
        %v4829 = vpop.f32.mrf.mxu0
        %v4830 = vadd.f32 %v4581, %v4829
        %v4831 = vpop.f32.mrf.mxu0
        %v4832 = vadd.f32 %v4583, %v4831
        %4833 = vmatmul.bf16.gmra.mxu0 %v3992
        %v4834 = vpop.f32.mrf.mxu0
        %v4835 = vadd.f32 %v4586, %v4834
        %v4836 = vpop.f32.mrf.mxu0
        %v4837 = vadd.f32 %v4588, %v4836
        %4838 = vmatmul.bf16.gmra.mxu0 %v3996
        %v4839 = vpop.f32.mrf.mxu0
        %v4840 = vadd.f32 %v4591, %v4839
        %v4841 = vpop.f32.mrf.mxu0
        %v4842 = vadd.f32 %v4593, %v4841
        %4843 = vmatmul.bf16.gmra.mxu0 %v4000
        %v4844 = vpop.f32.mrf.mxu0
        %v4845 = vadd.f32 %v4596, %v4844
        %v4846 = vpop.f32.mrf.mxu0
        %v4847 = vadd.f32 %v4598, %v4846
        %4848 = vmatmul.bf16.gmra.mxu0 %v4004
        %v4849 = vpop.f32.mrf.mxu0
        %v4850 = vadd.f32 %v4601, %v4849
        %v4851 = vpop.f32.mrf.mxu0
        %v4852 = vadd.f32 %v4603, %v4851
        %4853 = vmatmul.bf16.gmra.mxu0 %v4008
        %v4854 = vpop.f32.mrf.mxu0
        %v4855 = vadd.f32 %v4606, %v4854
        %v4856 = vpop.f32.mrf.mxu0
        %v4857 = vadd.f32 %v4608, %v4856
        %4858 = vmatmul.bf16.gmra.mxu0 %v4012
        %v4859 = vpop.f32.mrf.mxu0
        %v4860 = vadd.f32 %v4611, %v4859
        %v4861 = vpop.f32.mrf.mxu0
        %v4862 = vadd.f32 %v4613, %v4861
        %4863 = vmatmul.bf16.gmra.mxu0 %v4016
        %v4864 = vpop.f32.mrf.mxu0
        %v4865 = vadd.f32 %v4616, %v4864
        %v4866 = vpop.f32.mrf.mxu0
        %v4867 = vadd.f32 %v4618, %v4866
        %4868 = vmatmul.bf16.gmra.mxu0 %v4020
        %v4869 = vpop.f32.mrf.mxu0
        %v4870 = vadd.f32 %v4621, %v4869
        %v4871 = vpop.f32.mrf.mxu0
        %v4872 = vadd.f32 %v4623, %v4871
        %4873 = vmatmul.bf16.gmra.mxu0 %v4024
        %v4874 = vpop.f32.mrf.mxu0
        %v4875 = vadd.f32 %v4626, %v4874
        %v4876 = vpop.f32.mrf.mxu0
        %v4877 = vadd.f32 %v4628, %v4876
        %4878 = vmatmul.bf16.gmra.mxu0 %v4028
        %v4879 = vpop.f32.mrf.mxu0
        %v4880 = vadd.f32 %v4631, %v4879
        %v4881 = vpop.f32.mrf.mxu0
        %v4882 = vadd.f32 %v4633, %v4881
        %4883 = vmatmul.bf16.gmra.mxu0 %v4032
        %v4884 = vpop.f32.mrf.mxu0
        %v4885 = vadd.f32 %v4636, %v4884
        %v4886 = vpop.f32.mrf.mxu0
        %v4887 = vadd.f32 %v4638, %v4886
        %4888 = vmatmul.bf16.gmra.mxu0 %v4036
        %v4889 = vpop.f32.mrf.mxu0
        %v4890 = vadd.f32 %v4641, %v4889
        %v4891 = vpop.f32.mrf.mxu0
        %v4892 = vadd.f32 %v4643, %v4891
        %4893 = vmatmul.bf16.gmra.mxu0 %v4040
        %v4894 = vpop.f32.mrf.mxu0
        %v4895 = vadd.f32 %v4646, %v4894
        %v4896 = vpop.f32.mrf.mxu0
        %v4897 = vadd.f32 %v4648, %v4896
        %4898 = vmatmul.bf16.gmra.mxu0 %v4044
        %v4899 = vpop.f32.mrf.mxu0
        %v4900 = vadd.f32 %v4651, %v4899
        %v4901 = vpop.f32.mrf.mxu0
        %v4902 = vadd.f32 %v4653, %v4901
        %4903 = vmatmul.bf16.gmra.mxu0 %v4048
        %v4904 = vpop.f32.mrf.mxu0
        %v4905 = vadd.f32 %v4656, %v4904
        %v4906 = vpop.f32.mrf.mxu0
        %v4907 = vadd.f32 %v4658, %v4906
        %4908 = vmatmul.bf16.gmra.mxu0 %v4052
        %v4909 = vpop.f32.mrf.mxu0
        %v4910 = vadd.f32 %v4661, %v4909
        %v4911 = vpop.f32.mrf.mxu0
        %v4912 = vadd.f32 %v4663, %v4911
        %4913 = vmatmul.bf16.gmra.mxu0 %v4056
        %v4914 = vpop.f32.mrf.mxu0
        %v4915 = vadd.f32 %v4666, %v4914
        %v4916 = vpop.f32.mrf.mxu0
        %v4917 = vadd.f32 %v4668, %v4916
        %4918 = vmatmul.bf16.gmra.mxu0 %v4060
        %v4919 = vpop.f32.mrf.mxu0
        %v4920 = vadd.f32 %v4671, %v4919
        %v4921 = vpop.f32.mrf.mxu0
        %v4922 = vadd.f32 %v4673, %v4921
        %4923 = vmatmul.bf16.gmra.mxu0 %v4064
        %v4924 = vpop.f32.mrf.mxu0
        %v4925 = vadd.f32 %v4676, %v4924
        %v4926 = vpop.f32.mrf.mxu0
        %v4927 = vadd.f32 %v4678, %v4926
        %4928 = vmatmul.bf16.gmra.mxu0 %v4068
        %v4929 = vpop.f32.mrf.mxu0
        %v4930 = vadd.f32 %v4681, %v4929
        %v4931 = vpop.f32.mrf.mxu0
        %v4932 = vadd.f32 %v4683, %v4931
        %4933 = vmatmul.bf16.gmra.mxu0 %v4072
        %v4934 = vpop.f32.mrf.mxu0
        %v4935 = vadd.f32 %v4686, %v4934
        %v4936 = vpop.f32.mrf.mxu0
        %v4937 = vadd.f32 %v4688, %v4936
        %4938 = vmatmul.bf16.gmra.mxu0 %v4076
        %v4939 = vpop.f32.mrf.mxu0
        %v4940 = vadd.f32 %v4691, %v4939
        %v4941 = vpop.f32.mrf.mxu0
        %v4942 = vadd.f32 %v4693, %v4941
        %4943 = vmatmul.bf16.gmra.mxu0 %v4080
        %v4944 = vpop.f32.mrf.mxu0
        %v4945 = vadd.f32 %v4696, %v4944
        %v4946 = vpop.f32.mrf.mxu0
        %v4947 = vadd.f32 %v4698, %v4946
        %4948 = vmatmul.bf16.gmra.mxu0 %v4084
        %v4949 = vpop.f32.mrf.mxu0
        %v4950 = vadd.f32 %v4701, %v4949
        %v4951 = vpop.f32.mrf.mxu0
        %v4952 = vadd.f32 %v4703, %v4951
        %4953 = vmatmul.bf16.gmra.mxu0 %v4088
        %v4954 = vpop.f32.mrf.mxu0
        %v4955 = vadd.f32 %v4706, %v4954
        %v4956 = vpop.f32.mrf.mxu0
        %v4957 = vadd.f32 %v4708, %v4956
        %4958 = vmatmul.bf16.gmra.mxu0 %v4092
        %v4959 = vpop.f32.mrf.mxu0
        %v4960 = vadd.f32 %v4711, %v4959
        %v4961 = vpop.f32.mrf.mxu0
        %v4962 = vadd.f32 %v4713, %v4961
        %4963 = vmatmul.bf16.gmra.mxu0 %v4096
        %v4964 = vpop.f32.mrf.mxu0
        %v4965 = vadd.f32 %v4716, %v4964
        %v4966 = vpop.f32.mrf.mxu0
        %v4967 = vadd.f32 %v4718, %v4966
        %4968 = vmatmul.bf16.gmra.mxu0 %v4100
        %v4969 = vpop.f32.mrf.mxu0
        %v4970 = vadd.f32 %v4721, %v4969
        %v4971 = vpop.f32.mrf.mxu0
        %v4972 = vadd.f32 %v4723, %v4971
        %4973 = vmatmul.bf16.gmra.mxu0 %v4104
        %v4974 = vpop.f32.mrf.mxu0
        %v4975 = vadd.f32 %v4726, %v4974
        %v4976 = vpop.f32.mrf.mxu0
        %v4977 = vadd.f32 %v4728, %v4976
        %4978 = vmatmul.bf16.gmra.mxu0 %v4108
        %v4979 = vpop.f32.mrf.mxu0
        %v4980 = vadd.f32 %v4731, %v4979
        %v4981 = vpop.f32.mrf.mxu0
        %v4982 = vadd.f32 %v4733, %v4981
        %4983 = vmatmul.bf16.gmra.mxu0 %v4112
        %v4984 = vpop.f32.mrf.mxu0
        %v4985 = vadd.f32 %v4736, %v4984
        %v4986 = vpop.f32.mrf.mxu0
        %v4987 = vadd.f32 %v4738, %v4986
        %4988 = vmatmul.bf16.gmra.mxu0 %v4116
        %v4989 = vpop.f32.mrf.mxu0
        %v4990 = vadd.f32 %v4741, %v4989
        %v4991 = vpop.f32.mrf.mxu0
        %v4992 = vadd.f32 %v4743, %v4991
        %4993 = vmatmul.bf16.gmra.mxu0 %v4120
        %v4994 = vpop.f32.mrf.mxu0
        %v4995 = vadd.f32 %v4746, %v4994
        %v4996 = vpop.f32.mrf.mxu0
        %v4997 = vadd.f32 %v4748, %v4996
        %4998 = vmatmul.bf16.gmra.mxu0 %v4124
        %v4999 = vpop.f32.mrf.mxu0
        %v5000 = vadd.f32 %v4751, %v4999
        %v5001 = vpop.f32.mrf.mxu0
        %v5002 = vadd.f32 %v4753, %v5001
        %5003 = vmatmul.bf16.gmra.mxu0 %v4128
        %v5004 = vpop.f32.mrf.mxu0
        %v5005 = vadd.f32 %v4756, %v5004
        %v5006 = vpop.f32.mrf.mxu0
        %v5007 = vadd.f32 %v4758, %v5006
        %5008 = vmatmul.bf16.gmra.mxu0 %v4132
        %v5009 = vpop.f32.mrf.mxu0
        %v5010 = vadd.f32 %v4761, %v5009
        %v5011 = vpop.f32.mrf.mxu0
        %v5012 = vadd.f32 %v4763, %v5011
        %5013 = vmatmul.bf16.gmra.mxu0 %v4136
        %v5014 = vpop.f32.mrf.mxu0
        %v5015 = vadd.f32 %v4766, %v5014
        %v5016 = vpop.f32.mrf.mxu0
        %v5017 = vadd.f32 %v4768, %v5016
        %5018 = vmatmul.bf16.gmra.mxu0 %v4140
        %v5019 = vpop.f32.mrf.mxu0
        %v5020 = vadd.f32 %v4771, %v5019
        %v5021 = vpop.f32.mrf.mxu0
        %v5022 = vadd.f32 %v4773, %v5021
        %5023 = vmatmul.bf16.gmra.mxu0 %v4144
        %v5024 = vpop.f32.mrf.mxu0
        %v5025 = vadd.f32 %v4776, %v5024
        %v5026 = vpop.f32.mrf.mxu0
        %v5027 = vadd.f32 %v4778, %v5026
        %5028 = vdwg.mxu0
        %5029 = vmatpush.bf16.msra.mxu0 %v4490
        %5030 = vmatpush.bf16.msra.mxu0 %v4489
        %5031 = vmatpush.bf16.msra.mxu0 %v4488
        %5032 = vmatpush.bf16.msra.mxu0 %v4487
        %5033 = vmatpush.bf16.msra.mxu0 %v4486
        %5034 = vmatpush.bf16.msra.mxu0 %v4485
        %5035 = vmatpush.bf16.msra.mxu0 %v4484
        %5036 = vmatpush.bf16.msra.mxu0 %v4483
        %5037 = vmatmul.bf16.gmra.mxu0 %v3957
        %v5038 = vpop.f32.mrf.mxu0
        %v5039 = vadd.f32 %v4790, %v5038
        %v5040 = vpop.f32.mrf.mxu0
        %v5041 = vadd.f32 %v4792, %v5040
        %5042 = vmatmul.bf16.gmra.mxu0 %v3961
        %v5043 = vpop.f32.mrf.mxu0
        %v5044 = vadd.f32 %v4795, %v5043
        %v5045 = vpop.f32.mrf.mxu0
        %v5046 = vadd.f32 %v4797, %v5045
        %5047 = vmatmul.bf16.gmra.mxu0 %v3965
        %v5048 = vpop.f32.mrf.mxu0
        %v5049 = vadd.f32 %v4800, %v5048
        %v5050 = vpop.f32.mrf.mxu0
        %v5051 = vadd.f32 %v4802, %v5050
        %5052 = vmatmul.bf16.gmra.mxu0 %v3969
        %v5053 = vpop.f32.mrf.mxu0
        %v5054 = vadd.f32 %v4805, %v5053
        %v5055 = vpop.f32.mrf.mxu0
        %v5056 = vadd.f32 %v4807, %v5055
        %5057 = vmatmul.bf16.gmra.mxu0 %v3973
        %v5058 = vpop.f32.mrf.mxu0
        %v5059 = vadd.f32 %v4810, %v5058
        %v5060 = vpop.f32.mrf.mxu0
        %v5061 = vadd.f32 %v4812, %v5060
        %5062 = vmatmul.bf16.gmra.mxu0 %v3977
        %v5063 = vpop.f32.mrf.mxu0
        %v5064 = vadd.f32 %v4815, %v5063
        %v5065 = vpop.f32.mrf.mxu0
        %v5066 = vadd.f32 %v4817, %v5065
        %5067 = vmatmul.bf16.gmra.mxu0 %v3981
        %v5068 = vpop.f32.mrf.mxu0
        %v5069 = vadd.f32 %v4820, %v5068
        %v5070 = vpop.f32.mrf.mxu0
        %v5071 = vadd.f32 %v4822, %v5070
        %5072 = vmatmul.bf16.gmra.mxu0 %v3985
        %v5073 = vpop.f32.mrf.mxu0
        %v5074 = vadd.f32 %v4825, %v5073
        %v5075 = vpop.f32.mrf.mxu0
        %v5076 = vadd.f32 %v4827, %v5075
        %5077 = vmatmul.bf16.gmra.mxu0 %v3989
        %v5078 = vpop.f32.mrf.mxu0
        %v5079 = vadd.f32 %v4830, %v5078
        %v5080 = vpop.f32.mrf.mxu0
        %v5081 = vadd.f32 %v4832, %v5080
        %5082 = vmatmul.bf16.gmra.mxu0 %v3993
        %v5083 = vpop.f32.mrf.mxu0
        %v5084 = vadd.f32 %v4835, %v5083
        %v5085 = vpop.f32.mrf.mxu0
        %v5086 = vadd.f32 %v4837, %v5085
        %5087 = vmatmul.bf16.gmra.mxu0 %v3997
        %v5088 = vpop.f32.mrf.mxu0
        %v5089 = vadd.f32 %v4840, %v5088
        %v5090 = vpop.f32.mrf.mxu0
        %v5091 = vadd.f32 %v4842, %v5090
        %5092 = vmatmul.bf16.gmra.mxu0 %v4001
        %v5093 = vpop.f32.mrf.mxu0
        %v5094 = vadd.f32 %v4845, %v5093
        %v5095 = vpop.f32.mrf.mxu0
        %v5096 = vadd.f32 %v4847, %v5095
        %5097 = vmatmul.bf16.gmra.mxu0 %v4005
        %v5098 = vpop.f32.mrf.mxu0
        %v5099 = vadd.f32 %v4850, %v5098
        %v5100 = vpop.f32.mrf.mxu0
        %v5101 = vadd.f32 %v4852, %v5100
        %5102 = vmatmul.bf16.gmra.mxu0 %v4009
        %v5103 = vpop.f32.mrf.mxu0
        %v5104 = vadd.f32 %v4855, %v5103
        %v5105 = vpop.f32.mrf.mxu0
        %v5106 = vadd.f32 %v4857, %v5105
        %5107 = vmatmul.bf16.gmra.mxu0 %v4013
        %v5108 = vpop.f32.mrf.mxu0
        %v5109 = vadd.f32 %v4860, %v5108
        %v5110 = vpop.f32.mrf.mxu0
        %v5111 = vadd.f32 %v4862, %v5110
        %5112 = vmatmul.bf16.gmra.mxu0 %v4017
        %v5113 = vpop.f32.mrf.mxu0
        %v5114 = vadd.f32 %v4865, %v5113
        %v5115 = vpop.f32.mrf.mxu0
        %v5116 = vadd.f32 %v4867, %v5115
        %5117 = vmatmul.bf16.gmra.mxu0 %v4021
        %v5118 = vpop.f32.mrf.mxu0
        %v5119 = vadd.f32 %v4870, %v5118
        %v5120 = vpop.f32.mrf.mxu0
        %v5121 = vadd.f32 %v4872, %v5120
        %5122 = vmatmul.bf16.gmra.mxu0 %v4025
        %v5123 = vpop.f32.mrf.mxu0
        %v5124 = vadd.f32 %v4875, %v5123
        %v5125 = vpop.f32.mrf.mxu0
        %v5126 = vadd.f32 %v4877, %v5125
        %5127 = vmatmul.bf16.gmra.mxu0 %v4029
        %v5128 = vpop.f32.mrf.mxu0
        %v5129 = vadd.f32 %v4880, %v5128
        %v5130 = vpop.f32.mrf.mxu0
        %v5131 = vadd.f32 %v4882, %v5130
        %5132 = vmatmul.bf16.gmra.mxu0 %v4033
        %v5133 = vpop.f32.mrf.mxu0
        %v5134 = vadd.f32 %v4885, %v5133
        %v5135 = vpop.f32.mrf.mxu0
        %v5136 = vadd.f32 %v4887, %v5135
        %5137 = vmatmul.bf16.gmra.mxu0 %v4037
        %v5138 = vpop.f32.mrf.mxu0
        %v5139 = vadd.f32 %v4890, %v5138
        %v5140 = vpop.f32.mrf.mxu0
        %v5141 = vadd.f32 %v4892, %v5140
        %5142 = vmatmul.bf16.gmra.mxu0 %v4041
        %v5143 = vpop.f32.mrf.mxu0
        %v5144 = vadd.f32 %v4895, %v5143
        %v5145 = vpop.f32.mrf.mxu0
        %v5146 = vadd.f32 %v4897, %v5145
        %5147 = vmatmul.bf16.gmra.mxu0 %v4045
        %v5148 = vpop.f32.mrf.mxu0
        %v5149 = vadd.f32 %v4900, %v5148
        %v5150 = vpop.f32.mrf.mxu0
        %v5151 = vadd.f32 %v4902, %v5150
        %5152 = vmatmul.bf16.gmra.mxu0 %v4049
        %v5153 = vpop.f32.mrf.mxu0
        %v5154 = vadd.f32 %v4905, %v5153
        %v5155 = vpop.f32.mrf.mxu0
        %v5156 = vadd.f32 %v4907, %v5155
        %5157 = vmatmul.bf16.gmra.mxu0 %v4053
        %v5158 = vpop.f32.mrf.mxu0
        %v5159 = vadd.f32 %v4910, %v5158
        %v5160 = vpop.f32.mrf.mxu0
        %v5161 = vadd.f32 %v4912, %v5160
        %5162 = vmatmul.bf16.gmra.mxu0 %v4057
        %v5163 = vpop.f32.mrf.mxu0
        %v5164 = vadd.f32 %v4915, %v5163
        %v5165 = vpop.f32.mrf.mxu0
        %v5166 = vadd.f32 %v4917, %v5165
        %5167 = vmatmul.bf16.gmra.mxu0 %v4061
        %v5168 = vpop.f32.mrf.mxu0
        %v5169 = vadd.f32 %v4920, %v5168
        %v5170 = vpop.f32.mrf.mxu0
        %v5171 = vadd.f32 %v4922, %v5170
        %5172 = vmatmul.bf16.gmra.mxu0 %v4065
        %v5173 = vpop.f32.mrf.mxu0
        %v5174 = vadd.f32 %v4925, %v5173
        %v5175 = vpop.f32.mrf.mxu0
        %v5176 = vadd.f32 %v4927, %v5175
        %5177 = vmatmul.bf16.gmra.mxu0 %v4069
        %v5178 = vpop.f32.mrf.mxu0
        %v5179 = vadd.f32 %v4930, %v5178
        %v5180 = vpop.f32.mrf.mxu0
        %v5181 = vadd.f32 %v4932, %v5180
        %5182 = vmatmul.bf16.gmra.mxu0 %v4073
        %v5183 = vpop.f32.mrf.mxu0
        %v5184 = vadd.f32 %v4935, %v5183
        %v5185 = vpop.f32.mrf.mxu0
        %v5186 = vadd.f32 %v4937, %v5185
        %5187 = vmatmul.bf16.gmra.mxu0 %v4077
        %v5188 = vpop.f32.mrf.mxu0
        %v5189 = vadd.f32 %v4940, %v5188
        %v5190 = vpop.f32.mrf.mxu0
        %v5191 = vadd.f32 %v4942, %v5190
        %5192 = vmatmul.bf16.gmra.mxu0 %v4081
        %v5193 = vpop.f32.mrf.mxu0
        %v5194 = vadd.f32 %v4945, %v5193
        %v5195 = vpop.f32.mrf.mxu0
        %v5196 = vadd.f32 %v4947, %v5195
        %5197 = vmatmul.bf16.gmra.mxu0 %v4085
        %v5198 = vpop.f32.mrf.mxu0
        %v5199 = vadd.f32 %v4950, %v5198
        %v5200 = vpop.f32.mrf.mxu0
        %v5201 = vadd.f32 %v4952, %v5200
        %5202 = vmatmul.bf16.gmra.mxu0 %v4089
        %v5203 = vpop.f32.mrf.mxu0
        %v5204 = vadd.f32 %v4955, %v5203
        %v5205 = vpop.f32.mrf.mxu0
        %v5206 = vadd.f32 %v4957, %v5205
        %5207 = vmatmul.bf16.gmra.mxu0 %v4093
        %v5208 = vpop.f32.mrf.mxu0
        %v5209 = vadd.f32 %v4960, %v5208
        %v5210 = vpop.f32.mrf.mxu0
        %v5211 = vadd.f32 %v4962, %v5210
        %5212 = vmatmul.bf16.gmra.mxu0 %v4097
        %v5213 = vpop.f32.mrf.mxu0
        %v5214 = vadd.f32 %v4965, %v5213
        %v5215 = vpop.f32.mrf.mxu0
        %v5216 = vadd.f32 %v4967, %v5215
        %5217 = vmatmul.bf16.gmra.mxu0 %v4101
        %v5218 = vpop.f32.mrf.mxu0
        %v5219 = vadd.f32 %v4970, %v5218
        %v5220 = vpop.f32.mrf.mxu0
        %v5221 = vadd.f32 %v4972, %v5220
        %5222 = vmatmul.bf16.gmra.mxu0 %v4105
        %v5223 = vpop.f32.mrf.mxu0
        %v5224 = vadd.f32 %v4975, %v5223
        %v5225 = vpop.f32.mrf.mxu0
        %v5226 = vadd.f32 %v4977, %v5225
        %5227 = vmatmul.bf16.gmra.mxu0 %v4109
        %v5228 = vpop.f32.mrf.mxu0
        %v5229 = vadd.f32 %v4980, %v5228
        %v5230 = vpop.f32.mrf.mxu0
        %v5231 = vadd.f32 %v4982, %v5230
        %5232 = vmatmul.bf16.gmra.mxu0 %v4113
        %v5233 = vpop.f32.mrf.mxu0
        %v5234 = vadd.f32 %v4985, %v5233
        %v5235 = vpop.f32.mrf.mxu0
        %v5236 = vadd.f32 %v4987, %v5235
        %5237 = vmatmul.bf16.gmra.mxu0 %v4117
        %v5238 = vpop.f32.mrf.mxu0
        %v5239 = vadd.f32 %v4990, %v5238
        %v5240 = vpop.f32.mrf.mxu0
        %v5241 = vadd.f32 %v4992, %v5240
        %5242 = vmatmul.bf16.gmra.mxu0 %v4121
        %v5243 = vpop.f32.mrf.mxu0
        %v5244 = vadd.f32 %v4995, %v5243
        %v5245 = vpop.f32.mrf.mxu0
        %v5246 = vadd.f32 %v4997, %v5245
        %5247 = vmatmul.bf16.gmra.mxu0 %v4125
        %v5248 = vpop.f32.mrf.mxu0
        %v5249 = vadd.f32 %v5000, %v5248
        %v5250 = vpop.f32.mrf.mxu0
        %v5251 = vadd.f32 %v5002, %v5250
        %5252 = vmatmul.bf16.gmra.mxu0 %v4129
        %v5253 = vpop.f32.mrf.mxu0
        %v5254 = vadd.f32 %v5005, %v5253
        %v5255 = vpop.f32.mrf.mxu0
        %v5256 = vadd.f32 %v5007, %v5255
        %5257 = vmatmul.bf16.gmra.mxu0 %v4133
        %v5258 = vpop.f32.mrf.mxu0
        %v5259 = vadd.f32 %v5010, %v5258
        %v5260 = vpop.f32.mrf.mxu0
        %v5261 = vadd.f32 %v5012, %v5260
        %5262 = vmatmul.bf16.gmra.mxu0 %v4137
        %v5263 = vpop.f32.mrf.mxu0
        %v5264 = vadd.f32 %v5015, %v5263
        %v5265 = vpop.f32.mrf.mxu0
        %v5266 = vadd.f32 %v5017, %v5265
        %5267 = vmatmul.bf16.gmra.mxu0 %v4141
        %v5268 = vpop.f32.mrf.mxu0
        %v5269 = vadd.f32 %v5020, %v5268
        %v5270 = vpop.f32.mrf.mxu0
        %v5271 = vadd.f32 %v5022, %v5270
        %5272 = vmatmul.bf16.gmra.mxu0 %v4145
        %v5273 = vpop.f32.mrf.mxu0
        %v5274 = vadd.f32 %v5025, %v5273
        %v5275 = vpop.f32.mrf.mxu0
        %v5276 = vadd.f32 %v5027, %v5275
        %5277 = vdwg.mxu0
        %5278 = vmatpush.bf16.msra.mxu0 %v4498
        %5279 = vmatpush.bf16.msra.mxu0 %v4497
        %5280 = vmatpush.bf16.msra.mxu0 %v4496
        %5281 = vmatpush.bf16.msra.mxu0 %v4495
        %5282 = vmatpush.bf16.msra.mxu0 %v4494
        %5283 = vmatpush.bf16.msra.mxu0 %v4493
        %5284 = vmatpush.bf16.msra.mxu0 %v4492
        %5285 = vmatpush.bf16.msra.mxu0 %v4491
        %5286 = vmatmul.bf16.gmra.mxu0 %v3958
        %v5287 = vpop.f32.mrf.mxu0
        %v5288 = vadd.f32 %v5039, %v5287
        %v5289 = vpop.f32.mrf.mxu0
        %v5290 = vadd.f32 %v5041, %v5289
        %5291 = vmatmul.bf16.gmra.mxu0 %v3962
        %v5292 = vpop.f32.mrf.mxu0
        %v5293 = vadd.f32 %v5044, %v5292
        %v5294 = vpop.f32.mrf.mxu0
        %v5295 = vadd.f32 %v5046, %v5294
        %5296 = vmatmul.bf16.gmra.mxu0 %v3966
        %v5297 = vpop.f32.mrf.mxu0
        %v5298 = vadd.f32 %v5049, %v5297
        %v5299 = vpop.f32.mrf.mxu0
        %v5300 = vadd.f32 %v5051, %v5299
        %5301 = vmatmul.bf16.gmra.mxu0 %v3970
        %v5302 = vpop.f32.mrf.mxu0
        %v5303 = vadd.f32 %v5054, %v5302
        %v5304 = vpop.f32.mrf.mxu0
        %v5305 = vadd.f32 %v5056, %v5304
        %5306 = vmatmul.bf16.gmra.mxu0 %v3974
        %v5307 = vpop.f32.mrf.mxu0
        %v5308 = vadd.f32 %v5059, %v5307
        %v5309 = vpop.f32.mrf.mxu0
        %v5310 = vadd.f32 %v5061, %v5309
        %5311 = vmatmul.bf16.gmra.mxu0 %v3978
        %v5312 = vpop.f32.mrf.mxu0
        %v5313 = vadd.f32 %v5064, %v5312
        %v5314 = vpop.f32.mrf.mxu0
        %v5315 = vadd.f32 %v5066, %v5314
        %5316 = vmatmul.bf16.gmra.mxu0 %v3982
        %v5317 = vpop.f32.mrf.mxu0
        %v5318 = vadd.f32 %v5069, %v5317
        %v5319 = vpop.f32.mrf.mxu0
        %v5320 = vadd.f32 %v5071, %v5319
        %5321 = vmatmul.bf16.gmra.mxu0 %v3986
        %v5322 = vpop.f32.mrf.mxu0
        %v5323 = vadd.f32 %v5074, %v5322
        %v5324 = vpop.f32.mrf.mxu0
        %v5325 = vadd.f32 %v5076, %v5324
        %5326 = vmatmul.bf16.gmra.mxu0 %v3990
        %v5327 = vpop.f32.mrf.mxu0
        %v5328 = vadd.f32 %v5079, %v5327
        %v5329 = vpop.f32.mrf.mxu0
        %v5330 = vadd.f32 %v5081, %v5329
        %5331 = vmatmul.bf16.gmra.mxu0 %v3994
        %v5332 = vpop.f32.mrf.mxu0
        %v5333 = vadd.f32 %v5084, %v5332
        %v5334 = vpop.f32.mrf.mxu0
        %v5335 = vadd.f32 %v5086, %v5334
        %5336 = vmatmul.bf16.gmra.mxu0 %v3998
        %v5337 = vpop.f32.mrf.mxu0
        %v5338 = vadd.f32 %v5089, %v5337
        %v5339 = vpop.f32.mrf.mxu0
        %v5340 = vadd.f32 %v5091, %v5339
        %5341 = vmatmul.bf16.gmra.mxu0 %v4002
        %v5342 = vpop.f32.mrf.mxu0
        %v5343 = vadd.f32 %v5094, %v5342
        %v5344 = vpop.f32.mrf.mxu0
        %v5345 = vadd.f32 %v5096, %v5344
        %5346 = vmatmul.bf16.gmra.mxu0 %v4006
        %v5347 = vpop.f32.mrf.mxu0
        %v5348 = vadd.f32 %v5099, %v5347
        %v5349 = vpop.f32.mrf.mxu0
        %v5350 = vadd.f32 %v5101, %v5349
        %5351 = vmatmul.bf16.gmra.mxu0 %v4010
        %v5352 = vpop.f32.mrf.mxu0
        %v5353 = vadd.f32 %v5104, %v5352
        %v5354 = vpop.f32.mrf.mxu0
        %v5355 = vadd.f32 %v5106, %v5354
        %5356 = vmatmul.bf16.gmra.mxu0 %v4014
        %v5357 = vpop.f32.mrf.mxu0
        %v5358 = vadd.f32 %v5109, %v5357
        %v5359 = vpop.f32.mrf.mxu0
        %v5360 = vadd.f32 %v5111, %v5359
        %5361 = vmatmul.bf16.gmra.mxu0 %v4018
        %v5362 = vpop.f32.mrf.mxu0
        %v5363 = vadd.f32 %v5114, %v5362
        %v5364 = vpop.f32.mrf.mxu0
        %v5365 = vadd.f32 %v5116, %v5364
        %5366 = vmatmul.bf16.gmra.mxu0 %v4022
        %v5367 = vpop.f32.mrf.mxu0
        %v5368 = vadd.f32 %v5119, %v5367
        %v5369 = vpop.f32.mrf.mxu0
        %v5370 = vadd.f32 %v5121, %v5369
        %5371 = vmatmul.bf16.gmra.mxu0 %v4026
        %v5372 = vpop.f32.mrf.mxu0
        %v5373 = vadd.f32 %v5124, %v5372
        %v5374 = vpop.f32.mrf.mxu0
        %v5375 = vadd.f32 %v5126, %v5374
        %5376 = vmatmul.bf16.gmra.mxu0 %v4030
        %v5377 = vpop.f32.mrf.mxu0
        %v5378 = vadd.f32 %v5129, %v5377
        %v5379 = vpop.f32.mrf.mxu0
        %v5380 = vadd.f32 %v5131, %v5379
        %5381 = vmatmul.bf16.gmra.mxu0 %v4034
        %v5382 = vpop.f32.mrf.mxu0
        %v5383 = vadd.f32 %v5134, %v5382
        %v5384 = vpop.f32.mrf.mxu0
        %v5385 = vadd.f32 %v5136, %v5384
        %5386 = vmatmul.bf16.gmra.mxu0 %v4038
        %v5387 = vpop.f32.mrf.mxu0
        %v5388 = vadd.f32 %v5139, %v5387
        %v5389 = vpop.f32.mrf.mxu0
        %v5390 = vadd.f32 %v5141, %v5389
        %5391 = vmatmul.bf16.gmra.mxu0 %v4042
        %v5392 = vpop.f32.mrf.mxu0
        %v5393 = vadd.f32 %v5144, %v5392
        %v5394 = vpop.f32.mrf.mxu0
        %v5395 = vadd.f32 %v5146, %v5394
        %5396 = vmatmul.bf16.gmra.mxu0 %v4046
        %v5397 = vpop.f32.mrf.mxu0
        %v5398 = vadd.f32 %v5149, %v5397
        %v5399 = vpop.f32.mrf.mxu0
        %v5400 = vadd.f32 %v5151, %v5399
        %5401 = vmatmul.bf16.gmra.mxu0 %v4050
        %v5402 = vpop.f32.mrf.mxu0
        %v5403 = vadd.f32 %v5154, %v5402
        %v5404 = vpop.f32.mrf.mxu0
        %v5405 = vadd.f32 %v5156, %v5404
        %5406 = vmatmul.bf16.gmra.mxu0 %v4054
        %v5407 = vpop.f32.mrf.mxu0
        %v5408 = vadd.f32 %v5159, %v5407
        %v5409 = vpop.f32.mrf.mxu0
        %v5410 = vadd.f32 %v5161, %v5409
        %5411 = vmatmul.bf16.gmra.mxu0 %v4058
        %v5412 = vpop.f32.mrf.mxu0
        %v5413 = vadd.f32 %v5164, %v5412
        %v5414 = vpop.f32.mrf.mxu0
        %v5415 = vadd.f32 %v5166, %v5414
        %5416 = vmatmul.bf16.gmra.mxu0 %v4062
        %v5417 = vpop.f32.mrf.mxu0
        %v5418 = vadd.f32 %v5169, %v5417
        %v5419 = vpop.f32.mrf.mxu0
        %v5420 = vadd.f32 %v5171, %v5419
        %5421 = vmatmul.bf16.gmra.mxu0 %v4066
        %v5422 = vpop.f32.mrf.mxu0
        %v5423 = vadd.f32 %v5174, %v5422
        %v5424 = vpop.f32.mrf.mxu0
        %v5425 = vadd.f32 %v5176, %v5424
        %5426 = vmatmul.bf16.gmra.mxu0 %v4070
        %v5427 = vpop.f32.mrf.mxu0
        %v5428 = vadd.f32 %v5179, %v5427
        %v5429 = vpop.f32.mrf.mxu0
        %v5430 = vadd.f32 %v5181, %v5429
        %5431 = vmatmul.bf16.gmra.mxu0 %v4074
        %v5432 = vpop.f32.mrf.mxu0
        %v5433 = vadd.f32 %v5184, %v5432
        %v5434 = vpop.f32.mrf.mxu0
        %v5435 = vadd.f32 %v5186, %v5434
        %5436 = vmatmul.bf16.gmra.mxu0 %v4078
        %v5437 = vpop.f32.mrf.mxu0
        %v5438 = vadd.f32 %v5189, %v5437
        %v5439 = vpop.f32.mrf.mxu0
        %v5440 = vadd.f32 %v5191, %v5439
        %5441 = vmatmul.bf16.gmra.mxu0 %v4082
        %v5442 = vpop.f32.mrf.mxu0
        %v5443 = vadd.f32 %v5194, %v5442
        %v5444 = vpop.f32.mrf.mxu0
        %v5445 = vadd.f32 %v5196, %v5444
        %5446 = vmatmul.bf16.gmra.mxu0 %v4086
        %v5447 = vpop.f32.mrf.mxu0
        %v5448 = vadd.f32 %v5199, %v5447
        %v5449 = vpop.f32.mrf.mxu0
        %v5450 = vadd.f32 %v5201, %v5449
        %5451 = vmatmul.bf16.gmra.mxu0 %v4090
        %v5452 = vpop.f32.mrf.mxu0
        %v5453 = vadd.f32 %v5204, %v5452
        %v5454 = vpop.f32.mrf.mxu0
        %v5455 = vadd.f32 %v5206, %v5454
        %5456 = vmatmul.bf16.gmra.mxu0 %v4094
        %v5457 = vpop.f32.mrf.mxu0
        %v5458 = vadd.f32 %v5209, %v5457
        %v5459 = vpop.f32.mrf.mxu0
        %v5460 = vadd.f32 %v5211, %v5459
        %5461 = vmatmul.bf16.gmra.mxu0 %v4098
        %v5462 = vpop.f32.mrf.mxu0
        %v5463 = vadd.f32 %v5214, %v5462
        %v5464 = vpop.f32.mrf.mxu0
        %v5465 = vadd.f32 %v5216, %v5464
        %5466 = vmatmul.bf16.gmra.mxu0 %v4102
        %v5467 = vpop.f32.mrf.mxu0
        %v5468 = vadd.f32 %v5219, %v5467
        %v5469 = vpop.f32.mrf.mxu0
        %v5470 = vadd.f32 %v5221, %v5469
        %5471 = vmatmul.bf16.gmra.mxu0 %v4106
        %v5472 = vpop.f32.mrf.mxu0
        %v5473 = vadd.f32 %v5224, %v5472
        %v5474 = vpop.f32.mrf.mxu0
        %v5475 = vadd.f32 %v5226, %v5474
        %5476 = vmatmul.bf16.gmra.mxu0 %v4110
        %v5477 = vpop.f32.mrf.mxu0
        %v5478 = vadd.f32 %v5229, %v5477
        %v5479 = vpop.f32.mrf.mxu0
        %v5480 = vadd.f32 %v5231, %v5479
        %5481 = vmatmul.bf16.gmra.mxu0 %v4114
        %v5482 = vpop.f32.mrf.mxu0
        %v5483 = vadd.f32 %v5234, %v5482
        %v5484 = vpop.f32.mrf.mxu0
        %v5485 = vadd.f32 %v5236, %v5484
        %5486 = vmatmul.bf16.gmra.mxu0 %v4118
        %v5487 = vpop.f32.mrf.mxu0
        %v5488 = vadd.f32 %v5239, %v5487
        %v5489 = vpop.f32.mrf.mxu0
        %v5490 = vadd.f32 %v5241, %v5489
        %5491 = vmatmul.bf16.gmra.mxu0 %v4122
        %v5492 = vpop.f32.mrf.mxu0
        %v5493 = vadd.f32 %v5244, %v5492
        %v5494 = vpop.f32.mrf.mxu0
        %v5495 = vadd.f32 %v5246, %v5494
        %5496 = vmatmul.bf16.gmra.mxu0 %v4126
        %v5497 = vpop.f32.mrf.mxu0
        %v5498 = vadd.f32 %v5249, %v5497
        %v5499 = vpop.f32.mrf.mxu0
        %v5500 = vadd.f32 %v5251, %v5499
        %5501 = vmatmul.bf16.gmra.mxu0 %v4130
        %v5502 = vpop.f32.mrf.mxu0
        %v5503 = vadd.f32 %v5254, %v5502
        %v5504 = vpop.f32.mrf.mxu0
        %v5505 = vadd.f32 %v5256, %v5504
        %5506 = vmatmul.bf16.gmra.mxu0 %v4134
        %v5507 = vpop.f32.mrf.mxu0
        %v5508 = vadd.f32 %v5259, %v5507
        %v5509 = vpop.f32.mrf.mxu0
        %v5510 = vadd.f32 %v5261, %v5509
        %5511 = vmatmul.bf16.gmra.mxu0 %v4138
        %v5512 = vpop.f32.mrf.mxu0
        %v5513 = vadd.f32 %v5264, %v5512
        %v5514 = vpop.f32.mrf.mxu0
        %v5515 = vadd.f32 %v5266, %v5514
        %5516 = vmatmul.bf16.gmra.mxu0 %v4142
        %v5517 = vpop.f32.mrf.mxu0
        %v5518 = vadd.f32 %v5269, %v5517
        %v5519 = vpop.f32.mrf.mxu0
        %v5520 = vadd.f32 %v5271, %v5519
        %5521 = vmatmul.bf16.gmra.mxu0 %v4146
        %v5522 = vpop.f32.mrf.mxu0
        %v5523 = vadd.f32 %v5274, %v5522
        %v5524 = vpop.f32.mrf.mxu0
        %v5525 = vadd.f32 %v5276, %v5524
        %5526 = vdwg.mxu0
        %v5527 = vsub.f32 0.0, %v2548
        %v5528 = vsub.f32 0.0, %v2550
        %v5529 = vsub.f32 0.0, %v2553
        %v5530 = vsub.f32 0.0, %v2555
        %v5531 = vsub.f32 0.0, %v2558
        %v5532 = vsub.f32 0.0, %v2560
        %v5533 = vsub.f32 0.0, %v2563
        %v5534 = vsub.f32 0.0, %v2565
        %v5535 = vsub.f32 0.0, %v2568
        %v5536 = vsub.f32 0.0, %v2570
        %v5537 = vsub.f32 0.0, %v2573
        %v5538 = vsub.f32 0.0, %v2575
        %v5539 = vsub.f32 0.0, %v2578
        %v5540 = vsub.f32 0.0, %v2580
        %v5541 = vsub.f32 0.0, %v2583
        %v5542 = vsub.f32 0.0, %v2585
        %v5543 = vsub.f32 0.0, %v2588
        %v5544 = vsub.f32 0.0, %v2590
        %v5545 = vsub.f32 0.0, %v2593
        %v5546 = vsub.f32 0.0, %v2595
        %v5547 = vsub.f32 0.0, %v2598
        %v5548 = vsub.f32 0.0, %v2600
        %v5549 = vsub.f32 0.0, %v2603
        %v5550 = vsub.f32 0.0, %v2605
        %v5551 = vsub.f32 0.0, %v2608
        %v5552 = vsub.f32 0.0, %v2610
        %v5553 = vsub.f32 0.0, %v2613
        %v5554 = vsub.f32 0.0, %v2615
        %v5555 = vsub.f32 0.0, %v2618
        %v5556 = vsub.f32 0.0, %v2620
        %v5557 = vsub.f32 0.0, %v2623
        %v5558 = vsub.f32 0.0, %v2625
        %v5559 = vmul.f32 %v5527, 1.442695
        %v5560 = vpow.pop %v5559
        %v5561 = vmul.f32 %v5528, 1.442695
        %v5562 = vpow.pop %v5561
        %v5563 = vmul.f32 %v5529, 1.442695
        %v5564 = vpow.pop %v5563
        %v5565 = vmul.f32 %v5530, 1.442695
        %v5566 = vpow.pop %v5565
        %v5567 = vmul.f32 %v5531, 1.442695
        %v5568 = vpow.pop %v5567
        %v5569 = vmul.f32 %v5532, 1.442695
        %v5570 = vpow.pop %v5569
        %v5571 = vmul.f32 %v5533, 1.442695
        %v5572 = vpow.pop %v5571
        %v5573 = vmul.f32 %v5534, 1.442695
        %v5574 = vpow.pop %v5573
        %v5575 = vmul.f32 %v5535, 1.442695
        %v5576 = vpow.pop %v5575
        %v5577 = vmul.f32 %v5536, 1.442695
        %v5578 = vpow.pop %v5577
        %v5579 = vmul.f32 %v5537, 1.442695
        %v5580 = vpow.pop %v5579
        %v5581 = vmul.f32 %v5538, 1.442695
        %v5582 = vpow.pop %v5581
        %v5583 = vmul.f32 %v5539, 1.442695
        %v5584 = vpow.pop %v5583
        %v5585 = vmul.f32 %v5540, 1.442695
        %v5586 = vpow.pop %v5585
        %v5587 = vmul.f32 %v5541, 1.442695
        %v5588 = vpow.pop %v5587
        %v5589 = vmul.f32 %v5542, 1.442695
        %v5590 = vpow.pop %v5589
        %v5591 = vmul.f32 %v5543, 1.442695
        %v5592 = vpow.pop %v5591
        %v5593 = vmul.f32 %v5544, 1.442695
        %v5594 = vpow.pop %v5593
        %v5595 = vmul.f32 %v5545, 1.442695
        %v5596 = vpow.pop %v5595
        %v5597 = vmul.f32 %v5546, 1.442695
        %v5598 = vpow.pop %v5597
        %v5599 = vmul.f32 %v5547, 1.442695
        %v5600 = vpow.pop %v5599
        %v5601 = vmul.f32 %v5548, 1.442695
        %v5602 = vpow.pop %v5601
        %v5603 = vmul.f32 %v5549, 1.442695
        %v5604 = vpow.pop %v5603
        %v5605 = vmul.f32 %v5550, 1.442695
        %v5606 = vpow.pop %v5605
        %v5607 = vmul.f32 %v5551, 1.442695
        %v5608 = vpow.pop %v5607
        %v5609 = vmul.f32 %v5552, 1.442695
        %v5610 = vpow.pop %v5609
        %v5611 = vmul.f32 %v5553, 1.442695
        %v5612 = vpow.pop %v5611
        %v5613 = vmul.f32 %v5554, 1.442695
        %v5614 = vpow.pop %v5613
        %v5615 = vmul.f32 %v5555, 1.442695
        %v5616 = vpow.pop %v5615
        %v5617 = vmul.f32 %v5556, 1.442695
        %v5618 = vpow.pop %v5617
        %v5619 = vmul.f32 %v5557, 1.442695
        %v5620 = vpow.pop %v5619
        %v5621 = vmul.f32 %v5558, 1.442695
        %v5622 = vpow.pop %v5621
        %v5623 = vadd.f32 %v5560, 1.0
        %v5624 = vadd.f32 %v5562, 1.0
        %v5625 = vadd.f32 %v5564, 1.0
        %v5626 = vadd.f32 %v5566, 1.0
        %v5627 = vadd.f32 %v5568, 1.0
        %v5628 = vadd.f32 %v5570, 1.0
        %v5629 = vadd.f32 %v5572, 1.0
        %v5630 = vadd.f32 %v5574, 1.0
        %v5631 = vadd.f32 %v5576, 1.0
        %v5632 = vadd.f32 %v5578, 1.0
        %v5633 = vadd.f32 %v5580, 1.0
        %v5634 = vadd.f32 %v5582, 1.0
        %v5635 = vadd.f32 %v5584, 1.0
        %v5636 = vadd.f32 %v5586, 1.0
        %v5637 = vadd.f32 %v5588, 1.0
        %v5638 = vadd.f32 %v5590, 1.0
        %v5639 = vadd.f32 %v5592, 1.0
        %v5640 = vadd.f32 %v5594, 1.0
        %v5641 = vadd.f32 %v5596, 1.0
        %v5642 = vadd.f32 %v5598, 1.0
        %v5643 = vadd.f32 %v5600, 1.0
        %v5644 = vadd.f32 %v5602, 1.0
        %v5645 = vadd.f32 %v5604, 1.0
        %v5646 = vadd.f32 %v5606, 1.0
        %v5647 = vadd.f32 %v5608, 1.0
        %v5648 = vadd.f32 %v5610, 1.0
        %v5649 = vadd.f32 %v5612, 1.0
        %v5650 = vadd.f32 %v5614, 1.0
        %v5651 = vadd.f32 %v5616, 1.0
        %v5652 = vadd.f32 %v5618, 1.0
        %v5653 = vadd.f32 %v5620, 1.0
        %v5654 = vadd.f32 %v5622, 1.0
        %v5655 = vrcp.pop %v5623
        %v5656 = vrcp.pop %v5624
        %v5657 = vrcp.pop %v5625
        %v5658 = vrcp.pop %v5626
        %v5659 = vrcp.pop %v5627
        %v5660 = vrcp.pop %v5628
        %v5661 = vrcp.pop %v5629
        %v5662 = vrcp.pop %v5630
        %v5663 = vrcp.pop %v5631
        %v5664 = vrcp.pop %v5632
        %v5665 = vrcp.pop %v5633
        %v5666 = vrcp.pop %v5634
        %v5667 = vrcp.pop %v5635
        %v5668 = vrcp.pop %v5636
        %v5669 = vrcp.pop %v5637
        %v5670 = vrcp.pop %v5638
        %v5671 = vrcp.pop %v5639
        %v5672 = vrcp.pop %v5640
        %v5673 = vrcp.pop %v5641
        %v5674 = vrcp.pop %v5642
        %v5675 = vrcp.pop %v5643
        %v5676 = vrcp.pop %v5644
        %v5677 = vrcp.pop %v5645
        %v5678 = vrcp.pop %v5646
        %v5679 = vrcp.pop %v5647
        %v5680 = vrcp.pop %v5648
        %v5681 = vrcp.pop %v5649
        %v5682 = vrcp.pop %v5650
        %v5683 = vrcp.pop %v5651
        %v5684 = vrcp.pop %v5652
        %v5685 = vrcp.pop %v5653
        %v5686 = vrcp.pop %v5654
        %v5687 = vsub.f32 0.0, %v2628
        %v5688 = vsub.f32 0.0, %v2630
        %v5689 = vsub.f32 0.0, %v2633
        %v5690 = vsub.f32 0.0, %v2635
        %v5691 = vsub.f32 0.0, %v2638
        %v5692 = vsub.f32 0.0, %v2640
        %v5693 = vsub.f32 0.0, %v2643
        %v5694 = vsub.f32 0.0, %v2645
        %v5695 = vsub.f32 0.0, %v2648
        %v5696 = vsub.f32 0.0, %v2650
        %v5697 = vsub.f32 0.0, %v2653
        %v5698 = vsub.f32 0.0, %v2655
        %v5699 = vsub.f32 0.0, %v2658
        %v5700 = vsub.f32 0.0, %v2660
        %v5701 = vsub.f32 0.0, %v2663
        %v5702 = vsub.f32 0.0, %v2665
        %v5703 = vsub.f32 0.0, %v2668
        %v5704 = vsub.f32 0.0, %v2670
        %v5705 = vsub.f32 0.0, %v2673
        %v5706 = vsub.f32 0.0, %v2675
        %v5707 = vsub.f32 0.0, %v2678
        %v5708 = vsub.f32 0.0, %v2680
        %v5709 = vsub.f32 0.0, %v2683
        %v5710 = vsub.f32 0.0, %v2685
        %v5711 = vsub.f32 0.0, %v2688
        %v5712 = vsub.f32 0.0, %v2690
        %v5713 = vsub.f32 0.0, %v2693
        %v5714 = vsub.f32 0.0, %v2695
        %v5715 = vsub.f32 0.0, %v2698
        %v5716 = vsub.f32 0.0, %v2700
        %v5717 = vsub.f32 0.0, %v2703
        %v5718 = vsub.f32 0.0, %v2705
        %v5719 = vmul.f32 %v5687, 1.442695
        %v5720 = vpow.pop %v5719
        %v5721 = vmul.f32 %v5688, 1.442695
        %v5722 = vpow.pop %v5721
        %v5723 = vmul.f32 %v5689, 1.442695
        %v5724 = vpow.pop %v5723
        %v5725 = vmul.f32 %v5690, 1.442695
        %v5726 = vpow.pop %v5725
        %v5727 = vmul.f32 %v5691, 1.442695
        %v5728 = vpow.pop %v5727
        %v5729 = vmul.f32 %v5692, 1.442695
        %v5730 = vpow.pop %v5729
        %v5731 = vmul.f32 %v5693, 1.442695
        %v5732 = vpow.pop %v5731
        %v5733 = vmul.f32 %v5694, 1.442695
        %v5734 = vpow.pop %v5733
        %v5735 = vmul.f32 %v5695, 1.442695
        %v5736 = vpow.pop %v5735
        %v5737 = vmul.f32 %v5696, 1.442695
        %v5738 = vpow.pop %v5737
        %v5739 = vmul.f32 %v5697, 1.442695
        %v5740 = vpow.pop %v5739
        %v5741 = vmul.f32 %v5698, 1.442695
        %v5742 = vpow.pop %v5741
        %v5743 = vmul.f32 %v5699, 1.442695
        %v5744 = vpow.pop %v5743
        %v5745 = vmul.f32 %v5700, 1.442695
        %v5746 = vpow.pop %v5745
        %v5747 = vmul.f32 %v5701, 1.442695
        %v5748 = vpow.pop %v5747
        %v5749 = vmul.f32 %v5702, 1.442695
        %v5750 = vpow.pop %v5749
        %v5751 = vmul.f32 %v5703, 1.442695
        %v5752 = vpow.pop %v5751
        %v5753 = vmul.f32 %v5704, 1.442695
        %v5754 = vpow.pop %v5753
        %v5755 = vmul.f32 %v5705, 1.442695
        %v5756 = vpow.pop %v5755
        %v5757 = vmul.f32 %v5706, 1.442695
        %v5758 = vpow.pop %v5757
        %v5759 = vmul.f32 %v5707, 1.442695
        %v5760 = vpow.pop %v5759
        %v5761 = vmul.f32 %v5708, 1.442695
        %v5762 = vpow.pop %v5761
        %v5763 = vmul.f32 %v5709, 1.442695
        %v5764 = vpow.pop %v5763
        %v5765 = vmul.f32 %v5710, 1.442695
        %v5766 = vpow.pop %v5765
        %v5767 = vmul.f32 %v5711, 1.442695
        %v5768 = vpow.pop %v5767
        %v5769 = vmul.f32 %v5712, 1.442695
        %v5770 = vpow.pop %v5769
        %v5771 = vmul.f32 %v5713, 1.442695
        %v5772 = vpow.pop %v5771
        %v5773 = vmul.f32 %v5714, 1.442695
        %v5774 = vpow.pop %v5773
        %v5775 = vmul.f32 %v5715, 1.442695
        %v5776 = vpow.pop %v5775
        %v5777 = vmul.f32 %v5716, 1.442695
        %v5778 = vpow.pop %v5777
        %v5779 = vmul.f32 %v5717, 1.442695
        %v5780 = vpow.pop %v5779
        %v5781 = vmul.f32 %v5718, 1.442695
        %v5782 = vpow.pop %v5781
        %v5783 = vadd.f32 %v5720, 1.0
        %v5784 = vadd.f32 %v5722, 1.0
        %v5785 = vadd.f32 %v5724, 1.0
        %v5786 = vadd.f32 %v5726, 1.0
        %v5787 = vadd.f32 %v5728, 1.0
        %v5788 = vadd.f32 %v5730, 1.0
        %v5789 = vadd.f32 %v5732, 1.0
        %v5790 = vadd.f32 %v5734, 1.0
        %v5791 = vadd.f32 %v5736, 1.0
        %v5792 = vadd.f32 %v5738, 1.0
        %v5793 = vadd.f32 %v5740, 1.0
        %v5794 = vadd.f32 %v5742, 1.0
        %v5795 = vadd.f32 %v5744, 1.0
        %v5796 = vadd.f32 %v5746, 1.0
        %v5797 = vadd.f32 %v5748, 1.0
        %v5798 = vadd.f32 %v5750, 1.0
        %v5799 = vadd.f32 %v5752, 1.0
        %v5800 = vadd.f32 %v5754, 1.0
        %v5801 = vadd.f32 %v5756, 1.0
        %v5802 = vadd.f32 %v5758, 1.0
        %v5803 = vadd.f32 %v5760, 1.0
        %v5804 = vadd.f32 %v5762, 1.0
        %v5805 = vadd.f32 %v5764, 1.0
        %v5806 = vadd.f32 %v5766, 1.0
        %v5807 = vadd.f32 %v5768, 1.0
        %v5808 = vadd.f32 %v5770, 1.0
        %v5809 = vadd.f32 %v5772, 1.0
        %v5810 = vadd.f32 %v5774, 1.0
        %v5811 = vadd.f32 %v5776, 1.0
        %v5812 = vadd.f32 %v5778, 1.0
        %v5813 = vadd.f32 %v5780, 1.0
        %v5814 = vadd.f32 %v5782, 1.0
        %v5815 = vrcp.pop %v5783
        %v5816 = vrcp.pop %v5784
        %v5817 = vrcp.pop %v5785
        %v5818 = vrcp.pop %v5786
        %v5819 = vrcp.pop %v5787
        %v5820 = vrcp.pop %v5788
        %v5821 = vrcp.pop %v5789
        %v5822 = vrcp.pop %v5790
        %v5823 = vrcp.pop %v5791
        %v5824 = vrcp.pop %v5792
        %v5825 = vrcp.pop %v5793
        %v5826 = vrcp.pop %v5794
        %v5827 = vrcp.pop %v5795
        %v5828 = vrcp.pop %v5796
        %v5829 = vrcp.pop %v5797
        %v5830 = vrcp.pop %v5798
        %v5831 = vrcp.pop %v5799
        %v5832 = vrcp.pop %v5800
        %v5833 = vrcp.pop %v5801
        %v5834 = vrcp.pop %v5802
        %v5835 = vrcp.pop %v5803
        %v5836 = vrcp.pop %v5804
        %v5837 = vrcp.pop %v5805
        %v5838 = vrcp.pop %v5806
        %v5839 = vrcp.pop %v5807
        %v5840 = vrcp.pop %v5808
        %v5841 = vrcp.pop %v5809
        %v5842 = vrcp.pop %v5810
        %v5843 = vrcp.pop %v5811
        %v5844 = vrcp.pop %v5812
        %v5845 = vrcp.pop %v5813
        %v5846 = vrcp.pop %v5814
        %v5847 = vsub.f32 0.0, %v5288
        %v5848 = vsub.f32 0.0, %v5290
        %v5849 = vsub.f32 0.0, %v5293
        %v5850 = vsub.f32 0.0, %v5295
        %v5851 = vsub.f32 0.0, %v5298
        %v5852 = vsub.f32 0.0, %v5300
        %v5853 = vsub.f32 0.0, %v5303
        %v5854 = vsub.f32 0.0, %v5305
        %v5855 = vsub.f32 0.0, %v5308
        %v5856 = vsub.f32 0.0, %v5310
        %v5857 = vsub.f32 0.0, %v5313
        %v5858 = vsub.f32 0.0, %v5315
        %v5859 = vsub.f32 0.0, %v5318
        %v5860 = vsub.f32 0.0, %v5320
        %v5861 = vsub.f32 0.0, %v5323
        %v5862 = vsub.f32 0.0, %v5325
        %v5863 = vsub.f32 0.0, %v5328
        %v5864 = vsub.f32 0.0, %v5330
        %v5865 = vsub.f32 0.0, %v5333
        %v5866 = vsub.f32 0.0, %v5335
        %v5867 = vsub.f32 0.0, %v5338
        %v5868 = vsub.f32 0.0, %v5340
        %v5869 = vsub.f32 0.0, %v5343
        %v5870 = vsub.f32 0.0, %v5345
        %v5871 = vsub.f32 0.0, %v5348
        %v5872 = vsub.f32 0.0, %v5350
        %v5873 = vsub.f32 0.0, %v5353
        %v5874 = vsub.f32 0.0, %v5355
        %v5875 = vsub.f32 0.0, %v5358
        %v5876 = vsub.f32 0.0, %v5360
        %v5877 = vsub.f32 0.0, %v5363
        %v5878 = vsub.f32 0.0, %v5365
        %v5879 = vmul.f32 %v5847, 1.442695
        %v5880 = vpow.pop %v5879
        %v5881 = vmul.f32 %v5848, 1.442695
        %v5882 = vpow.pop %v5881
        %v5883 = vmul.f32 %v5849, 1.442695
        %v5884 = vpow.pop %v5883
        %v5885 = vmul.f32 %v5850, 1.442695
        %v5886 = vpow.pop %v5885
        %v5887 = vmul.f32 %v5851, 1.442695
        %v5888 = vpow.pop %v5887
        %v5889 = vmul.f32 %v5852, 1.442695
        %v5890 = vpow.pop %v5889
        %v5891 = vmul.f32 %v5853, 1.442695
        %v5892 = vpow.pop %v5891
        %v5893 = vmul.f32 %v5854, 1.442695
        %v5894 = vpow.pop %v5893
        %v5895 = vmul.f32 %v5855, 1.442695
        %v5896 = vpow.pop %v5895
        %v5897 = vmul.f32 %v5856, 1.442695
        %v5898 = vpow.pop %v5897
        %v5899 = vmul.f32 %v5857, 1.442695
        %v5900 = vpow.pop %v5899
        %v5901 = vmul.f32 %v5858, 1.442695
        %v5902 = vpow.pop %v5901
        %v5903 = vmul.f32 %v5859, 1.442695
        %v5904 = vpow.pop %v5903
        %v5905 = vmul.f32 %v5860, 1.442695
        %v5906 = vpow.pop %v5905
        %v5907 = vmul.f32 %v5861, 1.442695
        %v5908 = vpow.pop %v5907
        %v5909 = vmul.f32 %v5862, 1.442695
        %v5910 = vpow.pop %v5909
        %v5911 = vmul.f32 %v5863, 1.442695
        %v5912 = vpow.pop %v5911
        %v5913 = vmul.f32 %v5864, 1.442695
        %v5914 = vpow.pop %v5913
        %v5915 = vmul.f32 %v5865, 1.442695
        %v5916 = vpow.pop %v5915
        %v5917 = vmul.f32 %v5866, 1.442695
        %v5918 = vpow.pop %v5917
        %v5919 = vmul.f32 %v5867, 1.442695
        %v5920 = vpow.pop %v5919
        %v5921 = vmul.f32 %v5868, 1.442695
        %v5922 = vpow.pop %v5921
        %v5923 = vmul.f32 %v5869, 1.442695
        %v5924 = vpow.pop %v5923
        %v5925 = vmul.f32 %v5870, 1.442695
        %v5926 = vpow.pop %v5925
        %v5927 = vmul.f32 %v5871, 1.442695
        %v5928 = vpow.pop %v5927
        %v5929 = vmul.f32 %v5872, 1.442695
        %v5930 = vpow.pop %v5929
        %v5931 = vmul.f32 %v5873, 1.442695
        %v5932 = vpow.pop %v5931
        %v5933 = vmul.f32 %v5874, 1.442695
        %v5934 = vpow.pop %v5933
        %v5935 = vmul.f32 %v5875, 1.442695
        %v5936 = vpow.pop %v5935
        %v5937 = vmul.f32 %v5876, 1.442695
        %v5938 = vpow.pop %v5937
        %v5939 = vmul.f32 %v5877, 1.442695
        %v5940 = vpow.pop %v5939
        %v5941 = vmul.f32 %v5878, 1.442695
        %v5942 = vpow.pop %v5941
        %v5943 = vadd.f32 %v5880, 1.0
        %v5944 = vadd.f32 %v5882, 1.0
        %v5945 = vadd.f32 %v5884, 1.0
        %v5946 = vadd.f32 %v5886, 1.0
        %v5947 = vadd.f32 %v5888, 1.0
        %v5948 = vadd.f32 %v5890, 1.0
        %v5949 = vadd.f32 %v5892, 1.0
        %v5950 = vadd.f32 %v5894, 1.0
        %v5951 = vadd.f32 %v5896, 1.0
        %v5952 = vadd.f32 %v5898, 1.0
        %v5953 = vadd.f32 %v5900, 1.0
        %v5954 = vadd.f32 %v5902, 1.0
        %v5955 = vadd.f32 %v5904, 1.0
        %v5956 = vadd.f32 %v5906, 1.0
        %v5957 = vadd.f32 %v5908, 1.0
        %v5958 = vadd.f32 %v5910, 1.0
        %v5959 = vadd.f32 %v5912, 1.0
        %v5960 = vadd.f32 %v5914, 1.0
        %v5961 = vadd.f32 %v5916, 1.0
        %v5962 = vadd.f32 %v5918, 1.0
        %v5963 = vadd.f32 %v5920, 1.0
        %v5964 = vadd.f32 %v5922, 1.0
        %v5965 = vadd.f32 %v5924, 1.0
        %v5966 = vadd.f32 %v5926, 1.0
        %v5967 = vadd.f32 %v5928, 1.0
        %v5968 = vadd.f32 %v5930, 1.0
        %v5969 = vadd.f32 %v5932, 1.0
        %v5970 = vadd.f32 %v5934, 1.0
        %v5971 = vadd.f32 %v5936, 1.0
        %v5972 = vadd.f32 %v5938, 1.0
        %v5973 = vadd.f32 %v5940, 1.0
        %v5974 = vadd.f32 %v5942, 1.0
        %v5975 = vrcp.pop %v5943
        %v5976 = vrcp.pop %v5944
        %v5977 = vrcp.pop %v5945
        %v5978 = vrcp.pop %v5946
        %v5979 = vrcp.pop %v5947
        %v5980 = vrcp.pop %v5948
        %v5981 = vrcp.pop %v5949
        %v5982 = vrcp.pop %v5950
        %v5983 = vrcp.pop %v5951
        %v5984 = vrcp.pop %v5952
        %v5985 = vrcp.pop %v5953
        %v5986 = vrcp.pop %v5954
        %v5987 = vrcp.pop %v5955
        %v5988 = vrcp.pop %v5956
        %v5989 = vrcp.pop %v5957
        %v5990 = vrcp.pop %v5958
        %v5991 = vrcp.pop %v5959
        %v5992 = vrcp.pop %v5960
        %v5993 = vrcp.pop %v5961
        %v5994 = vrcp.pop %v5962
        %v5995 = vrcp.pop %v5963
        %v5996 = vrcp.pop %v5964
        %v5997 = vrcp.pop %v5965
        %v5998 = vrcp.pop %v5966
        %v5999 = vrcp.pop %v5967
        %v6000 = vrcp.pop %v5968
        %v6001 = vrcp.pop %v5969
        %v6002 = vrcp.pop %v5970
        %v6003 = vrcp.pop %v5971
        %v6004 = vrcp.pop %v5972
        %v6005 = vrcp.pop %v5973
        %v6006 = vrcp.pop %v5974
        %v6007 = vsub.f32 0.0, %v5368
        %v6008 = vsub.f32 0.0, %v5370
        %v6009 = vsub.f32 0.0, %v5373
        %v6010 = vsub.f32 0.0, %v5375
        %v6011 = vsub.f32 0.0, %v5378
        %v6012 = vsub.f32 0.0, %v5380
        %v6013 = vsub.f32 0.0, %v5383
        %v6014 = vsub.f32 0.0, %v5385
        %v6015 = vsub.f32 0.0, %v5388
        %v6016 = vsub.f32 0.0, %v5390
        %v6017 = vsub.f32 0.0, %v5393
        %v6018 = vsub.f32 0.0, %v5395
        %v6019 = vsub.f32 0.0, %v5398
        %v6020 = vsub.f32 0.0, %v5400
        %v6021 = vsub.f32 0.0, %v5403
        %v6022 = vsub.f32 0.0, %v5405
        %v6023 = vsub.f32 0.0, %v5408
        %v6024 = vsub.f32 0.0, %v5410
        %v6025 = vsub.f32 0.0, %v5413
        %v6026 = vsub.f32 0.0, %v5415
        %v6027 = vsub.f32 0.0, %v5418
        %v6028 = vsub.f32 0.0, %v5420
        %v6029 = vsub.f32 0.0, %v5423
        %v6030 = vsub.f32 0.0, %v5425
        %v6031 = vsub.f32 0.0, %v5428
        %v6032 = vsub.f32 0.0, %v5430
        %v6033 = vsub.f32 0.0, %v5433
        %v6034 = vsub.f32 0.0, %v5435
        %v6035 = vsub.f32 0.0, %v5438
        %v6036 = vsub.f32 0.0, %v5440
        %v6037 = vsub.f32 0.0, %v5443
        %v6038 = vsub.f32 0.0, %v5445
        %v6039 = vmul.f32 %v6007, 1.442695
        %v6040 = vpow.pop %v6039
        %v6041 = vmul.f32 %v6008, 1.442695
        %v6042 = vpow.pop %v6041
        %v6043 = vmul.f32 %v6009, 1.442695
        %v6044 = vpow.pop %v6043
        %v6045 = vmul.f32 %v6010, 1.442695
        %v6046 = vpow.pop %v6045
        %v6047 = vmul.f32 %v6011, 1.442695
        %v6048 = vpow.pop %v6047
        %v6049 = vmul.f32 %v6012, 1.442695
        %v6050 = vpow.pop %v6049
        %v6051 = vmul.f32 %v6013, 1.442695
        %v6052 = vpow.pop %v6051
        %v6053 = vmul.f32 %v6014, 1.442695
        %v6054 = vpow.pop %v6053
        %v6055 = vmul.f32 %v6015, 1.442695
        %v6056 = vpow.pop %v6055
        %v6057 = vmul.f32 %v6016, 1.442695
        %v6058 = vpow.pop %v6057
        %v6059 = vmul.f32 %v6017, 1.442695
        %v6060 = vpow.pop %v6059
        %v6061 = vmul.f32 %v6018, 1.442695
        %v6062 = vpow.pop %v6061
        %v6063 = vmul.f32 %v6019, 1.442695
        %v6064 = vpow.pop %v6063
        %v6065 = vmul.f32 %v6020, 1.442695
        %v6066 = vpow.pop %v6065
        %v6067 = vmul.f32 %v6021, 1.442695
        %v6068 = vpow.pop %v6067
        %v6069 = vmul.f32 %v6022, 1.442695
        %v6070 = vpow.pop %v6069
        %v6071 = vmul.f32 %v6023, 1.442695
        %v6072 = vpow.pop %v6071
        %v6073 = vmul.f32 %v6024, 1.442695
        %v6074 = vpow.pop %v6073
        %v6075 = vmul.f32 %v6025, 1.442695
        %v6076 = vpow.pop %v6075
        %v6077 = vmul.f32 %v6026, 1.442695
        %v6078 = vpow.pop %v6077
        %v6079 = vmul.f32 %v6027, 1.442695
        %v6080 = vpow.pop %v6079
        %v6081 = vmul.f32 %v6028, 1.442695
        %v6082 = vpow.pop %v6081
        %v6083 = vmul.f32 %v6029, 1.442695
        %v6084 = vpow.pop %v6083
        %v6085 = vmul.f32 %v6030, 1.442695
        %v6086 = vpow.pop %v6085
        %v6087 = vmul.f32 %v6031, 1.442695
        %v6088 = vpow.pop %v6087
        %v6089 = vmul.f32 %v6032, 1.442695
        %v6090 = vpow.pop %v6089
        %v6091 = vmul.f32 %v6033, 1.442695
        %v6092 = vpow.pop %v6091
        %v6093 = vmul.f32 %v6034, 1.442695
        %v6094 = vpow.pop %v6093
        %v6095 = vmul.f32 %v6035, 1.442695
        %v6096 = vpow.pop %v6095
        %v6097 = vmul.f32 %v6036, 1.442695
        %v6098 = vpow.pop %v6097
        %v6099 = vmul.f32 %v6037, 1.442695
        %v6100 = vpow.pop %v6099
        %v6101 = vmul.f32 %v6038, 1.442695
        %v6102 = vpow.pop %v6101
        %v6103 = vadd.f32 %v6040, 1.0
        %v6104 = vadd.f32 %v6042, 1.0
        %v6105 = vadd.f32 %v6044, 1.0
        %v6106 = vadd.f32 %v6046, 1.0
        %v6107 = vadd.f32 %v6048, 1.0
        %v6108 = vadd.f32 %v6050, 1.0
        %v6109 = vadd.f32 %v6052, 1.0
        %v6110 = vadd.f32 %v6054, 1.0
        %v6111 = vadd.f32 %v6056, 1.0
        %v6112 = vadd.f32 %v6058, 1.0
        %v6113 = vadd.f32 %v6060, 1.0
        %v6114 = vadd.f32 %v6062, 1.0
        %v6115 = vadd.f32 %v6064, 1.0
        %v6116 = vadd.f32 %v6066, 1.0
        %v6117 = vadd.f32 %v6068, 1.0
        %v6118 = vadd.f32 %v6070, 1.0
        %v6119 = vadd.f32 %v6072, 1.0
        %v6120 = vadd.f32 %v6074, 1.0
        %v6121 = vadd.f32 %v6076, 1.0
        %v6122 = vadd.f32 %v6078, 1.0
        %v6123 = vadd.f32 %v6080, 1.0
        %v6124 = vadd.f32 %v6082, 1.0
        %v6125 = vadd.f32 %v6084, 1.0
        %v6126 = vadd.f32 %v6086, 1.0
        %v6127 = vadd.f32 %v6088, 1.0
        %v6128 = vadd.f32 %v6090, 1.0
        %v6129 = vadd.f32 %v6092, 1.0
        %v6130 = vadd.f32 %v6094, 1.0
        %v6131 = vadd.f32 %v6096, 1.0
        %v6132 = vadd.f32 %v6098, 1.0
        %v6133 = vadd.f32 %v6100, 1.0
        %v6134 = vadd.f32 %v6102, 1.0
        %v6135 = vrcp.pop %v6103
        %v6136 = vrcp.pop %v6104
        %v6137 = vrcp.pop %v6105
        %v6138 = vrcp.pop %v6106
        %v6139 = vrcp.pop %v6107
        %v6140 = vrcp.pop %v6108
        %v6141 = vrcp.pop %v6109
        %v6142 = vrcp.pop %v6110
        %v6143 = vrcp.pop %v6111
        %v6144 = vrcp.pop %v6112
        %v6145 = vrcp.pop %v6113
        %v6146 = vrcp.pop %v6114
        %v6147 = vrcp.pop %v6115
        %v6148 = vrcp.pop %v6116
        %v6149 = vrcp.pop %v6117
        %v6150 = vrcp.pop %v6118
        %v6151 = vrcp.pop %v6119
        %v6152 = vrcp.pop %v6120
        %v6153 = vrcp.pop %v6121
        %v6154 = vrcp.pop %v6122
        %v6155 = vrcp.pop %v6123
        %v6156 = vrcp.pop %v6124
        %v6157 = vrcp.pop %v6125
        %v6158 = vrcp.pop %v6126
        %v6159 = vrcp.pop %v6127
        %v6160 = vrcp.pop %v6128
        %v6161 = vrcp.pop %v6129
        %v6162 = vrcp.pop %v6130
        %v6163 = vrcp.pop %v6131
        %v6164 = vrcp.pop %v6132
        %v6165 = vrcp.pop %v6133
        %v6166 = vrcp.pop %v6134
        %v6167 = vmul.f32 %v5815, %v495
        %v6168 = vmul.f32 %v5816, %v496
        %v6169 = vmul.f32 %v5817, %v497
        %v6170 = vmul.f32 %v5818, %v498
        %v6171 = vmul.f32 %v5819, %v499
        %v6172 = vmul.f32 %v5820, %v500
        %v6173 = vmul.f32 %v5821, %v501
        %v6174 = vmul.f32 %v5822, %v502
        %v6175 = vmul.f32 %v5823, %v503
        %v6176 = vmul.f32 %v5824, %v504
        %v6177 = vmul.f32 %v5825, %v505
        %v6178 = vmul.f32 %v5826, %v506
        %v6179 = vmul.f32 %v5827, %v507
        %v6180 = vmul.f32 %v5828, %v508
        %v6181 = vmul.f32 %v5829, %v509
        %v6182 = vmul.f32 %v5830, %v510
        %v6183 = vmul.f32 %v5831, %v511
        %v6184 = vmul.f32 %v5832, %v512
        %v6185 = vmul.f32 %v5833, %v513
        %v6186 = vmul.f32 %v5834, %v514
        %v6187 = vmul.f32 %v5835, %v515
        %v6188 = vmul.f32 %v5836, %v516
        %v6189 = vmul.f32 %v5837, %v517
        %v6190 = vmul.f32 %v5838, %v518
        %v6191 = vmul.f32 %v5839, %v519
        %v6192 = vmul.f32 %v5840, %v520
        %v6193 = vmul.f32 %v5841, %v521
        %v6194 = vmul.f32 %v5842, %v522
        %v6195 = vmul.f32 %v5843, %v523
        %v6196 = vmul.f32 %v5844, %v524
        %v6197 = vmul.f32 %v5845, %v525
        %v6198 = vmul.f32 %v5846, %v526
        %v6199 = vmul.f32 %v6135, %v527
        %v6200 = vmul.f32 %v6136, %v528
        %v6201 = vmul.f32 %v6137, %v529
        %v6202 = vmul.f32 %v6138, %v530
        %v6203 = vmul.f32 %v6139, %v531
        %v6204 = vmul.f32 %v6140, %v532
        %v6205 = vmul.f32 %v6141, %v533
        %v6206 = vmul.f32 %v6142, %v534
        %v6207 = vmul.f32 %v6143, %v535
        %v6208 = vmul.f32 %v6144, %v536
        %v6209 = vmul.f32 %v6145, %v537
        %v6210 = vmul.f32 %v6146, %v538
        %v6211 = vmul.f32 %v6147, %v539
        %v6212 = vmul.f32 %v6148, %v540
        %v6213 = vmul.f32 %v6149, %v541
        %v6214 = vmul.f32 %v6150, %v542
        %v6215 = vmul.f32 %v6151, %v543
        %v6216 = vmul.f32 %v6152, %v544
        %v6217 = vmul.f32 %v6153, %v545
        %v6218 = vmul.f32 %v6154, %v546
        %v6219 = vmul.f32 %v6155, %v547
        %v6220 = vmul.f32 %v6156, %v548
        %v6221 = vmul.f32 %v6157, %v549
        %v6222 = vmul.f32 %v6158, %v550
        %v6223 = vmul.f32 %v6159, %v551
        %v6224 = vmul.f32 %v6160, %v552
        %v6225 = vmul.f32 %v6161, %v553
        %v6226 = vmul.f32 %v6162, %v554
        %v6227 = vmul.f32 %v6163, %v555
        %v6228 = vmul.f32 %v6164, %v556
        %v6229 = vmul.f32 %v6165, %v557
        %v6230 = vmul.f32 %v6166, %v558
        %v6231 = vpack.c.bf16 %v6168, %v6167
        %v6232 = vpack.c.bf16 %v6170, %v6169
        %v6233 = vpack.c.bf16 %v6172, %v6171
        %v6234 = vpack.c.bf16 %v6174, %v6173
        %v6235 = vpack.c.bf16 %v6176, %v6175
        %v6236 = vpack.c.bf16 %v6178, %v6177
        %v6237 = vpack.c.bf16 %v6180, %v6179
        %v6238 = vpack.c.bf16 %v6182, %v6181
        %v6239 = vpack.c.bf16 %v6184, %v6183
        %v6240 = vpack.c.bf16 %v6186, %v6185
        %v6241 = vpack.c.bf16 %v6188, %v6187
        %v6242 = vpack.c.bf16 %v6190, %v6189
        %v6243 = vpack.c.bf16 %v6192, %v6191
        %v6244 = vpack.c.bf16 %v6194, %v6193
        %v6245 = vpack.c.bf16 %v6196, %v6195
        %v6246 = vpack.c.bf16 %v6198, %v6197
        %v6247 = vpack.c.bf16 %v6200, %v6199
        %v6248 = vpack.c.bf16 %v6202, %v6201
        %v6249 = vpack.c.bf16 %v6204, %v6203
        %v6250 = vpack.c.bf16 %v6206, %v6205
        %v6251 = vpack.c.bf16 %v6208, %v6207
        %v6252 = vpack.c.bf16 %v6210, %v6209
        %v6253 = vpack.c.bf16 %v6212, %v6211
        %v6254 = vpack.c.bf16 %v6214, %v6213
        %v6255 = vpack.c.bf16 %v6216, %v6215
        %v6256 = vpack.c.bf16 %v6218, %v6217
        %v6257 = vpack.c.bf16 %v6220, %v6219
        %v6258 = vpack.c.bf16 %v6222, %v6221
        %v6259 = vpack.c.bf16 %v6224, %v6223
        %v6260 = vpack.c.bf16 %v6226, %v6225
        %v6261 = vpack.c.bf16 %v6228, %v6227
        %v6262 = vpack.c.bf16 %v6230, %v6229
        %v6263 = vld [vmem:[#allocation8] sm:$0xff]
        %v6264 = vld [vmem:[#allocation8 + $0x8] sm:$0xff]
        %v6265 = vld [vmem:[#allocation8 + $0x10] sm:$0xff]
        %v6266 = vld [vmem:[#allocation8 + $0x18] sm:$0xff]
        %v6267 = vld [vmem:[#allocation8 + $0x20] sm:$0xff]
        %v6268 = vld [vmem:[#allocation8 + $0x28] sm:$0xff]
        %v6269 = vld [vmem:[#allocation8 + $0x30] sm:$0xff]
        %v6270 = vld [vmem:[#allocation8 + $0x38] sm:$0xff]
        %v6271 = vld [vmem:[#allocation8 + $0x40] sm:$0xff]
        %v6272 = vld [vmem:[#allocation8 + $0x48] sm:$0xff]
        %v6273 = vld [vmem:[#allocation8 + $0x50] sm:$0xff]
        %v6274 = vld [vmem:[#allocation8 + $0x58] sm:$0xff]
        %v6275 = vld [vmem:[#allocation8 + $0x60] sm:$0xff]
        %v6276 = vld [vmem:[#allocation8 + $0x68] sm:$0xff]
        %v6277 = vld [vmem:[#allocation8 + $0x70] sm:$0xff]
        %v6278 = vld [vmem:[#allocation8 + $0x78] sm:$0xff]
        %v6279 = vld [vmem:[#allocation8 + $0x80] sm:$0xff]
        %v6280 = vld [vmem:[#allocation8 + $0x88] sm:$0xff]
        %v6281 = vld [vmem:[#allocation8 + $0x90] sm:$0xff]
        %v6282 = vld [vmem:[#allocation8 + $0x98] sm:$0xff]
        %v6283 = vld [vmem:[#allocation8 + $0xa0] sm:$0xff]
        %v6284 = vld [vmem:[#allocation8 + $0xa8] sm:$0xff]
        %v6285 = vld [vmem:[#allocation8 + $0xb0] sm:$0xff]
        %v6286 = vld [vmem:[#allocation8 + $0xb8] sm:$0xff]
        %v6287 = vld [vmem:[#allocation8 + $0xc0] sm:$0xff]
        %v6288 = vld [vmem:[#allocation8 + $0xc8] sm:$0xff]
        %v6289 = vld [vmem:[#allocation8 + $0xd0] sm:$0xff]
        %v6290 = vld [vmem:[#allocation8 + $0xd8] sm:$0xff]
        %v6291 = vld [vmem:[#allocation8 + $0xe0] sm:$0xff]
        %v6292 = vld [vmem:[#allocation8 + $0xe8] sm:$0xff]
        %v6293 = vld [vmem:[#allocation8 + $0xf0] sm:$0xff]
        %v6294 = vld [vmem:[#allocation8 + $0xf8] sm:$0xff]
        %v6295 = vld [vmem:[#allocation8 + $0x100] sm:$0xff]
        %v6296 = vld [vmem:[#allocation8 + $0x108] sm:$0xff]
        %v6297 = vld [vmem:[#allocation8 + $0x110] sm:$0xff]
        %v6298 = vld [vmem:[#allocation8 + $0x118] sm:$0xff]
        %v6299 = vld [vmem:[#allocation8 + $0x120] sm:$0xff]
        %v6300 = vld [vmem:[#allocation8 + $0x128] sm:$0xff]
        %v6301 = vld [vmem:[#allocation8 + $0x130] sm:$0xff]
        %v6302 = vld [vmem:[#allocation8 + $0x138] sm:$0xff]
        %v6303 = vld [vmem:[#allocation8 + $0x140] sm:$0xff]
        %v6304 = vld [vmem:[#allocation8 + $0x148] sm:$0xff]
        %v6305 = vld [vmem:[#allocation8 + $0x150] sm:$0xff]
        %v6306 = vld [vmem:[#allocation8 + $0x158] sm:$0xff]
        %v6307 = vld [vmem:[#allocation8 + $0x160] sm:$0xff]
        %v6308 = vld [vmem:[#allocation8 + $0x168] sm:$0xff]
        %v6309 = vld [vmem:[#allocation8 + $0x170] sm:$0xff]
        %v6310 = vld [vmem:[#allocation8 + $0x178] sm:$0xff]
        %v6311 = vld [vmem:[#allocation8 + $0x180] sm:$0xff]
        %v6312 = vld [vmem:[#allocation8 + $0x188] sm:$0xff]
        %v6313 = vld [vmem:[#allocation8 + $0x190] sm:$0xff]
        %v6314 = vld [vmem:[#allocation8 + $0x198] sm:$0xff]
        %v6315 = vld [vmem:[#allocation8 + $0x1a0] sm:$0xff]
        %v6316 = vld [vmem:[#allocation8 + $0x1a8] sm:$0xff]
        %v6317 = vld [vmem:[#allocation8 + $0x1b0] sm:$0xff]
        %v6318 = vld [vmem:[#allocation8 + $0x1b8] sm:$0xff]
        %v6319 = vld [vmem:[#allocation8 + $0x1c0] sm:$0xff]
        %v6320 = vld [vmem:[#allocation8 + $0x1c8] sm:$0xff]
        %v6321 = vld [vmem:[#allocation8 + $0x1d0] sm:$0xff]
        %v6322 = vld [vmem:[#allocation8 + $0x1d8] sm:$0xff]
        %v6323 = vld [vmem:[#allocation8 + $0x1e0] sm:$0xff]
        %v6324 = vld [vmem:[#allocation8 + $0x1e8] sm:$0xff]
        %v6325 = vld [vmem:[#allocation8 + $0x1f0] sm:$0xff]
        %v6326 = vld [vmem:[#allocation8 + $0x1f8] sm:$0xff]
        %6328 = vset.pattern.permute.xlu0 0
        %6329 = vperm.xlu0 %6328, %v719
        %v6330 = vpop.permute.xlu0 %6329
        %6333 = vset.pattern.permute.xlu0 0
        %6334 = vperm.xlu0 %6333, %v720
        %v6335 = vpop.permute.xlu0 %6334
        %6338 = vset.pattern.permute.xlu0 0
        %6339 = vperm.xlu0 %6338, %v721
        %v6340 = vpop.permute.xlu0 %6339
        %6343 = vset.pattern.permute.xlu0 0
        %6344 = vperm.xlu0 %6343, %v722
        %v6345 = vpop.permute.xlu0 %6344
        %6348 = vset.pattern.permute.xlu0 0
        %6349 = vperm.xlu0 %6348, %v723
        %v6350 = vpop.permute.xlu0 %6349
        %6353 = vset.pattern.permute.xlu0 0
        %6354 = vperm.xlu0 %6353, %v724
        %v6355 = vpop.permute.xlu0 %6354
        %6358 = vset.pattern.permute.xlu0 0
        %6359 = vperm.xlu0 %6358, %v725
        %v6360 = vpop.permute.xlu0 %6359
        %6363 = vset.pattern.permute.xlu0 0
        %6364 = vperm.xlu0 %6363, %v726
        %v6365 = vpop.permute.xlu0 %6364
        %6368 = vset.pattern.permute.xlu0 0
        %6369 = vperm.xlu0 %6368, %v727
        %v6370 = vpop.permute.xlu0 %6369
        %6373 = vset.pattern.permute.xlu0 0
        %6374 = vperm.xlu0 %6373, %v728
        %v6375 = vpop.permute.xlu0 %6374
        %6378 = vset.pattern.permute.xlu0 0
        %6379 = vperm.xlu0 %6378, %v729
        %v6380 = vpop.permute.xlu0 %6379
        %6383 = vset.pattern.permute.xlu0 0
        %6384 = vperm.xlu0 %6383, %v730
        %v6385 = vpop.permute.xlu0 %6384
        %6388 = vset.pattern.permute.xlu0 0
        %6389 = vperm.xlu0 %6388, %v731
        %v6390 = vpop.permute.xlu0 %6389
        %6393 = vset.pattern.permute.xlu0 0
        %6394 = vperm.xlu0 %6393, %v732
        %v6395 = vpop.permute.xlu0 %6394
        %6398 = vset.pattern.permute.xlu0 0
        %6399 = vperm.xlu0 %6398, %v733
        %v6400 = vpop.permute.xlu0 %6399
        %6403 = vset.pattern.permute.xlu0 0
        %6404 = vperm.xlu0 %6403, %v734
        %v6405 = vpop.permute.xlu0 %6404
        %6408 = vset.pattern.permute.xlu0 0
        %6409 = vperm.xlu0 %6408, %v735
        %v6410 = vpop.permute.xlu0 %6409
        %6413 = vset.pattern.permute.xlu0 0
        %6414 = vperm.xlu0 %6413, %v736
        %v6415 = vpop.permute.xlu0 %6414
        %6418 = vset.pattern.permute.xlu0 0
        %6419 = vperm.xlu0 %6418, %v737
        %v6420 = vpop.permute.xlu0 %6419
        %6423 = vset.pattern.permute.xlu0 0
        %6424 = vperm.xlu0 %6423, %v738
        %v6425 = vpop.permute.xlu0 %6424
        %6428 = vset.pattern.permute.xlu0 0
        %6429 = vperm.xlu0 %6428, %v739
        %v6430 = vpop.permute.xlu0 %6429
        %6433 = vset.pattern.permute.xlu0 0
        %6434 = vperm.xlu0 %6433, %v740
        %v6435 = vpop.permute.xlu0 %6434
        %6438 = vset.pattern.permute.xlu0 0
        %6439 = vperm.xlu0 %6438, %v741
        %v6440 = vpop.permute.xlu0 %6439
        %6443 = vset.pattern.permute.xlu0 0
        %6444 = vperm.xlu0 %6443, %v742
        %v6445 = vpop.permute.xlu0 %6444
        %6448 = vset.pattern.permute.xlu0 0
        %6449 = vperm.xlu0 %6448, %v743
        %v6450 = vpop.permute.xlu0 %6449
        %6453 = vset.pattern.permute.xlu0 0
        %6454 = vperm.xlu0 %6453, %v744
        %v6455 = vpop.permute.xlu0 %6454
        %6458 = vset.pattern.permute.xlu0 0
        %6459 = vperm.xlu0 %6458, %v745
        %v6460 = vpop.permute.xlu0 %6459
        %6463 = vset.pattern.permute.xlu0 0
        %6464 = vperm.xlu0 %6463, %v746
        %v6465 = vpop.permute.xlu0 %6464
        %6468 = vset.pattern.permute.xlu0 0
        %6469 = vperm.xlu0 %6468, %v747
        %v6470 = vpop.permute.xlu0 %6469
        %6473 = vset.pattern.permute.xlu0 0
        %6474 = vperm.xlu0 %6473, %v748
        %v6475 = vpop.permute.xlu0 %6474
        %6478 = vset.pattern.permute.xlu0 0
        %6479 = vperm.xlu0 %6478, %v749
        %v6480 = vpop.permute.xlu0 %6479
        %6483 = vset.pattern.permute.xlu0 0
        %6484 = vperm.xlu0 %6483, %v750
        %v6485 = vpop.permute.xlu0 %6484
        %v6551 = vunpack.c.l.b16 %v6263
        %v6552 = vunpack.c.h.b16 %v6263
        %v6553 = vunpack.c.l.b16 %v6264
        %v6554 = vunpack.c.h.b16 %v6264
        %v6555 = vunpack.c.l.b16 %v6265
        %v6556 = vunpack.c.h.b16 %v6265
        %v6557 = vunpack.c.l.b16 %v6266
        %v6558 = vunpack.c.h.b16 %v6266
        %v6559 = vunpack.c.l.b16 %v6267
        %v6560 = vunpack.c.h.b16 %v6267
        %v6561 = vunpack.c.l.b16 %v6268
        %v6562 = vunpack.c.h.b16 %v6268
        %v6563 = vunpack.c.l.b16 %v6269
        %v6564 = vunpack.c.h.b16 %v6269
        %v6565 = vunpack.c.l.b16 %v6270
        %v6566 = vunpack.c.h.b16 %v6270
        %v6567 = vunpack.c.l.b16 %v6271
        %v6568 = vunpack.c.h.b16 %v6271
        %v6569 = vunpack.c.l.b16 %v6272
        %v6570 = vunpack.c.h.b16 %v6272
        %v6571 = vunpack.c.l.b16 %v6273
        %v6572 = vunpack.c.h.b16 %v6273
        %v6573 = vunpack.c.l.b16 %v6274
        %v6574 = vunpack.c.h.b16 %v6274
        %v6575 = vunpack.c.l.b16 %v6275
        %v6576 = vunpack.c.h.b16 %v6275
        %v6577 = vunpack.c.l.b16 %v6276
        %v6578 = vunpack.c.h.b16 %v6276
        %v6579 = vunpack.c.l.b16 %v6277
        %v6580 = vunpack.c.h.b16 %v6277
        %v6581 = vunpack.c.l.b16 %v6278
        %v6582 = vunpack.c.h.b16 %v6278
        %v6583 = vunpack.c.l.b16 %v6279
        %v6584 = vunpack.c.h.b16 %v6279
        %v6585 = vunpack.c.l.b16 %v6280
        %v6586 = vunpack.c.h.b16 %v6280
        %v6587 = vunpack.c.l.b16 %v6281
        %v6588 = vunpack.c.h.b16 %v6281
        %v6589 = vunpack.c.l.b16 %v6282
        %v6590 = vunpack.c.h.b16 %v6282
        %v6591 = vunpack.c.l.b16 %v6283
        %v6592 = vunpack.c.h.b16 %v6283
        %v6593 = vunpack.c.l.b16 %v6284
        %v6594 = vunpack.c.h.b16 %v6284
        %v6595 = vunpack.c.l.b16 %v6285
        %v6596 = vunpack.c.h.b16 %v6285
        %v6597 = vunpack.c.l.b16 %v6286
        %v6598 = vunpack.c.h.b16 %v6286
        %v6599 = vunpack.c.l.b16 %v6287
        %v6600 = vunpack.c.h.b16 %v6287
        %v6601 = vunpack.c.l.b16 %v6288
        %v6602 = vunpack.c.h.b16 %v6288
        %v6603 = vunpack.c.l.b16 %v6289
        %v6604 = vunpack.c.h.b16 %v6289
        %v6605 = vunpack.c.l.b16 %v6290
        %v6606 = vunpack.c.h.b16 %v6290
        %v6607 = vunpack.c.l.b16 %v6291
        %v6608 = vunpack.c.h.b16 %v6291
        %v6609 = vunpack.c.l.b16 %v6292
        %v6610 = vunpack.c.h.b16 %v6292
        %v6611 = vunpack.c.l.b16 %v6293
        %v6612 = vunpack.c.h.b16 %v6293
        %v6613 = vunpack.c.l.b16 %v6294
        %v6614 = vunpack.c.h.b16 %v6294
        %v6615 = vunpack.c.l.b16 %v6295
        %v6616 = vunpack.c.h.b16 %v6295
        %v6617 = vunpack.c.l.b16 %v6296
        %v6618 = vunpack.c.h.b16 %v6296
        %v6619 = vunpack.c.l.b16 %v6297
        %v6620 = vunpack.c.h.b16 %v6297
        %v6621 = vunpack.c.l.b16 %v6298
        %v6622 = vunpack.c.h.b16 %v6298
        %v6623 = vunpack.c.l.b16 %v6299
        %v6624 = vunpack.c.h.b16 %v6299
        %v6625 = vunpack.c.l.b16 %v6300
        %v6626 = vunpack.c.h.b16 %v6300
        %v6627 = vunpack.c.l.b16 %v6301
        %v6628 = vunpack.c.h.b16 %v6301
        %v6629 = vunpack.c.l.b16 %v6302
        %v6630 = vunpack.c.h.b16 %v6302
        %v6631 = vunpack.c.l.b16 %v6303
        %v6632 = vunpack.c.h.b16 %v6303
        %v6633 = vunpack.c.l.b16 %v6304
        %v6634 = vunpack.c.h.b16 %v6304
        %v6635 = vunpack.c.l.b16 %v6305
        %v6636 = vunpack.c.h.b16 %v6305
        %v6637 = vunpack.c.l.b16 %v6306
        %v6638 = vunpack.c.h.b16 %v6306
        %v6639 = vunpack.c.l.b16 %v6307
        %v6640 = vunpack.c.h.b16 %v6307
        %v6641 = vunpack.c.l.b16 %v6308
        %v6642 = vunpack.c.h.b16 %v6308
        %v6643 = vunpack.c.l.b16 %v6309
        %v6644 = vunpack.c.h.b16 %v6309
        %v6645 = vunpack.c.l.b16 %v6310
        %v6646 = vunpack.c.h.b16 %v6310
        %v6647 = vunpack.c.l.b16 %v6311
        %v6648 = vunpack.c.h.b16 %v6311
        %v6649 = vunpack.c.l.b16 %v6312
        %v6650 = vunpack.c.h.b16 %v6312
        %v6651 = vunpack.c.l.b16 %v6313
        %v6652 = vunpack.c.h.b16 %v6313
        %v6653 = vunpack.c.l.b16 %v6314
        %v6654 = vunpack.c.h.b16 %v6314
        %v6655 = vunpack.c.l.b16 %v6315
        %v6656 = vunpack.c.h.b16 %v6315
        %v6657 = vunpack.c.l.b16 %v6316
        %v6658 = vunpack.c.h.b16 %v6316
        %v6659 = vunpack.c.l.b16 %v6317
        %v6660 = vunpack.c.h.b16 %v6317
        %v6661 = vunpack.c.l.b16 %v6318
        %v6662 = vunpack.c.h.b16 %v6318
        %v6663 = vunpack.c.l.b16 %v6319
        %v6664 = vunpack.c.h.b16 %v6319
        %v6665 = vunpack.c.l.b16 %v6320
        %v6666 = vunpack.c.h.b16 %v6320
        %v6667 = vunpack.c.l.b16 %v6321
        %v6668 = vunpack.c.h.b16 %v6321
        %v6669 = vunpack.c.l.b16 %v6322
        %v6670 = vunpack.c.h.b16 %v6322
        %v6671 = vunpack.c.l.b16 %v6323
        %v6672 = vunpack.c.h.b16 %v6323
        %v6673 = vunpack.c.l.b16 %v6324
        %v6674 = vunpack.c.h.b16 %v6324
        %v6675 = vunpack.c.l.b16 %v6325
        %v6676 = vunpack.c.h.b16 %v6325
        %v6677 = vunpack.c.l.b16 %v6326
        %v6678 = vunpack.c.h.b16 %v6326
        %v6679 = vpack.c.b16 %v6555, %v6551
        %v6680 = vpack.c.b16 %v6556, %v6552
        %v6681 = vpack.c.b16 %v6557, %v6553
        %v6682 = vpack.c.b16 %v6558, %v6554
        %v6683 = vpack.c.b16 %v6563, %v6559
        %v6684 = vpack.c.b16 %v6564, %v6560
        %v6685 = vpack.c.b16 %v6565, %v6561
        %v6686 = vpack.c.b16 %v6566, %v6562
        %v6687 = vpack.c.b16 %v6571, %v6567
        %v6688 = vpack.c.b16 %v6572, %v6568
        %v6689 = vpack.c.b16 %v6573, %v6569
        %v6690 = vpack.c.b16 %v6574, %v6570
        %v6691 = vpack.c.b16 %v6579, %v6575
        %v6692 = vpack.c.b16 %v6580, %v6576
        %v6693 = vpack.c.b16 %v6581, %v6577
        %v6694 = vpack.c.b16 %v6582, %v6578
        %v6695 = vpack.c.b16 %v6587, %v6583
        %v6696 = vpack.c.b16 %v6588, %v6584
        %v6697 = vpack.c.b16 %v6589, %v6585
        %v6698 = vpack.c.b16 %v6590, %v6586
        %v6699 = vpack.c.b16 %v6595, %v6591
        %v6700 = vpack.c.b16 %v6596, %v6592
        %v6701 = vpack.c.b16 %v6597, %v6593
        %v6702 = vpack.c.b16 %v6598, %v6594
        %v6703 = vpack.c.b16 %v6603, %v6599
        %v6704 = vpack.c.b16 %v6604, %v6600
        %v6705 = vpack.c.b16 %v6605, %v6601
        %v6706 = vpack.c.b16 %v6606, %v6602
        %v6707 = vpack.c.b16 %v6611, %v6607
        %v6708 = vpack.c.b16 %v6612, %v6608
        %v6709 = vpack.c.b16 %v6613, %v6609
        %v6710 = vpack.c.b16 %v6614, %v6610
        %v6711 = vpack.c.b16 %v6619, %v6615
        %v6712 = vpack.c.b16 %v6620, %v6616
        %v6713 = vpack.c.b16 %v6621, %v6617
        %v6714 = vpack.c.b16 %v6622, %v6618
        %v6715 = vpack.c.b16 %v6627, %v6623
        %v6716 = vpack.c.b16 %v6628, %v6624
        %v6717 = vpack.c.b16 %v6629, %v6625
        %v6718 = vpack.c.b16 %v6630, %v6626
        %v6719 = vpack.c.b16 %v6635, %v6631
        %v6720 = vpack.c.b16 %v6636, %v6632
        %v6721 = vpack.c.b16 %v6637, %v6633
        %v6722 = vpack.c.b16 %v6638, %v6634
        %v6723 = vpack.c.b16 %v6643, %v6639
        %v6724 = vpack.c.b16 %v6644, %v6640
        %v6725 = vpack.c.b16 %v6645, %v6641
        %v6726 = vpack.c.b16 %v6646, %v6642
        %v6727 = vpack.c.b16 %v6651, %v6647
        %v6728 = vpack.c.b16 %v6652, %v6648
        %v6729 = vpack.c.b16 %v6653, %v6649
        %v6730 = vpack.c.b16 %v6654, %v6650
        %v6731 = vpack.c.b16 %v6659, %v6655
        %v6732 = vpack.c.b16 %v6660, %v6656
        %v6733 = vpack.c.b16 %v6661, %v6657
        %v6734 = vpack.c.b16 %v6662, %v6658
        %v6735 = vpack.c.b16 %v6667, %v6663
        %v6736 = vpack.c.b16 %v6668, %v6664
        %v6737 = vpack.c.b16 %v6669, %v6665
        %v6738 = vpack.c.b16 %v6670, %v6666
        %v6739 = vpack.c.b16 %v6675, %v6671
        %v6740 = vpack.c.b16 %v6676, %v6672
        %v6741 = vpack.c.b16 %v6677, %v6673
        %v6742 = vpack.c.b16 %v6678, %v6674
        %6807 = vmatpush.bf16.msra.mxu0 %v6238
        %6808 = vmatpush.bf16.msra.mxu0 %v6237
        %6809 = vmatpush.bf16.msra.mxu0 %v6236
        %6810 = vmatpush.bf16.msra.mxu0 %v6235
        %6811 = vmatpush.bf16.msra.mxu0 %v6234
        %6812 = vmatpush.bf16.msra.mxu0 %v6233
        %6813 = vmatpush.bf16.msra.mxu0 %v6232
        %6814 = vmatpush.bf16.msra.mxu0 %v6231
        %6815 = vmatmul.bf16.gmra.mxu0 %v6679
        %v6816 = vpop.f32.mrf.mxu0
        %v6817 = vadd.f32 %v6330, %v6816
        %v6818 = vpop.f32.mrf.mxu0
        %v6819 = vadd.f32 %v6335, %v6818
        %6820 = vmatmul.bf16.gmra.mxu0 %v6683
        %v6821 = vpop.f32.mrf.mxu0
        %v6822 = vadd.f32 %v6340, %v6821
        %v6823 = vpop.f32.mrf.mxu0
        %v6824 = vadd.f32 %v6345, %v6823
        %6825 = vmatmul.bf16.gmra.mxu0 %v6687
        %v6826 = vpop.f32.mrf.mxu0
        %v6827 = vadd.f32 %v6350, %v6826
        %v6828 = vpop.f32.mrf.mxu0
        %v6829 = vadd.f32 %v6355, %v6828
        %6830 = vmatmul.bf16.gmra.mxu0 %v6691
        %v6831 = vpop.f32.mrf.mxu0
        %v6832 = vadd.f32 %v6360, %v6831
        %v6833 = vpop.f32.mrf.mxu0
        %v6834 = vadd.f32 %v6365, %v6833
        %6835 = vmatmul.bf16.gmra.mxu0 %v6695
        %v6836 = vpop.f32.mrf.mxu0
        %v6837 = vadd.f32 %v6370, %v6836
        %v6838 = vpop.f32.mrf.mxu0
        %v6839 = vadd.f32 %v6375, %v6838
        %6840 = vmatmul.bf16.gmra.mxu0 %v6699
        %v6841 = vpop.f32.mrf.mxu0
        %v6842 = vadd.f32 %v6380, %v6841
        %v6843 = vpop.f32.mrf.mxu0
        %v6844 = vadd.f32 %v6385, %v6843
        %6845 = vmatmul.bf16.gmra.mxu0 %v6703
        %v6846 = vpop.f32.mrf.mxu0
        %v6847 = vadd.f32 %v6390, %v6846
        %v6848 = vpop.f32.mrf.mxu0
        %v6849 = vadd.f32 %v6395, %v6848
        %6850 = vmatmul.bf16.gmra.mxu0 %v6707
        %v6851 = vpop.f32.mrf.mxu0
        %v6852 = vadd.f32 %v6400, %v6851
        %v6853 = vpop.f32.mrf.mxu0
        %v6854 = vadd.f32 %v6405, %v6853
        %6855 = vmatmul.bf16.gmra.mxu0 %v6711
        %v6856 = vpop.f32.mrf.mxu0
        %v6857 = vadd.f32 %v6410, %v6856
        %v6858 = vpop.f32.mrf.mxu0
        %v6859 = vadd.f32 %v6415, %v6858
        %6860 = vmatmul.bf16.gmra.mxu0 %v6715
        %v6861 = vpop.f32.mrf.mxu0
        %v6862 = vadd.f32 %v6420, %v6861
        %v6863 = vpop.f32.mrf.mxu0
        %v6864 = vadd.f32 %v6425, %v6863
        %6865 = vmatmul.bf16.gmra.mxu0 %v6719
        %v6866 = vpop.f32.mrf.mxu0
        %v6867 = vadd.f32 %v6430, %v6866
        %v6868 = vpop.f32.mrf.mxu0
        %v6869 = vadd.f32 %v6435, %v6868
        %6870 = vmatmul.bf16.gmra.mxu0 %v6723
        %v6871 = vpop.f32.mrf.mxu0
        %v6872 = vadd.f32 %v6440, %v6871
        %v6873 = vpop.f32.mrf.mxu0
        %v6874 = vadd.f32 %v6445, %v6873
        %6875 = vmatmul.bf16.gmra.mxu0 %v6727
        %v6876 = vpop.f32.mrf.mxu0
        %v6877 = vadd.f32 %v6450, %v6876
        %v6878 = vpop.f32.mrf.mxu0
        %v6879 = vadd.f32 %v6455, %v6878
        %6880 = vmatmul.bf16.gmra.mxu0 %v6731
        %v6881 = vpop.f32.mrf.mxu0
        %v6882 = vadd.f32 %v6460, %v6881
        %v6883 = vpop.f32.mrf.mxu0
        %v6884 = vadd.f32 %v6465, %v6883
        %6885 = vmatmul.bf16.gmra.mxu0 %v6735
        %v6886 = vpop.f32.mrf.mxu0
        %v6887 = vadd.f32 %v6470, %v6886
        %v6888 = vpop.f32.mrf.mxu0
        %v6889 = vadd.f32 %v6475, %v6888
        %6890 = vmatmul.bf16.gmra.mxu0 %v6739
        %v6891 = vpop.f32.mrf.mxu0
        %v6892 = vadd.f32 %v6480, %v6891
        %v6893 = vpop.f32.mrf.mxu0
        %v6894 = vadd.f32 %v6485, %v6893
        %6895 = vdwg.mxu0
        %6896 = vmatpush.bf16.msra.mxu0 %v6246
        %6897 = vmatpush.bf16.msra.mxu0 %v6245
        %6898 = vmatpush.bf16.msra.mxu0 %v6244
        %6899 = vmatpush.bf16.msra.mxu0 %v6243
        %6900 = vmatpush.bf16.msra.mxu0 %v6242
        %6901 = vmatpush.bf16.msra.mxu0 %v6241
        %6902 = vmatpush.bf16.msra.mxu0 %v6240
        %6903 = vmatpush.bf16.msra.mxu0 %v6239
        %6904 = vmatmul.bf16.gmra.mxu0 %v6680
        %v6905 = vpop.f32.mrf.mxu0
        %v6906 = vadd.f32 %v6817, %v6905
        %v6907 = vpop.f32.mrf.mxu0
        %v6908 = vadd.f32 %v6819, %v6907
        %6909 = vmatmul.bf16.gmra.mxu0 %v6684
        %v6910 = vpop.f32.mrf.mxu0
        %v6911 = vadd.f32 %v6822, %v6910
        %v6912 = vpop.f32.mrf.mxu0
        %v6913 = vadd.f32 %v6824, %v6912
        %6914 = vmatmul.bf16.gmra.mxu0 %v6688
        %v6915 = vpop.f32.mrf.mxu0
        %v6916 = vadd.f32 %v6827, %v6915
        %v6917 = vpop.f32.mrf.mxu0
        %v6918 = vadd.f32 %v6829, %v6917
        %6919 = vmatmul.bf16.gmra.mxu0 %v6692
        %v6920 = vpop.f32.mrf.mxu0
        %v6921 = vadd.f32 %v6832, %v6920
        %v6922 = vpop.f32.mrf.mxu0
        %v6923 = vadd.f32 %v6834, %v6922
        %6924 = vmatmul.bf16.gmra.mxu0 %v6696
        %v6925 = vpop.f32.mrf.mxu0
        %v6926 = vadd.f32 %v6837, %v6925
        %v6927 = vpop.f32.mrf.mxu0
        %v6928 = vadd.f32 %v6839, %v6927
        %6929 = vmatmul.bf16.gmra.mxu0 %v6700
        %v6930 = vpop.f32.mrf.mxu0
        %v6931 = vadd.f32 %v6842, %v6930
        %v6932 = vpop.f32.mrf.mxu0
        %v6933 = vadd.f32 %v6844, %v6932
        %6934 = vmatmul.bf16.gmra.mxu0 %v6704
        %v6935 = vpop.f32.mrf.mxu0
        %v6936 = vadd.f32 %v6847, %v6935
        %v6937 = vpop.f32.mrf.mxu0
        %v6938 = vadd.f32 %v6849, %v6937
        %6939 = vmatmul.bf16.gmra.mxu0 %v6708
        %v6940 = vpop.f32.mrf.mxu0
        %v6941 = vadd.f32 %v6852, %v6940
        %v6942 = vpop.f32.mrf.mxu0
        %v6943 = vadd.f32 %v6854, %v6942
        %6944 = vmatmul.bf16.gmra.mxu0 %v6712
        %v6945 = vpop.f32.mrf.mxu0
        %v6946 = vadd.f32 %v6857, %v6945
        %v6947 = vpop.f32.mrf.mxu0
        %v6948 = vadd.f32 %v6859, %v6947
        %6949 = vmatmul.bf16.gmra.mxu0 %v6716
        %v6950 = vpop.f32.mrf.mxu0
        %v6951 = vadd.f32 %v6862, %v6950
        %v6952 = vpop.f32.mrf.mxu0
        %v6953 = vadd.f32 %v6864, %v6952
        %6954 = vmatmul.bf16.gmra.mxu0 %v6720
        %v6955 = vpop.f32.mrf.mxu0
        %v6956 = vadd.f32 %v6867, %v6955
        %v6957 = vpop.f32.mrf.mxu0
        %v6958 = vadd.f32 %v6869, %v6957
        %6959 = vmatmul.bf16.gmra.mxu0 %v6724
        %v6960 = vpop.f32.mrf.mxu0
        %v6961 = vadd.f32 %v6872, %v6960
        %v6962 = vpop.f32.mrf.mxu0
        %v6963 = vadd.f32 %v6874, %v6962
        %6964 = vmatmul.bf16.gmra.mxu0 %v6728
        %v6965 = vpop.f32.mrf.mxu0
        %v6966 = vadd.f32 %v6877, %v6965
        %v6967 = vpop.f32.mrf.mxu0
        %v6968 = vadd.f32 %v6879, %v6967
        %6969 = vmatmul.bf16.gmra.mxu0 %v6732
        %v6970 = vpop.f32.mrf.mxu0
        %v6971 = vadd.f32 %v6882, %v6970
        %v6972 = vpop.f32.mrf.mxu0
        %v6973 = vadd.f32 %v6884, %v6972
        %6974 = vmatmul.bf16.gmra.mxu0 %v6736
        %v6975 = vpop.f32.mrf.mxu0
        %v6976 = vadd.f32 %v6887, %v6975
        %v6977 = vpop.f32.mrf.mxu0
        %v6978 = vadd.f32 %v6889, %v6977
        %6979 = vmatmul.bf16.gmra.mxu0 %v6740
        %v6980 = vpop.f32.mrf.mxu0
        %v6981 = vadd.f32 %v6892, %v6980
        %v6982 = vpop.f32.mrf.mxu0
        %v6983 = vadd.f32 %v6894, %v6982
        %6984 = vdwg.mxu0
        %6985 = vmatpush.bf16.msra.mxu0 %v6254
        %6986 = vmatpush.bf16.msra.mxu0 %v6253
        %6987 = vmatpush.bf16.msra.mxu0 %v6252
        %6988 = vmatpush.bf16.msra.mxu0 %v6251
        %6989 = vmatpush.bf16.msra.mxu0 %v6250
        %6990 = vmatpush.bf16.msra.mxu0 %v6249
        %6991 = vmatpush.bf16.msra.mxu0 %v6248
        %6992 = vmatpush.bf16.msra.mxu0 %v6247
        %6993 = vmatmul.bf16.gmra.mxu0 %v6681
        %v6994 = vpop.f32.mrf.mxu0
        %v6995 = vadd.f32 %v6906, %v6994
        %v6996 = vpop.f32.mrf.mxu0
        %v6997 = vadd.f32 %v6908, %v6996
        %6998 = vmatmul.bf16.gmra.mxu0 %v6685
        %v6999 = vpop.f32.mrf.mxu0
        %v7000 = vadd.f32 %v6911, %v6999
        %v7001 = vpop.f32.mrf.mxu0
        %v7002 = vadd.f32 %v6913, %v7001
        %7003 = vmatmul.bf16.gmra.mxu0 %v6689
        %v7004 = vpop.f32.mrf.mxu0
        %v7005 = vadd.f32 %v6916, %v7004
        %v7006 = vpop.f32.mrf.mxu0
        %v7007 = vadd.f32 %v6918, %v7006
        %7008 = vmatmul.bf16.gmra.mxu0 %v6693
        %v7009 = vpop.f32.mrf.mxu0
        %v7010 = vadd.f32 %v6921, %v7009
        %v7011 = vpop.f32.mrf.mxu0
        %v7012 = vadd.f32 %v6923, %v7011
        %7013 = vmatmul.bf16.gmra.mxu0 %v6697
        %v7014 = vpop.f32.mrf.mxu0
        %v7015 = vadd.f32 %v6926, %v7014
        %v7016 = vpop.f32.mrf.mxu0
        %v7017 = vadd.f32 %v6928, %v7016
        %7018 = vmatmul.bf16.gmra.mxu0 %v6701
        %v7019 = vpop.f32.mrf.mxu0
        %v7020 = vadd.f32 %v6931, %v7019
        %v7021 = vpop.f32.mrf.mxu0
        %v7022 = vadd.f32 %v6933, %v7021
        %7023 = vmatmul.bf16.gmra.mxu0 %v6705
        %v7024 = vpop.f32.mrf.mxu0
        %v7025 = vadd.f32 %v6936, %v7024
        %v7026 = vpop.f32.mrf.mxu0
        %v7027 = vadd.f32 %v6938, %v7026
        %7028 = vmatmul.bf16.gmra.mxu0 %v6709
        %v7029 = vpop.f32.mrf.mxu0
        %v7030 = vadd.f32 %v6941, %v7029
        %v7031 = vpop.f32.mrf.mxu0
        %v7032 = vadd.f32 %v6943, %v7031
        %7033 = vmatmul.bf16.gmra.mxu0 %v6713
        %v7034 = vpop.f32.mrf.mxu0
        %v7035 = vadd.f32 %v6946, %v7034
        %v7036 = vpop.f32.mrf.mxu0
        %v7037 = vadd.f32 %v6948, %v7036
        %7038 = vmatmul.bf16.gmra.mxu0 %v6717
        %v7039 = vpop.f32.mrf.mxu0
        %v7040 = vadd.f32 %v6951, %v7039
        %v7041 = vpop.f32.mrf.mxu0
        %v7042 = vadd.f32 %v6953, %v7041
        %7043 = vmatmul.bf16.gmra.mxu0 %v6721
        %v7044 = vpop.f32.mrf.mxu0
        %v7045 = vadd.f32 %v6956, %v7044
        %v7046 = vpop.f32.mrf.mxu0
        %v7047 = vadd.f32 %v6958, %v7046
        %7048 = vmatmul.bf16.gmra.mxu0 %v6725
        %v7049 = vpop.f32.mrf.mxu0
        %v7050 = vadd.f32 %v6961, %v7049
        %v7051 = vpop.f32.mrf.mxu0
        %v7052 = vadd.f32 %v6963, %v7051
        %7053 = vmatmul.bf16.gmra.mxu0 %v6729
        %v7054 = vpop.f32.mrf.mxu0
        %v7055 = vadd.f32 %v6966, %v7054
        %v7056 = vpop.f32.mrf.mxu0
        %v7057 = vadd.f32 %v6968, %v7056
        %7058 = vmatmul.bf16.gmra.mxu0 %v6733
        %v7059 = vpop.f32.mrf.mxu0
        %v7060 = vadd.f32 %v6971, %v7059
        %v7061 = vpop.f32.mrf.mxu0
        %v7062 = vadd.f32 %v6973, %v7061
        %7063 = vmatmul.bf16.gmra.mxu0 %v6737
        %v7064 = vpop.f32.mrf.mxu0
        %v7065 = vadd.f32 %v6976, %v7064
        %v7066 = vpop.f32.mrf.mxu0
        %v7067 = vadd.f32 %v6978, %v7066
        %7068 = vmatmul.bf16.gmra.mxu0 %v6741
        %v7069 = vpop.f32.mrf.mxu0
        %v7070 = vadd.f32 %v6981, %v7069
        %v7071 = vpop.f32.mrf.mxu0
        %v7072 = vadd.f32 %v6983, %v7071
        %7073 = vdwg.mxu0
        %7074 = vmatpush.bf16.msra.mxu0 %v6262
        %7075 = vmatpush.bf16.msra.mxu0 %v6261
        %7076 = vmatpush.bf16.msra.mxu0 %v6260
        %7077 = vmatpush.bf16.msra.mxu0 %v6259
        %7078 = vmatpush.bf16.msra.mxu0 %v6258
        %7079 = vmatpush.bf16.msra.mxu0 %v6257
        %7080 = vmatpush.bf16.msra.mxu0 %v6256
        %7081 = vmatpush.bf16.msra.mxu0 %v6255
        %7082 = vmatmul.bf16.gmra.mxu0 %v6682
        %v7083 = vpop.f32.mrf.mxu0
        %v7084 = vadd.f32 %v6995, %v7083
        %v7085 = vpop.f32.mrf.mxu0
        %v7086 = vadd.f32 %v6997, %v7085
        %7087 = vmatmul.bf16.gmra.mxu0 %v6686
        %v7088 = vpop.f32.mrf.mxu0
        %v7089 = vadd.f32 %v7000, %v7088
        %v7090 = vpop.f32.mrf.mxu0
        %v7091 = vadd.f32 %v7002, %v7090
        %7092 = vmatmul.bf16.gmra.mxu0 %v6690
        %v7093 = vpop.f32.mrf.mxu0
        %v7094 = vadd.f32 %v7005, %v7093
        %v7095 = vpop.f32.mrf.mxu0
        %v7096 = vadd.f32 %v7007, %v7095
        %7097 = vmatmul.bf16.gmra.mxu0 %v6694
        %v7098 = vpop.f32.mrf.mxu0
        %v7099 = vadd.f32 %v7010, %v7098
        %v7100 = vpop.f32.mrf.mxu0
        %v7101 = vadd.f32 %v7012, %v7100
        %7102 = vmatmul.bf16.gmra.mxu0 %v6698
        %v7103 = vpop.f32.mrf.mxu0
        %v7104 = vadd.f32 %v7015, %v7103
        %v7105 = vpop.f32.mrf.mxu0
        %v7106 = vadd.f32 %v7017, %v7105
        %7107 = vmatmul.bf16.gmra.mxu0 %v6702
        %v7108 = vpop.f32.mrf.mxu0
        %v7109 = vadd.f32 %v7020, %v7108
        %v7110 = vpop.f32.mrf.mxu0
        %v7111 = vadd.f32 %v7022, %v7110
        %7112 = vmatmul.bf16.gmra.mxu0 %v6706
        %v7113 = vpop.f32.mrf.mxu0
        %v7114 = vadd.f32 %v7025, %v7113
        %v7115 = vpop.f32.mrf.mxu0
        %v7116 = vadd.f32 %v7027, %v7115
        %7117 = vmatmul.bf16.gmra.mxu0 %v6710
        %v7118 = vpop.f32.mrf.mxu0
        %v7119 = vadd.f32 %v7030, %v7118
        %v7120 = vpop.f32.mrf.mxu0
        %v7121 = vadd.f32 %v7032, %v7120
        %7122 = vmatmul.bf16.gmra.mxu0 %v6714
        %v7123 = vpop.f32.mrf.mxu0
        %v7124 = vadd.f32 %v7035, %v7123
        %v7125 = vpop.f32.mrf.mxu0
        %v7126 = vadd.f32 %v7037, %v7125
        %7127 = vmatmul.bf16.gmra.mxu0 %v6718
        %v7128 = vpop.f32.mrf.mxu0
        %v7129 = vadd.f32 %v7040, %v7128
        %v7130 = vpop.f32.mrf.mxu0
        %v7131 = vadd.f32 %v7042, %v7130
        %7132 = vmatmul.bf16.gmra.mxu0 %v6722
        %v7133 = vpop.f32.mrf.mxu0
        %v7134 = vadd.f32 %v7045, %v7133
        %v7135 = vpop.f32.mrf.mxu0
        %v7136 = vadd.f32 %v7047, %v7135
        %7137 = vmatmul.bf16.gmra.mxu0 %v6726
        %v7138 = vpop.f32.mrf.mxu0
        %v7139 = vadd.f32 %v7050, %v7138
        %v7140 = vpop.f32.mrf.mxu0
        %v7141 = vadd.f32 %v7052, %v7140
        %7142 = vmatmul.bf16.gmra.mxu0 %v6730
        %v7143 = vpop.f32.mrf.mxu0
        %v7144 = vadd.f32 %v7055, %v7143
        %v7145 = vpop.f32.mrf.mxu0
        %v7146 = vadd.f32 %v7057, %v7145
        %7147 = vmatmul.bf16.gmra.mxu0 %v6734
        %v7148 = vpop.f32.mrf.mxu0
        %v7149 = vadd.f32 %v7060, %v7148
        %v7150 = vpop.f32.mrf.mxu0
        %v7151 = vadd.f32 %v7062, %v7150
        %7152 = vmatmul.bf16.gmra.mxu0 %v6738
        %v7153 = vpop.f32.mrf.mxu0
        %v7154 = vadd.f32 %v7065, %v7153
        %v7155 = vpop.f32.mrf.mxu0
        %v7156 = vadd.f32 %v7067, %v7155
        %7157 = vmatmul.bf16.gmra.mxu0 %v6742
        %v7158 = vpop.f32.mrf.mxu0
        %v7159 = vadd.f32 %v7070, %v7158
        %v7160 = vpop.f32.mrf.mxu0
        %v7161 = vadd.f32 %v7072, %v7160
        %7162 = vdwg.mxu0
        %v7163 = vtanh.pop %v7084
        %v7164 = vtanh.pop %v7086
        %v7165 = vtanh.pop %v7089
        %v7166 = vtanh.pop %v7091
        %v7167 = vtanh.pop %v7094
        %v7168 = vtanh.pop %v7096
        %v7169 = vtanh.pop %v7099
        %v7170 = vtanh.pop %v7101
        %v7171 = vtanh.pop %v7104
        %v7172 = vtanh.pop %v7106
        %v7173 = vtanh.pop %v7109
        %v7174 = vtanh.pop %v7111
        %v7175 = vtanh.pop %v7114
        %v7176 = vtanh.pop %v7116
        %v7177 = vtanh.pop %v7119
        %v7178 = vtanh.pop %v7121
        %v7179 = vtanh.pop %v7124
        %v7180 = vtanh.pop %v7126
        %v7181 = vtanh.pop %v7129
        %v7182 = vtanh.pop %v7131
        %v7183 = vtanh.pop %v7134
        %v7184 = vtanh.pop %v7136
        %v7185 = vtanh.pop %v7139
        %v7186 = vtanh.pop %v7141
        %v7187 = vtanh.pop %v7144
        %v7188 = vtanh.pop %v7146
        %v7189 = vtanh.pop %v7149
        %v7190 = vtanh.pop %v7151
        %v7191 = vtanh.pop %v7154
        %v7192 = vtanh.pop %v7156
        %v7193 = vtanh.pop %v7159
        %v7194 = vtanh.pop %v7161
        %v7195 = vtanh.pop %v5448
        %v7196 = vtanh.pop %v5450
        %v7197 = vtanh.pop %v5453
        %v7198 = vtanh.pop %v5455
        %v7199 = vtanh.pop %v5458
        %v7200 = vtanh.pop %v5460
        %v7201 = vtanh.pop %v5463
        %v7202 = vtanh.pop %v5465
        %v7203 = vtanh.pop %v5468
        %v7204 = vtanh.pop %v5470
        %v7205 = vtanh.pop %v5473
        %v7206 = vtanh.pop %v5475
        %v7207 = vtanh.pop %v5478
        %v7208 = vtanh.pop %v5480
        %v7209 = vtanh.pop %v5483
        %v7210 = vtanh.pop %v5485
        %v7211 = vtanh.pop %v5488
        %v7212 = vtanh.pop %v5490
        %v7213 = vtanh.pop %v5493
        %v7214 = vtanh.pop %v5495
        %v7215 = vtanh.pop %v5498
        %v7216 = vtanh.pop %v5500
        %v7217 = vtanh.pop %v5503
        %v7218 = vtanh.pop %v5505
        %v7219 = vtanh.pop %v5508
        %v7220 = vtanh.pop %v5510
        %v7221 = vtanh.pop %v5513
        %v7222 = vtanh.pop %v5515
        %v7223 = vtanh.pop %v5518
        %v7224 = vtanh.pop %v5520
        %v7225 = vtanh.pop %v5523
        %v7226 = vtanh.pop %v5525
        %v7227 = vsub.f32 1.0, %v5655
        %v7228 = vsub.f32 1.0, %v5656
        %v7229 = vsub.f32 1.0, %v5657
        %v7230 = vsub.f32 1.0, %v5658
        %v7231 = vsub.f32 1.0, %v5659
        %v7232 = vsub.f32 1.0, %v5660
        %v7233 = vsub.f32 1.0, %v5661
        %v7234 = vsub.f32 1.0, %v5662
        %v7235 = vsub.f32 1.0, %v5663
        %v7236 = vsub.f32 1.0, %v5664
        %v7237 = vsub.f32 1.0, %v5665
        %v7238 = vsub.f32 1.0, %v5666
        %v7239 = vsub.f32 1.0, %v5667
        %v7240 = vsub.f32 1.0, %v5668
        %v7241 = vsub.f32 1.0, %v5669
        %v7242 = vsub.f32 1.0, %v5670
        %v7243 = vsub.f32 1.0, %v5671
        %v7244 = vsub.f32 1.0, %v5672
        %v7245 = vsub.f32 1.0, %v5673
        %v7246 = vsub.f32 1.0, %v5674
        %v7247 = vsub.f32 1.0, %v5675
        %v7248 = vsub.f32 1.0, %v5676
        %v7249 = vsub.f32 1.0, %v5677
        %v7250 = vsub.f32 1.0, %v5678
        %v7251 = vsub.f32 1.0, %v5679
        %v7252 = vsub.f32 1.0, %v5680
        %v7253 = vsub.f32 1.0, %v5681
        %v7254 = vsub.f32 1.0, %v5682
        %v7255 = vsub.f32 1.0, %v5683
        %v7256 = vsub.f32 1.0, %v5684
        %v7257 = vsub.f32 1.0, %v5685
        %v7258 = vsub.f32 1.0, %v5686
        %v7259 = vmul.f32 %v7227, %v495
        %v7260 = vmul.f32 %v7228, %v496
        %v7261 = vmul.f32 %v7229, %v497
        %v7262 = vmul.f32 %v7230, %v498
        %v7263 = vmul.f32 %v7231, %v499
        %v7264 = vmul.f32 %v7232, %v500
        %v7265 = vmul.f32 %v7233, %v501
        %v7266 = vmul.f32 %v7234, %v502
        %v7267 = vmul.f32 %v7235, %v503
        %v7268 = vmul.f32 %v7236, %v504
        %v7269 = vmul.f32 %v7237, %v505
        %v7270 = vmul.f32 %v7238, %v506
        %v7271 = vmul.f32 %v7239, %v507
        %v7272 = vmul.f32 %v7240, %v508
        %v7273 = vmul.f32 %v7241, %v509
        %v7274 = vmul.f32 %v7242, %v510
        %v7275 = vmul.f32 %v7243, %v511
        %v7276 = vmul.f32 %v7244, %v512
        %v7277 = vmul.f32 %v7245, %v513
        %v7278 = vmul.f32 %v7246, %v514
        %v7279 = vmul.f32 %v7247, %v515
        %v7280 = vmul.f32 %v7248, %v516
        %v7281 = vmul.f32 %v7249, %v517
        %v7282 = vmul.f32 %v7250, %v518
        %v7283 = vmul.f32 %v7251, %v519
        %v7284 = vmul.f32 %v7252, %v520
        %v7285 = vmul.f32 %v7253, %v521
        %v7286 = vmul.f32 %v7254, %v522
        %v7287 = vmul.f32 %v7255, %v523
        %v7288 = vmul.f32 %v7256, %v524
        %v7289 = vmul.f32 %v7257, %v525
        %v7290 = vmul.f32 %v7258, %v526
        %v7291 = vmul.f32 %v5655, %v7163
        %v7292 = vmul.f32 %v5656, %v7164
        %v7293 = vmul.f32 %v5657, %v7165
        %v7294 = vmul.f32 %v5658, %v7166
        %v7295 = vmul.f32 %v5659, %v7167
        %v7296 = vmul.f32 %v5660, %v7168
        %v7297 = vmul.f32 %v5661, %v7169
        %v7298 = vmul.f32 %v5662, %v7170
        %v7299 = vmul.f32 %v5663, %v7171
        %v7300 = vmul.f32 %v5664, %v7172
        %v7301 = vmul.f32 %v5665, %v7173
        %v7302 = vmul.f32 %v5666, %v7174
        %v7303 = vmul.f32 %v5667, %v7175
        %v7304 = vmul.f32 %v5668, %v7176
        %v7305 = vmul.f32 %v5669, %v7177
        %v7306 = vmul.f32 %v5670, %v7178
        %v7307 = vmul.f32 %v5671, %v7179
        %v7308 = vmul.f32 %v5672, %v7180
        %v7309 = vmul.f32 %v5673, %v7181
        %v7310 = vmul.f32 %v5674, %v7182
        %v7311 = vmul.f32 %v5675, %v7183
        %v7312 = vmul.f32 %v5676, %v7184
        %v7313 = vmul.f32 %v5677, %v7185
        %v7314 = vmul.f32 %v5678, %v7186
        %v7315 = vmul.f32 %v5679, %v7187
        %v7316 = vmul.f32 %v5680, %v7188
        %v7317 = vmul.f32 %v5681, %v7189
        %v7318 = vmul.f32 %v5682, %v7190
        %v7319 = vmul.f32 %v5683, %v7191
        %v7320 = vmul.f32 %v5684, %v7192
        %v7321 = vmul.f32 %v5685, %v7193
        %v7322 = vmul.f32 %v5686, %v7194
        %v7323 = vadd.f32 %v7259, %v7291
        %v7324 = vadd.f32 %v7260, %v7292
        %v7325 = vadd.f32 %v7261, %v7293
        %v7326 = vadd.f32 %v7262, %v7294
        %v7327 = vadd.f32 %v7263, %v7295
        %v7328 = vadd.f32 %v7264, %v7296
        %v7329 = vadd.f32 %v7265, %v7297
        %v7330 = vadd.f32 %v7266, %v7298
        %v7331 = vadd.f32 %v7267, %v7299
        %v7332 = vadd.f32 %v7268, %v7300
        %v7333 = vadd.f32 %v7269, %v7301
        %v7334 = vadd.f32 %v7270, %v7302
        %v7335 = vadd.f32 %v7271, %v7303
        %v7336 = vadd.f32 %v7272, %v7304
        %v7337 = vadd.f32 %v7273, %v7305
        %v7338 = vadd.f32 %v7274, %v7306
        %v7339 = vadd.f32 %v7275, %v7307
        %v7340 = vadd.f32 %v7276, %v7308
        %v7341 = vadd.f32 %v7277, %v7309
        %v7342 = vadd.f32 %v7278, %v7310
        %v7343 = vadd.f32 %v7279, %v7311
        %v7344 = vadd.f32 %v7280, %v7312
        %v7345 = vadd.f32 %v7281, %v7313
        %v7346 = vadd.f32 %v7282, %v7314
        %v7347 = vadd.f32 %v7283, %v7315
        %v7348 = vadd.f32 %v7284, %v7316
        %v7349 = vadd.f32 %v7285, %v7317
        %v7350 = vadd.f32 %v7286, %v7318
        %v7351 = vadd.f32 %v7287, %v7319
        %v7352 = vadd.f32 %v7288, %v7320
        %v7353 = vadd.f32 %v7289, %v7321
        %v7354 = vadd.f32 %v7290, %v7322
        %v7355 = vpack.c.bf16 %v7323, %v7323
        %v7356 = vpack.c.bf16 %v7324, %v7324
        %v7357 = vpack.c.bf16 %v7325, %v7325
        %v7358 = vpack.c.bf16 %v7326, %v7326
        %v7359 = vpack.c.bf16 %v7327, %v7327
        %v7360 = vpack.c.bf16 %v7328, %v7328
        %v7361 = vpack.c.bf16 %v7329, %v7329
        %v7362 = vpack.c.bf16 %v7330, %v7330
        %v7363 = vpack.c.bf16 %v7331, %v7331
        %v7364 = vpack.c.bf16 %v7332, %v7332
        %v7365 = vpack.c.bf16 %v7333, %v7333
        %v7366 = vpack.c.bf16 %v7334, %v7334
        %v7367 = vpack.c.bf16 %v7335, %v7335
        %v7368 = vpack.c.bf16 %v7336, %v7336
        %v7369 = vpack.c.bf16 %v7337, %v7337
        %v7370 = vpack.c.bf16 %v7338, %v7338
        %v7371 = vpack.c.bf16 %v7339, %v7339
        %v7372 = vpack.c.bf16 %v7340, %v7340
        %v7373 = vpack.c.bf16 %v7341, %v7341
        %v7374 = vpack.c.bf16 %v7342, %v7342
        %v7375 = vpack.c.bf16 %v7343, %v7343
        %v7376 = vpack.c.bf16 %v7344, %v7344
        %v7377 = vpack.c.bf16 %v7345, %v7345
        %v7378 = vpack.c.bf16 %v7346, %v7346
        %v7379 = vpack.c.bf16 %v7347, %v7347
        %v7380 = vpack.c.bf16 %v7348, %v7348
        %v7381 = vpack.c.bf16 %v7349, %v7349
        %v7382 = vpack.c.bf16 %v7350, %v7350
        %v7383 = vpack.c.bf16 %v7351, %v7351
        %v7384 = vpack.c.bf16 %v7352, %v7352
        %v7385 = vpack.c.bf16 %v7353, %v7353
        %v7386 = vpack.c.bf16 %v7354, %v7354
        %7387 = vst [vmem:[%s366] sm:$0xf] %v7355
        %7388 = vst [vmem:[%s366 + $0x4] sm:$0xf] %v7356
        %7389 = vst [vmem:[%s366 + $0x8] sm:$0xf] %v7357
        %7390 = vst [vmem:[%s366 + $0xc] sm:$0xf] %v7358
        %7391 = vst [vmem:[%s366 + $0x10] sm:$0xf] %v7359
        %7392 = vst [vmem:[%s366 + $0x14] sm:$0xf] %v7360
        %7393 = vst [vmem:[%s366 + $0x18] sm:$0xf] %v7361
        %7394 = vst [vmem:[%s366 + $0x1c] sm:$0xf] %v7362
        %7395 = vst [vmem:[%s366 + $0x20] sm:$0xf] %v7363
        %7396 = vst [vmem:[%s366 + $0x24] sm:$0xf] %v7364
        %7397 = vst [vmem:[%s366 + $0x28] sm:$0xf] %v7365
        %7398 = vst [vmem:[%s366 + $0x2c] sm:$0xf] %v7366
        %7399 = vst [vmem:[%s366 + $0x30] sm:$0xf] %v7367
        %7400 = vst [vmem:[%s366 + $0x34] sm:$0xf] %v7368
        %7401 = vst [vmem:[%s366 + $0x38] sm:$0xf] %v7369
        %7402 = vst [vmem:[%s366 + $0x3c] sm:$0xf] %v7370
        %7403 = vst [vmem:[%s366 + $0x40] sm:$0xf] %v7371
        %7404 = vst [vmem:[%s366 + $0x44] sm:$0xf] %v7372
        %7405 = vst [vmem:[%s366 + $0x48] sm:$0xf] %v7373
        %7406 = vst [vmem:[%s366 + $0x4c] sm:$0xf] %v7374
        %7407 = vst [vmem:[%s366 + $0x50] sm:$0xf] %v7375
        %7408 = vst [vmem:[%s366 + $0x54] sm:$0xf] %v7376
        %7409 = vst [vmem:[%s366 + $0x58] sm:$0xf] %v7377
        %7410 = vst [vmem:[%s366 + $0x5c] sm:$0xf] %v7378
        %7411 = vst [vmem:[%s366 + $0x60] sm:$0xf] %v7379
        %7412 = vst [vmem:[%s366 + $0x64] sm:$0xf] %v7380
        %7413 = vst [vmem:[%s366 + $0x68] sm:$0xf] %v7381
        %7414 = vst [vmem:[%s366 + $0x6c] sm:$0xf] %v7382
        %7415 = vst [vmem:[%s366 + $0x70] sm:$0xf] %v7383
        %7416 = vst [vmem:[%s366 + $0x74] sm:$0xf] %v7384
        %7417 = vst [vmem:[%s366 + $0x78] sm:$0xf] %v7385
        %7418 = vst [vmem:[%s366 + $0x7c] sm:$0xf] %v7386
        %v7419 = vsub.f32 1.0, %v5975
        %v7420 = vsub.f32 1.0, %v5976
        %v7421 = vsub.f32 1.0, %v5977
        %v7422 = vsub.f32 1.0, %v5978
        %v7423 = vsub.f32 1.0, %v5979
        %v7424 = vsub.f32 1.0, %v5980
        %v7425 = vsub.f32 1.0, %v5981
        %v7426 = vsub.f32 1.0, %v5982
        %v7427 = vsub.f32 1.0, %v5983
        %v7428 = vsub.f32 1.0, %v5984
        %v7429 = vsub.f32 1.0, %v5985
        %v7430 = vsub.f32 1.0, %v5986
        %v7431 = vsub.f32 1.0, %v5987
        %v7432 = vsub.f32 1.0, %v5988
        %v7433 = vsub.f32 1.0, %v5989
        %v7434 = vsub.f32 1.0, %v5990
        %v7435 = vsub.f32 1.0, %v5991
        %v7436 = vsub.f32 1.0, %v5992
        %v7437 = vsub.f32 1.0, %v5993
        %v7438 = vsub.f32 1.0, %v5994
        %v7439 = vsub.f32 1.0, %v5995
        %v7440 = vsub.f32 1.0, %v5996
        %v7441 = vsub.f32 1.0, %v5997
        %v7442 = vsub.f32 1.0, %v5998
        %v7443 = vsub.f32 1.0, %v5999
        %v7444 = vsub.f32 1.0, %v6000
        %v7445 = vsub.f32 1.0, %v6001
        %v7446 = vsub.f32 1.0, %v6002
        %v7447 = vsub.f32 1.0, %v6003
        %v7448 = vsub.f32 1.0, %v6004
        %v7449 = vsub.f32 1.0, %v6005
        %v7450 = vsub.f32 1.0, %v6006
        %v7451 = vmul.f32 %v7419, %v527
        %v7452 = vmul.f32 %v7420, %v528
        %v7453 = vmul.f32 %v7421, %v529
        %v7454 = vmul.f32 %v7422, %v530
        %v7455 = vmul.f32 %v7423, %v531
        %v7456 = vmul.f32 %v7424, %v532
        %v7457 = vmul.f32 %v7425, %v533
        %v7458 = vmul.f32 %v7426, %v534
        %v7459 = vmul.f32 %v7427, %v535
        %v7460 = vmul.f32 %v7428, %v536
        %v7461 = vmul.f32 %v7429, %v537
        %v7462 = vmul.f32 %v7430, %v538
        %v7463 = vmul.f32 %v7431, %v539
        %v7464 = vmul.f32 %v7432, %v540
        %v7465 = vmul.f32 %v7433, %v541
        %v7466 = vmul.f32 %v7434, %v542
        %v7467 = vmul.f32 %v7435, %v543
        %v7468 = vmul.f32 %v7436, %v544
        %v7469 = vmul.f32 %v7437, %v545
        %v7470 = vmul.f32 %v7438, %v546
        %v7471 = vmul.f32 %v7439, %v547
        %v7472 = vmul.f32 %v7440, %v548
        %v7473 = vmul.f32 %v7441, %v549
        %v7474 = vmul.f32 %v7442, %v550
        %v7475 = vmul.f32 %v7443, %v551
        %v7476 = vmul.f32 %v7444, %v552
        %v7477 = vmul.f32 %v7445, %v553
        %v7478 = vmul.f32 %v7446, %v554
        %v7479 = vmul.f32 %v7447, %v555
        %v7480 = vmul.f32 %v7448, %v556
        %v7481 = vmul.f32 %v7449, %v557
        %v7482 = vmul.f32 %v7450, %v558
        %v7483 = vmul.f32 %v5975, %v7195
        %v7484 = vmul.f32 %v5976, %v7196
        %v7485 = vmul.f32 %v5977, %v7197
        %v7486 = vmul.f32 %v5978, %v7198
        %v7487 = vmul.f32 %v5979, %v7199
        %v7488 = vmul.f32 %v5980, %v7200
        %v7489 = vmul.f32 %v5981, %v7201
        %v7490 = vmul.f32 %v5982, %v7202
        %v7491 = vmul.f32 %v5983, %v7203
        %v7492 = vmul.f32 %v5984, %v7204
        %v7493 = vmul.f32 %v5985, %v7205
        %v7494 = vmul.f32 %v5986, %v7206
        %v7495 = vmul.f32 %v5987, %v7207
        %v7496 = vmul.f32 %v5988, %v7208
        %v7497 = vmul.f32 %v5989, %v7209
        %v7498 = vmul.f32 %v5990, %v7210
        %v7499 = vmul.f32 %v5991, %v7211
        %v7500 = vmul.f32 %v5992, %v7212
        %v7501 = vmul.f32 %v5993, %v7213
        %v7502 = vmul.f32 %v5994, %v7214
        %v7503 = vmul.f32 %v5995, %v7215
        %v7504 = vmul.f32 %v5996, %v7216
        %v7505 = vmul.f32 %v5997, %v7217
        %v7506 = vmul.f32 %v5998, %v7218
        %v7507 = vmul.f32 %v5999, %v7219
        %v7508 = vmul.f32 %v6000, %v7220
        %v7509 = vmul.f32 %v6001, %v7221
        %v7510 = vmul.f32 %v6002, %v7222
        %v7511 = vmul.f32 %v6003, %v7223
        %v7512 = vmul.f32 %v6004, %v7224
        %v7513 = vmul.f32 %v6005, %v7225
        %v7514 = vmul.f32 %v6006, %v7226
        %v7515 = vadd.f32 %v7451, %v7483
        %v7516 = vadd.f32 %v7452, %v7484
        %v7517 = vadd.f32 %v7453, %v7485
        %v7518 = vadd.f32 %v7454, %v7486
        %v7519 = vadd.f32 %v7455, %v7487
        %v7520 = vadd.f32 %v7456, %v7488
        %v7521 = vadd.f32 %v7457, %v7489
        %v7522 = vadd.f32 %v7458, %v7490
        %v7523 = vadd.f32 %v7459, %v7491
        %v7524 = vadd.f32 %v7460, %v7492
        %v7525 = vadd.f32 %v7461, %v7493
        %v7526 = vadd.f32 %v7462, %v7494
        %v7527 = vadd.f32 %v7463, %v7495
        %v7528 = vadd.f32 %v7464, %v7496
        %v7529 = vadd.f32 %v7465, %v7497
        %v7530 = vadd.f32 %v7466, %v7498
        %v7531 = vadd.f32 %v7467, %v7499
        %v7532 = vadd.f32 %v7468, %v7500
        %v7533 = vadd.f32 %v7469, %v7501
        %v7534 = vadd.f32 %v7470, %v7502
        %v7535 = vadd.f32 %v7471, %v7503
        %v7536 = vadd.f32 %v7472, %v7504
        %v7537 = vadd.f32 %v7473, %v7505
        %v7538 = vadd.f32 %v7474, %v7506
        %v7539 = vadd.f32 %v7475, %v7507
        %v7540 = vadd.f32 %v7476, %v7508
        %v7541 = vadd.f32 %v7477, %v7509
        %v7542 = vadd.f32 %v7478, %v7510
        %v7543 = vadd.f32 %v7479, %v7511
        %v7544 = vadd.f32 %v7480, %v7512
        %v7545 = vadd.f32 %v7481, %v7513
        %v7546 = vadd.f32 %v7482, %v7514
        %v7547 = vpack.c.bf16 %v7515, %v7515
        %v7548 = vpack.c.bf16 %v7516, %v7516
        %v7549 = vpack.c.bf16 %v7517, %v7517
        %v7550 = vpack.c.bf16 %v7518, %v7518
        %v7551 = vpack.c.bf16 %v7519, %v7519
        %v7552 = vpack.c.bf16 %v7520, %v7520
        %v7553 = vpack.c.bf16 %v7521, %v7521
        %v7554 = vpack.c.bf16 %v7522, %v7522
        %v7555 = vpack.c.bf16 %v7523, %v7523
        %v7556 = vpack.c.bf16 %v7524, %v7524
        %v7557 = vpack.c.bf16 %v7525, %v7525
        %v7558 = vpack.c.bf16 %v7526, %v7526
        %v7559 = vpack.c.bf16 %v7527, %v7527
        %v7560 = vpack.c.bf16 %v7528, %v7528
        %v7561 = vpack.c.bf16 %v7529, %v7529
        %v7562 = vpack.c.bf16 %v7530, %v7530
        %v7563 = vpack.c.bf16 %v7531, %v7531
        %v7564 = vpack.c.bf16 %v7532, %v7532
        %v7565 = vpack.c.bf16 %v7533, %v7533
        %v7566 = vpack.c.bf16 %v7534, %v7534
        %v7567 = vpack.c.bf16 %v7535, %v7535
        %v7568 = vpack.c.bf16 %v7536, %v7536
        %v7569 = vpack.c.bf16 %v7537, %v7537
        %v7570 = vpack.c.bf16 %v7538, %v7538
        %v7571 = vpack.c.bf16 %v7539, %v7539
        %v7572 = vpack.c.bf16 %v7540, %v7540
        %v7573 = vpack.c.bf16 %v7541, %v7541
        %v7574 = vpack.c.bf16 %v7542, %v7542
        %v7575 = vpack.c.bf16 %v7543, %v7543
        %v7576 = vpack.c.bf16 %v7544, %v7544
        %v7577 = vpack.c.bf16 %v7545, %v7545
        %v7578 = vpack.c.bf16 %v7546, %v7546
        %7579 = vst [vmem:[%s366 + $0x80] sm:$0xf] %v7547
        %7580 = vst [vmem:[%s366 + $0x84] sm:$0xf] %v7548
        %7581 = vst [vmem:[%s366 + $0x88] sm:$0xf] %v7549
        %7582 = vst [vmem:[%s366 + $0x8c] sm:$0xf] %v7550
        %7583 = vst [vmem:[%s366 + $0x90] sm:$0xf] %v7551
        %7584 = vst [vmem:[%s366 + $0x94] sm:$0xf] %v7552
        %7585 = vst [vmem:[%s366 + $0x98] sm:$0xf] %v7553
        %7586 = vst [vmem:[%s366 + $0x9c] sm:$0xf] %v7554
        %7587 = vst [vmem:[%s366 + $0xa0] sm:$0xf] %v7555
        %7588 = vst [vmem:[%s366 + $0xa4] sm:$0xf] %v7556
        %7589 = vst [vmem:[%s366 + $0xa8] sm:$0xf] %v7557
        %7590 = vst [vmem:[%s366 + $0xac] sm:$0xf] %v7558
        %7591 = vst [vmem:[%s366 + $0xb0] sm:$0xf] %v7559
        %7592 = vst [vmem:[%s366 + $0xb4] sm:$0xf] %v7560
        %7593 = vst [vmem:[%s366 + $0xb8] sm:$0xf] %v7561
        %7594 = vst [vmem:[%s366 + $0xbc] sm:$0xf] %v7562
        %7595 = vst [vmem:[%s366 + $0xc0] sm:$0xf] %v7563
        %7596 = vst [vmem:[%s366 + $0xc4] sm:$0xf] %v7564
        %7597 = vst [vmem:[%s366 + $0xc8] sm:$0xf] %v7565
        %7598 = vst [vmem:[%s366 + $0xcc] sm:$0xf] %v7566
        %7599 = vst [vmem:[%s366 + $0xd0] sm:$0xf] %v7567
        %7600 = vst [vmem:[%s366 + $0xd4] sm:$0xf] %v7568
        %7601 = vst [vmem:[%s366 + $0xd8] sm:$0xf] %v7569
        %7602 = vst [vmem:[%s366 + $0xdc] sm:$0xf] %v7570
        %7603 = vst [vmem:[%s366 + $0xe0] sm:$0xf] %v7571
        %7604 = vst [vmem:[%s366 + $0xe4] sm:$0xf] %v7572
        %7605 = vst [vmem:[%s366 + $0xe8] sm:$0xf] %v7573
        %7606 = vst [vmem:[%s366 + $0xec] sm:$0xf] %v7574
        %7607 = vst [vmem:[%s366 + $0xf0] sm:$0xf] %v7575
        %7608 = vst [vmem:[%s366 + $0xf4] sm:$0xf] %v7576
        %7609 = vst [vmem:[%s366 + $0xf8] sm:$0xf] %v7577
        %7610 = vst [vmem:[%s366 + $0xfc] sm:$0xf] %v7578
        %s7611 = sand.u32 %s189, 1
        %s7612 = scalar_lea.sflag [#allocation4], %s7611
        %s7613 = sand.u32 %s189, 1
        %s7614 = smul.addr %s7613, 256
        %s7615 = scalar_lea.vmem [#allocation10], %s7614
        // Predicated region
        $region61: #{tpu_custom_call.1} parent=43 // pred_check
          %p7616 = pneg %p199
        $region62: #{tpu_custom_call.1} parent=43 // pred_check_branch
          %7618 = sbr.rel (%p7616) target = $region64
        $region63: #{tpu_custom_call.1} parent=43 // pred_region
          %7620 = vsyncadd %s7612, 0
          %s7621 = smul.addr %s31, 128
          %s7622 = sadd.s32 %s32, %s7621
          %s7623 = smul.addr %s7622, 4
          %s7624 = scalar_lea.hbm %s6, %s7623
          %s7625 = sshll.u32 %s7615, 4
          %s7626 = int_to_ptr.vmem [resolvable:$true] %s7625
          %s7627 = sshll.u32 %s7624, 4
          %s7628 = int_to_ptr.hbm [resolvable:$true] %s7627
          %7633 = dma.vmem_to_hbm [thread:$0]  %s7626, 4096, %s7628, %s7612, 64, 128, 4
        $region64: #{tpu_custom_call.1} parent=43 // pred_fallthru
          _
      $region44: #{tpu_custom_call.1} parent=5 // pred_fallthru
        _
      %p7634 = scmp.le.s32.totalorder 2, %s22
      // Predicated region
      $region65: #{tpu_custom_call.1} parent=5 // pred_check
        %p7635 = pneg %p7634
      $region66: #{tpu_custom_call.1} parent=5 // pred_check_branch
        %7637 = sbr.rel (%p7635) target = $region68
      $region67: #{tpu_custom_call.1} parent=5 // pred_region
        %s7638 = ssub.s32 %s22, 2
        // Predicated region
        $region69: #{tpu_custom_call.1} parent=67 // pred_check
          %p7639 = pneg %p205
        $region70: #{tpu_custom_call.1} parent=67 // pred_check_branch
          %7641 = sbr.rel (%p7639) target = $region72
        $region71: #{tpu_custom_call.1} parent=67 // pred_region
          %s7642 = sand.u32 %s190, 1
          %s7643 = scalar_lea.sflag [#allocation4], %s7642
          %s7644 = sand.u32 %s190, 1
          %s7645 = smul.addr %s7644, 256
          %s7646 = scalar_lea.vmem [#allocation10], %s7645
          %7648 = dma.done %s7643, 4096
        $region72: #{tpu_custom_call.1} parent=67 // pred_fallthru
          _
      $region68: #{tpu_custom_call.1} parent=5 // pred_fallthru
        _
    $region6: #{tpu_custom_call.1} parent=1 // loop_footer
      %s26 = sadd.s32 1, %s22
    $region7: #{tpu_custom_call.1} parent=1 // loop_footer_branch
      %21 = sbr.rel target = $region3
    $region8: #{tpu_custom_call.1} parent=1 // loop_exit
      _
    %7649 = vsyncpa [#allocation3], 1
    %s7650 = scalar_lea.sflag [#allocation3], 1
    %7651 = vsyncpa %s7650, 1
    %7652 = vsyncpa [#allocation6], 1
    %s7653 = scalar_lea.sflag [#allocation6], 1
    %7654 = vsyncpa %s7653, 1
    %7655 = vsyncpa [#allocation9], 1
    %7656 = vsyncpa [#allocation4], 1
    %s7657 = scalar_lea.sflag [#allocation4], 1
    %7658 = vsyncpa %s7657, 1

</llo_original>
